<compile_context>
chip_gen: v6e
topology: v6e:2x2x1
jax: 0.10.0
libtpu: 0.0.40
codegen_flags: <defaults>
</compile_context>

<pallas_src>
import jax
import jax.numpy as jnp
import numpy as np
from jax import lax
from jax.experimental import pallas as pl
from jax.experimental.pallas import tpu as pltpu


def _rrb_kernel(x_ref, w1_ref, b1_ref, wa_ref, ba_ref, wb_ref,
                out_ref, pad1_ref, pad2_ref, col_ref):
    # x_ref:   (1, H, W, C)   bf16
    # w1_ref:  (C, C)         bf16      b1_ref: (1, C) f32
    # wa_ref:  (9*C, C)       bf16      ba_ref: (1, C) f32
    # wb_ref:  (9*C, C)       bf16
    # pad1/2:  (H+2, W+2, C)  f32  VMEM scratch (zero-padded h / t)
    # col:     (H*W, 9*C)     bf16 VMEM scratch (im2col matrix)
    _, H, W, C = x_ref.shape
    HW = H * W

    zrow = jnp.zeros((1, W + 2, C), jnp.float32)
    zcol = jnp.zeros((H + 2, 1, C), jnp.float32)

    def zero_halo(pref):
        # Interior is fully overwritten every step; only the border needs 0s.
        pref[0:1, :, :] = zrow
        pref[H + 1:H + 2, :, :] = zrow
        pref[:, 0:1, :] = zcol
        pref[:, W + 1:W + 2, :] = zcol

    def build_col(pref):
        # im2col: tap t = 3*dy + dx occupies channel block [t*C, (t+1)*C).
        for t in range(9):
            dy, dx = divmod(t, 3)
            win = pref[dy:dy + H, dx:dx + W, :].astype(jnp.bfloat16)
            col_ref[:, t * C:(t + 1) * C] = win.reshape(HW, C)

    # ---- 1x1 conv (+ bias): bf16 x bf16 -> f32 accumulate ------------------
    x2d = x_ref[0].reshape(HW, C)
    h = jnp.dot(x2d, w1_ref[...],
                preferred_element_type=jnp.float32) + b1_ref[...]

    # Park h in the padded scratch; re-read later for the residual so it does
    # not stay live in vregs across both 3x3 convolutions.
    zero_halo(pad1_ref)
    pad1_ref[1:H + 1, 1:W + 1, :] = h.reshape(H, W, C)

    # ---- 3x3 conv #1 (+ bias) + ReLU: single K=9C matmul -------------------
    build_col(pad1_ref)
    t1 = jnp.dot(col_ref[...], wa_ref[...],
                 preferred_element_type=jnp.float32) + ba_ref[...]
    t1 = jnp.maximum(t1, 0.0)

    zero_halo(pad2_ref)
    pad2_ref[1:H + 1, 1:W + 1, :] = t1.reshape(H, W, C)

    # ---- 3x3 conv #2 (no bias): single K=9C matmul --------------------------
    build_col(pad2_ref)
    y = jnp.dot(col_ref[...], wb_ref[...],
                preferred_element_type=jnp.float32)

    # ---- residual add + ReLU (h re-read from VMEM at full f32) --------------
    h_res = pad1_ref[1:H + 1, 1:W + 1, :].reshape(HW, C)
    out_ref[0] = jnp.maximum(h_res + y, 0.0).reshape(H, W, C).astype(out_ref.dtype)


def rrb_pallas(x_nchw, w1, b1, wa, ba, wb):
    """x_nchw: (N, C, H, W) float32. Weights: w1 (C,C) in->out, b1 (C,),
    wa/wb (3,3,C,C) HWIO, ba (C,). Returns (N, C, H, W) float32."""
    N, C, H, W = x_nchw.shape
    x = jnp.transpose(x_nchw, (0, 2, 3, 1)).astype(jnp.bfloat16)   # NHWC bf16

    # One-time weight prep: bf16 MXU operands, im2col (9C, C) layout.
    w1_bf = w1.astype(jnp.bfloat16)
    wa_2d = wa.reshape(9 * C, C).astype(jnp.bfloat16)   # rows: (dy, dx, cin)
    wb_2d = wb.reshape(9 * C, C).astype(jnp.bfloat16)
    b1_2d = b1.reshape(1, C).astype(jnp.float32)
    ba_2d = ba.reshape(1, C).astype(jnp.float32)

    out = pl.pallas_call(
        _rrb_kernel,
        out_shape=jax.ShapeDtypeStruct((N, H, W, C), jnp.float32),
        grid_spec=pltpu.PrefetchScalarGridSpec(
            num_scalar_prefetch=0,
            grid=(N,),
            in_specs=[
                pl.BlockSpec((1, H, W, C), lambda n: (n, 0, 0, 0)),
                pl.BlockSpec((C, C), lambda n: (0, 0)),
                pl.BlockSpec((1, C), lambda n: (0, 0)),
                pl.BlockSpec((9 * C, C), lambda n: (0, 0)),
                pl.BlockSpec((1, C), lambda n: (0, 0)),
                pl.BlockSpec((9 * C, C), lambda n: (0, 0)),
            ],
            out_specs=pl.BlockSpec((1, H, W, C), lambda n: (n, 0, 0, 0)),
            scratch_shapes=[
                pltpu.VMEM((H + 2, W + 2, C), jnp.float32),
                pltpu.VMEM((H + 2, W + 2, C), jnp.float32),
                pltpu.VMEM((H * W, 9 * C), jnp.bfloat16),
            ],
        ),
        compiler_params=pltpu.CompilerParams(
            dimension_semantics=("parallel",)),
    )(x, w1_bf, b1_2d, wa_2d, ba_2d, wb_2d)

    return jnp.transpose(out, (0, 3, 1, 2))          # back to NCHW


def rrb_reference(x_nchw, w1, b1, wa, ba, wb):
    """Pure-JAX f32 reference (mirrors the PyTorch forward), NCHW in/out."""
    x = jnp.transpose(x_nchw, (0, 2, 3, 1))
    dn = ('NHWC', 'HWIO', 'NHWC')
    h = lax.conv_general_dilated(x, w1.reshape(1, 1, *w1.shape),
                                 (1, 1), 'SAME', dimension_numbers=dn) + b1
    t = lax.conv_general_dilated(h, wa, (1, 1), 'SAME',
                                 dimension_numbers=dn) + ba
    t = jnp.maximum(t, 0.0)
    y = lax.conv_general_dilated(t, wb, (1, 1), 'SAME', dimension_numbers=dn)
    out = jnp.maximum(h + y, 0.0)
    return jnp.transpose(out, (0, 3, 1, 2))


if __name__ == "__main__":
    N, C, H, W = 2, 32, 16, 16   # oc = 32

    key = jax.random.PRNGKey(0)
    kx, k1, kb1, ka, kba, kb = jax.random.split(key, 6)

    x = jax.random.normal(kx, (N, C, H, W), jnp.float32)
    # Synthetic parameters (PyTorch shapes: conv1x1 (C,C,1,1)+bias,
    # conv3x3 (C,C,3,3)+bias, conv3x3 (C,C,3,3) no bias), stored as
    # (in,out) / HWIO for the NHWC kernel.
    w1 = jax.random.normal(k1, (C, C), jnp.float32) * 0.1
    b1 = jax.random.normal(kb1, (C,), jnp.float32) * 0.1
    wa = jax.random.normal(ka, (3, 3, C, C), jnp.float32) * 0.05
    ba = jax.random.normal(kba, (C,), jnp.float32) * 0.1
    wb = jax.random.normal(kb, (3, 3, C, C), jnp.float32) * 0.05

    out = rrb_pallas(x, w1, b1, wa, ba, wb)
    out = jax.block_until_ready(out)

    ref = jax.block_until_ready(rrb_reference(x, w1, b1, wa, ba, wb))
    # Tolerance covers the bf16 MXU-operand path (f32 accumulation).
    np.testing.assert_allclose(np.asarray(out), np.asarray(ref),
                               rtol=3e-2, atol=3e-2)

    print("KERNEL_OK")
</pallas_src>

<mosaic_0001>
module attributes {stable_mosaic.version = 11 : i64} {
  func.func @_rrb_kernel(%arg0: i32, %arg1: memref<1x16x16x32xbf16, #tpu.memory_space<vmem>>, %arg2: memref<32x32xbf16, #tpu.memory_space<vmem>>, %arg3: memref<1x32xf32, #tpu.memory_space<vmem>>, %arg4: memref<288x32xbf16, #tpu.memory_space<vmem>>, %arg5: memref<1x32xf32, #tpu.memory_space<vmem>>, %arg6: memref<288x32xbf16, #tpu.memory_space<vmem>>, %arg7: memref<1x16x16x32xf32, #tpu.memory_space<vmem>>, %arg8: memref<18x18x32xf32, #tpu.memory_space<vmem>>, %arg9: memref<18x18x32xf32, #tpu.memory_space<vmem>>, %arg10: memref<256x288xbf16, #tpu.memory_space<vmem>>) attributes {dimension_semantics = [#tpu.dimension_semantics<parallel>], iteration_bounds = array<i64: 2>, scalar_prefetch = 0 : i64, scratch_operands = 3 : i64, tpu.core_type = #tpu.core_type<tc>, window_params = [{transform_indices = @transform_0, window_bounds = array<i64: 1, 16, 16, 32>}, {pipeline_mode = #tpu.pipeline_mode<synchronous>, transform_indices = @transform_1, window_bounds = array<i64: 32, 32>}, {pipeline_mode = #tpu.pipeline_mode<synchronous>, transform_indices = @transform_2, window_bounds = array<i64: 1, 32>}, {pipeline_mode = #tpu.pipeline_mode<synchronous>, transform_indices = @transform_3, window_bounds = array<i64: 288, 32>}, {pipeline_mode = #tpu.pipeline_mode<synchronous>, transform_indices = @transform_4, window_bounds = array<i64: 1, 32>}, {pipeline_mode = #tpu.pipeline_mode<synchronous>, transform_indices = @transform_5, window_bounds = array<i64: 288, 32>}, {transform_indices = @transform_6, window_bounds = array<i64: 1, 16, 16, 32>}]} {
    %cst = arith.constant 0.000000e+00 : f32
    %0 = vector.broadcast %cst : f32 to vector<1x18x32xf32>
    %cst_0 = arith.constant 0.000000e+00 : f32
    %1 = vector.broadcast %cst_0 : f32 to vector<18x1x32xf32>
    %c0 = arith.constant 0 : index
    %c0_1 = arith.constant 0 : index
    %c0_2 = arith.constant 0 : index
    %c0_3 = arith.constant 0 : index
    %2 = vector.load %arg1[%c0, %c0_1, %c0_2, %c0_3] : memref<1x16x16x32xbf16, #tpu.memory_space<vmem>>, vector<1x16x16x32xbf16>
    %3 = vector.shape_cast %2 : vector<1x16x16x32xbf16> to vector<16x16x32xbf16>
    %4 = vector.shape_cast %3 : vector<16x16x32xbf16> to vector<256x32xbf16>
    %c0_4 = arith.constant 0 : index
    %c0_5 = arith.constant 0 : index
    %5 = vector.load %arg2[%c0_4, %c0_5] : memref<32x32xbf16, #tpu.memory_space<vmem>>, vector<32x32xbf16>
    %cst_6 = arith.constant dense<0.000000e+00> : vector<256x32xf32>
    %6 = tpu.matmul %4, %5, %cst_6 {dimension_numbers = #tpu.dot_dimension_numbers<[1], [0], [0], [1], [0, 0, 1, 1], [], []>} : vector<256x32xbf16>, vector<32x32xbf16>, vector<256x32xf32> -> vector<256x32xf32>
    %c0_7 = arith.constant 0 : index
    %c0_8 = arith.constant 0 : index
    %7 = vector.load %arg3[%c0_7, %c0_8] : memref<1x32xf32, #tpu.memory_space<vmem>>, vector<1x32xf32>
    %8 = vector.broadcast %7 : vector<1x32xf32> to vector<256x32xf32>
    %9 = arith.addf %6, %8 : vector<256x32xf32>
    %c0_9 = arith.constant 0 : index
    %c0_10 = arith.constant 0 : index
    %c0_11 = arith.constant 0 : index
    %10 = vector.load %arg8[%c0_9, %c0_10, %c0_11] : memref<18x18x32xf32, #tpu.memory_space<vmem>>, vector<1x18x32xf32>
    tpu.vector_store %arg8[%c0_9, %c0_10, %c0_11], %0 {strides = array<i32>} : memref<18x18x32xf32, #tpu.memory_space<vmem>>, vector<1x18x32xf32>,
    %c17 = arith.constant 17 : index
    %c0_12 = arith.constant 0 : index
    %c0_13 = arith.constant 0 : index
    %11 = vector.load %arg8[%c17, %c0_12, %c0_13] : memref<18x18x32xf32, #tpu.memory_space<vmem>>, vector<1x18x32xf32>
    tpu.vector_store %arg8[%c17, %c0_12, %c0_13], %0 {strides = array<i32>} : memref<18x18x32xf32, #tpu.memory_space<vmem>>, vector<1x18x32xf32>,
    %c0_14 = arith.constant 0 : index
    %c0_15 = arith.constant 0 : index
    %c0_16 = arith.constant 0 : index
    %12 = vector.load %arg8[%c0_14, %c0_15, %c0_16] : memref<18x18x32xf32, #tpu.memory_space<vmem>>, vector<18x1x32xf32>
    tpu.vector_store %arg8[%c0_14, %c0_15, %c0_16], %1 {strides = array<i32>} : memref<18x18x32xf32, #tpu.memory_space<vmem>>, vector<18x1x32xf32>,
    %c0_17 = arith.constant 0 : index
    %c17_18 = arith.constant 17 : index
    %c0_19 = arith.constant 0 : index
    %13 = vector.load %arg8[%c0_17, %c17_18, %c0_19] : memref<18x18x32xf32, #tpu.memory_space<vmem>>, vector<18x1x32xf32>
    tpu.vector_store %arg8[%c0_17, %c17_18, %c0_19], %1 {strides = array<i32>} : memref<18x18x32xf32, #tpu.memory_space<vmem>>, vector<18x1x32xf32>,
    %14 = vector.shape_cast %9 : vector<256x32xf32> to vector<16x16x32xf32>
    %c1 = arith.constant 1 : index
    %c1_20 = arith.constant 1 : index
    %c0_21 = arith.constant 0 : index
    %15 = vector.load %arg8[%c1, %c1_20, %c0_21] : memref<18x18x32xf32, #tpu.memory_space<vmem>>, vector<16x16x32xf32>
    tpu.vector_store %arg8[%c1, %c1_20, %c0_21], %14 {strides = array<i32>} : memref<18x18x32xf32, #tpu.memory_space<vmem>>, vector<16x16x32xf32>,
    %c0_22 = arith.constant 0 : index
    %c0_23 = arith.constant 0 : index
    %c0_24 = arith.constant 0 : index
    %16 = vector.load %arg8[%c0_22, %c0_23, %c0_24] : memref<18x18x32xf32, #tpu.memory_space<vmem>>, vector<16x16x32xf32>
    %17 = arith.truncf %16 : vector<16x16x32xf32> to vector<16x16x32xbf16>
    %18 = vector.shape_cast %17 : vector<16x16x32xbf16> to vector<256x32xbf16>
    %c0_25 = arith.constant 0 : index
    %c0_26 = arith.constant 0 : index
    %19 = vector.load %arg10[%c0_25, %c0_26] : memref<256x288xbf16, #tpu.memory_space<vmem>>, vector<256x32xbf16>
    tpu.vector_store %arg10[%c0_25, %c0_26], %18 {strides = array<i32>} : memref<256x288xbf16, #tpu.memory_space<vmem>>, vector<256x32xbf16>,
    %c0_27 = arith.constant 0 : index
    %c1_28 = arith.constant 1 : index
    %c0_29 = arith.constant 0 : index
    %20 = vector.load %arg8[%c0_27, %c1_28, %c0_29] : memref<18x18x32xf32, #tpu.memory_space<vmem>>, vector<16x16x32xf32>
    %21 = arith.truncf %20 : vector<16x16x32xf32> to vector<16x16x32xbf16>
    %22 = vector.shape_cast %21 : vector<16x16x32xbf16> to vector<256x32xbf16>
    %c0_30 = arith.constant 0 : index
    %c32 = arith.constant 32 : index
    %23 = vector.load %arg10[%c0_30, %c32] : memref<256x288xbf16, #tpu.memory_space<vmem>>, vector<256x32xbf16>
    tpu.vector_store %arg10[%c0_30, %c32], %22 {strides = array<i32>} : memref<256x288xbf16, #tpu.memory_space<vmem>>, vector<256x32xbf16>,
    %c0_31 = arith.constant 0 : index
    %c2 = arith.constant 2 : index
    %c0_32 = arith.constant 0 : index
    %24 = vector.load %arg8[%c0_31, %c2, %c0_32] : memref<18x18x32xf32, #tpu.memory_space<vmem>>, vector<16x16x32xf32>
    %25 = arith.truncf %24 : vector<16x16x32xf32> to vector<16x16x32xbf16>
    %26 = vector.shape_cast %25 : vector<16x16x32xbf16> to vector<256x32xbf16>
    %c0_33 = arith.constant 0 : index
    %c64 = arith.constant 64 : index
    %27 = vector.load %arg10[%c0_33, %c64] : memref<256x288xbf16, #tpu.memory_space<vmem>>, vector<256x32xbf16>
    tpu.vector_store %arg10[%c0_33, %c64], %26 {strides = array<i32>} : memref<256x288xbf16, #tpu.memory_space<vmem>>, vector<256x32xbf16>,
    %c1_34 = arith.constant 1 : index
    %c0_35 = arith.constant 0 : index
    %c0_36 = arith.constant 0 : index
    %28 = vector.load %arg8[%c1_34, %c0_35, %c0_36] : memref<18x18x32xf32, #tpu.memory_space<vmem>>, vector<16x16x32xf32>
    %29 = arith.truncf %28 : vector<16x16x32xf32> to vector<16x16x32xbf16>
    %30 = vector.shape_cast %29 : vector<16x16x32xbf16> to vector<256x32xbf16>
    %c0_37 = arith.constant 0 : index
    %c96 = arith.constant 96 : index
    %31 = vector.load %arg10[%c0_37, %c96] : memref<256x288xbf16, #tpu.memory_space<vmem>>, vector<256x32xbf16>
    tpu.vector_store %arg10[%c0_37, %c96], %30 {strides = array<i32>} : memref<256x288xbf16, #tpu.memory_space<vmem>>, vector<256x32xbf16>,
    %c1_38 = arith.constant 1 : index
    %c1_39 = arith.constant 1 : index
    %c0_40 = arith.constant 0 : index
    %32 = vector.load %arg8[%c1_38, %c1_39, %c0_40] : memref<18x18x32xf32, #tpu.memory_space<vmem>>, vector<16x16x32xf32>
    %33 = arith.truncf %32 : vector<16x16x32xf32> to vector<16x16x32xbf16>
    %34 = vector.shape_cast %33 : vector<16x16x32xbf16> to vector<256x32xbf16>
    %c0_41 = arith.constant 0 : index
    %c128 = arith.constant 128 : index
    %35 = vector.load %arg10[%c0_41, %c128] : memref<256x288xbf16, #tpu.memory_space<vmem>>, vector<256x32xbf16>
    tpu.vector_store %arg10[%c0_41, %c128], %34 {strides = array<i32>} : memref<256x288xbf16, #tpu.memory_space<vmem>>, vector<256x32xbf16>,
    %c1_42 = arith.constant 1 : index
    %c2_43 = arith.constant 2 : index
    %c0_44 = arith.constant 0 : index
    %36 = vector.load %arg8[%c1_42, %c2_43, %c0_44] : memref<18x18x32xf32, #tpu.memory_space<vmem>>, vector<16x16x32xf32>
    %37 = arith.truncf %36 : vector<16x16x32xf32> to vector<16x16x32xbf16>
    %38 = vector.shape_cast %37 : vector<16x16x32xbf16> to vector<256x32xbf16>
    %c0_45 = arith.constant 0 : index
    %c160 = arith.constant 160 : index
    %39 = vector.load %arg10[%c0_45, %c160] : memref<256x288xbf16, #tpu.memory_space<vmem>>, vector<256x32xbf16>
    tpu.vector_store %arg10[%c0_45, %c160], %38 {strides = array<i32>} : memref<256x288xbf16, #tpu.memory_space<vmem>>, vector<256x32xbf16>,
    %c2_46 = arith.constant 2 : index
    %c0_47 = arith.constant 0 : index
    %c0_48 = arith.constant 0 : index
    %40 = vector.load %arg8[%c2_46, %c0_47, %c0_48] : memref<18x18x32xf32, #tpu.memory_space<vmem>>, vector<16x16x32xf32>
    %41 = arith.truncf %40 : vector<16x16x32xf32> to vector<16x16x32xbf16>
    %42 = vector.shape_cast %41 : vector<16x16x32xbf16> to vector<256x32xbf16>
    %c0_49 = arith.constant 0 : index
    %c192 = arith.constant 192 : index
    %43 = vector.load %arg10[%c0_49, %c192] : memref<256x288xbf16, #tpu.memory_space<vmem>>, vector<256x32xbf16>
    tpu.vector_store %arg10[%c0_49, %c192], %42 {strides = array<i32>} : memref<256x288xbf16, #tpu.memory_space<vmem>>, vector<256x32xbf16>,
    %c2_50 = arith.constant 2 : index
    %c1_51 = arith.constant 1 : index
    %c0_52 = arith.constant 0 : index
    %44 = vector.load %arg8[%c2_50, %c1_51, %c0_52] : memref<18x18x32xf32, #tpu.memory_space<vmem>>, vector<16x16x32xf32>
    %45 = arith.truncf %44 : vector<16x16x32xf32> to vector<16x16x32xbf16>
    %46 = vector.shape_cast %45 : vector<16x16x32xbf16> to vector<256x32xbf16>
    %c0_53 = arith.constant 0 : index
    %c224 = arith.constant 224 : index
    %47 = vector.load %arg10[%c0_53, %c224] : memref<256x288xbf16, #tpu.memory_space<vmem>>, vector<256x32xbf16>
    tpu.vector_store %arg10[%c0_53, %c224], %46 {strides = array<i32>} : memref<256x288xbf16, #tpu.memory_space<vmem>>, vector<256x32xbf16>,
    %c2_54 = arith.constant 2 : index
    %c2_55 = arith.constant 2 : index
    %c0_56 = arith.constant 0 : index
    %48 = vector.load %arg8[%c2_54, %c2_55, %c0_56] : memref<18x18x32xf32, #tpu.memory_space<vmem>>, vector<16x16x32xf32>
    %49 = arith.truncf %48 : vector<16x16x32xf32> to vector<16x16x32xbf16>
    %50 = vector.shape_cast %49 : vector<16x16x32xbf16> to vector<256x32xbf16>
    %c0_57 = arith.constant 0 : index
    %c256 = arith.constant 256 : index
    %51 = vector.load %arg10[%c0_57, %c256] : memref<256x288xbf16, #tpu.memory_space<vmem>>, vector<256x32xbf16>
    tpu.vector_store %arg10[%c0_57, %c256], %50 {strides = array<i32>} : memref<256x288xbf16, #tpu.memory_space<vmem>>, vector<256x32xbf16>,
    %c0_58 = arith.constant 0 : index
    %c0_59 = arith.constant 0 : index
    %52 = vector.load %arg10[%c0_58, %c0_59] : memref<256x288xbf16, #tpu.memory_space<vmem>>, vector<256x288xbf16>
    %c0_60 = arith.constant 0 : index
    %c0_61 = arith.constant 0 : index
    %53 = vector.load %arg4[%c0_60, %c0_61] : memref<288x32xbf16, #tpu.memory_space<vmem>>, vector<288x32xbf16>
    %cst_62 = arith.constant dense<0.000000e+00> : vector<256x32xf32>
    %54 = tpu.matmul %52, %53, %cst_62 {dimension_numbers = #tpu.dot_dimension_numbers<[1], [0], [0], [1], [0, 0, 1, 1], [], []>} : vector<256x288xbf16>, vector<288x32xbf16>, vector<256x32xf32> -> vector<256x32xf32>
    %c0_63 = arith.constant 0 : index
    %c0_64 = arith.constant 0 : index
    %55 = vector.load %arg5[%c0_63, %c0_64] : memref<1x32xf32, #tpu.memory_space<vmem>>, vector<1x32xf32>
    %56 = vector.broadcast %55 : vector<1x32xf32> to vector<256x32xf32>
    %57 = arith.addf %54, %56 : vector<256x32xf32>
    %cst_65 = arith.constant 0.000000e+00 : f32
    %58 = vector.broadcast %cst_65 : f32 to vector<256x32xf32>
    %59 = arith.maximumf %57, %58 : vector<256x32xf32>
    %c0_66 = arith.constant 0 : index
    %c0_67 = arith.constant 0 : index
    %c0_68 = arith.constant 0 : index
    %60 = vector.load %arg9[%c0_66, %c0_67, %c0_68] : memref<18x18x32xf32, #tpu.memory_space<vmem>>, vector<1x18x32xf32>
    tpu.vector_store %arg9[%c0_66, %c0_67, %c0_68], %0 {strides = array<i32>} : memref<18x18x32xf32, #tpu.memory_space<vmem>>, vector<1x18x32xf32>,
    %c17_69 = arith.constant 17 : index
    %c0_70 = arith.constant 0 : index
    %c0_71 = arith.constant 0 : index
    %61 = vector.load %arg9[%c17_69, %c0_70, %c0_71] : memref<18x18x32xf32, #tpu.memory_space<vmem>>, vector<1x18x32xf32>
    tpu.vector_store %arg9[%c17_69, %c0_70, %c0_71], %0 {strides = array<i32>} : memref<18x18x32xf32, #tpu.memory_space<vmem>>, vector<1x18x32xf32>,
    %c0_72 = arith.constant 0 : index
    %c0_73 = arith.constant 0 : index
    %c0_74 = arith.constant 0 : index
    %62 = vector.load %arg9[%c0_72, %c0_73, %c0_74] : memref<18x18x32xf32, #tpu.memory_space<vmem>>, vector<18x1x32xf32>
    tpu.vector_store %arg9[%c0_72, %c0_73, %c0_74], %1 {strides = array<i32>} : memref<18x18x32xf32, #tpu.memory_space<vmem>>, vector<18x1x32xf32>,
    %c0_75 = arith.constant 0 : index
    %c17_76 = arith.constant 17 : index
    %c0_77 = arith.constant 0 : index
    %63 = vector.load %arg9[%c0_75, %c17_76, %c0_77] : memref<18x18x32xf32, #tpu.memory_space<vmem>>, vector<18x1x32xf32>
    tpu.vector_store %arg9[%c0_75, %c17_76, %c0_77], %1 {strides = array<i32>} : memref<18x18x32xf32, #tpu.memory_space<vmem>>, vector<18x1x32xf32>,
    %64 = vector.shape_cast %59 : vector<256x32xf32> to vector<16x16x32xf32>
    %c1_78 = arith.constant 1 : index
    %c1_79 = arith.constant 1 : index
    %c0_80 = arith.constant 0 : index
    %65 = vector.load %arg9[%c1_78, %c1_79, %c0_80] : memref<18x18x32xf32, #tpu.memory_space<vmem>>, vector<16x16x32xf32>
    tpu.vector_store %arg9[%c1_78, %c1_79, %c0_80], %64 {strides = array<i32>} : memref<18x18x32xf32, #tpu.memory_space<vmem>>, vector<16x16x32xf32>,
    %c0_81 = arith.constant 0 : index
    %c0_82 = arith.constant 0 : index
    %c0_83 = arith.constant 0 : index
    %66 = vector.load %arg9[%c0_81, %c0_82, %c0_83] : memref<18x18x32xf32, #tpu.memory_space<vmem>>, vector<16x16x32xf32>
    %67 = arith.truncf %66 : vector<16x16x32xf32> to vector<16x16x32xbf16>
    %68 = vector.shape_cast %67 : vector<16x16x32xbf16> to vector<256x32xbf16>
    %c0_84 = arith.constant 0 : index
    %c0_85 = arith.constant 0 : index
    %69 = vector.load %arg10[%c0_84, %c0_85] : memref<256x288xbf16, #tpu.memory_space<vmem>>, vector<256x32xbf16>
    tpu.vector_store %arg10[%c0_84, %c0_85], %68 {strides = array<i32>} : memref<256x288xbf16, #tpu.memory_space<vmem>>, vector<256x32xbf16>,
    %c0_86 = arith.constant 0 : index
    %c1_87 = arith.constant 1 : index
    %c0_88 = arith.constant 0 : index
    %70 = vector.load %arg9[%c0_86, %c1_87, %c0_88] : memref<18x18x32xf32, #tpu.memory_space<vmem>>, vector<16x16x32xf32>
    %71 = arith.truncf %70 : vector<16x16x32xf32> to vector<16x16x32xbf16>
    %72 = vector.shape_cast %71 : vector<16x16x32xbf16> to vector<256x32xbf16>
    %c0_89 = arith.constant 0 : index
    %c32_90 = arith.constant 32 : index
    %73 = vector.load %arg10[%c0_89, %c32_90] : memref<256x288xbf16, #tpu.memory_space<vmem>>, vector<256x32xbf16>
    tpu.vector_store %arg10[%c0_89, %c32_90], %72 {strides = array<i32>} : memref<256x288xbf16, #tpu.memory_space<vmem>>, vector<256x32xbf16>,
    %c0_91 = arith.constant 0 : index
    %c2_92 = arith.constant 2 : index
    %c0_93 = arith.constant 0 : index
    %74 = vector.load %arg9[%c0_91, %c2_92, %c0_93] : memref<18x18x32xf32, #tpu.memory_space<vmem>>, vector<16x16x32xf32>
    %75 = arith.truncf %74 : vector<16x16x32xf32> to vector<16x16x32xbf16>
    %76 = vector.shape_cast %75 : vector<16x16x32xbf16> to vector<256x32xbf16>
    %c0_94 = arith.constant 0 : index
    %c64_95 = arith.constant 64 : index
    %77 = vector.load %arg10[%c0_94, %c64_95] : memref<256x288xbf16, #tpu.memory_space<vmem>>, vector<256x32xbf16>
    tpu.vector_store %arg10[%c0_94, %c64_95], %76 {strides = array<i32>} : memref<256x288xbf16, #tpu.memory_space<vmem>>, vector<256x32xbf16>,
    %c1_96 = arith.constant 1 : index
    %c0_97 = arith.constant 0 : index
    %c0_98 = arith.constant 0 : index
    %78 = vector.load %arg9[%c1_96, %c0_97, %c0_98] : memref<18x18x32xf32, #tpu.memory_space<vmem>>, vector<16x16x32xf32>
    %79 = arith.truncf %78 : vector<16x16x32xf32> to vector<16x16x32xbf16>
    %80 = vector.shape_cast %79 : vector<16x16x32xbf16> to vector<256x32xbf16>
    %c0_99 = arith.constant 0 : index
    %c96_100 = arith.constant 96 : index
    %81 = vector.load %arg10[%c0_99, %c96_100] : memref<256x288xbf16, #tpu.memory_space<vmem>>, vector<256x32xbf16>
    tpu.vector_store %arg10[%c0_99, %c96_100], %80 {strides = array<i32>} : memref<256x288xbf16, #tpu.memory_space<vmem>>, vector<256x32xbf16>,
    %c1_101 = arith.constant 1 : index
    %c1_102 = arith.constant 1 : index
    %c0_103 = arith.constant 0 : index
    %82 = vector.load %arg9[%c1_101, %c1_102, %c0_103] : memref<18x18x32xf32, #tpu.memory_space<vmem>>, vector<16x16x32xf32>
    %83 = arith.truncf %82 : vector<16x16x32xf32> to vector<16x16x32xbf16>
    %84 = vector.shape_cast %83 : vector<16x16x32xbf16> to vector<256x32xbf16>
    %c0_104 = arith.constant 0 : index
    %c128_105 = arith.constant 128 : index
    %85 = vector.load %arg10[%c0_104, %c128_105] : memref<256x288xbf16, #tpu.memory_space<vmem>>, vector<256x32xbf16>
    tpu.vector_store %arg10[%c0_104, %c128_105], %84 {strides = array<i32>} : memref<256x288xbf16, #tpu.memory_space<vmem>>, vector<256x32xbf16>,
    %c1_106 = arith.constant 1 : index
    %c2_107 = arith.constant 2 : index
    %c0_108 = arith.constant 0 : index
    %86 = vector.load %arg9[%c1_106, %c2_107, %c0_108] : memref<18x18x32xf32, #tpu.memory_space<vmem>>, vector<16x16x32xf32>
    %87 = arith.truncf %86 : vector<16x16x32xf32> to vector<16x16x32xbf16>
    %88 = vector.shape_cast %87 : vector<16x16x32xbf16> to vector<256x32xbf16>
    %c0_109 = arith.constant 0 : index
    %c160_110 = arith.constant 160 : index
    %89 = vector.load %arg10[%c0_109, %c160_110] : memref<256x288xbf16, #tpu.memory_space<vmem>>, vector<256x32xbf16>
    tpu.vector_store %arg10[%c0_109, %c160_110], %88 {strides = array<i32>} : memref<256x288xbf16, #tpu.memory_space<vmem>>, vector<256x32xbf16>,
    %c2_111 = arith.constant 2 : index
    %c0_112 = arith.constant 0 : index
    %c0_113 = arith.constant 0 : index
    %90 = vector.load %arg9[%c2_111, %c0_112, %c0_113] : memref<18x18x32xf32, #tpu.memory_space<vmem>>, vector<16x16x32xf32>
    %91 = arith.truncf %90 : vector<16x16x32xf32> to vector<16x16x32xbf16>
    %92 = vector.shape_cast %91 : vector<16x16x32xbf16> to vector<256x32xbf16>
    %c0_114 = arith.constant 0 : index
    %c192_115 = arith.constant 192 : index
    %93 = vector.load %arg10[%c0_114, %c192_115] : memref<256x288xbf16, #tpu.memory_space<vmem>>, vector<256x32xbf16>
    tpu.vector_store %arg10[%c0_114, %c192_115], %92 {strides = array<i32>} : memref<256x288xbf16, #tpu.memory_space<vmem>>, vector<256x32xbf16>,
    %c2_116 = arith.constant 2 : index
    %c1_117 = arith.constant 1 : index
    %c0_118 = arith.constant 0 : index
    %94 = vector.load %arg9[%c2_116, %c1_117, %c0_118] : memref<18x18x32xf32, #tpu.memory_space<vmem>>, vector<16x16x32xf32>
    %95 = arith.truncf %94 : vector<16x16x32xf32> to vector<16x16x32xbf16>
    %96 = vector.shape_cast %95 : vector<16x16x32xbf16> to vector<256x32xbf16>
    %c0_119 = arith.constant 0 : index
    %c224_120 = arith.constant 224 : index
    %97 = vector.load %arg10[%c0_119, %c224_120] : memref<256x288xbf16, #tpu.memory_space<vmem>>, vector<256x32xbf16>
    tpu.vector_store %arg10[%c0_119, %c224_120], %96 {strides = array<i32>} : memref<256x288xbf16, #tpu.memory_space<vmem>>, vector<256x32xbf16>,
    %c2_121 = arith.constant 2 : index
    %c2_122 = arith.constant 2 : index
    %c0_123 = arith.constant 0 : index
    %98 = vector.load %arg9[%c2_121, %c2_122, %c0_123] : memref<18x18x32xf32, #tpu.memory_space<vmem>>, vector<16x16x32xf32>
    %99 = arith.truncf %98 : vector<16x16x32xf32> to vector<16x16x32xbf16>
    %100 = vector.shape_cast %99 : vector<16x16x32xbf16> to vector<256x32xbf16>
    %c0_124 = arith.constant 0 : index
    %c256_125 = arith.constant 256 : index
    %101 = vector.load %arg10[%c0_124, %c256_125] : memref<256x288xbf16, #tpu.memory_space<vmem>>, vector<256x32xbf16>
    tpu.vector_store %arg10[%c0_124, %c256_125], %100 {strides = array<i32>} : memref<256x288xbf16, #tpu.memory_space<vmem>>, vector<256x32xbf16>,
    %c0_126 = arith.constant 0 : index
    %c0_127 = arith.constant 0 : index
    %102 = vector.load %arg10[%c0_126, %c0_127] : memref<256x288xbf16, #tpu.memory_space<vmem>>, vector<256x288xbf16>
    %c0_128 = arith.constant 0 : index
    %c0_129 = arith.constant 0 : index
    %103 = vector.load %arg6[%c0_128, %c0_129] : memref<288x32xbf16, #tpu.memory_space<vmem>>, vector<288x32xbf16>
    %cst_130 = arith.constant dense<0.000000e+00> : vector<256x32xf32>
    %104 = tpu.matmul %102, %103, %cst_130 {dimension_numbers = #tpu.dot_dimension_numbers<[1], [0], [0], [1], [0, 0, 1, 1], [], []>} : vector<256x288xbf16>, vector<288x32xbf16>, vector<256x32xf32> -> vector<256x32xf32>
    %c1_131 = arith.constant 1 : index
    %c1_132 = arith.constant 1 : index
    %c0_133 = arith.constant 0 : index
    %105 = vector.load %arg8[%c1_131, %c1_132, %c0_133] : memref<18x18x32xf32, #tpu.memory_space<vmem>>, vector<16x16x32xf32>
    %106 = vector.shape_cast %105 : vector<16x16x32xf32> to vector<256x32xf32>
    %107 = arith.addf %106, %104 : vector<256x32xf32>
    %cst_134 = arith.constant 0.000000e+00 : f32
    %108 = vector.broadcast %cst_134 : f32 to vector<256x32xf32>
    %109 = arith.maximumf %107, %108 : vector<256x32xf32>
    %110 = vector.shape_cast %109 : vector<256x32xf32> to vector<16x16x32xf32>
    %c0_135 = arith.constant 0 : index
    %c0_136 = arith.constant 0 : index
    %c0_137 = arith.constant 0 : index
    %c0_138 = arith.constant 0 : index
    %111 = vector.load %arg7[%c0_135, %c0_136, %c0_137, %c0_138] : memref<1x16x16x32xf32, #tpu.memory_space<vmem>>, vector<1x16x16x32xf32>
    %112 = vector.shape_cast %111 : vector<1x16x16x32xf32> to vector<16x16x32xf32>
    %113 = vector.shape_cast %110 : vector<16x16x32xf32> to vector<1x16x16x32xf32>
    tpu.vector_store %arg7[%c0_135, %c0_136, %c0_137, %c0_138], %113 {strides = array<i32>} : memref<1x16x16x32xf32, #tpu.memory_space<vmem>>, vector<1x16x16x32xf32>,
    return
  }
  func.func @transform_0(%arg0: i32) -> (i32, i32, i32, i32) {
    %c0_i32 = arith.constant 0 : i32
    %c0_i32_0 = arith.constant 0 : i32
    %c0_i32_1 = arith.constant 0 : i32
    %c0_i32_2 = arith.constant 0 : i32
    return %arg0, %c0_i32, %c0_i32_0, %c0_i32_1 : i32, i32, i32, i32
  }
  func.func @transform_1(%arg0: i32) -> (i32, i32) {
    %c0_i32 = arith.constant 0 : i32
    %c0_i32_0 = arith.constant 0 : i32
    %c0_i32_1 = arith.constant 0 : i32
    return %c0_i32, %c0_i32_0 : i32, i32
  }
  func.func @transform_2(%arg0: i32) -> (i32, i32) {
    %c0_i32 = arith.constant 0 : i32
    %c0_i32_0 = arith.constant 0 : i32
    %c0_i32_1 = arith.constant 0 : i32
    return %c0_i32, %c0_i32_0 : i32, i32
  }
  func.func @transform_3(%arg0: i32) -> (i32, i32) {
    %c0_i32 = arith.constant 0 : i32
    %c0_i32_0 = arith.constant 0 : i32
    %c0_i32_1 = arith.constant 0 : i32
    return %c0_i32, %c0_i32_0 : i32, i32
  }
  func.func @transform_4(%arg0: i32) -> (i32, i32) {
    %c0_i32 = arith.constant 0 : i32
    %c0_i32_0 = arith.constant 0 : i32
    %c0_i32_1 = arith.constant 0 : i32
    return %c0_i32, %c0_i32_0 : i32, i32
  }
  func.func @transform_5(%arg0: i32) -> (i32, i32) {
    %c0_i32 = arith.constant 0 : i32
    %c0_i32_0 = arith.constant 0 : i32
    %c0_i32_1 = arith.constant 0 : i32
    return %c0_i32, %c0_i32_0 : i32, i32
  }
  func.func @transform_6(%arg0: i32) -> (i32, i32, i32, i32) {
    %c0_i32 = arith.constant 0 : i32
    %c0_i32_0 = arith.constant 0 : i32
    %c0_i32_1 = arith.constant 0 : i32
    %c0_i32_2 = arith.constant 0 : i32
    return %arg0, %c0_i32, %c0_i32_0, %c0_i32_1 : i32, i32, i32, i32
  }
}

</mosaic_0001>

<llo_original>
// kernel: tpu_custom_call.1
$region0: #{tpu_custom_call.1}
  #allocation0 [shape = 'u32[]', space=smem, size = 0x4, offset = 0x4, fixed_abs, tag = 'smem constant byte address 0x4 - core index']
  #allocation1 [shape = 'u32[144,128]{1,0:T(1,128)}', space=vmem, size = 0x12000, scoped, tag = 'internal scratch']
  #allocation2 [shape = 'f32[18,18,32]{2,1,0:T(8,128)}', space=vmem, size = 0x36000, scoped, tag = 'scratch operand']
  #allocation3 [shape = 'f32[18,18,32]{2,1,0:T(8,128)}', space=vmem, size = 0x36000, scoped, tag = 'scratch operand']
  #allocation4 [shape = 'bf16[256,288]{1,0:T(8,128)(2,1)}', space=vmem, size = 0x30000, scoped, tag = 'scratch operand']
  %s0 = inlined_call_operand.vmem [shape: bf16[2,16,16,32], index: 0, kind: input, shape index: {}]
  %s1 = inlined_call_operand.vmem [shape: bf16[32,32], index: 1, kind: input, shape index: {}]
  %s2 = inlined_call_operand.vmem [shape: f32[1,32], index: 2, kind: input, shape index: {}]
  %s3 = inlined_call_operand.vmem [shape: bf16[288,32], index: 3, kind: input, shape index: {}]
  %s4 = inlined_call_operand.vmem [shape: f32[1,32], index: 4, kind: input, shape index: {}]
  %s5 = inlined_call_operand.vmem [shape: bf16[288,32], index: 5, kind: input, shape index: {}]
  %s6 = inlined_call_operand.hbm [shape: f32[2,16,16,32], index: 6, kind: output, shape index: {}]
  %s7 = sld [smem:[#allocation0]]
  $region57: #{tpu_custom_call.1} parent=0
    _
  %s9 = ssub.s32 1, %s7
  %s10 = scalar_select 0, %s9, %s7
  $region1: #{tpu_custom_call.1} parent=0
    #allocation5 [shape = 'u8[262144]{0}', space=vmem, size = 0x40000, scoped, tag = 'output window, operand 0']
    #allocation6 [shape = 's32[2]{0}', space=sflag, size = 0x8, scoped, tag = 'scoped memory for tpu_custom_call.1']
    %11 = vsyncpa [#allocation6], 0
    %s12 = scalar_lea.sflag [#allocation6], 1
    %13 = vsyncpa %s12, 0
    loop: start=0, step=1, limit=4
    $region2: #{tpu_custom_call.1} parent=1 // loop_pre_header
      _
    $region3: #{tpu_custom_call.1} parent=1 // loop_header
      %s15 = sphi 0, %s19
      %p16 = scmp.ge.s32.totalorder %s15, 4
      %s25 = sphi 0, %s27
      %s28 = sphi 0, %s25
      %s29 = sphi 0, %s28
      %s45 = sphi 0, %s29
      %s49 = sphi 0, %s49
      %s51 = sphi 0, %s49
      %s52 = sphi 0, %s51
      %s66 = sphi 0, %s52
      %s70 = sphi 0, %s70
      %s72 = sphi 0, %s70
      %s73 = sphi 0, %s72
      %s87 = sphi 0, %s73
      %s91 = sphi 0, %s91
      %s93 = sphi 0, %s91
      %s94 = sphi 0, %s93
      %s108 = sphi 0, %s94
      %s112 = sphi 0, %s112
      %s114 = sphi 0, %s112
      %s115 = sphi 0, %s114
      %s129 = sphi 0, %s115
      %s133 = sphi 0, %s133
      %s135 = sphi 0, %s133
      %s136 = sphi 0, %s135
      %s150 = sphi 0, %s136
      %s156 = sphi 0, %s158
      %s159 = sphi 0, %s156
      %s160 = sphi 0, %s159
      %s176 = sphi 0, %s160
    $region4: #{tpu_custom_call.1} parent=1 // loop_header_branch
      %18 = sbr.rel (%p16) target = $region8
    $region5: #{tpu_custom_call.1} parent=1 // loop_body
      %s20 = ssub.s32 %s15, 1
      %s21 = ssub.s32 %s15, 2
      %s22 = sadd.s32 %s15, 1
      %s23 = ssub.s32 %s15, %s22
      %p24 = scmp.eq.s32.totalorder %s23, 0
      %s26 = sadd.s32 %s25, 1
      %s27 = scalar_select %p24, %s25, %s26
      %p30 = pneg %p24
      %p31 = scmp.eq.s32.totalorder %s15, 1
      %p32 = por %p30, %p31
      %p33 = scmp.ne.s32.totalorder %s25, %s28
      %p34 = scmp.eq.s32.totalorder %s15, 0
      %p35 = por %p33, %p34
      %p36 = scmp.ne.s32.totalorder %s25, %s28
      %p37 = scmp.eq.s32.totalorder %s20, 1
      %p38 = por %p36, %p37
      %p39 = scmp.ne.s32.totalorder %s28, %s29
      %p40 = scmp.eq.s32.totalorder %s20, 0
      %p41 = por %p39, %p40
      %p42 = scmp.ne.s32.totalorder %s28, %s29
      %p43 = scmp.eq.s32.totalorder %s21, 1
      %p44 = por %p42, %p43
      %p46 = scmp.ne.s32.totalorder %s29, %s45
      %p47 = scmp.eq.s32.totalorder %s21, 0
      %p48 = por %p46, %p47
      %s50 = sadd.s32 %s49, 1
      %p53 = scmp.eq.s32.totalorder %s15, 1
      %p54 = scmp.ne.s32.totalorder %s49, %s51
      %p55 = scmp.eq.s32.totalorder %s15, 0
      %p56 = por %p54, %p55
      %p57 = scmp.ne.s32.totalorder %s49, %s51
      %p58 = scmp.eq.s32.totalorder %s20, 1
      %p59 = por %p57, %p58
      %p60 = scmp.ne.s32.totalorder %s51, %s52
      %p61 = scmp.eq.s32.totalorder %s20, 0
      %p62 = por %p60, %p61
      %p63 = scmp.ne.s32.totalorder %s51, %s52
      %p64 = scmp.eq.s32.totalorder %s21, 1
      %p65 = por %p63, %p64
      %p67 = scmp.ne.s32.totalorder %s52, %s66
      %p68 = scmp.eq.s32.totalorder %s21, 0
      %p69 = por %p67, %p68
      %s71 = sadd.s32 %s70, 1
      %p74 = scmp.eq.s32.totalorder %s15, 1
      %p75 = scmp.ne.s32.totalorder %s70, %s72
      %p76 = scmp.eq.s32.totalorder %s15, 0
      %p77 = por %p75, %p76
      %p78 = scmp.ne.s32.totalorder %s70, %s72
      %p79 = scmp.eq.s32.totalorder %s20, 1
      %p80 = por %p78, %p79
      %p81 = scmp.ne.s32.totalorder %s72, %s73
      %p82 = scmp.eq.s32.totalorder %s20, 0
      %p83 = por %p81, %p82
      %p84 = scmp.ne.s32.totalorder %s72, %s73
      %p85 = scmp.eq.s32.totalorder %s21, 1
      %p86 = por %p84, %p85
      %p88 = scmp.ne.s32.totalorder %s73, %s87
      %p89 = scmp.eq.s32.totalorder %s21, 0
      %p90 = por %p88, %p89
      %s92 = sadd.s32 %s91, 1
      %p95 = scmp.eq.s32.totalorder %s15, 1
      %p96 = scmp.ne.s32.totalorder %s91, %s93
      %p97 = scmp.eq.s32.totalorder %s15, 0
      %p98 = por %p96, %p97
      %p99 = scmp.ne.s32.totalorder %s91, %s93
      %p100 = scmp.eq.s32.totalorder %s20, 1
      %p101 = por %p99, %p100
      %p102 = scmp.ne.s32.totalorder %s93, %s94
      %p103 = scmp.eq.s32.totalorder %s20, 0
      %p104 = por %p102, %p103
      %p105 = scmp.ne.s32.totalorder %s93, %s94
      %p106 = scmp.eq.s32.totalorder %s21, 1
      %p107 = por %p105, %p106
      %p109 = scmp.ne.s32.totalorder %s94, %s108
      %p110 = scmp.eq.s32.totalorder %s21, 0
      %p111 = por %p109, %p110
      %s113 = sadd.s32 %s112, 1
      %p116 = scmp.eq.s32.totalorder %s15, 1
      %p117 = scmp.ne.s32.totalorder %s112, %s114
      %p118 = scmp.eq.s32.totalorder %s15, 0
      %p119 = por %p117, %p118
      %p120 = scmp.ne.s32.totalorder %s112, %s114
      %p121 = scmp.eq.s32.totalorder %s20, 1
      %p122 = por %p120, %p121
      %p123 = scmp.ne.s32.totalorder %s114, %s115
      %p124 = scmp.eq.s32.totalorder %s20, 0
      %p125 = por %p123, %p124
      %p126 = scmp.ne.s32.totalorder %s114, %s115
      %p127 = scmp.eq.s32.totalorder %s21, 1
      %p128 = por %p126, %p127
      %p130 = scmp.ne.s32.totalorder %s115, %s129
      %p131 = scmp.eq.s32.totalorder %s21, 0
      %p132 = por %p130, %p131
      %s134 = sadd.s32 %s133, 1
      %p137 = scmp.eq.s32.totalorder %s15, 1
      %p138 = scmp.ne.s32.totalorder %s133, %s135
      %p139 = scmp.eq.s32.totalorder %s15, 0
      %p140 = por %p138, %p139
      %p141 = scmp.ne.s32.totalorder %s133, %s135
      %p142 = scmp.eq.s32.totalorder %s20, 1
      %p143 = por %p141, %p142
      %p144 = scmp.ne.s32.totalorder %s135, %s136
      %p145 = scmp.eq.s32.totalorder %s20, 0
      %p146 = por %p144, %p145
      %p147 = scmp.ne.s32.totalorder %s135, %s136
      %p148 = scmp.eq.s32.totalorder %s21, 1
      %p149 = por %p147, %p148
      %p151 = scmp.ne.s32.totalorder %s136, %s150
      %p152 = scmp.eq.s32.totalorder %s21, 0
      %p153 = por %p151, %p152
      %s154 = ssub.s32 %s15, %s22
      %p155 = scmp.eq.s32.totalorder %s154, 0
      %s157 = sadd.s32 %s156, 1
      %s158 = scalar_select %p155, %s156, %s157
      %p161 = pneg %p155
      %p162 = scmp.eq.s32.totalorder %s15, 1
      %p163 = por %p161, %p162
      %p164 = scmp.ne.s32.totalorder %s156, %s159
      %p165 = scmp.eq.s32.totalorder %s15, 0
      %p166 = por %p164, %p165
      %p167 = scmp.ne.s32.totalorder %s156, %s159
      %p168 = scmp.eq.s32.totalorder %s20, 1
      %p169 = por %p167, %p168
      %p170 = scmp.ne.s32.totalorder %s159, %s160
      %p171 = scmp.eq.s32.totalorder %s20, 0
      %p172 = por %p170, %p171
      %p173 = scmp.ne.s32.totalorder %s159, %s160
      %p174 = scmp.eq.s32.totalorder %s21, 1
      %p175 = por %p173, %p174
      %p177 = scmp.ne.s32.totalorder %s160, %s176
      %p178 = scmp.eq.s32.totalorder %s21, 0
      %p179 = por %p177, %p178
      %p180 = scmp.le.s32.totalorder 1, %s15
      %p181 = scmp.lt.s32.totalorder %s15, 3
      %p182 = pnand %p180, %p181
      %p183 = pneg %p182
      // Predicated region
      $region9: #{tpu_custom_call.1} parent=5 // pred_check
        _
      $region10: #{tpu_custom_call.1} parent=5 // pred_check_branch
        %185 = sbr.rel (%p182) target = $region12
      $region11: #{tpu_custom_call.1} parent=5 // pred_region
        %s186 = ssub.s32 %s15, 1
        // Predicated region
        $region13: #{tpu_custom_call.1} parent=11 // pred_check
          %p187 = pneg %p62
        $region14: #{tpu_custom_call.1} parent=11 // pred_check_branch
          %189 = sbr.rel (%p187) target = $region16
        $region15: #{tpu_custom_call.1} parent=11 // pred_region
          _
        $region16: #{tpu_custom_call.1} parent=11 // pred_fallthru
          _
        // Predicated region
        $region17: #{tpu_custom_call.1} parent=11 // pred_check
          %p190 = pneg %p83
        $region18: #{tpu_custom_call.1} parent=11 // pred_check_branch
          %192 = sbr.rel (%p190) target = $region20
        $region19: #{tpu_custom_call.1} parent=11 // pred_region
          _
        $region20: #{tpu_custom_call.1} parent=11 // pred_fallthru
          _
        // Predicated region
        $region21: #{tpu_custom_call.1} parent=11 // pred_check
          %p193 = pneg %p104
        $region22: #{tpu_custom_call.1} parent=11 // pred_check_branch
          %195 = sbr.rel (%p193) target = $region24
        $region23: #{tpu_custom_call.1} parent=11 // pred_region
          _
        $region24: #{tpu_custom_call.1} parent=11 // pred_fallthru
          _
        // Predicated region
        $region25: #{tpu_custom_call.1} parent=11 // pred_check
          %p196 = pneg %p125
        $region26: #{tpu_custom_call.1} parent=11 // pred_check_branch
          %198 = sbr.rel (%p196) target = $region28
        $region27: #{tpu_custom_call.1} parent=11 // pred_region
          _
        $region28: #{tpu_custom_call.1} parent=11 // pred_fallthru
          _
        // Predicated region
        $region29: #{tpu_custom_call.1} parent=11 // pred_check
          %p199 = pneg %p146
        $region30: #{tpu_custom_call.1} parent=11 // pred_check_branch
          %201 = sbr.rel (%p199) target = $region32
        $region31: #{tpu_custom_call.1} parent=11 // pred_region
          _
        $region32: #{tpu_custom_call.1} parent=11 // pred_fallthru
          _
      $region12: #{tpu_custom_call.1} parent=5 // pred_fallthru
        _
      %p202 = scmp.lt.s32.totalorder %s15, 2
      // Predicated region
      $region33: #{tpu_custom_call.1} parent=5 // pred_check
        %p203 = pneg %p202
      $region34: #{tpu_custom_call.1} parent=5 // pred_check_branch
        %205 = sbr.rel (%p203) target = $region36
      $region35: #{tpu_custom_call.1} parent=5 // pred_region
        // Predicated region
        $region37: #{tpu_custom_call.1} parent=35 // pred_check
          %p206 = pneg %p35
        $region38: #{tpu_custom_call.1} parent=35 // pred_check_branch
          %208 = sbr.rel (%p206) target = $region40
        $region39: #{tpu_custom_call.1} parent=35 // pred_region
          %p209 = scmp.lt.s32.totalorder %s15, 1
          %s210 = scalar_select %p209, %s15, 1
          %s211 = smul.addr %s210, 32
          %s212 = smul.addr %s211, 4
          %s213 = scalar_lea.vmem %s0, %s212
        $region40: #{tpu_custom_call.1} parent=35 // pred_fallthru
          _
      $region36: #{tpu_custom_call.1} parent=5 // pred_fallthru
        _
      %p214 = scmp.le.s32.totalorder 1, %s15
      %p215 = scmp.lt.s32.totalorder %s15, 3
      %p216 = pnand %p214, %p215
      %p217 = pneg %p216
      // Predicated region
      $region41: #{tpu_custom_call.1} parent=5 // pred_check
        _
      $region42: #{tpu_custom_call.1} parent=5 // pred_check_branch
        %219 = sbr.rel (%p216) target = $region44
      $region43: #{tpu_custom_call.1} parent=5 // pred_region
        %s220 = ssub.s32 %s15, 1
        %p221 = scmp.lt.s32.totalorder %s20, 1
        %s222 = scalar_select %p221, %s20, 1
        %s223 = smul.addr %s222, 32
        %s224 = smul.addr %s223, 4
        %s225 = scalar_lea.vmem %s0, %s224
        %p226 = pneg %p41
        %p227 = pneg %p38
        %p228 = pneg %p62
        %p229 = pneg %p59
        %p230 = pneg %p83
        %p231 = pneg %p80
        %p232 = pneg %p104
        %p233 = pneg %p101
        %p234 = pneg %p125
        %p235 = pneg %p122
        %p236 = pneg %p146
        %p237 = pneg %p143
        %p238 = pneg %p172
        %p239 = pneg %p169
        %s240 = sand.u32 %s159, 1
        %s241 = scalar_lea.sflag [#allocation6], %s240
        %s242 = sand.u32 %s159, 1
        %s243 = smul.addr %s242, 256
        %s244 = scalar_lea.vmem [#allocation5], %s243
        %p245 = scmp.lt.s32.totalorder %s20, 1
        %s246 = scalar_select %p245, %s20, 1
        %s247 = smul.addr %s246, 32
        %s248 = smul.addr %s247, 4
        %s249 = scalar_lea.vmem %s0, %s248
        %v251 = vld [vmem:[%s249] sm:$0xf]
        %v252 = vld [vmem:[%s249 + $0x4] sm:$0xf]
        %v253 = vld [vmem:[%s249 + $0x8] sm:$0xf]
        %v254 = vld [vmem:[%s249 + $0xc] sm:$0xf]
        %v255 = vld [vmem:[%s249 + $0x10] sm:$0xf]
        %v256 = vld [vmem:[%s249 + $0x14] sm:$0xf]
        %v257 = vld [vmem:[%s249 + $0x18] sm:$0xf]
        %v258 = vld [vmem:[%s249 + $0x1c] sm:$0xf]
        %v259 = vld [vmem:[%s249 + $0x20] sm:$0xf]
        %v260 = vld [vmem:[%s249 + $0x24] sm:$0xf]
        %v261 = vld [vmem:[%s249 + $0x28] sm:$0xf]
        %v262 = vld [vmem:[%s249 + $0x2c] sm:$0xf]
        %v263 = vld [vmem:[%s249 + $0x30] sm:$0xf]
        %v264 = vld [vmem:[%s249 + $0x34] sm:$0xf]
        %v265 = vld [vmem:[%s249 + $0x38] sm:$0xf]
        %v266 = vld [vmem:[%s249 + $0x3c] sm:$0xf]
        %v267 = vld [vmem:[%s249 + $0x40] sm:$0xf]
        %v268 = vld [vmem:[%s249 + $0x44] sm:$0xf]
        %v269 = vld [vmem:[%s249 + $0x48] sm:$0xf]
        %v270 = vld [vmem:[%s249 + $0x4c] sm:$0xf]
        %v271 = vld [vmem:[%s249 + $0x50] sm:$0xf]
        %v272 = vld [vmem:[%s249 + $0x54] sm:$0xf]
        %v273 = vld [vmem:[%s249 + $0x58] sm:$0xf]
        %v274 = vld [vmem:[%s249 + $0x5c] sm:$0xf]
        %v275 = vld [vmem:[%s249 + $0x60] sm:$0xf]
        %v276 = vld [vmem:[%s249 + $0x64] sm:$0xf]
        %v277 = vld [vmem:[%s249 + $0x68] sm:$0xf]
        %v278 = vld [vmem:[%s249 + $0x6c] sm:$0xf]
        %v279 = vld [vmem:[%s249 + $0x70] sm:$0xf]
        %v280 = vld [vmem:[%s249 + $0x74] sm:$0xf]
        %v281 = vld [vmem:[%s249 + $0x78] sm:$0xf]
        %v282 = vld [vmem:[%s249 + $0x7c] sm:$0xf]
        %v283 = vld [vmem:[%s1] sm:$0xf]
        %v284 = vld [vmem:[%s1 + $0x4] sm:$0xf]
        %v285 = vld [vmem:[%s1 + $0x8] sm:$0xf]
        %v286 = vld [vmem:[%s1 + $0xc] sm:$0xf]
        %v287 = vld [vmem:[%s2] sm:$0x1]
        %v289 = vlaneseq
        %v290 = vshrl.u32 %v289, 7
        %v291 = vsub.s32 0, %v290
        %v292 = vrot.slane %v287, %v291
        %v326 = vunpack.c.l.b16 %v251
        %v327 = vunpack.c.l.b16 %v252
        %v328 = vunpack.c.l.b16 %v253
        %v329 = vunpack.c.l.b16 %v254
        %v330 = vunpack.c.l.b16 %v255
        %v331 = vunpack.c.l.b16 %v256
        %v332 = vunpack.c.l.b16 %v257
        %v333 = vunpack.c.l.b16 %v258
        %v334 = vunpack.c.l.b16 %v259
        %v335 = vunpack.c.l.b16 %v260
        %v336 = vunpack.c.l.b16 %v261
        %v337 = vunpack.c.l.b16 %v262
        %v338 = vunpack.c.l.b16 %v263
        %v339 = vunpack.c.l.b16 %v264
        %v340 = vunpack.c.l.b16 %v265
        %v341 = vunpack.c.l.b16 %v266
        %v342 = vunpack.c.l.b16 %v267
        %v343 = vunpack.c.l.b16 %v268
        %v344 = vunpack.c.l.b16 %v269
        %v345 = vunpack.c.l.b16 %v270
        %v346 = vunpack.c.l.b16 %v271
        %v347 = vunpack.c.l.b16 %v272
        %v348 = vunpack.c.l.b16 %v273
        %v349 = vunpack.c.l.b16 %v274
        %v350 = vunpack.c.l.b16 %v275
        %v351 = vunpack.c.l.b16 %v276
        %v352 = vunpack.c.l.b16 %v277
        %v353 = vunpack.c.l.b16 %v278
        %v354 = vunpack.c.l.b16 %v279
        %v355 = vunpack.c.l.b16 %v280
        %v356 = vunpack.c.l.b16 %v281
        %v357 = vunpack.c.l.b16 %v282
        %v358 = vpack.c.b16 %v327, %v326
        %v359 = vpack.c.b16 %v329, %v328
        %v360 = vpack.c.b16 %v331, %v330
        %v361 = vpack.c.b16 %v333, %v332
        %v362 = vpack.c.b16 %v335, %v334
        %v363 = vpack.c.b16 %v337, %v336
        %v364 = vpack.c.b16 %v339, %v338
        %v365 = vpack.c.b16 %v341, %v340
        %v366 = vpack.c.b16 %v343, %v342
        %v367 = vpack.c.b16 %v345, %v344
        %v368 = vpack.c.b16 %v347, %v346
        %v369 = vpack.c.b16 %v349, %v348
        %v370 = vpack.c.b16 %v351, %v350
        %v371 = vpack.c.b16 %v353, %v352
        %v372 = vpack.c.b16 %v355, %v354
        %v373 = vpack.c.b16 %v357, %v356
        %v378 = vunpack.c.l.b16 %v283
        %v379 = vunpack.c.l.b16 %v284
        %v380 = vunpack.c.l.b16 %v285
        %v381 = vunpack.c.l.b16 %v286
        %v382 = vpack.c.b16 %v379, %v378
        %v383 = vpack.c.b16 %v381, %v380
        %vm386 = vcmask 261120
        %v388 = vsel %vm386, %v358, 0
        %v391 = vsel %vm386, %v359, 0
        %v394 = vsel %vm386, %v360, 0
        %v397 = vsel %vm386, %v361, 0
        %v400 = vsel %vm386, %v362, 0
        %v403 = vsel %vm386, %v363, 0
        %v406 = vsel %vm386, %v364, 0
        %v409 = vsel %vm386, %v365, 0
        %v412 = vsel %vm386, %v366, 0
        %v415 = vsel %vm386, %v367, 0
        %v418 = vsel %vm386, %v368, 0
        %v421 = vsel %vm386, %v369, 0
        %v424 = vsel %vm386, %v370, 0
        %v427 = vsel %vm386, %v371, 0
        %v430 = vsel %vm386, %v372, 0
        %v433 = vsel %vm386, %v373, 0
        %435 = vmatprep.subr.bf16.mxu0 0
        %436 = vmatpush1.bf16.msra.mxu0 0
        %437 = vmatprep.subr.bf16.mxu0 0
        %438 = vmatpush1.bf16.msra.mxu0 0
        %439 = vmatprep.subr.bf16.mxu0 0
        %440 = vmatpush1.bf16.msra.mxu0 0
        %441 = vmatprep.subr.bf16.mxu0 0
        %442 = vmatpush1.bf16.msra.mxu0 0
        %443 = vmatprep.subr.bf16.mxu0 0
        %444 = vmatpush1.bf16.msra.mxu0 0
        %445 = vmatprep.subr.bf16.mxu0 0
        %446 = vmatpush1.bf16.msra.mxu0 0
        %447 = vmatprep.subr.bf16.mxu0 0
        %448 = vmatpush1.bf16.msra.mxu0 %v383
        %449 = vmatprep.subr.bf16.mxu0 0
        %450 = vmatpush1.bf16.msra.mxu0 %v382
        %451 = vmatprep.subr.bf16.mxu0 0
        %452 = vmatpush2.bf16.msra.mxu0 0
        %453 = vmatprep.subr.bf16.mxu0 0
        %454 = vmatpush2.bf16.msra.mxu0 0
        %455 = vmatprep.subr.bf16.mxu0 0
        %456 = vmatpush2.bf16.msra.mxu0 0
        %457 = vmatprep.subr.bf16.mxu0 0
        %458 = vmatpush2.bf16.msra.mxu0 0
        %459 = vmatprep.subr.bf16.mxu0 0
        %460 = vmatpush2.bf16.msra.mxu0 0
        %461 = vmatprep.subr.bf16.mxu0 0
        %462 = vmatpush2.bf16.msra.mxu0 0
        %463 = vmatprep.subr.bf16.mxu0 0
        %464 = vmatpush2.bf16.msra.mxu0 0
        %465 = vmatprep.subr.bf16.mxu0 0
        %466 = vmatpush2.bf16.msra.mxu0 0
        %467 = vmatprep.mubr.bf16.mxu0 0
        %468 = vmatmul.mubr.bf16.gmra.mxu0 %v388
        %v469 = vpop.f32.mrf.mxu0
        %v470 = vadd.f32 %v292, %v469
        %v471 = vpop.f32.mrf.mxu0
        %v472 = vpop.f32.mrf.mxu0
        %v473 = vadd.f32 %v292, %v472
        %v474 = vpop.f32.mrf.mxu0
        %475 = vmatprep.mubr.bf16.mxu0 0
        %476 = vmatmul.mubr.bf16.gmra.mxu0 %v391
        %v477 = vpop.f32.mrf.mxu0
        %v478 = vadd.f32 %v292, %v477
        %v479 = vpop.f32.mrf.mxu0
        %v480 = vpop.f32.mrf.mxu0
        %v481 = vadd.f32 %v292, %v480
        %v482 = vpop.f32.mrf.mxu0
        %483 = vmatprep.mubr.bf16.mxu0 0
        %484 = vmatmul.mubr.bf16.gmra.mxu0 %v394
        %v485 = vpop.f32.mrf.mxu0
        %v486 = vadd.f32 %v292, %v485
        %v487 = vpop.f32.mrf.mxu0
        %v488 = vpop.f32.mrf.mxu0
        %v489 = vadd.f32 %v292, %v488
        %v490 = vpop.f32.mrf.mxu0
        %491 = vmatprep.mubr.bf16.mxu0 0
        %492 = vmatmul.mubr.bf16.gmra.mxu0 %v397
        %v493 = vpop.f32.mrf.mxu0
        %v494 = vadd.f32 %v292, %v493
        %v495 = vpop.f32.mrf.mxu0
        %v496 = vpop.f32.mrf.mxu0
        %v497 = vadd.f32 %v292, %v496
        %v498 = vpop.f32.mrf.mxu0
        %499 = vmatprep.mubr.bf16.mxu0 0
        %500 = vmatmul.mubr.bf16.gmra.mxu0 %v400
        %v501 = vpop.f32.mrf.mxu0
        %v502 = vadd.f32 %v292, %v501
        %v503 = vpop.f32.mrf.mxu0
        %v504 = vpop.f32.mrf.mxu0
        %v505 = vadd.f32 %v292, %v504
        %v506 = vpop.f32.mrf.mxu0
        %507 = vmatprep.mubr.bf16.mxu0 0
        %508 = vmatmul.mubr.bf16.gmra.mxu0 %v403
        %v509 = vpop.f32.mrf.mxu0
        %v510 = vadd.f32 %v292, %v509
        %v511 = vpop.f32.mrf.mxu0
        %v512 = vpop.f32.mrf.mxu0
        %v513 = vadd.f32 %v292, %v512
        %v514 = vpop.f32.mrf.mxu0
        %515 = vmatprep.mubr.bf16.mxu0 0
        %516 = vmatmul.mubr.bf16.gmra.mxu0 %v406
        %v517 = vpop.f32.mrf.mxu0
        %v518 = vadd.f32 %v292, %v517
        %v519 = vpop.f32.mrf.mxu0
        %v520 = vpop.f32.mrf.mxu0
        %v521 = vadd.f32 %v292, %v520
        %v522 = vpop.f32.mrf.mxu0
        %523 = vmatprep.mubr.bf16.mxu0 0
        %524 = vmatmul.mubr.bf16.gmra.mxu0 %v409
        %v525 = vpop.f32.mrf.mxu0
        %v526 = vadd.f32 %v292, %v525
        %v527 = vpop.f32.mrf.mxu0
        %v528 = vpop.f32.mrf.mxu0
        %v529 = vadd.f32 %v292, %v528
        %v530 = vpop.f32.mrf.mxu0
        %531 = vmatprep.mubr.bf16.mxu0 0
        %532 = vmatmul.mubr.bf16.gmra.mxu0 %v412
        %v533 = vpop.f32.mrf.mxu0
        %v534 = vadd.f32 %v292, %v533
        %v535 = vpop.f32.mrf.mxu0
        %v536 = vpop.f32.mrf.mxu0
        %v537 = vadd.f32 %v292, %v536
        %v538 = vpop.f32.mrf.mxu0
        %539 = vmatprep.mubr.bf16.mxu0 0
        %540 = vmatmul.mubr.bf16.gmra.mxu0 %v415
        %v541 = vpop.f32.mrf.mxu0
        %v542 = vadd.f32 %v292, %v541
        %v543 = vpop.f32.mrf.mxu0
        %v544 = vpop.f32.mrf.mxu0
        %v545 = vadd.f32 %v292, %v544
        %v546 = vpop.f32.mrf.mxu0
        %547 = vmatprep.mubr.bf16.mxu0 0
        %548 = vmatmul.mubr.bf16.gmra.mxu0 %v418
        %v549 = vpop.f32.mrf.mxu0
        %v550 = vadd.f32 %v292, %v549
        %v551 = vpop.f32.mrf.mxu0
        %v552 = vpop.f32.mrf.mxu0
        %v553 = vadd.f32 %v292, %v552
        %v554 = vpop.f32.mrf.mxu0
        %555 = vmatprep.mubr.bf16.mxu0 0
        %556 = vmatmul.mubr.bf16.gmra.mxu0 %v421
        %v557 = vpop.f32.mrf.mxu0
        %v558 = vadd.f32 %v292, %v557
        %v559 = vpop.f32.mrf.mxu0
        %v560 = vpop.f32.mrf.mxu0
        %v561 = vadd.f32 %v292, %v560
        %v562 = vpop.f32.mrf.mxu0
        %563 = vmatprep.mubr.bf16.mxu0 0
        %564 = vmatmul.mubr.bf16.gmra.mxu0 %v424
        %v565 = vpop.f32.mrf.mxu0
        %v566 = vadd.f32 %v292, %v565
        %v567 = vpop.f32.mrf.mxu0
        %v568 = vpop.f32.mrf.mxu0
        %v569 = vadd.f32 %v292, %v568
        %v570 = vpop.f32.mrf.mxu0
        %571 = vmatprep.mubr.bf16.mxu0 0
        %572 = vmatmul.mubr.bf16.gmra.mxu0 %v427
        %v573 = vpop.f32.mrf.mxu0
        %v574 = vadd.f32 %v292, %v573
        %v575 = vpop.f32.mrf.mxu0
        %v576 = vpop.f32.mrf.mxu0
        %v577 = vadd.f32 %v292, %v576
        %v578 = vpop.f32.mrf.mxu0
        %579 = vmatprep.mubr.bf16.mxu0 0
        %580 = vmatmul.mubr.bf16.gmra.mxu0 %v430
        %v581 = vpop.f32.mrf.mxu0
        %v582 = vadd.f32 %v292, %v581
        %v583 = vpop.f32.mrf.mxu0
        %v584 = vpop.f32.mrf.mxu0
        %v585 = vadd.f32 %v292, %v584
        %v586 = vpop.f32.mrf.mxu0
        %587 = vmatprep.mubr.bf16.mxu0 0
        %588 = vmatmul.mubr.bf16.gmra.mxu0 %v433
        %v589 = vpop.f32.mrf.mxu0
        %v590 = vadd.f32 %v292, %v589
        %v591 = vpop.f32.mrf.mxu0
        %v592 = vpop.f32.mrf.mxu0
        %v593 = vadd.f32 %v292, %v592
        %v594 = vpop.f32.mrf.mxu0
        %595 = vdwg.mxu0
        %596 = vst.msk [vmem:[#allocation2] sm:$0xff] %vm386, 0.0
        %597 = vst.msk [vmem:[#allocation2 + $0x8] sm:$0xff] %vm386, 0.0
        %vm598 = vcmask 254976
        %599 = vst.msk [vmem:[#allocation2 + $0x10] sm:$0x3] %vm598, 0.0
        %s600 = scalar_lea.vmem [#allocation2], 408
        %601 = vst.msk [vmem:[%s600] sm:$0xff] %vm386, 0.0
        %602 = vst.msk [vmem:[%s600 + $0x8] sm:$0xff] %vm386, 0.0
        %603 = vst.msk [vmem:[%s600 + $0x10] sm:$0x3] %vm598, 0.0
        %vm604 = vcmask 253952
        %605 = vst.msk [vmem:[#allocation2] sm:$0x1] %vm604, 0.0
        %606 = vst.msk [vmem:[#allocation2 + $0x18] sm:$0x1] %vm604, 0.0
        %607 = vst.msk [vmem:[#allocation2 + $0x30] sm:$0x1] %vm604, 0.0
        %608 = vst.msk [vmem:[#allocation2 + $0x48] sm:$0x1] %vm604, 0.0
        %609 = vst.msk [vmem:[#allocation2 + $0x60] sm:$0x1] %vm604, 0.0
        %610 = vst.msk [vmem:[#allocation2 + $0x78] sm:$0x1] %vm604, 0.0
        %611 = vst.msk [vmem:[#allocation2 + $0x90] sm:$0x1] %vm604, 0.0
        %612 = vst.msk [vmem:[#allocation2 + $0xa8] sm:$0x1] %vm604, 0.0
        %613 = vst.msk [vmem:[#allocation2 + $0xc0] sm:$0x1] %vm604, 0.0
        %614 = vst.msk [vmem:[#allocation2 + $0xd8] sm:$0x1] %vm604, 0.0
        %615 = vst.msk [vmem:[#allocation2 + $0xf0] sm:$0x1] %vm604, 0.0
        %616 = vst.msk [vmem:[#allocation2 + $0x108] sm:$0x1] %vm604, 0.0
        %617 = vst.msk [vmem:[#allocation2 + $0x120] sm:$0x1] %vm604, 0.0
        %618 = vst.msk [vmem:[#allocation2 + $0x138] sm:$0x1] %vm604, 0.0
        %619 = vst.msk [vmem:[#allocation2 + $0x150] sm:$0x1] %vm604, 0.0
        %620 = vst.msk [vmem:[#allocation2 + $0x168] sm:$0x1] %vm604, 0.0
        %621 = vst.msk [vmem:[#allocation2 + $0x180] sm:$0x1] %vm604, 0.0
        %622 = vst.msk [vmem:[#allocation2 + $0x198] sm:$0x1] %vm604, 0.0
        %623 = vst.msk [vmem:[#allocation2 + $0x11] sm:$0x1] %vm604, 0.0
        %624 = vst.msk [vmem:[#allocation2 + $0x29] sm:$0x1] %vm604, 0.0
        %625 = vst.msk [vmem:[#allocation2 + $0x41] sm:$0x1] %vm604, 0.0
        %626 = vst.msk [vmem:[#allocation2 + $0x59] sm:$0x1] %vm604, 0.0
        %627 = vst.msk [vmem:[#allocation2 + $0x71] sm:$0x1] %vm604, 0.0
        %628 = vst.msk [vmem:[#allocation2 + $0x89] sm:$0x1] %vm604, 0.0
        %629 = vst.msk [vmem:[#allocation2 + $0xa1] sm:$0x1] %vm604, 0.0
        %630 = vst.msk [vmem:[#allocation2 + $0xb9] sm:$0x1] %vm604, 0.0
        %631 = vst.msk [vmem:[#allocation2 + $0xd1] sm:$0x1] %vm604, 0.0
        %632 = vst.msk [vmem:[#allocation2 + $0xe9] sm:$0x1] %vm604, 0.0
        %633 = vst.msk [vmem:[#allocation2 + $0x101] sm:$0x1] %vm604, 0.0
        %634 = vst.msk [vmem:[#allocation2 + $0x119] sm:$0x1] %vm604, 0.0
        %635 = vst.msk [vmem:[#allocation2 + $0x131] sm:$0x1] %vm604, 0.0
        %636 = vst.msk [vmem:[#allocation2 + $0x149] sm:$0x1] %vm604, 0.0
        %637 = vst.msk [vmem:[#allocation2 + $0x161] sm:$0x1] %vm604, 0.0
        %638 = vst.msk [vmem:[#allocation2 + $0x179] sm:$0x1] %vm604, 0.0
        %639 = vst.msk [vmem:[#allocation2 + $0x191] sm:$0x1] %vm604, 0.0
        %640 = vst.msk [vmem:[#allocation2 + $0x1a9] sm:$0x1] %vm604, 0.0
        %s641 = scalar_lea.vmem [#allocation2], 24
        %642 = vst.msk [vmem:[%s641 + $0x1] sm:$0xff] %vm386, %v470
        %643 = vst.msk [vmem:[%s641 + $0x9] sm:$0xff] %vm386, %v473
        %644 = vst.msk [vmem:[%s641 + $0x19] sm:$0xff] %vm386, %v478
        %645 = vst.msk [vmem:[%s641 + $0x21] sm:$0xff] %vm386, %v481
        %646 = vst.msk [vmem:[%s641 + $0x31] sm:$0xff] %vm386, %v486
        %647 = vst.msk [vmem:[%s641 + $0x39] sm:$0xff] %vm386, %v489
        %648 = vst.msk [vmem:[%s641 + $0x49] sm:$0xff] %vm386, %v494
        %649 = vst.msk [vmem:[%s641 + $0x51] sm:$0xff] %vm386, %v497
        %650 = vst.msk [vmem:[%s641 + $0x61] sm:$0xff] %vm386, %v502
        %651 = vst.msk [vmem:[%s641 + $0x69] sm:$0xff] %vm386, %v505
        %652 = vst.msk [vmem:[%s641 + $0x79] sm:$0xff] %vm386, %v510
        %653 = vst.msk [vmem:[%s641 + $0x81] sm:$0xff] %vm386, %v513
        %654 = vst.msk [vmem:[%s641 + $0x91] sm:$0xff] %vm386, %v518
        %655 = vst.msk [vmem:[%s641 + $0x99] sm:$0xff] %vm386, %v521
        %656 = vst.msk [vmem:[%s641 + $0xa9] sm:$0xff] %vm386, %v526
        %657 = vst.msk [vmem:[%s641 + $0xb1] sm:$0xff] %vm386, %v529
        %658 = vst.msk [vmem:[%s641 + $0xc1] sm:$0xff] %vm386, %v534
        %659 = vst.msk [vmem:[%s641 + $0xc9] sm:$0xff] %vm386, %v537
        %660 = vst.msk [vmem:[%s641 + $0xd9] sm:$0xff] %vm386, %v542
        %661 = vst.msk [vmem:[%s641 + $0xe1] sm:$0xff] %vm386, %v545
        %662 = vst.msk [vmem:[%s641 + $0xf1] sm:$0xff] %vm386, %v550
        %663 = vst.msk [vmem:[%s641 + $0xf9] sm:$0xff] %vm386, %v553
        %664 = vst.msk [vmem:[%s641 + $0x109] sm:$0xff] %vm386, %v558
        %665 = vst.msk [vmem:[%s641 + $0x111] sm:$0xff] %vm386, %v561
        %666 = vst.msk [vmem:[%s641 + $0x121] sm:$0xff] %vm386, %v566
        %667 = vst.msk [vmem:[%s641 + $0x129] sm:$0xff] %vm386, %v569
        %668 = vst.msk [vmem:[%s641 + $0x139] sm:$0xff] %vm386, %v574
        %669 = vst.msk [vmem:[%s641 + $0x141] sm:$0xff] %vm386, %v577
        %670 = vst.msk [vmem:[%s641 + $0x151] sm:$0xff] %vm386, %v582
        %671 = vst.msk [vmem:[%s641 + $0x159] sm:$0xff] %vm386, %v585
        %672 = vst.msk [vmem:[%s641 + $0x169] sm:$0xff] %vm386, %v590
        %673 = vst.msk [vmem:[%s641 + $0x171] sm:$0xff] %vm386, %v593
        %v674 = vld [vmem:[#allocation2] sm:$0xff]
        %v675 = vld [vmem:[#allocation2 + $0x8] sm:$0xff]
        %v676 = vld [vmem:[#allocation2 + $0x18] sm:$0xff]
        %v677 = vld [vmem:[#allocation2 + $0x20] sm:$0xff]
        %v678 = vld [vmem:[#allocation2 + $0x30] sm:$0xff]
        %v679 = vld [vmem:[#allocation2 + $0x38] sm:$0xff]
        %v680 = vld [vmem:[#allocation2 + $0x48] sm:$0xff]
        %v681 = vld [vmem:[#allocation2 + $0x50] sm:$0xff]
        %v682 = vld [vmem:[#allocation2 + $0x60] sm:$0xff]
        %v683 = vld [vmem:[#allocation2 + $0x68] sm:$0xff]
        %v684 = vld [vmem:[#allocation2 + $0x78] sm:$0xff]
        %v685 = vld [vmem:[#allocation2 + $0x80] sm:$0xff]
        %v686 = vld [vmem:[#allocation2 + $0x90] sm:$0xff]
        %v687 = vld [vmem:[#allocation2 + $0x98] sm:$0xff]
        %v688 = vld [vmem:[#allocation2 + $0xa8] sm:$0xff]
        %v689 = vld [vmem:[#allocation2 + $0xb0] sm:$0xff]
        %v690 = vld [vmem:[#allocation2 + $0xc0] sm:$0xff]
        %v691 = vld [vmem:[#allocation2 + $0xc8] sm:$0xff]
        %v692 = vld [vmem:[#allocation2 + $0xd8] sm:$0xff]
        %v693 = vld [vmem:[#allocation2 + $0xe0] sm:$0xff]
        %v694 = vld [vmem:[#allocation2 + $0xf0] sm:$0xff]
        %v695 = vld [vmem:[#allocation2 + $0xf8] sm:$0xff]
        %v696 = vld [vmem:[#allocation2 + $0x108] sm:$0xff]
        %v697 = vld [vmem:[#allocation2 + $0x110] sm:$0xff]
        %v698 = vld [vmem:[#allocation2 + $0x120] sm:$0xff]
        %v699 = vld [vmem:[#allocation2 + $0x128] sm:$0xff]
        %v700 = vld [vmem:[#allocation2 + $0x138] sm:$0xff]
        %v701 = vld [vmem:[#allocation2 + $0x140] sm:$0xff]
        %v702 = vld [vmem:[#allocation2 + $0x150] sm:$0xff]
        %v703 = vld [vmem:[#allocation2 + $0x158] sm:$0xff]
        %v704 = vld [vmem:[#allocation2 + $0x168] sm:$0xff]
        %v705 = vld [vmem:[#allocation2 + $0x170] sm:$0xff]
        %v706 = vpack.c.bf16 %v675, %v674
        %v707 = vpack.c.bf16 %v677, %v676
        %v708 = vpack.c.bf16 %v679, %v678
        %v709 = vpack.c.bf16 %v681, %v680
        %v710 = vpack.c.bf16 %v683, %v682
        %v711 = vpack.c.bf16 %v685, %v684
        %v712 = vpack.c.bf16 %v687, %v686
        %v713 = vpack.c.bf16 %v689, %v688
        %v714 = vpack.c.bf16 %v691, %v690
        %v715 = vpack.c.bf16 %v693, %v692
        %v716 = vpack.c.bf16 %v695, %v694
        %v717 = vpack.c.bf16 %v697, %v696
        %v718 = vpack.c.bf16 %v699, %v698
        %v719 = vpack.c.bf16 %v701, %v700
        %v720 = vpack.c.bf16 %v703, %v702
        %v721 = vpack.c.bf16 %v705, %v704
        %v738 = vunpack.c.l.b16 %v706
        %v739 = vunpack.c.h.b16 %v706
        %v740 = vunpack.c.l.b16 %v707
        %v741 = vunpack.c.h.b16 %v707
        %v742 = vunpack.c.l.b16 %v708
        %v743 = vunpack.c.h.b16 %v708
        %v744 = vunpack.c.l.b16 %v709
        %v745 = vunpack.c.h.b16 %v709
        %v746 = vunpack.c.l.b16 %v710
        %v747 = vunpack.c.h.b16 %v710
        %v748 = vunpack.c.l.b16 %v711
        %v749 = vunpack.c.h.b16 %v711
        %v750 = vunpack.c.l.b16 %v712
        %v751 = vunpack.c.h.b16 %v712
        %v752 = vunpack.c.l.b16 %v713
        %v753 = vunpack.c.h.b16 %v713
        %v754 = vunpack.c.l.b16 %v714
        %v755 = vunpack.c.h.b16 %v714
        %v756 = vunpack.c.l.b16 %v715
        %v757 = vunpack.c.h.b16 %v715
        %v758 = vunpack.c.l.b16 %v716
        %v759 = vunpack.c.h.b16 %v716
        %v760 = vunpack.c.l.b16 %v717
        %v761 = vunpack.c.h.b16 %v717
        %v762 = vunpack.c.l.b16 %v718
        %v763 = vunpack.c.h.b16 %v718
        %v764 = vunpack.c.l.b16 %v719
        %v765 = vunpack.c.h.b16 %v719
        %v766 = vunpack.c.l.b16 %v720
        %v767 = vunpack.c.h.b16 %v720
        %v768 = vunpack.c.l.b16 %v721
        %v769 = vunpack.c.h.b16 %v721
        %v770 = vpack.c.b16 %v738, %v738
        %v771 = vpack.c.b16 %v739, %v739
        %v772 = vpack.c.b16 %v740, %v740
        %v773 = vpack.c.b16 %v741, %v741
        %v774 = vpack.c.b16 %v742, %v742
        %v775 = vpack.c.b16 %v743, %v743
        %v776 = vpack.c.b16 %v744, %v744
        %v777 = vpack.c.b16 %v745, %v745
        %v778 = vpack.c.b16 %v746, %v746
        %v779 = vpack.c.b16 %v747, %v747
        %v780 = vpack.c.b16 %v748, %v748
        %v781 = vpack.c.b16 %v749, %v749
        %v782 = vpack.c.b16 %v750, %v750
        %v783 = vpack.c.b16 %v751, %v751
        %v784 = vpack.c.b16 %v752, %v752
        %v785 = vpack.c.b16 %v753, %v753
        %v786 = vpack.c.b16 %v754, %v754
        %v787 = vpack.c.b16 %v755, %v755
        %v788 = vpack.c.b16 %v756, %v756
        %v789 = vpack.c.b16 %v757, %v757
        %v790 = vpack.c.b16 %v758, %v758
        %v791 = vpack.c.b16 %v759, %v759
        %v792 = vpack.c.b16 %v760, %v760
        %v793 = vpack.c.b16 %v761, %v761
        %v794 = vpack.c.b16 %v762, %v762
        %v795 = vpack.c.b16 %v763, %v763
        %v796 = vpack.c.b16 %v764, %v764
        %v797 = vpack.c.b16 %v765, %v765
        %v798 = vpack.c.b16 %v766, %v766
        %v799 = vpack.c.b16 %v767, %v767
        %v800 = vpack.c.b16 %v768, %v768
        %v801 = vpack.c.b16 %v769, %v769
        %vm834 = vcmask 257024
        %835 = vst.msk [vmem:[#allocation4] sm:$0xf] %vm834, %v770
        %836 = vst.msk [vmem:[#allocation4 + $0xc] sm:$0xf] %vm834, %v771
        %837 = vst.msk [vmem:[#allocation4 + $0x18] sm:$0xf] %vm834, %v772
        %838 = vst.msk [vmem:[#allocation4 + $0x24] sm:$0xf] %vm834, %v773
        %839 = vst.msk [vmem:[#allocation4 + $0x30] sm:$0xf] %vm834, %v774
        %840 = vst.msk [vmem:[#allocation4 + $0x3c] sm:$0xf] %vm834, %v775
        %841 = vst.msk [vmem:[#allocation4 + $0x48] sm:$0xf] %vm834, %v776
        %842 = vst.msk [vmem:[#allocation4 + $0x54] sm:$0xf] %vm834, %v777
        %843 = vst.msk [vmem:[#allocation4 + $0x60] sm:$0xf] %vm834, %v778
        %844 = vst.msk [vmem:[#allocation4 + $0x6c] sm:$0xf] %vm834, %v779
        %845 = vst.msk [vmem:[#allocation4 + $0x78] sm:$0xf] %vm834, %v780
        %846 = vst.msk [vmem:[#allocation4 + $0x84] sm:$0xf] %vm834, %v781
        %847 = vst.msk [vmem:[#allocation4 + $0x90] sm:$0xf] %vm834, %v782
        %848 = vst.msk [vmem:[#allocation4 + $0x9c] sm:$0xf] %vm834, %v783
        %849 = vst.msk [vmem:[#allocation4 + $0xa8] sm:$0xf] %vm834, %v784
        %850 = vst.msk [vmem:[#allocation4 + $0xb4] sm:$0xf] %vm834, %v785
        %851 = vst.msk [vmem:[#allocation4 + $0xc0] sm:$0xf] %vm834, %v786
        %852 = vst.msk [vmem:[#allocation4 + $0xcc] sm:$0xf] %vm834, %v787
        %853 = vst.msk [vmem:[#allocation4 + $0xd8] sm:$0xf] %vm834, %v788
        %854 = vst.msk [vmem:[#allocation4 + $0xe4] sm:$0xf] %vm834, %v789
        %855 = vst.msk [vmem:[#allocation4 + $0xf0] sm:$0xf] %vm834, %v790
        %856 = vst.msk [vmem:[#allocation4 + $0xfc] sm:$0xf] %vm834, %v791
        %857 = vst.msk [vmem:[#allocation4 + $0x108] sm:$0xf] %vm834, %v792
        %858 = vst.msk [vmem:[#allocation4 + $0x114] sm:$0xf] %vm834, %v793
        %859 = vst.msk [vmem:[#allocation4 + $0x120] sm:$0xf] %vm834, %v794
        %860 = vst.msk [vmem:[#allocation4 + $0x12c] sm:$0xf] %vm834, %v795
        %861 = vst.msk [vmem:[#allocation4 + $0x138] sm:$0xf] %vm834, %v796
        %862 = vst.msk [vmem:[#allocation4 + $0x144] sm:$0xf] %vm834, %v797
        %863 = vst.msk [vmem:[#allocation4 + $0x150] sm:$0xf] %vm834, %v798
        %864 = vst.msk [vmem:[#allocation4 + $0x15c] sm:$0xf] %vm834, %v799
        %865 = vst.msk [vmem:[#allocation4 + $0x168] sm:$0xf] %vm834, %v800
        %866 = vst.msk [vmem:[#allocation4 + $0x174] sm:$0xf] %vm834, %v801
        %v867 = vld [vmem:[#allocation2 + $0x1] sm:$0xff]
        %v868 = vld [vmem:[#allocation2 + $0x9] sm:$0xff]
        %v869 = vld [vmem:[#allocation2 + $0x19] sm:$0xff]
        %v870 = vld [vmem:[#allocation2 + $0x21] sm:$0xff]
        %v871 = vld [vmem:[#allocation2 + $0x31] sm:$0xff]
        %v872 = vld [vmem:[#allocation2 + $0x39] sm:$0xff]
        %v873 = vld [vmem:[#allocation2 + $0x49] sm:$0xff]
        %v874 = vld [vmem:[#allocation2 + $0x51] sm:$0xff]
        %v875 = vld [vmem:[#allocation2 + $0x61] sm:$0xff]
        %v876 = vld [vmem:[#allocation2 + $0x69] sm:$0xff]
        %v877 = vld [vmem:[#allocation2 + $0x79] sm:$0xff]
        %v878 = vld [vmem:[#allocation2 + $0x81] sm:$0xff]
        %v879 = vld [vmem:[#allocation2 + $0x91] sm:$0xff]
        %v880 = vld [vmem:[#allocation2 + $0x99] sm:$0xff]
        %v881 = vld [vmem:[#allocation2 + $0xa9] sm:$0xff]
        %v882 = vld [vmem:[#allocation2 + $0xb1] sm:$0xff]
        %v883 = vld [vmem:[#allocation2 + $0xc1] sm:$0xff]
        %v884 = vld [vmem:[#allocation2 + $0xc9] sm:$0xff]
        %v885 = vld [vmem:[#allocation2 + $0xd9] sm:$0xff]
        %v886 = vld [vmem:[#allocation2 + $0xe1] sm:$0xff]
        %v887 = vld [vmem:[#allocation2 + $0xf1] sm:$0xff]
        %v888 = vld [vmem:[#allocation2 + $0xf9] sm:$0xff]
        %v889 = vld [vmem:[#allocation2 + $0x109] sm:$0xff]
        %v890 = vld [vmem:[#allocation2 + $0x111] sm:$0xff]
        %v891 = vld [vmem:[#allocation2 + $0x121] sm:$0xff]
        %v892 = vld [vmem:[#allocation2 + $0x129] sm:$0xff]
        %v893 = vld [vmem:[#allocation2 + $0x139] sm:$0xff]
        %v894 = vld [vmem:[#allocation2 + $0x141] sm:$0xff]
        %v895 = vld [vmem:[#allocation2 + $0x151] sm:$0xff]
        %v896 = vld [vmem:[#allocation2 + $0x159] sm:$0xff]
        %v897 = vld [vmem:[#allocation2 + $0x169] sm:$0xff]
        %v898 = vld [vmem:[#allocation2 + $0x171] sm:$0xff]
        %v899 = vpack.c.bf16 %v868, %v867
        %v900 = vpack.c.bf16 %v870, %v869
        %v901 = vpack.c.bf16 %v872, %v871
        %v902 = vpack.c.bf16 %v874, %v873
        %v903 = vpack.c.bf16 %v876, %v875
        %v904 = vpack.c.bf16 %v878, %v877
        %v905 = vpack.c.bf16 %v880, %v879
        %v906 = vpack.c.bf16 %v882, %v881
        %v907 = vpack.c.bf16 %v884, %v883
        %v908 = vpack.c.bf16 %v886, %v885
        %v909 = vpack.c.bf16 %v888, %v887
        %v910 = vpack.c.bf16 %v890, %v889
        %v911 = vpack.c.bf16 %v892, %v891
        %v912 = vpack.c.bf16 %v894, %v893
        %v913 = vpack.c.bf16 %v896, %v895
        %v914 = vpack.c.bf16 %v898, %v897
        %v931 = vunpack.c.l.b16 %v899
        %v932 = vunpack.c.h.b16 %v899
        %v933 = vunpack.c.l.b16 %v900
        %v934 = vunpack.c.h.b16 %v900
        %v935 = vunpack.c.l.b16 %v901
        %v936 = vunpack.c.h.b16 %v901
        %v937 = vunpack.c.l.b16 %v902
        %v938 = vunpack.c.h.b16 %v902
        %v939 = vunpack.c.l.b16 %v903
        %v940 = vunpack.c.h.b16 %v903
        %v941 = vunpack.c.l.b16 %v904
        %v942 = vunpack.c.h.b16 %v904
        %v943 = vunpack.c.l.b16 %v905
        %v944 = vunpack.c.h.b16 %v905
        %v945 = vunpack.c.l.b16 %v906
        %v946 = vunpack.c.h.b16 %v906
        %v947 = vunpack.c.l.b16 %v907
        %v948 = vunpack.c.h.b16 %v907
        %v949 = vunpack.c.l.b16 %v908
        %v950 = vunpack.c.h.b16 %v908
        %v951 = vunpack.c.l.b16 %v909
        %v952 = vunpack.c.h.b16 %v909
        %v953 = vunpack.c.l.b16 %v910
        %v954 = vunpack.c.h.b16 %v910
        %v955 = vunpack.c.l.b16 %v911
        %v956 = vunpack.c.h.b16 %v911
        %v957 = vunpack.c.l.b16 %v912
        %v958 = vunpack.c.h.b16 %v912
        %v959 = vunpack.c.l.b16 %v913
        %v960 = vunpack.c.h.b16 %v913
        %v961 = vunpack.c.l.b16 %v914
        %v962 = vunpack.c.h.b16 %v914
        %v963 = vpack.c.b16 %v931, %v931
        %v964 = vpack.c.b16 %v932, %v932
        %v965 = vpack.c.b16 %v933, %v933
        %v966 = vpack.c.b16 %v934, %v934
        %v967 = vpack.c.b16 %v935, %v935
        %v968 = vpack.c.b16 %v936, %v936
        %v969 = vpack.c.b16 %v937, %v937
        %v970 = vpack.c.b16 %v938, %v938
        %v971 = vpack.c.b16 %v939, %v939
        %v972 = vpack.c.b16 %v940, %v940
        %v973 = vpack.c.b16 %v941, %v941
        %v974 = vpack.c.b16 %v942, %v942
        %v975 = vpack.c.b16 %v943, %v943
        %v976 = vpack.c.b16 %v944, %v944
        %v977 = vpack.c.b16 %v945, %v945
        %v978 = vpack.c.b16 %v946, %v946
        %v979 = vpack.c.b16 %v947, %v947
        %v980 = vpack.c.b16 %v948, %v948
        %v981 = vpack.c.b16 %v949, %v949
        %v982 = vpack.c.b16 %v950, %v950
        %v983 = vpack.c.b16 %v951, %v951
        %v984 = vpack.c.b16 %v952, %v952
        %v985 = vpack.c.b16 %v953, %v953
        %v986 = vpack.c.b16 %v954, %v954
        %v987 = vpack.c.b16 %v955, %v955
        %v988 = vpack.c.b16 %v956, %v956
        %v989 = vpack.c.b16 %v957, %v957
        %v990 = vpack.c.b16 %v958, %v958
        %v991 = vpack.c.b16 %v959, %v959
        %v992 = vpack.c.b16 %v960, %v960
        %v993 = vpack.c.b16 %v961, %v961
        %v994 = vpack.c.b16 %v962, %v962
        %995 = vrot.lane.b32.xlu0 %v963, 32
        %v996 = vpop.permute.xlu0 %995
        %997 = vrot.lane.b32.xlu0 %v964, 32
        %v998 = vpop.permute.xlu0 %997
        %999 = vrot.lane.b32.xlu0 %v965, 32
        %v1000 = vpop.permute.xlu0 %999
        %1001 = vrot.lane.b32.xlu0 %v966, 32
        %v1002 = vpop.permute.xlu0 %1001
        %1003 = vrot.lane.b32.xlu0 %v967, 32
        %v1004 = vpop.permute.xlu0 %1003
        %1005 = vrot.lane.b32.xlu0 %v968, 32
        %v1006 = vpop.permute.xlu0 %1005
        %1007 = vrot.lane.b32.xlu0 %v969, 32
        %v1008 = vpop.permute.xlu0 %1007
        %1009 = vrot.lane.b32.xlu0 %v970, 32
        %v1010 = vpop.permute.xlu0 %1009
        %1011 = vrot.lane.b32.xlu0 %v971, 32
        %v1012 = vpop.permute.xlu0 %1011
        %1013 = vrot.lane.b32.xlu0 %v972, 32
        %v1014 = vpop.permute.xlu0 %1013
        %1015 = vrot.lane.b32.xlu0 %v973, 32
        %v1016 = vpop.permute.xlu0 %1015
        %1017 = vrot.lane.b32.xlu0 %v974, 32
        %v1018 = vpop.permute.xlu0 %1017
        %1019 = vrot.lane.b32.xlu0 %v975, 32
        %v1020 = vpop.permute.xlu0 %1019
        %1021 = vrot.lane.b32.xlu0 %v976, 32
        %v1022 = vpop.permute.xlu0 %1021
        %1023 = vrot.lane.b32.xlu0 %v977, 32
        %v1024 = vpop.permute.xlu0 %1023
        %1025 = vrot.lane.b32.xlu0 %v978, 32
        %v1026 = vpop.permute.xlu0 %1025
        %1027 = vrot.lane.b32.xlu0 %v979, 32
        %v1028 = vpop.permute.xlu0 %1027
        %1029 = vrot.lane.b32.xlu0 %v980, 32
        %v1030 = vpop.permute.xlu0 %1029
        %1031 = vrot.lane.b32.xlu0 %v981, 32
        %v1032 = vpop.permute.xlu0 %1031
        %1033 = vrot.lane.b32.xlu0 %v982, 32
        %v1034 = vpop.permute.xlu0 %1033
        %1035 = vrot.lane.b32.xlu0 %v983, 32
        %v1036 = vpop.permute.xlu0 %1035
        %1037 = vrot.lane.b32.xlu0 %v984, 32
        %v1038 = vpop.permute.xlu0 %1037
        %1039 = vrot.lane.b32.xlu0 %v985, 32
        %v1040 = vpop.permute.xlu0 %1039
        %1041 = vrot.lane.b32.xlu0 %v986, 32
        %v1042 = vpop.permute.xlu0 %1041
        %1043 = vrot.lane.b32.xlu0 %v987, 32
        %v1044 = vpop.permute.xlu0 %1043
        %1045 = vrot.lane.b32.xlu0 %v988, 32
        %v1046 = vpop.permute.xlu0 %1045
        %1047 = vrot.lane.b32.xlu0 %v989, 32
        %v1048 = vpop.permute.xlu0 %1047
        %1049 = vrot.lane.b32.xlu0 %v990, 32
        %v1050 = vpop.permute.xlu0 %1049
        %1051 = vrot.lane.b32.xlu0 %v991, 32
        %v1052 = vpop.permute.xlu0 %1051
        %1053 = vrot.lane.b32.xlu0 %v992, 32
        %v1054 = vpop.permute.xlu0 %1053
        %1055 = vrot.lane.b32.xlu0 %v993, 32
        %v1056 = vpop.permute.xlu0 %1055
        %1057 = vrot.lane.b32.xlu0 %v994, 32
        %v1058 = vpop.permute.xlu0 %1057
        %vm1091 = vcmask 519424
        %1092 = vst.msk [vmem:[#allocation4] sm:$0xf] %vm1091, %v996
        %1093 = vst.msk [vmem:[#allocation4 + $0xc] sm:$0xf] %vm1091, %v998
        %1094 = vst.msk [vmem:[#allocation4 + $0x18] sm:$0xf] %vm1091, %v1000
        %1095 = vst.msk [vmem:[#allocation4 + $0x24] sm:$0xf] %vm1091, %v1002
        %1096 = vst.msk [vmem:[#allocation4 + $0x30] sm:$0xf] %vm1091, %v1004
        %1097 = vst.msk [vmem:[#allocation4 + $0x3c] sm:$0xf] %vm1091, %v1006
        %1098 = vst.msk [vmem:[#allocation4 + $0x48] sm:$0xf] %vm1091, %v1008
        %1099 = vst.msk [vmem:[#allocation4 + $0x54] sm:$0xf] %vm1091, %v1010
        %1100 = vst.msk [vmem:[#allocation4 + $0x60] sm:$0xf] %vm1091, %v1012
        %1101 = vst.msk [vmem:[#allocation4 + $0x6c] sm:$0xf] %vm1091, %v1014
        %1102 = vst.msk [vmem:[#allocation4 + $0x78] sm:$0xf] %vm1091, %v1016
        %1103 = vst.msk [vmem:[#allocation4 + $0x84] sm:$0xf] %vm1091, %v1018
        %1104 = vst.msk [vmem:[#allocation4 + $0x90] sm:$0xf] %vm1091, %v1020
        %1105 = vst.msk [vmem:[#allocation4 + $0x9c] sm:$0xf] %vm1091, %v1022
        %1106 = vst.msk [vmem:[#allocation4 + $0xa8] sm:$0xf] %vm1091, %v1024
        %1107 = vst.msk [vmem:[#allocation4 + $0xb4] sm:$0xf] %vm1091, %v1026
        %1108 = vst.msk [vmem:[#allocation4 + $0xc0] sm:$0xf] %vm1091, %v1028
        %1109 = vst.msk [vmem:[#allocation4 + $0xcc] sm:$0xf] %vm1091, %v1030
        %1110 = vst.msk [vmem:[#allocation4 + $0xd8] sm:$0xf] %vm1091, %v1032
        %1111 = vst.msk [vmem:[#allocation4 + $0xe4] sm:$0xf] %vm1091, %v1034
        %1112 = vst.msk [vmem:[#allocation4 + $0xf0] sm:$0xf] %vm1091, %v1036
        %1113 = vst.msk [vmem:[#allocation4 + $0xfc] sm:$0xf] %vm1091, %v1038
        %1114 = vst.msk [vmem:[#allocation4 + $0x108] sm:$0xf] %vm1091, %v1040
        %1115 = vst.msk [vmem:[#allocation4 + $0x114] sm:$0xf] %vm1091, %v1042
        %1116 = vst.msk [vmem:[#allocation4 + $0x120] sm:$0xf] %vm1091, %v1044
        %1117 = vst.msk [vmem:[#allocation4 + $0x12c] sm:$0xf] %vm1091, %v1046
        %1118 = vst.msk [vmem:[#allocation4 + $0x138] sm:$0xf] %vm1091, %v1048
        %1119 = vst.msk [vmem:[#allocation4 + $0x144] sm:$0xf] %vm1091, %v1050
        %1120 = vst.msk [vmem:[#allocation4 + $0x150] sm:$0xf] %vm1091, %v1052
        %1121 = vst.msk [vmem:[#allocation4 + $0x15c] sm:$0xf] %vm1091, %v1054
        %1122 = vst.msk [vmem:[#allocation4 + $0x168] sm:$0xf] %vm1091, %v1056
        %1123 = vst.msk [vmem:[#allocation4 + $0x174] sm:$0xf] %vm1091, %v1058
        %v1124 = vld [vmem:[#allocation2 + $0x2] sm:$0xff]
        %v1125 = vld [vmem:[#allocation2 + $0xa] sm:$0xff]
        %v1126 = vld [vmem:[#allocation2 + $0x1a] sm:$0xff]
        %v1127 = vld [vmem:[#allocation2 + $0x22] sm:$0xff]
        %v1128 = vld [vmem:[#allocation2 + $0x32] sm:$0xff]
        %v1129 = vld [vmem:[#allocation2 + $0x3a] sm:$0xff]
        %v1130 = vld [vmem:[#allocation2 + $0x4a] sm:$0xff]
        %v1131 = vld [vmem:[#allocation2 + $0x52] sm:$0xff]
        %v1132 = vld [vmem:[#allocation2 + $0x62] sm:$0xff]
        %v1133 = vld [vmem:[#allocation2 + $0x6a] sm:$0xff]
        %v1134 = vld [vmem:[#allocation2 + $0x7a] sm:$0xff]
        %v1135 = vld [vmem:[#allocation2 + $0x82] sm:$0xff]
        %v1136 = vld [vmem:[#allocation2 + $0x92] sm:$0xff]
        %v1137 = vld [vmem:[#allocation2 + $0x9a] sm:$0xff]
        %v1138 = vld [vmem:[#allocation2 + $0xaa] sm:$0xff]
        %v1139 = vld [vmem:[#allocation2 + $0xb2] sm:$0xff]
        %v1140 = vld [vmem:[#allocation2 + $0xc2] sm:$0xff]
        %v1141 = vld [vmem:[#allocation2 + $0xca] sm:$0xff]
        %v1142 = vld [vmem:[#allocation2 + $0xda] sm:$0xff]
        %v1143 = vld [vmem:[#allocation2 + $0xe2] sm:$0xff]
        %v1144 = vld [vmem:[#allocation2 + $0xf2] sm:$0xff]
        %v1145 = vld [vmem:[#allocation2 + $0xfa] sm:$0xff]
        %v1146 = vld [vmem:[#allocation2 + $0x10a] sm:$0xff]
        %v1147 = vld [vmem:[#allocation2 + $0x112] sm:$0xff]
        %v1148 = vld [vmem:[#allocation2 + $0x122] sm:$0xff]
        %v1149 = vld [vmem:[#allocation2 + $0x12a] sm:$0xff]
        %v1150 = vld [vmem:[#allocation2 + $0x13a] sm:$0xff]
        %v1151 = vld [vmem:[#allocation2 + $0x142] sm:$0xff]
        %v1152 = vld [vmem:[#allocation2 + $0x152] sm:$0xff]
        %v1153 = vld [vmem:[#allocation2 + $0x15a] sm:$0xff]
        %v1154 = vld [vmem:[#allocation2 + $0x16a] sm:$0xff]
        %v1155 = vld [vmem:[#allocation2 + $0x172] sm:$0xff]
        %v1156 = vpack.c.bf16 %v1125, %v1124
        %v1157 = vpack.c.bf16 %v1127, %v1126
        %v1158 = vpack.c.bf16 %v1129, %v1128
        %v1159 = vpack.c.bf16 %v1131, %v1130
        %v1160 = vpack.c.bf16 %v1133, %v1132
        %v1161 = vpack.c.bf16 %v1135, %v1134
        %v1162 = vpack.c.bf16 %v1137, %v1136
        %v1163 = vpack.c.bf16 %v1139, %v1138
        %v1164 = vpack.c.bf16 %v1141, %v1140
        %v1165 = vpack.c.bf16 %v1143, %v1142
        %v1166 = vpack.c.bf16 %v1145, %v1144
        %v1167 = vpack.c.bf16 %v1147, %v1146
        %v1168 = vpack.c.bf16 %v1149, %v1148
        %v1169 = vpack.c.bf16 %v1151, %v1150
        %v1170 = vpack.c.bf16 %v1153, %v1152
        %v1171 = vpack.c.bf16 %v1155, %v1154
        %v1188 = vunpack.c.l.b16 %v1156
        %v1189 = vunpack.c.h.b16 %v1156
        %v1190 = vunpack.c.l.b16 %v1157
        %v1191 = vunpack.c.h.b16 %v1157
        %v1192 = vunpack.c.l.b16 %v1158
        %v1193 = vunpack.c.h.b16 %v1158
        %v1194 = vunpack.c.l.b16 %v1159
        %v1195 = vunpack.c.h.b16 %v1159
        %v1196 = vunpack.c.l.b16 %v1160
        %v1197 = vunpack.c.h.b16 %v1160
        %v1198 = vunpack.c.l.b16 %v1161
        %v1199 = vunpack.c.h.b16 %v1161
        %v1200 = vunpack.c.l.b16 %v1162
        %v1201 = vunpack.c.h.b16 %v1162
        %v1202 = vunpack.c.l.b16 %v1163
        %v1203 = vunpack.c.h.b16 %v1163
        %v1204 = vunpack.c.l.b16 %v1164
        %v1205 = vunpack.c.h.b16 %v1164
        %v1206 = vunpack.c.l.b16 %v1165
        %v1207 = vunpack.c.h.b16 %v1165
        %v1208 = vunpack.c.l.b16 %v1166
        %v1209 = vunpack.c.h.b16 %v1166
        %v1210 = vunpack.c.l.b16 %v1167
        %v1211 = vunpack.c.h.b16 %v1167
        %v1212 = vunpack.c.l.b16 %v1168
        %v1213 = vunpack.c.h.b16 %v1168
        %v1214 = vunpack.c.l.b16 %v1169
        %v1215 = vunpack.c.h.b16 %v1169
        %v1216 = vunpack.c.l.b16 %v1170
        %v1217 = vunpack.c.h.b16 %v1170
        %v1218 = vunpack.c.l.b16 %v1171
        %v1219 = vunpack.c.h.b16 %v1171
        %v1220 = vpack.c.b16 %v1188, %v1188
        %v1221 = vpack.c.b16 %v1189, %v1189
        %v1222 = vpack.c.b16 %v1190, %v1190
        %v1223 = vpack.c.b16 %v1191, %v1191
        %v1224 = vpack.c.b16 %v1192, %v1192
        %v1225 = vpack.c.b16 %v1193, %v1193
        %v1226 = vpack.c.b16 %v1194, %v1194
        %v1227 = vpack.c.b16 %v1195, %v1195
        %v1228 = vpack.c.b16 %v1196, %v1196
        %v1229 = vpack.c.b16 %v1197, %v1197
        %v1230 = vpack.c.b16 %v1198, %v1198
        %v1231 = vpack.c.b16 %v1199, %v1199
        %v1232 = vpack.c.b16 %v1200, %v1200
        %v1233 = vpack.c.b16 %v1201, %v1201
        %v1234 = vpack.c.b16 %v1202, %v1202
        %v1235 = vpack.c.b16 %v1203, %v1203
        %v1236 = vpack.c.b16 %v1204, %v1204
        %v1237 = vpack.c.b16 %v1205, %v1205
        %v1238 = vpack.c.b16 %v1206, %v1206
        %v1239 = vpack.c.b16 %v1207, %v1207
        %v1240 = vpack.c.b16 %v1208, %v1208
        %v1241 = vpack.c.b16 %v1209, %v1209
        %v1242 = vpack.c.b16 %v1210, %v1210
        %v1243 = vpack.c.b16 %v1211, %v1211
        %v1244 = vpack.c.b16 %v1212, %v1212
        %v1245 = vpack.c.b16 %v1213, %v1213
        %v1246 = vpack.c.b16 %v1214, %v1214
        %v1247 = vpack.c.b16 %v1215, %v1215
        %v1248 = vpack.c.b16 %v1216, %v1216
        %v1249 = vpack.c.b16 %v1217, %v1217
        %v1250 = vpack.c.b16 %v1218, %v1218
        %v1251 = vpack.c.b16 %v1219, %v1219
        %1252 = vrot.lane.b32.xlu0 %v1220, 64
        %v1253 = vpop.permute.xlu0 %1252
        %1254 = vrot.lane.b32.xlu0 %v1221, 64
        %v1255 = vpop.permute.xlu0 %1254
        %1256 = vrot.lane.b32.xlu0 %v1222, 64
        %v1257 = vpop.permute.xlu0 %1256
        %1258 = vrot.lane.b32.xlu0 %v1223, 64
        %v1259 = vpop.permute.xlu0 %1258
        %1260 = vrot.lane.b32.xlu0 %v1224, 64
        %v1261 = vpop.permute.xlu0 %1260
        %1262 = vrot.lane.b32.xlu0 %v1225, 64
        %v1263 = vpop.permute.xlu0 %1262
        %1264 = vrot.lane.b32.xlu0 %v1226, 64
        %v1265 = vpop.permute.xlu0 %1264
        %1266 = vrot.lane.b32.xlu0 %v1227, 64
        %v1267 = vpop.permute.xlu0 %1266
        %1268 = vrot.lane.b32.xlu0 %v1228, 64
        %v1269 = vpop.permute.xlu0 %1268
        %1270 = vrot.lane.b32.xlu0 %v1229, 64
        %v1271 = vpop.permute.xlu0 %1270
        %1272 = vrot.lane.b32.xlu0 %v1230, 64
        %v1273 = vpop.permute.xlu0 %1272
        %1274 = vrot.lane.b32.xlu0 %v1231, 64
        %v1275 = vpop.permute.xlu0 %1274
        %1276 = vrot.lane.b32.xlu0 %v1232, 64
        %v1277 = vpop.permute.xlu0 %1276
        %1278 = vrot.lane.b32.xlu0 %v1233, 64
        %v1279 = vpop.permute.xlu0 %1278
        %1280 = vrot.lane.b32.xlu0 %v1234, 64
        %v1281 = vpop.permute.xlu0 %1280
        %1282 = vrot.lane.b32.xlu0 %v1235, 64
        %v1283 = vpop.permute.xlu0 %1282
        %1284 = vrot.lane.b32.xlu0 %v1236, 64
        %v1285 = vpop.permute.xlu0 %1284
        %1286 = vrot.lane.b32.xlu0 %v1237, 64
        %v1287 = vpop.permute.xlu0 %1286
        %1288 = vrot.lane.b32.xlu0 %v1238, 64
        %v1289 = vpop.permute.xlu0 %1288
        %1290 = vrot.lane.b32.xlu0 %v1239, 64
        %v1291 = vpop.permute.xlu0 %1290
        %1292 = vrot.lane.b32.xlu0 %v1240, 64
        %v1293 = vpop.permute.xlu0 %1292
        %1294 = vrot.lane.b32.xlu0 %v1241, 64
        %v1295 = vpop.permute.xlu0 %1294
        %1296 = vrot.lane.b32.xlu0 %v1242, 64
        %v1297 = vpop.permute.xlu0 %1296
        %1298 = vrot.lane.b32.xlu0 %v1243, 64
        %v1299 = vpop.permute.xlu0 %1298
        %1300 = vrot.lane.b32.xlu0 %v1244, 64
        %v1301 = vpop.permute.xlu0 %1300
        %1302 = vrot.lane.b32.xlu0 %v1245, 64
        %v1303 = vpop.permute.xlu0 %1302
        %1304 = vrot.lane.b32.xlu0 %v1246, 64
        %v1305 = vpop.permute.xlu0 %1304
        %1306 = vrot.lane.b32.xlu0 %v1247, 64
        %v1307 = vpop.permute.xlu0 %1306
        %1308 = vrot.lane.b32.xlu0 %v1248, 64
        %v1309 = vpop.permute.xlu0 %1308
        %1310 = vrot.lane.b32.xlu0 %v1249, 64
        %v1311 = vpop.permute.xlu0 %1310
        %1312 = vrot.lane.b32.xlu0 %v1250, 64
        %v1313 = vpop.permute.xlu0 %1312
        %1314 = vrot.lane.b32.xlu0 %v1251, 64
        %v1315 = vpop.permute.xlu0 %1314
        %vm1348 = vcmask 781824
        %1349 = vst.msk [vmem:[#allocation4] sm:$0xf] %vm1348, %v1253
        %1350 = vst.msk [vmem:[#allocation4 + $0xc] sm:$0xf] %vm1348, %v1255
        %1351 = vst.msk [vmem:[#allocation4 + $0x18] sm:$0xf] %vm1348, %v1257
        %1352 = vst.msk [vmem:[#allocation4 + $0x24] sm:$0xf] %vm1348, %v1259
        %1353 = vst.msk [vmem:[#allocation4 + $0x30] sm:$0xf] %vm1348, %v1261
        %1354 = vst.msk [vmem:[#allocation4 + $0x3c] sm:$0xf] %vm1348, %v1263
        %1355 = vst.msk [vmem:[#allocation4 + $0x48] sm:$0xf] %vm1348, %v1265
        %1356 = vst.msk [vmem:[#allocation4 + $0x54] sm:$0xf] %vm1348, %v1267
        %1357 = vst.msk [vmem:[#allocation4 + $0x60] sm:$0xf] %vm1348, %v1269
        %1358 = vst.msk [vmem:[#allocation4 + $0x6c] sm:$0xf] %vm1348, %v1271
        %1359 = vst.msk [vmem:[#allocation4 + $0x78] sm:$0xf] %vm1348, %v1273
        %1360 = vst.msk [vmem:[#allocation4 + $0x84] sm:$0xf] %vm1348, %v1275
        %1361 = vst.msk [vmem:[#allocation4 + $0x90] sm:$0xf] %vm1348, %v1277
        %1362 = vst.msk [vmem:[#allocation4 + $0x9c] sm:$0xf] %vm1348, %v1279
        %1363 = vst.msk [vmem:[#allocation4 + $0xa8] sm:$0xf] %vm1348, %v1281
        %1364 = vst.msk [vmem:[#allocation4 + $0xb4] sm:$0xf] %vm1348, %v1283
        %1365 = vst.msk [vmem:[#allocation4 + $0xc0] sm:$0xf] %vm1348, %v1285
        %1366 = vst.msk [vmem:[#allocation4 + $0xcc] sm:$0xf] %vm1348, %v1287
        %1367 = vst.msk [vmem:[#allocation4 + $0xd8] sm:$0xf] %vm1348, %v1289
        %1368 = vst.msk [vmem:[#allocation4 + $0xe4] sm:$0xf] %vm1348, %v1291
        %1369 = vst.msk [vmem:[#allocation4 + $0xf0] sm:$0xf] %vm1348, %v1293
        %1370 = vst.msk [vmem:[#allocation4 + $0xfc] sm:$0xf] %vm1348, %v1295
        %1371 = vst.msk [vmem:[#allocation4 + $0x108] sm:$0xf] %vm1348, %v1297
        %1372 = vst.msk [vmem:[#allocation4 + $0x114] sm:$0xf] %vm1348, %v1299
        %1373 = vst.msk [vmem:[#allocation4 + $0x120] sm:$0xf] %vm1348, %v1301
        %1374 = vst.msk [vmem:[#allocation4 + $0x12c] sm:$0xf] %vm1348, %v1303
        %1375 = vst.msk [vmem:[#allocation4 + $0x138] sm:$0xf] %vm1348, %v1305
        %1376 = vst.msk [vmem:[#allocation4 + $0x144] sm:$0xf] %vm1348, %v1307
        %1377 = vst.msk [vmem:[#allocation4 + $0x150] sm:$0xf] %vm1348, %v1309
        %1378 = vst.msk [vmem:[#allocation4 + $0x15c] sm:$0xf] %vm1348, %v1311
        %1379 = vst.msk [vmem:[#allocation4 + $0x168] sm:$0xf] %vm1348, %v1313
        %1380 = vst.msk [vmem:[#allocation4 + $0x174] sm:$0xf] %vm1348, %v1315
        %v1381 = vld [vmem:[%s641] sm:$0xff]
        %v1382 = vld [vmem:[%s641 + $0x8] sm:$0xff]
        %v1383 = vld [vmem:[%s641 + $0x18] sm:$0xff]
        %v1384 = vld [vmem:[%s641 + $0x20] sm:$0xff]
        %v1385 = vld [vmem:[%s641 + $0x30] sm:$0xff]
        %v1386 = vld [vmem:[%s641 + $0x38] sm:$0xff]
        %v1387 = vld [vmem:[%s641 + $0x48] sm:$0xff]
        %v1388 = vld [vmem:[%s641 + $0x50] sm:$0xff]
        %v1389 = vld [vmem:[%s641 + $0x60] sm:$0xff]
        %v1390 = vld [vmem:[%s641 + $0x68] sm:$0xff]
        %v1391 = vld [vmem:[%s641 + $0x78] sm:$0xff]
        %v1392 = vld [vmem:[%s641 + $0x80] sm:$0xff]
        %v1393 = vld [vmem:[%s641 + $0x90] sm:$0xff]
        %v1394 = vld [vmem:[%s641 + $0x98] sm:$0xff]
        %v1395 = vld [vmem:[%s641 + $0xa8] sm:$0xff]
        %v1396 = vld [vmem:[%s641 + $0xb0] sm:$0xff]
        %v1397 = vld [vmem:[%s641 + $0xc0] sm:$0xff]
        %v1398 = vld [vmem:[%s641 + $0xc8] sm:$0xff]
        %v1399 = vld [vmem:[%s641 + $0xd8] sm:$0xff]
        %v1400 = vld [vmem:[%s641 + $0xe0] sm:$0xff]
        %v1401 = vld [vmem:[%s641 + $0xf0] sm:$0xff]
        %v1402 = vld [vmem:[%s641 + $0xf8] sm:$0xff]
        %v1403 = vld [vmem:[%s641 + $0x108] sm:$0xff]
        %v1404 = vld [vmem:[%s641 + $0x110] sm:$0xff]
        %v1405 = vld [vmem:[%s641 + $0x120] sm:$0xff]
        %v1406 = vld [vmem:[%s641 + $0x128] sm:$0xff]
        %v1407 = vld [vmem:[%s641 + $0x138] sm:$0xff]
        %v1408 = vld [vmem:[%s641 + $0x140] sm:$0xff]
        %v1409 = vld [vmem:[%s641 + $0x150] sm:$0xff]
        %v1410 = vld [vmem:[%s641 + $0x158] sm:$0xff]
        %v1411 = vld [vmem:[%s641 + $0x168] sm:$0xff]
        %v1412 = vld [vmem:[%s641 + $0x170] sm:$0xff]
        %v1413 = vpack.c.bf16 %v1382, %v1381
        %v1414 = vpack.c.bf16 %v1384, %v1383
        %v1415 = vpack.c.bf16 %v1386, %v1385
        %v1416 = vpack.c.bf16 %v1388, %v1387
        %v1417 = vpack.c.bf16 %v1390, %v1389
        %v1418 = vpack.c.bf16 %v1392, %v1391
        %v1419 = vpack.c.bf16 %v1394, %v1393
        %v1420 = vpack.c.bf16 %v1396, %v1395
        %v1421 = vpack.c.bf16 %v1398, %v1397
        %v1422 = vpack.c.bf16 %v1400, %v1399
        %v1423 = vpack.c.bf16 %v1402, %v1401
        %v1424 = vpack.c.bf16 %v1404, %v1403
        %v1425 = vpack.c.bf16 %v1406, %v1405
        %v1426 = vpack.c.bf16 %v1408, %v1407
        %v1427 = vpack.c.bf16 %v1410, %v1409
        %v1428 = vpack.c.bf16 %v1412, %v1411
        %v1445 = vunpack.c.l.b16 %v1413
        %v1446 = vunpack.c.h.b16 %v1413
        %v1447 = vunpack.c.l.b16 %v1414
        %v1448 = vunpack.c.h.b16 %v1414
        %v1449 = vunpack.c.l.b16 %v1415
        %v1450 = vunpack.c.h.b16 %v1415
        %v1451 = vunpack.c.l.b16 %v1416
        %v1452 = vunpack.c.h.b16 %v1416
        %v1453 = vunpack.c.l.b16 %v1417
        %v1454 = vunpack.c.h.b16 %v1417
        %v1455 = vunpack.c.l.b16 %v1418
        %v1456 = vunpack.c.h.b16 %v1418
        %v1457 = vunpack.c.l.b16 %v1419
        %v1458 = vunpack.c.h.b16 %v1419
        %v1459 = vunpack.c.l.b16 %v1420
        %v1460 = vunpack.c.h.b16 %v1420
        %v1461 = vunpack.c.l.b16 %v1421
        %v1462 = vunpack.c.h.b16 %v1421
        %v1463 = vunpack.c.l.b16 %v1422
        %v1464 = vunpack.c.h.b16 %v1422
        %v1465 = vunpack.c.l.b16 %v1423
        %v1466 = vunpack.c.h.b16 %v1423
        %v1467 = vunpack.c.l.b16 %v1424
        %v1468 = vunpack.c.h.b16 %v1424
        %v1469 = vunpack.c.l.b16 %v1425
        %v1470 = vunpack.c.h.b16 %v1425
        %v1471 = vunpack.c.l.b16 %v1426
        %v1472 = vunpack.c.h.b16 %v1426
        %v1473 = vunpack.c.l.b16 %v1427
        %v1474 = vunpack.c.h.b16 %v1427
        %v1475 = vunpack.c.l.b16 %v1428
        %v1476 = vunpack.c.h.b16 %v1428
        %v1477 = vpack.c.b16 %v1445, %v1445
        %v1478 = vpack.c.b16 %v1446, %v1446
        %v1479 = vpack.c.b16 %v1447, %v1447
        %v1480 = vpack.c.b16 %v1448, %v1448
        %v1481 = vpack.c.b16 %v1449, %v1449
        %v1482 = vpack.c.b16 %v1450, %v1450
        %v1483 = vpack.c.b16 %v1451, %v1451
        %v1484 = vpack.c.b16 %v1452, %v1452
        %v1485 = vpack.c.b16 %v1453, %v1453
        %v1486 = vpack.c.b16 %v1454, %v1454
        %v1487 = vpack.c.b16 %v1455, %v1455
        %v1488 = vpack.c.b16 %v1456, %v1456
        %v1489 = vpack.c.b16 %v1457, %v1457
        %v1490 = vpack.c.b16 %v1458, %v1458
        %v1491 = vpack.c.b16 %v1459, %v1459
        %v1492 = vpack.c.b16 %v1460, %v1460
        %v1493 = vpack.c.b16 %v1461, %v1461
        %v1494 = vpack.c.b16 %v1462, %v1462
        %v1495 = vpack.c.b16 %v1463, %v1463
        %v1496 = vpack.c.b16 %v1464, %v1464
        %v1497 = vpack.c.b16 %v1465, %v1465
        %v1498 = vpack.c.b16 %v1466, %v1466
        %v1499 = vpack.c.b16 %v1467, %v1467
        %v1500 = vpack.c.b16 %v1468, %v1468
        %v1501 = vpack.c.b16 %v1469, %v1469
        %v1502 = vpack.c.b16 %v1470, %v1470
        %v1503 = vpack.c.b16 %v1471, %v1471
        %v1504 = vpack.c.b16 %v1472, %v1472
        %v1505 = vpack.c.b16 %v1473, %v1473
        %v1506 = vpack.c.b16 %v1474, %v1474
        %v1507 = vpack.c.b16 %v1475, %v1475
        %v1508 = vpack.c.b16 %v1476, %v1476
        %1509 = vrot.lane.b32.xlu0 %v1477, 96
        %v1510 = vpop.permute.xlu0 %1509
        %1511 = vrot.lane.b32.xlu0 %v1478, 96
        %v1512 = vpop.permute.xlu0 %1511
        %1513 = vrot.lane.b32.xlu0 %v1479, 96
        %v1514 = vpop.permute.xlu0 %1513
        %1515 = vrot.lane.b32.xlu0 %v1480, 96
        %v1516 = vpop.permute.xlu0 %1515
        %1517 = vrot.lane.b32.xlu0 %v1481, 96
        %v1518 = vpop.permute.xlu0 %1517
        %1519 = vrot.lane.b32.xlu0 %v1482, 96
        %v1520 = vpop.permute.xlu0 %1519
        %1521 = vrot.lane.b32.xlu0 %v1483, 96
        %v1522 = vpop.permute.xlu0 %1521
        %1523 = vrot.lane.b32.xlu0 %v1484, 96
        %v1524 = vpop.permute.xlu0 %1523
        %1525 = vrot.lane.b32.xlu0 %v1485, 96
        %v1526 = vpop.permute.xlu0 %1525
        %1527 = vrot.lane.b32.xlu0 %v1486, 96
        %v1528 = vpop.permute.xlu0 %1527
        %1529 = vrot.lane.b32.xlu0 %v1487, 96
        %v1530 = vpop.permute.xlu0 %1529
        %1531 = vrot.lane.b32.xlu0 %v1488, 96
        %v1532 = vpop.permute.xlu0 %1531
        %1533 = vrot.lane.b32.xlu0 %v1489, 96
        %v1534 = vpop.permute.xlu0 %1533
        %1535 = vrot.lane.b32.xlu0 %v1490, 96
        %v1536 = vpop.permute.xlu0 %1535
        %1537 = vrot.lane.b32.xlu0 %v1491, 96
        %v1538 = vpop.permute.xlu0 %1537
        %1539 = vrot.lane.b32.xlu0 %v1492, 96
        %v1540 = vpop.permute.xlu0 %1539
        %1541 = vrot.lane.b32.xlu0 %v1493, 96
        %v1542 = vpop.permute.xlu0 %1541
        %1543 = vrot.lane.b32.xlu0 %v1494, 96
        %v1544 = vpop.permute.xlu0 %1543
        %1545 = vrot.lane.b32.xlu0 %v1495, 96
        %v1546 = vpop.permute.xlu0 %1545
        %1547 = vrot.lane.b32.xlu0 %v1496, 96
        %v1548 = vpop.permute.xlu0 %1547
        %1549 = vrot.lane.b32.xlu0 %v1497, 96
        %v1550 = vpop.permute.xlu0 %1549
        %1551 = vrot.lane.b32.xlu0 %v1498, 96
        %v1552 = vpop.permute.xlu0 %1551
        %1553 = vrot.lane.b32.xlu0 %v1499, 96
        %v1554 = vpop.permute.xlu0 %1553
        %1555 = vrot.lane.b32.xlu0 %v1500, 96
        %v1556 = vpop.permute.xlu0 %1555
        %1557 = vrot.lane.b32.xlu0 %v1501, 96
        %v1558 = vpop.permute.xlu0 %1557
        %1559 = vrot.lane.b32.xlu0 %v1502, 96
        %v1560 = vpop.permute.xlu0 %1559
        %1561 = vrot.lane.b32.xlu0 %v1503, 96
        %v1562 = vpop.permute.xlu0 %1561
        %1563 = vrot.lane.b32.xlu0 %v1504, 96
        %v1564 = vpop.permute.xlu0 %1563
        %1565 = vrot.lane.b32.xlu0 %v1505, 96
        %v1566 = vpop.permute.xlu0 %1565
        %1567 = vrot.lane.b32.xlu0 %v1506, 96
        %v1568 = vpop.permute.xlu0 %1567
        %1569 = vrot.lane.b32.xlu0 %v1507, 96
        %v1570 = vpop.permute.xlu0 %1569
        %1571 = vrot.lane.b32.xlu0 %v1508, 96
        %v1572 = vpop.permute.xlu0 %1571
        %vm1605 = vcmask 1044224
        %1606 = vst.msk [vmem:[#allocation4] sm:$0xf] %vm1605, %v1510
        %1607 = vst.msk [vmem:[#allocation4 + $0xc] sm:$0xf] %vm1605, %v1512
        %1608 = vst.msk [vmem:[#allocation4 + $0x18] sm:$0xf] %vm1605, %v1514
        %1609 = vst.msk [vmem:[#allocation4 + $0x24] sm:$0xf] %vm1605, %v1516
        %1610 = vst.msk [vmem:[#allocation4 + $0x30] sm:$0xf] %vm1605, %v1518
        %1611 = vst.msk [vmem:[#allocation4 + $0x3c] sm:$0xf] %vm1605, %v1520
        %1612 = vst.msk [vmem:[#allocation4 + $0x48] sm:$0xf] %vm1605, %v1522
        %1613 = vst.msk [vmem:[#allocation4 + $0x54] sm:$0xf] %vm1605, %v1524
        %1614 = vst.msk [vmem:[#allocation4 + $0x60] sm:$0xf] %vm1605, %v1526
        %1615 = vst.msk [vmem:[#allocation4 + $0x6c] sm:$0xf] %vm1605, %v1528
        %1616 = vst.msk [vmem:[#allocation4 + $0x78] sm:$0xf] %vm1605, %v1530
        %1617 = vst.msk [vmem:[#allocation4 + $0x84] sm:$0xf] %vm1605, %v1532
        %1618 = vst.msk [vmem:[#allocation4 + $0x90] sm:$0xf] %vm1605, %v1534
        %1619 = vst.msk [vmem:[#allocation4 + $0x9c] sm:$0xf] %vm1605, %v1536
        %1620 = vst.msk [vmem:[#allocation4 + $0xa8] sm:$0xf] %vm1605, %v1538
        %1621 = vst.msk [vmem:[#allocation4 + $0xb4] sm:$0xf] %vm1605, %v1540
        %1622 = vst.msk [vmem:[#allocation4 + $0xc0] sm:$0xf] %vm1605, %v1542
        %1623 = vst.msk [vmem:[#allocation4 + $0xcc] sm:$0xf] %vm1605, %v1544
        %1624 = vst.msk [vmem:[#allocation4 + $0xd8] sm:$0xf] %vm1605, %v1546
        %1625 = vst.msk [vmem:[#allocation4 + $0xe4] sm:$0xf] %vm1605, %v1548
        %1626 = vst.msk [vmem:[#allocation4 + $0xf0] sm:$0xf] %vm1605, %v1550
        %1627 = vst.msk [vmem:[#allocation4 + $0xfc] sm:$0xf] %vm1605, %v1552
        %1628 = vst.msk [vmem:[#allocation4 + $0x108] sm:$0xf] %vm1605, %v1554
        %1629 = vst.msk [vmem:[#allocation4 + $0x114] sm:$0xf] %vm1605, %v1556
        %1630 = vst.msk [vmem:[#allocation4 + $0x120] sm:$0xf] %vm1605, %v1558
        %1631 = vst.msk [vmem:[#allocation4 + $0x12c] sm:$0xf] %vm1605, %v1560
        %1632 = vst.msk [vmem:[#allocation4 + $0x138] sm:$0xf] %vm1605, %v1562
        %1633 = vst.msk [vmem:[#allocation4 + $0x144] sm:$0xf] %vm1605, %v1564
        %1634 = vst.msk [vmem:[#allocation4 + $0x150] sm:$0xf] %vm1605, %v1566
        %1635 = vst.msk [vmem:[#allocation4 + $0x15c] sm:$0xf] %vm1605, %v1568
        %1636 = vst.msk [vmem:[#allocation4 + $0x168] sm:$0xf] %vm1605, %v1570
        %1637 = vst.msk [vmem:[#allocation4 + $0x174] sm:$0xf] %vm1605, %v1572
        %v1638 = vld [vmem:[%s641 + $0x1] sm:$0xff]
        %v1639 = vld [vmem:[%s641 + $0x9] sm:$0xff]
        %v1640 = vld [vmem:[%s641 + $0x19] sm:$0xff]
        %v1641 = vld [vmem:[%s641 + $0x21] sm:$0xff]
        %v1642 = vld [vmem:[%s641 + $0x31] sm:$0xff]
        %v1643 = vld [vmem:[%s641 + $0x39] sm:$0xff]
        %v1644 = vld [vmem:[%s641 + $0x49] sm:$0xff]
        %v1645 = vld [vmem:[%s641 + $0x51] sm:$0xff]
        %v1646 = vld [vmem:[%s641 + $0x61] sm:$0xff]
        %v1647 = vld [vmem:[%s641 + $0x69] sm:$0xff]
        %v1648 = vld [vmem:[%s641 + $0x79] sm:$0xff]
        %v1649 = vld [vmem:[%s641 + $0x81] sm:$0xff]
        %v1650 = vld [vmem:[%s641 + $0x91] sm:$0xff]
        %v1651 = vld [vmem:[%s641 + $0x99] sm:$0xff]
        %v1652 = vld [vmem:[%s641 + $0xa9] sm:$0xff]
        %v1653 = vld [vmem:[%s641 + $0xb1] sm:$0xff]
        %v1654 = vld [vmem:[%s641 + $0xc1] sm:$0xff]
        %v1655 = vld [vmem:[%s641 + $0xc9] sm:$0xff]
        %v1656 = vld [vmem:[%s641 + $0xd9] sm:$0xff]
        %v1657 = vld [vmem:[%s641 + $0xe1] sm:$0xff]
        %v1658 = vld [vmem:[%s641 + $0xf1] sm:$0xff]
        %v1659 = vld [vmem:[%s641 + $0xf9] sm:$0xff]
        %v1660 = vld [vmem:[%s641 + $0x109] sm:$0xff]
        %v1661 = vld [vmem:[%s641 + $0x111] sm:$0xff]
        %v1662 = vld [vmem:[%s641 + $0x121] sm:$0xff]
        %v1663 = vld [vmem:[%s641 + $0x129] sm:$0xff]
        %v1664 = vld [vmem:[%s641 + $0x139] sm:$0xff]
        %v1665 = vld [vmem:[%s641 + $0x141] sm:$0xff]
        %v1666 = vld [vmem:[%s641 + $0x151] sm:$0xff]
        %v1667 = vld [vmem:[%s641 + $0x159] sm:$0xff]
        %v1668 = vld [vmem:[%s641 + $0x169] sm:$0xff]
        %v1669 = vld [vmem:[%s641 + $0x171] sm:$0xff]
        %v1670 = vpack.c.bf16 %v1639, %v1638
        %v1671 = vpack.c.bf16 %v1641, %v1640
        %v1672 = vpack.c.bf16 %v1643, %v1642
        %v1673 = vpack.c.bf16 %v1645, %v1644
        %v1674 = vpack.c.bf16 %v1647, %v1646
        %v1675 = vpack.c.bf16 %v1649, %v1648
        %v1676 = vpack.c.bf16 %v1651, %v1650
        %v1677 = vpack.c.bf16 %v1653, %v1652
        %v1678 = vpack.c.bf16 %v1655, %v1654
        %v1679 = vpack.c.bf16 %v1657, %v1656
        %v1680 = vpack.c.bf16 %v1659, %v1658
        %v1681 = vpack.c.bf16 %v1661, %v1660
        %v1682 = vpack.c.bf16 %v1663, %v1662
        %v1683 = vpack.c.bf16 %v1665, %v1664
        %v1684 = vpack.c.bf16 %v1667, %v1666
        %v1685 = vpack.c.bf16 %v1669, %v1668
        %v1702 = vunpack.c.l.b16 %v1670
        %v1703 = vunpack.c.h.b16 %v1670
        %v1704 = vunpack.c.l.b16 %v1671
        %v1705 = vunpack.c.h.b16 %v1671
        %v1706 = vunpack.c.l.b16 %v1672
        %v1707 = vunpack.c.h.b16 %v1672
        %v1708 = vunpack.c.l.b16 %v1673
        %v1709 = vunpack.c.h.b16 %v1673
        %v1710 = vunpack.c.l.b16 %v1674
        %v1711 = vunpack.c.h.b16 %v1674
        %v1712 = vunpack.c.l.b16 %v1675
        %v1713 = vunpack.c.h.b16 %v1675
        %v1714 = vunpack.c.l.b16 %v1676
        %v1715 = vunpack.c.h.b16 %v1676
        %v1716 = vunpack.c.l.b16 %v1677
        %v1717 = vunpack.c.h.b16 %v1677
        %v1718 = vunpack.c.l.b16 %v1678
        %v1719 = vunpack.c.h.b16 %v1678
        %v1720 = vunpack.c.l.b16 %v1679
        %v1721 = vunpack.c.h.b16 %v1679
        %v1722 = vunpack.c.l.b16 %v1680
        %v1723 = vunpack.c.h.b16 %v1680
        %v1724 = vunpack.c.l.b16 %v1681
        %v1725 = vunpack.c.h.b16 %v1681
        %v1726 = vunpack.c.l.b16 %v1682
        %v1727 = vunpack.c.h.b16 %v1682
        %v1728 = vunpack.c.l.b16 %v1683
        %v1729 = vunpack.c.h.b16 %v1683
        %v1730 = vunpack.c.l.b16 %v1684
        %v1731 = vunpack.c.h.b16 %v1684
        %v1732 = vunpack.c.l.b16 %v1685
        %v1733 = vunpack.c.h.b16 %v1685
        %v1734 = vpack.c.b16 %v1702, %v1702
        %v1735 = vpack.c.b16 %v1703, %v1703
        %v1736 = vpack.c.b16 %v1704, %v1704
        %v1737 = vpack.c.b16 %v1705, %v1705
        %v1738 = vpack.c.b16 %v1706, %v1706
        %v1739 = vpack.c.b16 %v1707, %v1707
        %v1740 = vpack.c.b16 %v1708, %v1708
        %v1741 = vpack.c.b16 %v1709, %v1709
        %v1742 = vpack.c.b16 %v1710, %v1710
        %v1743 = vpack.c.b16 %v1711, %v1711
        %v1744 = vpack.c.b16 %v1712, %v1712
        %v1745 = vpack.c.b16 %v1713, %v1713
        %v1746 = vpack.c.b16 %v1714, %v1714
        %v1747 = vpack.c.b16 %v1715, %v1715
        %v1748 = vpack.c.b16 %v1716, %v1716
        %v1749 = vpack.c.b16 %v1717, %v1717
        %v1750 = vpack.c.b16 %v1718, %v1718
        %v1751 = vpack.c.b16 %v1719, %v1719
        %v1752 = vpack.c.b16 %v1720, %v1720
        %v1753 = vpack.c.b16 %v1721, %v1721
        %v1754 = vpack.c.b16 %v1722, %v1722
        %v1755 = vpack.c.b16 %v1723, %v1723
        %v1756 = vpack.c.b16 %v1724, %v1724
        %v1757 = vpack.c.b16 %v1725, %v1725
        %v1758 = vpack.c.b16 %v1726, %v1726
        %v1759 = vpack.c.b16 %v1727, %v1727
        %v1760 = vpack.c.b16 %v1728, %v1728
        %v1761 = vpack.c.b16 %v1729, %v1729
        %v1762 = vpack.c.b16 %v1730, %v1730
        %v1763 = vpack.c.b16 %v1731, %v1731
        %v1764 = vpack.c.b16 %v1732, %v1732
        %v1765 = vpack.c.b16 %v1733, %v1733
        %1798 = vst.msk [vmem:[#allocation4 + $0x4] sm:$0xf] %vm834, %v1734
        %1799 = vst.msk [vmem:[#allocation4 + $0x10] sm:$0xf] %vm834, %v1735
        %1800 = vst.msk [vmem:[#allocation4 + $0x1c] sm:$0xf] %vm834, %v1736
        %1801 = vst.msk [vmem:[#allocation4 + $0x28] sm:$0xf] %vm834, %v1737
        %1802 = vst.msk [vmem:[#allocation4 + $0x34] sm:$0xf] %vm834, %v1738
        %1803 = vst.msk [vmem:[#allocation4 + $0x40] sm:$0xf] %vm834, %v1739
        %1804 = vst.msk [vmem:[#allocation4 + $0x4c] sm:$0xf] %vm834, %v1740
        %1805 = vst.msk [vmem:[#allocation4 + $0x58] sm:$0xf] %vm834, %v1741
        %1806 = vst.msk [vmem:[#allocation4 + $0x64] sm:$0xf] %vm834, %v1742
        %1807 = vst.msk [vmem:[#allocation4 + $0x70] sm:$0xf] %vm834, %v1743
        %1808 = vst.msk [vmem:[#allocation4 + $0x7c] sm:$0xf] %vm834, %v1744
        %1809 = vst.msk [vmem:[#allocation4 + $0x88] sm:$0xf] %vm834, %v1745
        %1810 = vst.msk [vmem:[#allocation4 + $0x94] sm:$0xf] %vm834, %v1746
        %1811 = vst.msk [vmem:[#allocation4 + $0xa0] sm:$0xf] %vm834, %v1747
        %1812 = vst.msk [vmem:[#allocation4 + $0xac] sm:$0xf] %vm834, %v1748
        %1813 = vst.msk [vmem:[#allocation4 + $0xb8] sm:$0xf] %vm834, %v1749
        %1814 = vst.msk [vmem:[#allocation4 + $0xc4] sm:$0xf] %vm834, %v1750
        %1815 = vst.msk [vmem:[#allocation4 + $0xd0] sm:$0xf] %vm834, %v1751
        %1816 = vst.msk [vmem:[#allocation4 + $0xdc] sm:$0xf] %vm834, %v1752
        %1817 = vst.msk [vmem:[#allocation4 + $0xe8] sm:$0xf] %vm834, %v1753
        %1818 = vst.msk [vmem:[#allocation4 + $0xf4] sm:$0xf] %vm834, %v1754
        %1819 = vst.msk [vmem:[#allocation4 + $0x100] sm:$0xf] %vm834, %v1755
        %1820 = vst.msk [vmem:[#allocation4 + $0x10c] sm:$0xf] %vm834, %v1756
        %1821 = vst.msk [vmem:[#allocation4 + $0x118] sm:$0xf] %vm834, %v1757
        %1822 = vst.msk [vmem:[#allocation4 + $0x124] sm:$0xf] %vm834, %v1758
        %1823 = vst.msk [vmem:[#allocation4 + $0x130] sm:$0xf] %vm834, %v1759
        %1824 = vst.msk [vmem:[#allocation4 + $0x13c] sm:$0xf] %vm834, %v1760
        %1825 = vst.msk [vmem:[#allocation4 + $0x148] sm:$0xf] %vm834, %v1761
        %1826 = vst.msk [vmem:[#allocation4 + $0x154] sm:$0xf] %vm834, %v1762
        %1827 = vst.msk [vmem:[#allocation4 + $0x160] sm:$0xf] %vm834, %v1763
        %1828 = vst.msk [vmem:[#allocation4 + $0x16c] sm:$0xf] %vm834, %v1764
        %1829 = vst.msk [vmem:[#allocation4 + $0x178] sm:$0xf] %vm834, %v1765
        %v1830 = vld [vmem:[%s641 + $0x2] sm:$0xff]
        %v1831 = vld [vmem:[%s641 + $0xa] sm:$0xff]
        %v1832 = vld [vmem:[%s641 + $0x1a] sm:$0xff]
        %v1833 = vld [vmem:[%s641 + $0x22] sm:$0xff]
        %v1834 = vld [vmem:[%s641 + $0x32] sm:$0xff]
        %v1835 = vld [vmem:[%s641 + $0x3a] sm:$0xff]
        %v1836 = vld [vmem:[%s641 + $0x4a] sm:$0xff]
        %v1837 = vld [vmem:[%s641 + $0x52] sm:$0xff]
        %v1838 = vld [vmem:[%s641 + $0x62] sm:$0xff]
        %v1839 = vld [vmem:[%s641 + $0x6a] sm:$0xff]
        %v1840 = vld [vmem:[%s641 + $0x7a] sm:$0xff]
        %v1841 = vld [vmem:[%s641 + $0x82] sm:$0xff]
        %v1842 = vld [vmem:[%s641 + $0x92] sm:$0xff]
        %v1843 = vld [vmem:[%s641 + $0x9a] sm:$0xff]
        %v1844 = vld [vmem:[%s641 + $0xaa] sm:$0xff]
        %v1845 = vld [vmem:[%s641 + $0xb2] sm:$0xff]
        %v1846 = vld [vmem:[%s641 + $0xc2] sm:$0xff]
        %v1847 = vld [vmem:[%s641 + $0xca] sm:$0xff]
        %v1848 = vld [vmem:[%s641 + $0xda] sm:$0xff]
        %v1849 = vld [vmem:[%s641 + $0xe2] sm:$0xff]
        %v1850 = vld [vmem:[%s641 + $0xf2] sm:$0xff]
        %v1851 = vld [vmem:[%s641 + $0xfa] sm:$0xff]
        %v1852 = vld [vmem:[%s641 + $0x10a] sm:$0xff]
        %v1853 = vld [vmem:[%s641 + $0x112] sm:$0xff]
        %v1854 = vld [vmem:[%s641 + $0x122] sm:$0xff]
        %v1855 = vld [vmem:[%s641 + $0x12a] sm:$0xff]
        %v1856 = vld [vmem:[%s641 + $0x13a] sm:$0xff]
        %v1857 = vld [vmem:[%s641 + $0x142] sm:$0xff]
        %v1858 = vld [vmem:[%s641 + $0x152] sm:$0xff]
        %v1859 = vld [vmem:[%s641 + $0x15a] sm:$0xff]
        %v1860 = vld [vmem:[%s641 + $0x16a] sm:$0xff]
        %v1861 = vld [vmem:[%s641 + $0x172] sm:$0xff]
        %v1862 = vpack.c.bf16 %v1831, %v1830
        %v1863 = vpack.c.bf16 %v1833, %v1832
        %v1864 = vpack.c.bf16 %v1835, %v1834
        %v1865 = vpack.c.bf16 %v1837, %v1836
        %v1866 = vpack.c.bf16 %v1839, %v1838
        %v1867 = vpack.c.bf16 %v1841, %v1840
        %v1868 = vpack.c.bf16 %v1843, %v1842
        %v1869 = vpack.c.bf16 %v1845, %v1844
        %v1870 = vpack.c.bf16 %v1847, %v1846
        %v1871 = vpack.c.bf16 %v1849, %v1848
        %v1872 = vpack.c.bf16 %v1851, %v1850
        %v1873 = vpack.c.bf16 %v1853, %v1852
        %v1874 = vpack.c.bf16 %v1855, %v1854
        %v1875 = vpack.c.bf16 %v1857, %v1856
        %v1876 = vpack.c.bf16 %v1859, %v1858
        %v1877 = vpack.c.bf16 %v1861, %v1860
        %v1894 = vunpack.c.l.b16 %v1862
        %v1895 = vunpack.c.h.b16 %v1862
        %v1896 = vunpack.c.l.b16 %v1863
        %v1897 = vunpack.c.h.b16 %v1863
        %v1898 = vunpack.c.l.b16 %v1864
        %v1899 = vunpack.c.h.b16 %v1864
        %v1900 = vunpack.c.l.b16 %v1865
        %v1901 = vunpack.c.h.b16 %v1865
        %v1902 = vunpack.c.l.b16 %v1866
        %v1903 = vunpack.c.h.b16 %v1866
        %v1904 = vunpack.c.l.b16 %v1867
        %v1905 = vunpack.c.h.b16 %v1867
        %v1906 = vunpack.c.l.b16 %v1868
        %v1907 = vunpack.c.h.b16 %v1868
        %v1908 = vunpack.c.l.b16 %v1869
        %v1909 = vunpack.c.h.b16 %v1869
        %v1910 = vunpack.c.l.b16 %v1870
        %v1911 = vunpack.c.h.b16 %v1870
        %v1912 = vunpack.c.l.b16 %v1871
        %v1913 = vunpack.c.h.b16 %v1871
        %v1914 = vunpack.c.l.b16 %v1872
        %v1915 = vunpack.c.h.b16 %v1872
        %v1916 = vunpack.c.l.b16 %v1873
        %v1917 = vunpack.c.h.b16 %v1873
        %v1918 = vunpack.c.l.b16 %v1874
        %v1919 = vunpack.c.h.b16 %v1874
        %v1920 = vunpack.c.l.b16 %v1875
        %v1921 = vunpack.c.h.b16 %v1875
        %v1922 = vunpack.c.l.b16 %v1876
        %v1923 = vunpack.c.h.b16 %v1876
        %v1924 = vunpack.c.l.b16 %v1877
        %v1925 = vunpack.c.h.b16 %v1877
        %v1926 = vpack.c.b16 %v1894, %v1894
        %v1927 = vpack.c.b16 %v1895, %v1895
        %v1928 = vpack.c.b16 %v1896, %v1896
        %v1929 = vpack.c.b16 %v1897, %v1897
        %v1930 = vpack.c.b16 %v1898, %v1898
        %v1931 = vpack.c.b16 %v1899, %v1899
        %v1932 = vpack.c.b16 %v1900, %v1900
        %v1933 = vpack.c.b16 %v1901, %v1901
        %v1934 = vpack.c.b16 %v1902, %v1902
        %v1935 = vpack.c.b16 %v1903, %v1903
        %v1936 = vpack.c.b16 %v1904, %v1904
        %v1937 = vpack.c.b16 %v1905, %v1905
        %v1938 = vpack.c.b16 %v1906, %v1906
        %v1939 = vpack.c.b16 %v1907, %v1907
        %v1940 = vpack.c.b16 %v1908, %v1908
        %v1941 = vpack.c.b16 %v1909, %v1909
        %v1942 = vpack.c.b16 %v1910, %v1910
        %v1943 = vpack.c.b16 %v1911, %v1911
        %v1944 = vpack.c.b16 %v1912, %v1912
        %v1945 = vpack.c.b16 %v1913, %v1913
        %v1946 = vpack.c.b16 %v1914, %v1914
        %v1947 = vpack.c.b16 %v1915, %v1915
        %v1948 = vpack.c.b16 %v1916, %v1916
        %v1949 = vpack.c.b16 %v1917, %v1917
        %v1950 = vpack.c.b16 %v1918, %v1918
        %v1951 = vpack.c.b16 %v1919, %v1919
        %v1952 = vpack.c.b16 %v1920, %v1920
        %v1953 = vpack.c.b16 %v1921, %v1921
        %v1954 = vpack.c.b16 %v1922, %v1922
        %v1955 = vpack.c.b16 %v1923, %v1923
        %v1956 = vpack.c.b16 %v1924, %v1924
        %v1957 = vpack.c.b16 %v1925, %v1925
        %1958 = vrot.lane.b32.xlu0 %v1926, 32
        %v1959 = vpop.permute.xlu0 %1958
        %1960 = vrot.lane.b32.xlu0 %v1927, 32
        %v1961 = vpop.permute.xlu0 %1960
        %1962 = vrot.lane.b32.xlu0 %v1928, 32
        %v1963 = vpop.permute.xlu0 %1962
        %1964 = vrot.lane.b32.xlu0 %v1929, 32
        %v1965 = vpop.permute.xlu0 %1964
        %1966 = vrot.lane.b32.xlu0 %v1930, 32
        %v1967 = vpop.permute.xlu0 %1966
        %1968 = vrot.lane.b32.xlu0 %v1931, 32
        %v1969 = vpop.permute.xlu0 %1968
        %1970 = vrot.lane.b32.xlu0 %v1932, 32
        %v1971 = vpop.permute.xlu0 %1970
        %1972 = vrot.lane.b32.xlu0 %v1933, 32
        %v1973 = vpop.permute.xlu0 %1972
        %1974 = vrot.lane.b32.xlu0 %v1934, 32
        %v1975 = vpop.permute.xlu0 %1974
        %1976 = vrot.lane.b32.xlu0 %v1935, 32
        %v1977 = vpop.permute.xlu0 %1976
        %1978 = vrot.lane.b32.xlu0 %v1936, 32
        %v1979 = vpop.permute.xlu0 %1978
        %1980 = vrot.lane.b32.xlu0 %v1937, 32
        %v1981 = vpop.permute.xlu0 %1980
        %1982 = vrot.lane.b32.xlu0 %v1938, 32
        %v1983 = vpop.permute.xlu0 %1982
        %1984 = vrot.lane.b32.xlu0 %v1939, 32
        %v1985 = vpop.permute.xlu0 %1984
        %1986 = vrot.lane.b32.xlu0 %v1940, 32
        %v1987 = vpop.permute.xlu0 %1986
        %1988 = vrot.lane.b32.xlu0 %v1941, 32
        %v1989 = vpop.permute.xlu0 %1988
        %1990 = vrot.lane.b32.xlu0 %v1942, 32
        %v1991 = vpop.permute.xlu0 %1990
        %1992 = vrot.lane.b32.xlu0 %v1943, 32
        %v1993 = vpop.permute.xlu0 %1992
        %1994 = vrot.lane.b32.xlu0 %v1944, 32
        %v1995 = vpop.permute.xlu0 %1994
        %1996 = vrot.lane.b32.xlu0 %v1945, 32
        %v1997 = vpop.permute.xlu0 %1996
        %1998 = vrot.lane.b32.xlu0 %v1946, 32
        %v1999 = vpop.permute.xlu0 %1998
        %2000 = vrot.lane.b32.xlu0 %v1947, 32
        %v2001 = vpop.permute.xlu0 %2000
        %2002 = vrot.lane.b32.xlu0 %v1948, 32
        %v2003 = vpop.permute.xlu0 %2002
        %2004 = vrot.lane.b32.xlu0 %v1949, 32
        %v2005 = vpop.permute.xlu0 %2004
        %2006 = vrot.lane.b32.xlu0 %v1950, 32
        %v2007 = vpop.permute.xlu0 %2006
        %2008 = vrot.lane.b32.xlu0 %v1951, 32
        %v2009 = vpop.permute.xlu0 %2008
        %2010 = vrot.lane.b32.xlu0 %v1952, 32
        %v2011 = vpop.permute.xlu0 %2010
        %2012 = vrot.lane.b32.xlu0 %v1953, 32
        %v2013 = vpop.permute.xlu0 %2012
        %2014 = vrot.lane.b32.xlu0 %v1954, 32
        %v2015 = vpop.permute.xlu0 %2014
        %2016 = vrot.lane.b32.xlu0 %v1955, 32
        %v2017 = vpop.permute.xlu0 %2016
        %2018 = vrot.lane.b32.xlu0 %v1956, 32
        %v2019 = vpop.permute.xlu0 %2018
        %2020 = vrot.lane.b32.xlu0 %v1957, 32
        %v2021 = vpop.permute.xlu0 %2020
        %2054 = vst.msk [vmem:[#allocation4 + $0x4] sm:$0xf] %vm1091, %v1959
        %2055 = vst.msk [vmem:[#allocation4 + $0x10] sm:$0xf] %vm1091, %v1961
        %2056 = vst.msk [vmem:[#allocation4 + $0x1c] sm:$0xf] %vm1091, %v1963
        %2057 = vst.msk [vmem:[#allocation4 + $0x28] sm:$0xf] %vm1091, %v1965
        %2058 = vst.msk [vmem:[#allocation4 + $0x34] sm:$0xf] %vm1091, %v1967
        %2059 = vst.msk [vmem:[#allocation4 + $0x40] sm:$0xf] %vm1091, %v1969
        %2060 = vst.msk [vmem:[#allocation4 + $0x4c] sm:$0xf] %vm1091, %v1971
        %2061 = vst.msk [vmem:[#allocation4 + $0x58] sm:$0xf] %vm1091, %v1973
        %2062 = vst.msk [vmem:[#allocation4 + $0x64] sm:$0xf] %vm1091, %v1975
        %2063 = vst.msk [vmem:[#allocation4 + $0x70] sm:$0xf] %vm1091, %v1977
        %2064 = vst.msk [vmem:[#allocation4 + $0x7c] sm:$0xf] %vm1091, %v1979
        %2065 = vst.msk [vmem:[#allocation4 + $0x88] sm:$0xf] %vm1091, %v1981
        %2066 = vst.msk [vmem:[#allocation4 + $0x94] sm:$0xf] %vm1091, %v1983
        %2067 = vst.msk [vmem:[#allocation4 + $0xa0] sm:$0xf] %vm1091, %v1985
        %2068 = vst.msk [vmem:[#allocation4 + $0xac] sm:$0xf] %vm1091, %v1987
        %2069 = vst.msk [vmem:[#allocation4 + $0xb8] sm:$0xf] %vm1091, %v1989
        %2070 = vst.msk [vmem:[#allocation4 + $0xc4] sm:$0xf] %vm1091, %v1991
        %2071 = vst.msk [vmem:[#allocation4 + $0xd0] sm:$0xf] %vm1091, %v1993
        %2072 = vst.msk [vmem:[#allocation4 + $0xdc] sm:$0xf] %vm1091, %v1995
        %2073 = vst.msk [vmem:[#allocation4 + $0xe8] sm:$0xf] %vm1091, %v1997
        %2074 = vst.msk [vmem:[#allocation4 + $0xf4] sm:$0xf] %vm1091, %v1999
        %2075 = vst.msk [vmem:[#allocation4 + $0x100] sm:$0xf] %vm1091, %v2001
        %2076 = vst.msk [vmem:[#allocation4 + $0x10c] sm:$0xf] %vm1091, %v2003
        %2077 = vst.msk [vmem:[#allocation4 + $0x118] sm:$0xf] %vm1091, %v2005
        %2078 = vst.msk [vmem:[#allocation4 + $0x124] sm:$0xf] %vm1091, %v2007
        %2079 = vst.msk [vmem:[#allocation4 + $0x130] sm:$0xf] %vm1091, %v2009
        %2080 = vst.msk [vmem:[#allocation4 + $0x13c] sm:$0xf] %vm1091, %v2011
        %2081 = vst.msk [vmem:[#allocation4 + $0x148] sm:$0xf] %vm1091, %v2013
        %2082 = vst.msk [vmem:[#allocation4 + $0x154] sm:$0xf] %vm1091, %v2015
        %2083 = vst.msk [vmem:[#allocation4 + $0x160] sm:$0xf] %vm1091, %v2017
        %2084 = vst.msk [vmem:[#allocation4 + $0x16c] sm:$0xf] %vm1091, %v2019
        %2085 = vst.msk [vmem:[#allocation4 + $0x178] sm:$0xf] %vm1091, %v2021
        %s2086 = scalar_lea.vmem [#allocation2], 48
        %v2087 = vld [vmem:[%s2086] sm:$0xff]
        %v2088 = vld [vmem:[%s2086 + $0x8] sm:$0xff]
        %v2089 = vld [vmem:[%s2086 + $0x18] sm:$0xff]
        %v2090 = vld [vmem:[%s2086 + $0x20] sm:$0xff]
        %v2091 = vld [vmem:[%s2086 + $0x30] sm:$0xff]
        %v2092 = vld [vmem:[%s2086 + $0x38] sm:$0xff]
        %v2093 = vld [vmem:[%s2086 + $0x48] sm:$0xff]
        %v2094 = vld [vmem:[%s2086 + $0x50] sm:$0xff]
        %v2095 = vld [vmem:[%s2086 + $0x60] sm:$0xff]
        %v2096 = vld [vmem:[%s2086 + $0x68] sm:$0xff]
        %v2097 = vld [vmem:[%s2086 + $0x78] sm:$0xff]
        %v2098 = vld [vmem:[%s2086 + $0x80] sm:$0xff]
        %v2099 = vld [vmem:[%s2086 + $0x90] sm:$0xff]
        %v2100 = vld [vmem:[%s2086 + $0x98] sm:$0xff]
        %v2101 = vld [vmem:[%s2086 + $0xa8] sm:$0xff]
        %v2102 = vld [vmem:[%s2086 + $0xb0] sm:$0xff]
        %v2103 = vld [vmem:[%s2086 + $0xc0] sm:$0xff]
        %v2104 = vld [vmem:[%s2086 + $0xc8] sm:$0xff]
        %v2105 = vld [vmem:[%s2086 + $0xd8] sm:$0xff]
        %v2106 = vld [vmem:[%s2086 + $0xe0] sm:$0xff]
        %v2107 = vld [vmem:[%s2086 + $0xf0] sm:$0xff]
        %v2108 = vld [vmem:[%s2086 + $0xf8] sm:$0xff]
        %v2109 = vld [vmem:[%s2086 + $0x108] sm:$0xff]
        %v2110 = vld [vmem:[%s2086 + $0x110] sm:$0xff]
        %v2111 = vld [vmem:[%s2086 + $0x120] sm:$0xff]
        %v2112 = vld [vmem:[%s2086 + $0x128] sm:$0xff]
        %v2113 = vld [vmem:[%s2086 + $0x138] sm:$0xff]
        %v2114 = vld [vmem:[%s2086 + $0x140] sm:$0xff]
        %v2115 = vld [vmem:[%s2086 + $0x150] sm:$0xff]
        %v2116 = vld [vmem:[%s2086 + $0x158] sm:$0xff]
        %v2117 = vld [vmem:[%s2086 + $0x168] sm:$0xff]
        %v2118 = vld [vmem:[%s2086 + $0x170] sm:$0xff]
        %v2119 = vpack.c.bf16 %v2088, %v2087
        %v2120 = vpack.c.bf16 %v2090, %v2089
        %v2121 = vpack.c.bf16 %v2092, %v2091
        %v2122 = vpack.c.bf16 %v2094, %v2093
        %v2123 = vpack.c.bf16 %v2096, %v2095
        %v2124 = vpack.c.bf16 %v2098, %v2097
        %v2125 = vpack.c.bf16 %v2100, %v2099
        %v2126 = vpack.c.bf16 %v2102, %v2101
        %v2127 = vpack.c.bf16 %v2104, %v2103
        %v2128 = vpack.c.bf16 %v2106, %v2105
        %v2129 = vpack.c.bf16 %v2108, %v2107
        %v2130 = vpack.c.bf16 %v2110, %v2109
        %v2131 = vpack.c.bf16 %v2112, %v2111
        %v2132 = vpack.c.bf16 %v2114, %v2113
        %v2133 = vpack.c.bf16 %v2116, %v2115
        %v2134 = vpack.c.bf16 %v2118, %v2117
        %v2151 = vunpack.c.l.b16 %v2119
        %v2152 = vunpack.c.h.b16 %v2119
        %v2153 = vunpack.c.l.b16 %v2120
        %v2154 = vunpack.c.h.b16 %v2120
        %v2155 = vunpack.c.l.b16 %v2121
        %v2156 = vunpack.c.h.b16 %v2121
        %v2157 = vunpack.c.l.b16 %v2122
        %v2158 = vunpack.c.h.b16 %v2122
        %v2159 = vunpack.c.l.b16 %v2123
        %v2160 = vunpack.c.h.b16 %v2123
        %v2161 = vunpack.c.l.b16 %v2124
        %v2162 = vunpack.c.h.b16 %v2124
        %v2163 = vunpack.c.l.b16 %v2125
        %v2164 = vunpack.c.h.b16 %v2125
        %v2165 = vunpack.c.l.b16 %v2126
        %v2166 = vunpack.c.h.b16 %v2126
        %v2167 = vunpack.c.l.b16 %v2127
        %v2168 = vunpack.c.h.b16 %v2127
        %v2169 = vunpack.c.l.b16 %v2128
        %v2170 = vunpack.c.h.b16 %v2128
        %v2171 = vunpack.c.l.b16 %v2129
        %v2172 = vunpack.c.h.b16 %v2129
        %v2173 = vunpack.c.l.b16 %v2130
        %v2174 = vunpack.c.h.b16 %v2130
        %v2175 = vunpack.c.l.b16 %v2131
        %v2176 = vunpack.c.h.b16 %v2131
        %v2177 = vunpack.c.l.b16 %v2132
        %v2178 = vunpack.c.h.b16 %v2132
        %v2179 = vunpack.c.l.b16 %v2133
        %v2180 = vunpack.c.h.b16 %v2133
        %v2181 = vunpack.c.l.b16 %v2134
        %v2182 = vunpack.c.h.b16 %v2134
        %v2183 = vpack.c.b16 %v2151, %v2151
        %v2184 = vpack.c.b16 %v2152, %v2152
        %v2185 = vpack.c.b16 %v2153, %v2153
        %v2186 = vpack.c.b16 %v2154, %v2154
        %v2187 = vpack.c.b16 %v2155, %v2155
        %v2188 = vpack.c.b16 %v2156, %v2156
        %v2189 = vpack.c.b16 %v2157, %v2157
        %v2190 = vpack.c.b16 %v2158, %v2158
        %v2191 = vpack.c.b16 %v2159, %v2159
        %v2192 = vpack.c.b16 %v2160, %v2160
        %v2193 = vpack.c.b16 %v2161, %v2161
        %v2194 = vpack.c.b16 %v2162, %v2162
        %v2195 = vpack.c.b16 %v2163, %v2163
        %v2196 = vpack.c.b16 %v2164, %v2164
        %v2197 = vpack.c.b16 %v2165, %v2165
        %v2198 = vpack.c.b16 %v2166, %v2166
        %v2199 = vpack.c.b16 %v2167, %v2167
        %v2200 = vpack.c.b16 %v2168, %v2168
        %v2201 = vpack.c.b16 %v2169, %v2169
        %v2202 = vpack.c.b16 %v2170, %v2170
        %v2203 = vpack.c.b16 %v2171, %v2171
        %v2204 = vpack.c.b16 %v2172, %v2172
        %v2205 = vpack.c.b16 %v2173, %v2173
        %v2206 = vpack.c.b16 %v2174, %v2174
        %v2207 = vpack.c.b16 %v2175, %v2175
        %v2208 = vpack.c.b16 %v2176, %v2176
        %v2209 = vpack.c.b16 %v2177, %v2177
        %v2210 = vpack.c.b16 %v2178, %v2178
        %v2211 = vpack.c.b16 %v2179, %v2179
        %v2212 = vpack.c.b16 %v2180, %v2180
        %v2213 = vpack.c.b16 %v2181, %v2181
        %v2214 = vpack.c.b16 %v2182, %v2182
        %2215 = vrot.lane.b32.xlu0 %v2183, 64
        %v2216 = vpop.permute.xlu0 %2215
        %2217 = vrot.lane.b32.xlu0 %v2184, 64
        %v2218 = vpop.permute.xlu0 %2217
        %2219 = vrot.lane.b32.xlu0 %v2185, 64
        %v2220 = vpop.permute.xlu0 %2219
        %2221 = vrot.lane.b32.xlu0 %v2186, 64
        %v2222 = vpop.permute.xlu0 %2221
        %2223 = vrot.lane.b32.xlu0 %v2187, 64
        %v2224 = vpop.permute.xlu0 %2223
        %2225 = vrot.lane.b32.xlu0 %v2188, 64
        %v2226 = vpop.permute.xlu0 %2225
        %2227 = vrot.lane.b32.xlu0 %v2189, 64
        %v2228 = vpop.permute.xlu0 %2227
        %2229 = vrot.lane.b32.xlu0 %v2190, 64
        %v2230 = vpop.permute.xlu0 %2229
        %2231 = vrot.lane.b32.xlu0 %v2191, 64
        %v2232 = vpop.permute.xlu0 %2231
        %2233 = vrot.lane.b32.xlu0 %v2192, 64
        %v2234 = vpop.permute.xlu0 %2233
        %2235 = vrot.lane.b32.xlu0 %v2193, 64
        %v2236 = vpop.permute.xlu0 %2235
        %2237 = vrot.lane.b32.xlu0 %v2194, 64
        %v2238 = vpop.permute.xlu0 %2237
        %2239 = vrot.lane.b32.xlu0 %v2195, 64
        %v2240 = vpop.permute.xlu0 %2239
        %2241 = vrot.lane.b32.xlu0 %v2196, 64
        %v2242 = vpop.permute.xlu0 %2241
        %2243 = vrot.lane.b32.xlu0 %v2197, 64
        %v2244 = vpop.permute.xlu0 %2243
        %2245 = vrot.lane.b32.xlu0 %v2198, 64
        %v2246 = vpop.permute.xlu0 %2245
        %2247 = vrot.lane.b32.xlu0 %v2199, 64
        %v2248 = vpop.permute.xlu0 %2247
        %2249 = vrot.lane.b32.xlu0 %v2200, 64
        %v2250 = vpop.permute.xlu0 %2249
        %2251 = vrot.lane.b32.xlu0 %v2201, 64
        %v2252 = vpop.permute.xlu0 %2251
        %2253 = vrot.lane.b32.xlu0 %v2202, 64
        %v2254 = vpop.permute.xlu0 %2253
        %2255 = vrot.lane.b32.xlu0 %v2203, 64
        %v2256 = vpop.permute.xlu0 %2255
        %2257 = vrot.lane.b32.xlu0 %v2204, 64
        %v2258 = vpop.permute.xlu0 %2257
        %2259 = vrot.lane.b32.xlu0 %v2205, 64
        %v2260 = vpop.permute.xlu0 %2259
        %2261 = vrot.lane.b32.xlu0 %v2206, 64
        %v2262 = vpop.permute.xlu0 %2261
        %2263 = vrot.lane.b32.xlu0 %v2207, 64
        %v2264 = vpop.permute.xlu0 %2263
        %2265 = vrot.lane.b32.xlu0 %v2208, 64
        %v2266 = vpop.permute.xlu0 %2265
        %2267 = vrot.lane.b32.xlu0 %v2209, 64
        %v2268 = vpop.permute.xlu0 %2267
        %2269 = vrot.lane.b32.xlu0 %v2210, 64
        %v2270 = vpop.permute.xlu0 %2269
        %2271 = vrot.lane.b32.xlu0 %v2211, 64
        %v2272 = vpop.permute.xlu0 %2271
        %2273 = vrot.lane.b32.xlu0 %v2212, 64
        %v2274 = vpop.permute.xlu0 %2273
        %2275 = vrot.lane.b32.xlu0 %v2213, 64
        %v2276 = vpop.permute.xlu0 %2275
        %2277 = vrot.lane.b32.xlu0 %v2214, 64
        %v2278 = vpop.permute.xlu0 %2277
        %2311 = vst.msk [vmem:[#allocation4 + $0x4] sm:$0xf] %vm1348, %v2216
        %2312 = vst.msk [vmem:[#allocation4 + $0x10] sm:$0xf] %vm1348, %v2218
        %2313 = vst.msk [vmem:[#allocation4 + $0x1c] sm:$0xf] %vm1348, %v2220
        %2314 = vst.msk [vmem:[#allocation4 + $0x28] sm:$0xf] %vm1348, %v2222
        %2315 = vst.msk [vmem:[#allocation4 + $0x34] sm:$0xf] %vm1348, %v2224
        %2316 = vst.msk [vmem:[#allocation4 + $0x40] sm:$0xf] %vm1348, %v2226
        %2317 = vst.msk [vmem:[#allocation4 + $0x4c] sm:$0xf] %vm1348, %v2228
        %2318 = vst.msk [vmem:[#allocation4 + $0x58] sm:$0xf] %vm1348, %v2230
        %2319 = vst.msk [vmem:[#allocation4 + $0x64] sm:$0xf] %vm1348, %v2232
        %2320 = vst.msk [vmem:[#allocation4 + $0x70] sm:$0xf] %vm1348, %v2234
        %2321 = vst.msk [vmem:[#allocation4 + $0x7c] sm:$0xf] %vm1348, %v2236
        %2322 = vst.msk [vmem:[#allocation4 + $0x88] sm:$0xf] %vm1348, %v2238
        %2323 = vst.msk [vmem:[#allocation4 + $0x94] sm:$0xf] %vm1348, %v2240
        %2324 = vst.msk [vmem:[#allocation4 + $0xa0] sm:$0xf] %vm1348, %v2242
        %2325 = vst.msk [vmem:[#allocation4 + $0xac] sm:$0xf] %vm1348, %v2244
        %2326 = vst.msk [vmem:[#allocation4 + $0xb8] sm:$0xf] %vm1348, %v2246
        %2327 = vst.msk [vmem:[#allocation4 + $0xc4] sm:$0xf] %vm1348, %v2248
        %2328 = vst.msk [vmem:[#allocation4 + $0xd0] sm:$0xf] %vm1348, %v2250
        %2329 = vst.msk [vmem:[#allocation4 + $0xdc] sm:$0xf] %vm1348, %v2252
        %2330 = vst.msk [vmem:[#allocation4 + $0xe8] sm:$0xf] %vm1348, %v2254
        %2331 = vst.msk [vmem:[#allocation4 + $0xf4] sm:$0xf] %vm1348, %v2256
        %2332 = vst.msk [vmem:[#allocation4 + $0x100] sm:$0xf] %vm1348, %v2258
        %2333 = vst.msk [vmem:[#allocation4 + $0x10c] sm:$0xf] %vm1348, %v2260
        %2334 = vst.msk [vmem:[#allocation4 + $0x118] sm:$0xf] %vm1348, %v2262
        %2335 = vst.msk [vmem:[#allocation4 + $0x124] sm:$0xf] %vm1348, %v2264
        %2336 = vst.msk [vmem:[#allocation4 + $0x130] sm:$0xf] %vm1348, %v2266
        %2337 = vst.msk [vmem:[#allocation4 + $0x13c] sm:$0xf] %vm1348, %v2268
        %2338 = vst.msk [vmem:[#allocation4 + $0x148] sm:$0xf] %vm1348, %v2270
        %2339 = vst.msk [vmem:[#allocation4 + $0x154] sm:$0xf] %vm1348, %v2272
        %2340 = vst.msk [vmem:[#allocation4 + $0x160] sm:$0xf] %vm1348, %v2274
        %2341 = vst.msk [vmem:[#allocation4 + $0x16c] sm:$0xf] %vm1348, %v2276
        %2342 = vst.msk [vmem:[#allocation4 + $0x178] sm:$0xf] %vm1348, %v2278
        %v2343 = vld [vmem:[%s2086 + $0x1] sm:$0xff]
        %v2344 = vld [vmem:[%s2086 + $0x9] sm:$0xff]
        %v2345 = vld [vmem:[%s2086 + $0x19] sm:$0xff]
        %v2346 = vld [vmem:[%s2086 + $0x21] sm:$0xff]
        %v2347 = vld [vmem:[%s2086 + $0x31] sm:$0xff]
        %v2348 = vld [vmem:[%s2086 + $0x39] sm:$0xff]
        %v2349 = vld [vmem:[%s2086 + $0x49] sm:$0xff]
        %v2350 = vld [vmem:[%s2086 + $0x51] sm:$0xff]
        %v2351 = vld [vmem:[%s2086 + $0x61] sm:$0xff]
        %v2352 = vld [vmem:[%s2086 + $0x69] sm:$0xff]
        %v2353 = vld [vmem:[%s2086 + $0x79] sm:$0xff]
        %v2354 = vld [vmem:[%s2086 + $0x81] sm:$0xff]
        %v2355 = vld [vmem:[%s2086 + $0x91] sm:$0xff]
        %v2356 = vld [vmem:[%s2086 + $0x99] sm:$0xff]
        %v2357 = vld [vmem:[%s2086 + $0xa9] sm:$0xff]
        %v2358 = vld [vmem:[%s2086 + $0xb1] sm:$0xff]
        %v2359 = vld [vmem:[%s2086 + $0xc1] sm:$0xff]
        %v2360 = vld [vmem:[%s2086 + $0xc9] sm:$0xff]
        %v2361 = vld [vmem:[%s2086 + $0xd9] sm:$0xff]
        %v2362 = vld [vmem:[%s2086 + $0xe1] sm:$0xff]
        %v2363 = vld [vmem:[%s2086 + $0xf1] sm:$0xff]
        %v2364 = vld [vmem:[%s2086 + $0xf9] sm:$0xff]
        %v2365 = vld [vmem:[%s2086 + $0x109] sm:$0xff]
        %v2366 = vld [vmem:[%s2086 + $0x111] sm:$0xff]
        %v2367 = vld [vmem:[%s2086 + $0x121] sm:$0xff]
        %v2368 = vld [vmem:[%s2086 + $0x129] sm:$0xff]
        %v2369 = vld [vmem:[%s2086 + $0x139] sm:$0xff]
        %v2370 = vld [vmem:[%s2086 + $0x141] sm:$0xff]
        %v2371 = vld [vmem:[%s2086 + $0x151] sm:$0xff]
        %v2372 = vld [vmem:[%s2086 + $0x159] sm:$0xff]
        %v2373 = vld [vmem:[%s2086 + $0x169] sm:$0xff]
        %v2374 = vld [vmem:[%s2086 + $0x171] sm:$0xff]
        %v2375 = vpack.c.bf16 %v2344, %v2343
        %v2376 = vpack.c.bf16 %v2346, %v2345
        %v2377 = vpack.c.bf16 %v2348, %v2347
        %v2378 = vpack.c.bf16 %v2350, %v2349
        %v2379 = vpack.c.bf16 %v2352, %v2351
        %v2380 = vpack.c.bf16 %v2354, %v2353
        %v2381 = vpack.c.bf16 %v2356, %v2355
        %v2382 = vpack.c.bf16 %v2358, %v2357
        %v2383 = vpack.c.bf16 %v2360, %v2359
        %v2384 = vpack.c.bf16 %v2362, %v2361
        %v2385 = vpack.c.bf16 %v2364, %v2363
        %v2386 = vpack.c.bf16 %v2366, %v2365
        %v2387 = vpack.c.bf16 %v2368, %v2367
        %v2388 = vpack.c.bf16 %v2370, %v2369
        %v2389 = vpack.c.bf16 %v2372, %v2371
        %v2390 = vpack.c.bf16 %v2374, %v2373
        %v2407 = vunpack.c.l.b16 %v2375
        %v2408 = vunpack.c.h.b16 %v2375
        %v2409 = vunpack.c.l.b16 %v2376
        %v2410 = vunpack.c.h.b16 %v2376
        %v2411 = vunpack.c.l.b16 %v2377
        %v2412 = vunpack.c.h.b16 %v2377
        %v2413 = vunpack.c.l.b16 %v2378
        %v2414 = vunpack.c.h.b16 %v2378
        %v2415 = vunpack.c.l.b16 %v2379
        %v2416 = vunpack.c.h.b16 %v2379
        %v2417 = vunpack.c.l.b16 %v2380
        %v2418 = vunpack.c.h.b16 %v2380
        %v2419 = vunpack.c.l.b16 %v2381
        %v2420 = vunpack.c.h.b16 %v2381
        %v2421 = vunpack.c.l.b16 %v2382
        %v2422 = vunpack.c.h.b16 %v2382
        %v2423 = vunpack.c.l.b16 %v2383
        %v2424 = vunpack.c.h.b16 %v2383
        %v2425 = vunpack.c.l.b16 %v2384
        %v2426 = vunpack.c.h.b16 %v2384
        %v2427 = vunpack.c.l.b16 %v2385
        %v2428 = vunpack.c.h.b16 %v2385
        %v2429 = vunpack.c.l.b16 %v2386
        %v2430 = vunpack.c.h.b16 %v2386
        %v2431 = vunpack.c.l.b16 %v2387
        %v2432 = vunpack.c.h.b16 %v2387
        %v2433 = vunpack.c.l.b16 %v2388
        %v2434 = vunpack.c.h.b16 %v2388
        %v2435 = vunpack.c.l.b16 %v2389
        %v2436 = vunpack.c.h.b16 %v2389
        %v2437 = vunpack.c.l.b16 %v2390
        %v2438 = vunpack.c.h.b16 %v2390
        %v2439 = vpack.c.b16 %v2407, %v2407
        %v2440 = vpack.c.b16 %v2408, %v2408
        %v2441 = vpack.c.b16 %v2409, %v2409
        %v2442 = vpack.c.b16 %v2410, %v2410
        %v2443 = vpack.c.b16 %v2411, %v2411
        %v2444 = vpack.c.b16 %v2412, %v2412
        %v2445 = vpack.c.b16 %v2413, %v2413
        %v2446 = vpack.c.b16 %v2414, %v2414
        %v2447 = vpack.c.b16 %v2415, %v2415
        %v2448 = vpack.c.b16 %v2416, %v2416
        %v2449 = vpack.c.b16 %v2417, %v2417
        %v2450 = vpack.c.b16 %v2418, %v2418
        %v2451 = vpack.c.b16 %v2419, %v2419
        %v2452 = vpack.c.b16 %v2420, %v2420
        %v2453 = vpack.c.b16 %v2421, %v2421
        %v2454 = vpack.c.b16 %v2422, %v2422
        %v2455 = vpack.c.b16 %v2423, %v2423
        %v2456 = vpack.c.b16 %v2424, %v2424
        %v2457 = vpack.c.b16 %v2425, %v2425
        %v2458 = vpack.c.b16 %v2426, %v2426
        %v2459 = vpack.c.b16 %v2427, %v2427
        %v2460 = vpack.c.b16 %v2428, %v2428
        %v2461 = vpack.c.b16 %v2429, %v2429
        %v2462 = vpack.c.b16 %v2430, %v2430
        %v2463 = vpack.c.b16 %v2431, %v2431
        %v2464 = vpack.c.b16 %v2432, %v2432
        %v2465 = vpack.c.b16 %v2433, %v2433
        %v2466 = vpack.c.b16 %v2434, %v2434
        %v2467 = vpack.c.b16 %v2435, %v2435
        %v2468 = vpack.c.b16 %v2436, %v2436
        %v2469 = vpack.c.b16 %v2437, %v2437
        %v2470 = vpack.c.b16 %v2438, %v2438
        %2471 = vrot.lane.b32.xlu0 %v2439, 96
        %v2472 = vpop.permute.xlu0 %2471
        %2473 = vrot.lane.b32.xlu0 %v2440, 96
        %v2474 = vpop.permute.xlu0 %2473
        %2475 = vrot.lane.b32.xlu0 %v2441, 96
        %v2476 = vpop.permute.xlu0 %2475
        %2477 = vrot.lane.b32.xlu0 %v2442, 96
        %v2478 = vpop.permute.xlu0 %2477
        %2479 = vrot.lane.b32.xlu0 %v2443, 96
        %v2480 = vpop.permute.xlu0 %2479
        %2481 = vrot.lane.b32.xlu0 %v2444, 96
        %v2482 = vpop.permute.xlu0 %2481
        %2483 = vrot.lane.b32.xlu0 %v2445, 96
        %v2484 = vpop.permute.xlu0 %2483
        %2485 = vrot.lane.b32.xlu0 %v2446, 96
        %v2486 = vpop.permute.xlu0 %2485
        %2487 = vrot.lane.b32.xlu0 %v2447, 96
        %v2488 = vpop.permute.xlu0 %2487
        %2489 = vrot.lane.b32.xlu0 %v2448, 96
        %v2490 = vpop.permute.xlu0 %2489
        %2491 = vrot.lane.b32.xlu0 %v2449, 96
        %v2492 = vpop.permute.xlu0 %2491
        %2493 = vrot.lane.b32.xlu0 %v2450, 96
        %v2494 = vpop.permute.xlu0 %2493
        %2495 = vrot.lane.b32.xlu0 %v2451, 96
        %v2496 = vpop.permute.xlu0 %2495
        %2497 = vrot.lane.b32.xlu0 %v2452, 96
        %v2498 = vpop.permute.xlu0 %2497
        %2499 = vrot.lane.b32.xlu0 %v2453, 96
        %v2500 = vpop.permute.xlu0 %2499
        %2501 = vrot.lane.b32.xlu0 %v2454, 96
        %v2502 = vpop.permute.xlu0 %2501
        %2503 = vrot.lane.b32.xlu0 %v2455, 96
        %v2504 = vpop.permute.xlu0 %2503
        %2505 = vrot.lane.b32.xlu0 %v2456, 96
        %v2506 = vpop.permute.xlu0 %2505
        %2507 = vrot.lane.b32.xlu0 %v2457, 96
        %v2508 = vpop.permute.xlu0 %2507
        %2509 = vrot.lane.b32.xlu0 %v2458, 96
        %v2510 = vpop.permute.xlu0 %2509
        %2511 = vrot.lane.b32.xlu0 %v2459, 96
        %v2512 = vpop.permute.xlu0 %2511
        %2513 = vrot.lane.b32.xlu0 %v2460, 96
        %v2514 = vpop.permute.xlu0 %2513
        %2515 = vrot.lane.b32.xlu0 %v2461, 96
        %v2516 = vpop.permute.xlu0 %2515
        %2517 = vrot.lane.b32.xlu0 %v2462, 96
        %v2518 = vpop.permute.xlu0 %2517
        %2519 = vrot.lane.b32.xlu0 %v2463, 96
        %v2520 = vpop.permute.xlu0 %2519
        %2521 = vrot.lane.b32.xlu0 %v2464, 96
        %v2522 = vpop.permute.xlu0 %2521
        %2523 = vrot.lane.b32.xlu0 %v2465, 96
        %v2524 = vpop.permute.xlu0 %2523
        %2525 = vrot.lane.b32.xlu0 %v2466, 96
        %v2526 = vpop.permute.xlu0 %2525
        %2527 = vrot.lane.b32.xlu0 %v2467, 96
        %v2528 = vpop.permute.xlu0 %2527
        %2529 = vrot.lane.b32.xlu0 %v2468, 96
        %v2530 = vpop.permute.xlu0 %2529
        %2531 = vrot.lane.b32.xlu0 %v2469, 96
        %v2532 = vpop.permute.xlu0 %2531
        %2533 = vrot.lane.b32.xlu0 %v2470, 96
        %v2534 = vpop.permute.xlu0 %2533
        %2567 = vst.msk [vmem:[#allocation4 + $0x4] sm:$0xf] %vm1605, %v2472
        %2568 = vst.msk [vmem:[#allocation4 + $0x10] sm:$0xf] %vm1605, %v2474
        %2569 = vst.msk [vmem:[#allocation4 + $0x1c] sm:$0xf] %vm1605, %v2476
        %2570 = vst.msk [vmem:[#allocation4 + $0x28] sm:$0xf] %vm1605, %v2478
        %2571 = vst.msk [vmem:[#allocation4 + $0x34] sm:$0xf] %vm1605, %v2480
        %2572 = vst.msk [vmem:[#allocation4 + $0x40] sm:$0xf] %vm1605, %v2482
        %2573 = vst.msk [vmem:[#allocation4 + $0x4c] sm:$0xf] %vm1605, %v2484
        %2574 = vst.msk [vmem:[#allocation4 + $0x58] sm:$0xf] %vm1605, %v2486
        %2575 = vst.msk [vmem:[#allocation4 + $0x64] sm:$0xf] %vm1605, %v2488
        %2576 = vst.msk [vmem:[#allocation4 + $0x70] sm:$0xf] %vm1605, %v2490
        %2577 = vst.msk [vmem:[#allocation4 + $0x7c] sm:$0xf] %vm1605, %v2492
        %2578 = vst.msk [vmem:[#allocation4 + $0x88] sm:$0xf] %vm1605, %v2494
        %2579 = vst.msk [vmem:[#allocation4 + $0x94] sm:$0xf] %vm1605, %v2496
        %2580 = vst.msk [vmem:[#allocation4 + $0xa0] sm:$0xf] %vm1605, %v2498
        %2581 = vst.msk [vmem:[#allocation4 + $0xac] sm:$0xf] %vm1605, %v2500
        %2582 = vst.msk [vmem:[#allocation4 + $0xb8] sm:$0xf] %vm1605, %v2502
        %2583 = vst.msk [vmem:[#allocation4 + $0xc4] sm:$0xf] %vm1605, %v2504
        %2584 = vst.msk [vmem:[#allocation4 + $0xd0] sm:$0xf] %vm1605, %v2506
        %2585 = vst.msk [vmem:[#allocation4 + $0xdc] sm:$0xf] %vm1605, %v2508
        %2586 = vst.msk [vmem:[#allocation4 + $0xe8] sm:$0xf] %vm1605, %v2510
        %2587 = vst.msk [vmem:[#allocation4 + $0xf4] sm:$0xf] %vm1605, %v2512
        %2588 = vst.msk [vmem:[#allocation4 + $0x100] sm:$0xf] %vm1605, %v2514
        %2589 = vst.msk [vmem:[#allocation4 + $0x10c] sm:$0xf] %vm1605, %v2516
        %2590 = vst.msk [vmem:[#allocation4 + $0x118] sm:$0xf] %vm1605, %v2518
        %2591 = vst.msk [vmem:[#allocation4 + $0x124] sm:$0xf] %vm1605, %v2520
        %2592 = vst.msk [vmem:[#allocation4 + $0x130] sm:$0xf] %vm1605, %v2522
        %2593 = vst.msk [vmem:[#allocation4 + $0x13c] sm:$0xf] %vm1605, %v2524
        %2594 = vst.msk [vmem:[#allocation4 + $0x148] sm:$0xf] %vm1605, %v2526
        %2595 = vst.msk [vmem:[#allocation4 + $0x154] sm:$0xf] %vm1605, %v2528
        %2596 = vst.msk [vmem:[#allocation4 + $0x160] sm:$0xf] %vm1605, %v2530
        %2597 = vst.msk [vmem:[#allocation4 + $0x16c] sm:$0xf] %vm1605, %v2532
        %2598 = vst.msk [vmem:[#allocation4 + $0x178] sm:$0xf] %vm1605, %v2534
        %v2599 = vld [vmem:[%s2086 + $0x2] sm:$0xff]
        %v2600 = vld [vmem:[%s2086 + $0xa] sm:$0xff]
        %v2601 = vld [vmem:[%s2086 + $0x1a] sm:$0xff]
        %v2602 = vld [vmem:[%s2086 + $0x22] sm:$0xff]
        %v2603 = vld [vmem:[%s2086 + $0x32] sm:$0xff]
        %v2604 = vld [vmem:[%s2086 + $0x3a] sm:$0xff]
        %v2605 = vld [vmem:[%s2086 + $0x4a] sm:$0xff]
        %v2606 = vld [vmem:[%s2086 + $0x52] sm:$0xff]
        %v2607 = vld [vmem:[%s2086 + $0x62] sm:$0xff]
        %v2608 = vld [vmem:[%s2086 + $0x6a] sm:$0xff]
        %v2609 = vld [vmem:[%s2086 + $0x7a] sm:$0xff]
        %v2610 = vld [vmem:[%s2086 + $0x82] sm:$0xff]
        %v2611 = vld [vmem:[%s2086 + $0x92] sm:$0xff]
        %v2612 = vld [vmem:[%s2086 + $0x9a] sm:$0xff]
        %v2613 = vld [vmem:[%s2086 + $0xaa] sm:$0xff]
        %v2614 = vld [vmem:[%s2086 + $0xb2] sm:$0xff]
        %v2615 = vld [vmem:[%s2086 + $0xc2] sm:$0xff]
        %v2616 = vld [vmem:[%s2086 + $0xca] sm:$0xff]
        %v2617 = vld [vmem:[%s2086 + $0xda] sm:$0xff]
        %v2618 = vld [vmem:[%s2086 + $0xe2] sm:$0xff]
        %v2619 = vld [vmem:[%s2086 + $0xf2] sm:$0xff]
        %v2620 = vld [vmem:[%s2086 + $0xfa] sm:$0xff]
        %v2621 = vld [vmem:[%s2086 + $0x10a] sm:$0xff]
        %v2622 = vld [vmem:[%s2086 + $0x112] sm:$0xff]
        %v2623 = vld [vmem:[%s2086 + $0x122] sm:$0xff]
        %v2624 = vld [vmem:[%s2086 + $0x12a] sm:$0xff]
        %v2625 = vld [vmem:[%s2086 + $0x13a] sm:$0xff]
        %v2626 = vld [vmem:[%s2086 + $0x142] sm:$0xff]
        %v2627 = vld [vmem:[%s2086 + $0x152] sm:$0xff]
        %v2628 = vld [vmem:[%s2086 + $0x15a] sm:$0xff]
        %v2629 = vld [vmem:[%s2086 + $0x16a] sm:$0xff]
        %v2630 = vld [vmem:[%s2086 + $0x172] sm:$0xff]
        %v2631 = vpack.c.bf16 %v2600, %v2599
        %v2632 = vpack.c.bf16 %v2602, %v2601
        %v2633 = vpack.c.bf16 %v2604, %v2603
        %v2634 = vpack.c.bf16 %v2606, %v2605
        %v2635 = vpack.c.bf16 %v2608, %v2607
        %v2636 = vpack.c.bf16 %v2610, %v2609
        %v2637 = vpack.c.bf16 %v2612, %v2611
        %v2638 = vpack.c.bf16 %v2614, %v2613
        %v2639 = vpack.c.bf16 %v2616, %v2615
        %v2640 = vpack.c.bf16 %v2618, %v2617
        %v2641 = vpack.c.bf16 %v2620, %v2619
        %v2642 = vpack.c.bf16 %v2622, %v2621
        %v2643 = vpack.c.bf16 %v2624, %v2623
        %v2644 = vpack.c.bf16 %v2626, %v2625
        %v2645 = vpack.c.bf16 %v2628, %v2627
        %v2646 = vpack.c.bf16 %v2630, %v2629
        %v2663 = vunpack.c.l.b16 %v2631
        %v2664 = vunpack.c.h.b16 %v2631
        %v2665 = vunpack.c.l.b16 %v2632
        %v2666 = vunpack.c.h.b16 %v2632
        %v2667 = vunpack.c.l.b16 %v2633
        %v2668 = vunpack.c.h.b16 %v2633
        %v2669 = vunpack.c.l.b16 %v2634
        %v2670 = vunpack.c.h.b16 %v2634
        %v2671 = vunpack.c.l.b16 %v2635
        %v2672 = vunpack.c.h.b16 %v2635
        %v2673 = vunpack.c.l.b16 %v2636
        %v2674 = vunpack.c.h.b16 %v2636
        %v2675 = vunpack.c.l.b16 %v2637
        %v2676 = vunpack.c.h.b16 %v2637
        %v2677 = vunpack.c.l.b16 %v2638
        %v2678 = vunpack.c.h.b16 %v2638
        %v2679 = vunpack.c.l.b16 %v2639
        %v2680 = vunpack.c.h.b16 %v2639
        %v2681 = vunpack.c.l.b16 %v2640
        %v2682 = vunpack.c.h.b16 %v2640
        %v2683 = vunpack.c.l.b16 %v2641
        %v2684 = vunpack.c.h.b16 %v2641
        %v2685 = vunpack.c.l.b16 %v2642
        %v2686 = vunpack.c.h.b16 %v2642
        %v2687 = vunpack.c.l.b16 %v2643
        %v2688 = vunpack.c.h.b16 %v2643
        %v2689 = vunpack.c.l.b16 %v2644
        %v2690 = vunpack.c.h.b16 %v2644
        %v2691 = vunpack.c.l.b16 %v2645
        %v2692 = vunpack.c.h.b16 %v2645
        %v2693 = vunpack.c.l.b16 %v2646
        %v2694 = vunpack.c.h.b16 %v2646
        %v2695 = vpack.c.b16 %v2663, %v2663
        %v2696 = vpack.c.b16 %v2664, %v2664
        %v2697 = vpack.c.b16 %v2665, %v2665
        %v2698 = vpack.c.b16 %v2666, %v2666
        %v2699 = vpack.c.b16 %v2667, %v2667
        %v2700 = vpack.c.b16 %v2668, %v2668
        %v2701 = vpack.c.b16 %v2669, %v2669
        %v2702 = vpack.c.b16 %v2670, %v2670
        %v2703 = vpack.c.b16 %v2671, %v2671
        %v2704 = vpack.c.b16 %v2672, %v2672
        %v2705 = vpack.c.b16 %v2673, %v2673
        %v2706 = vpack.c.b16 %v2674, %v2674
        %v2707 = vpack.c.b16 %v2675, %v2675
        %v2708 = vpack.c.b16 %v2676, %v2676
        %v2709 = vpack.c.b16 %v2677, %v2677
        %v2710 = vpack.c.b16 %v2678, %v2678
        %v2711 = vpack.c.b16 %v2679, %v2679
        %v2712 = vpack.c.b16 %v2680, %v2680
        %v2713 = vpack.c.b16 %v2681, %v2681
        %v2714 = vpack.c.b16 %v2682, %v2682
        %v2715 = vpack.c.b16 %v2683, %v2683
        %v2716 = vpack.c.b16 %v2684, %v2684
        %v2717 = vpack.c.b16 %v2685, %v2685
        %v2718 = vpack.c.b16 %v2686, %v2686
        %v2719 = vpack.c.b16 %v2687, %v2687
        %v2720 = vpack.c.b16 %v2688, %v2688
        %v2721 = vpack.c.b16 %v2689, %v2689
        %v2722 = vpack.c.b16 %v2690, %v2690
        %v2723 = vpack.c.b16 %v2691, %v2691
        %v2724 = vpack.c.b16 %v2692, %v2692
        %v2725 = vpack.c.b16 %v2693, %v2693
        %v2726 = vpack.c.b16 %v2694, %v2694
        %2759 = vst.msk [vmem:[#allocation4 + $0x8] sm:$0xf] %vm834, %v2695
        %2760 = vst.msk [vmem:[#allocation4 + $0x14] sm:$0xf] %vm834, %v2696
        %2761 = vst.msk [vmem:[#allocation4 + $0x20] sm:$0xf] %vm834, %v2697
        %2762 = vst.msk [vmem:[#allocation4 + $0x2c] sm:$0xf] %vm834, %v2698
        %2763 = vst.msk [vmem:[#allocation4 + $0x38] sm:$0xf] %vm834, %v2699
        %2764 = vst.msk [vmem:[#allocation4 + $0x44] sm:$0xf] %vm834, %v2700
        %2765 = vst.msk [vmem:[#allocation4 + $0x50] sm:$0xf] %vm834, %v2701
        %2766 = vst.msk [vmem:[#allocation4 + $0x5c] sm:$0xf] %vm834, %v2702
        %2767 = vst.msk [vmem:[#allocation4 + $0x68] sm:$0xf] %vm834, %v2703
        %2768 = vst.msk [vmem:[#allocation4 + $0x74] sm:$0xf] %vm834, %v2704
        %2769 = vst.msk [vmem:[#allocation4 + $0x80] sm:$0xf] %vm834, %v2705
        %2770 = vst.msk [vmem:[#allocation4 + $0x8c] sm:$0xf] %vm834, %v2706
        %2771 = vst.msk [vmem:[#allocation4 + $0x98] sm:$0xf] %vm834, %v2707
        %2772 = vst.msk [vmem:[#allocation4 + $0xa4] sm:$0xf] %vm834, %v2708
        %2773 = vst.msk [vmem:[#allocation4 + $0xb0] sm:$0xf] %vm834, %v2709
        %2774 = vst.msk [vmem:[#allocation4 + $0xbc] sm:$0xf] %vm834, %v2710
        %2775 = vst.msk [vmem:[#allocation4 + $0xc8] sm:$0xf] %vm834, %v2711
        %2776 = vst.msk [vmem:[#allocation4 + $0xd4] sm:$0xf] %vm834, %v2712
        %2777 = vst.msk [vmem:[#allocation4 + $0xe0] sm:$0xf] %vm834, %v2713
        %2778 = vst.msk [vmem:[#allocation4 + $0xec] sm:$0xf] %vm834, %v2714
        %2779 = vst.msk [vmem:[#allocation4 + $0xf8] sm:$0xf] %vm834, %v2715
        %2780 = vst.msk [vmem:[#allocation4 + $0x104] sm:$0xf] %vm834, %v2716
        %2781 = vst.msk [vmem:[#allocation4 + $0x110] sm:$0xf] %vm834, %v2717
        %2782 = vst.msk [vmem:[#allocation4 + $0x11c] sm:$0xf] %vm834, %v2718
        %2783 = vst.msk [vmem:[#allocation4 + $0x128] sm:$0xf] %vm834, %v2719
        %2784 = vst.msk [vmem:[#allocation4 + $0x134] sm:$0xf] %vm834, %v2720
        %2785 = vst.msk [vmem:[#allocation4 + $0x140] sm:$0xf] %vm834, %v2721
        %2786 = vst.msk [vmem:[#allocation4 + $0x14c] sm:$0xf] %vm834, %v2722
        %2787 = vst.msk [vmem:[#allocation4 + $0x158] sm:$0xf] %vm834, %v2723
        %2788 = vst.msk [vmem:[#allocation4 + $0x164] sm:$0xf] %vm834, %v2724
        %2789 = vst.msk [vmem:[#allocation4 + $0x170] sm:$0xf] %vm834, %v2725
        %2790 = vst.msk [vmem:[#allocation4 + $0x17c] sm:$0xf] %vm834, %v2726
        %v2791 = vld [vmem:[#allocation4] sm:$0xff]
        %v2792 = vld [vmem:[#allocation4 + $0x8] sm:$0xf]
        %v2793 = vld [vmem:[#allocation4 + $0xc] sm:$0xff]
        %v2794 = vld [vmem:[#allocation4 + $0x14] sm:$0xf]
        %v2795 = vld [vmem:[#allocation4 + $0x18] sm:$0xff]
        %v2796 = vld [vmem:[#allocation4 + $0x20] sm:$0xf]
        %v2797 = vld [vmem:[#allocation4 + $0x24] sm:$0xff]
        %v2798 = vld [vmem:[#allocation4 + $0x2c] sm:$0xf]
        %v2799 = vld [vmem:[#allocation4 + $0x30] sm:$0xff]
        %v2800 = vld [vmem:[#allocation4 + $0x38] sm:$0xf]
        %v2801 = vld [vmem:[#allocation4 + $0x3c] sm:$0xff]
        %v2802 = vld [vmem:[#allocation4 + $0x44] sm:$0xf]
        %v2803 = vld [vmem:[#allocation4 + $0x48] sm:$0xff]
        %v2804 = vld [vmem:[#allocation4 + $0x50] sm:$0xf]
        %v2805 = vld [vmem:[#allocation4 + $0x54] sm:$0xff]
        %v2806 = vld [vmem:[#allocation4 + $0x5c] sm:$0xf]
        %v2807 = vld [vmem:[#allocation4 + $0x60] sm:$0xff]
        %v2808 = vld [vmem:[#allocation4 + $0x68] sm:$0xf]
        %v2809 = vld [vmem:[#allocation4 + $0x6c] sm:$0xff]
        %v2810 = vld [vmem:[#allocation4 + $0x74] sm:$0xf]
        %v2811 = vld [vmem:[#allocation4 + $0x78] sm:$0xff]
        %v2812 = vld [vmem:[#allocation4 + $0x80] sm:$0xf]
        %v2813 = vld [vmem:[#allocation4 + $0x84] sm:$0xff]
        %v2814 = vld [vmem:[#allocation4 + $0x8c] sm:$0xf]
        %v2815 = vld [vmem:[#allocation4 + $0x90] sm:$0xff]
        %v2816 = vld [vmem:[#allocation4 + $0x98] sm:$0xf]
        %v2817 = vld [vmem:[#allocation4 + $0x9c] sm:$0xff]
        %v2818 = vld [vmem:[#allocation4 + $0xa4] sm:$0xf]
        %v2819 = vld [vmem:[#allocation4 + $0xa8] sm:$0xff]
        %v2820 = vld [vmem:[#allocation4 + $0xb0] sm:$0xf]
        %v2821 = vld [vmem:[#allocation4 + $0xb4] sm:$0xff]
        %v2822 = vld [vmem:[#allocation4 + $0xbc] sm:$0xf]
        %v2823 = vld [vmem:[#allocation4 + $0xc0] sm:$0xff]
        %v2824 = vld [vmem:[#allocation4 + $0xc8] sm:$0xf]
        %v2825 = vld [vmem:[#allocation4 + $0xcc] sm:$0xff]
        %v2826 = vld [vmem:[#allocation4 + $0xd4] sm:$0xf]
        %v2827 = vld [vmem:[#allocation4 + $0xd8] sm:$0xff]
        %v2828 = vld [vmem:[#allocation4 + $0xe0] sm:$0xf]
        %v2829 = vld [vmem:[#allocation4 + $0xe4] sm:$0xff]
        %v2830 = vld [vmem:[#allocation4 + $0xec] sm:$0xf]
        %v2831 = vld [vmem:[#allocation4 + $0xf0] sm:$0xff]
        %v2832 = vld [vmem:[#allocation4 + $0xf8] sm:$0xf]
        %v2833 = vld [vmem:[#allocation4 + $0xfc] sm:$0xff]
        %v2834 = vld [vmem:[#allocation4 + $0x104] sm:$0xf]
        %v2835 = vld [vmem:[#allocation4 + $0x108] sm:$0xff]
        %v2836 = vld [vmem:[#allocation4 + $0x110] sm:$0xf]
        %v2837 = vld [vmem:[#allocation4 + $0x114] sm:$0xff]
        %v2838 = vld [vmem:[#allocation4 + $0x11c] sm:$0xf]
        %v2839 = vld [vmem:[#allocation4 + $0x120] sm:$0xff]
        %v2840 = vld [vmem:[#allocation4 + $0x128] sm:$0xf]
        %v2841 = vld [vmem:[#allocation4 + $0x12c] sm:$0xff]
        %v2842 = vld [vmem:[#allocation4 + $0x134] sm:$0xf]
        %v2843 = vld [vmem:[#allocation4 + $0x138] sm:$0xff]
        %v2844 = vld [vmem:[#allocation4 + $0x140] sm:$0xf]
        %v2845 = vld [vmem:[#allocation4 + $0x144] sm:$0xff]
        %v2846 = vld [vmem:[#allocation4 + $0x14c] sm:$0xf]
        %v2847 = vld [vmem:[#allocation4 + $0x150] sm:$0xff]
        %v2848 = vld [vmem:[#allocation4 + $0x158] sm:$0xf]
        %v2849 = vld [vmem:[#allocation4 + $0x15c] sm:$0xff]
        %v2850 = vld [vmem:[#allocation4 + $0x164] sm:$0xf]
        %v2851 = vld [vmem:[#allocation4 + $0x168] sm:$0xff]
        %v2852 = vld [vmem:[#allocation4 + $0x170] sm:$0xf]
        %v2853 = vld [vmem:[#allocation4 + $0x174] sm:$0xff]
        %v2854 = vld [vmem:[#allocation4 + $0x17c] sm:$0xf]
        %v2855 = vld [vmem:[%s3] sm:$0xf]
        %v2856 = vld [vmem:[%s3 + $0x4] sm:$0xf]
        %v2857 = vld [vmem:[%s3 + $0x8] sm:$0xf]
        %v2858 = vld [vmem:[%s3 + $0xc] sm:$0xf]
        %v2859 = vld [vmem:[%s3 + $0x10] sm:$0xf]
        %v2860 = vld [vmem:[%s3 + $0x14] sm:$0xf]
        %v2861 = vld [vmem:[%s3 + $0x18] sm:$0xf]
        %v2862 = vld [vmem:[%s3 + $0x1c] sm:$0xf]
        %v2863 = vld [vmem:[%s3 + $0x20] sm:$0xf]
        %v2864 = vld [vmem:[%s3 + $0x24] sm:$0xf]
        %v2865 = vld [vmem:[%s3 + $0x28] sm:$0xf]
        %v2866 = vld [vmem:[%s3 + $0x2c] sm:$0xf]
        %v2867 = vld [vmem:[%s3 + $0x30] sm:$0xf]
        %v2868 = vld [vmem:[%s3 + $0x34] sm:$0xf]
        %v2869 = vld [vmem:[%s3 + $0x38] sm:$0xf]
        %v2870 = vld [vmem:[%s3 + $0x3c] sm:$0xf]
        %v2871 = vld [vmem:[%s3 + $0x40] sm:$0xf]
        %v2872 = vld [vmem:[%s3 + $0x44] sm:$0xf]
        %v2873 = vld [vmem:[%s3 + $0x48] sm:$0xf]
        %v2874 = vld [vmem:[%s3 + $0x4c] sm:$0xf]
        %v2875 = vld [vmem:[%s3 + $0x50] sm:$0xf]
        %v2876 = vld [vmem:[%s3 + $0x54] sm:$0xf]
        %v2877 = vld [vmem:[%s3 + $0x58] sm:$0xf]
        %v2878 = vld [vmem:[%s3 + $0x5c] sm:$0xf]
        %v2879 = vld [vmem:[%s3 + $0x60] sm:$0xf]
        %v2880 = vld [vmem:[%s3 + $0x64] sm:$0xf]
        %v2881 = vld [vmem:[%s3 + $0x68] sm:$0xf]
        %v2882 = vld [vmem:[%s3 + $0x6c] sm:$0xf]
        %v2883 = vld [vmem:[%s3 + $0x70] sm:$0xf]
        %v2884 = vld [vmem:[%s3 + $0x74] sm:$0xf]
        %v2885 = vld [vmem:[%s3 + $0x78] sm:$0xf]
        %v2886 = vld [vmem:[%s3 + $0x7c] sm:$0xf]
        %v2887 = vld [vmem:[%s3 + $0x80] sm:$0xf]
        %v2888 = vld [vmem:[%s3 + $0x84] sm:$0xf]
        %v2889 = vld [vmem:[%s3 + $0x88] sm:$0xf]
        %v2890 = vld [vmem:[%s3 + $0x8c] sm:$0xf]
        %v2891 = vld [vmem:[%s4] sm:$0x1]
        %v2893 = vlaneseq
        %v2894 = vshrl.u32 %v2893, 7
        %v2895 = vsub.s32 0, %v2894
        %v2896 = vrot.slane %v2891, %v2895
        %v2962 = vunpack.c.l.b16 %v2791
        %v2963 = vunpack.c.h.b16 %v2791
        %v2964 = vunpack.c.l.b16 %v2792
        %v2965 = vunpack.c.l.b16 %v2793
        %v2966 = vunpack.c.h.b16 %v2793
        %v2967 = vunpack.c.l.b16 %v2794
        %v2968 = vunpack.c.l.b16 %v2795
        %v2969 = vunpack.c.h.b16 %v2795
        %v2970 = vunpack.c.l.b16 %v2796
        %v2971 = vunpack.c.l.b16 %v2797
        %v2972 = vunpack.c.h.b16 %v2797
        %v2973 = vunpack.c.l.b16 %v2798
        %v2974 = vunpack.c.l.b16 %v2799
        %v2975 = vunpack.c.h.b16 %v2799
        %v2976 = vunpack.c.l.b16 %v2800
        %v2977 = vunpack.c.l.b16 %v2801
        %v2978 = vunpack.c.h.b16 %v2801
        %v2979 = vunpack.c.l.b16 %v2802
        %v2980 = vunpack.c.l.b16 %v2803
        %v2981 = vunpack.c.h.b16 %v2803
        %v2982 = vunpack.c.l.b16 %v2804
        %v2983 = vunpack.c.l.b16 %v2805
        %v2984 = vunpack.c.h.b16 %v2805
        %v2985 = vunpack.c.l.b16 %v2806
        %v2986 = vunpack.c.l.b16 %v2807
        %v2987 = vunpack.c.h.b16 %v2807
        %v2988 = vunpack.c.l.b16 %v2808
        %v2989 = vunpack.c.l.b16 %v2809
        %v2990 = vunpack.c.h.b16 %v2809
        %v2991 = vunpack.c.l.b16 %v2810
        %v2992 = vunpack.c.l.b16 %v2811
        %v2993 = vunpack.c.h.b16 %v2811
        %v2994 = vunpack.c.l.b16 %v2812
        %v2995 = vunpack.c.l.b16 %v2813
        %v2996 = vunpack.c.h.b16 %v2813
        %v2997 = vunpack.c.l.b16 %v2814
        %v2998 = vunpack.c.l.b16 %v2815
        %v2999 = vunpack.c.h.b16 %v2815
        %v3000 = vunpack.c.l.b16 %v2816
        %v3001 = vunpack.c.l.b16 %v2817
        %v3002 = vunpack.c.h.b16 %v2817
        %v3003 = vunpack.c.l.b16 %v2818
        %v3004 = vunpack.c.l.b16 %v2819
        %v3005 = vunpack.c.h.b16 %v2819
        %v3006 = vunpack.c.l.b16 %v2820
        %v3007 = vunpack.c.l.b16 %v2821
        %v3008 = vunpack.c.h.b16 %v2821
        %v3009 = vunpack.c.l.b16 %v2822
        %v3010 = vunpack.c.l.b16 %v2823
        %v3011 = vunpack.c.h.b16 %v2823
        %v3012 = vunpack.c.l.b16 %v2824
        %v3013 = vunpack.c.l.b16 %v2825
        %v3014 = vunpack.c.h.b16 %v2825
        %v3015 = vunpack.c.l.b16 %v2826
        %v3016 = vunpack.c.l.b16 %v2827
        %v3017 = vunpack.c.h.b16 %v2827
        %v3018 = vunpack.c.l.b16 %v2828
        %v3019 = vunpack.c.l.b16 %v2829
        %v3020 = vunpack.c.h.b16 %v2829
        %v3021 = vunpack.c.l.b16 %v2830
        %v3022 = vunpack.c.l.b16 %v2831
        %v3023 = vunpack.c.h.b16 %v2831
        %v3024 = vunpack.c.l.b16 %v2832
        %v3025 = vunpack.c.l.b16 %v2833
        %v3026 = vunpack.c.h.b16 %v2833
        %v3027 = vunpack.c.l.b16 %v2834
        %v3028 = vunpack.c.l.b16 %v2835
        %v3029 = vunpack.c.h.b16 %v2835
        %v3030 = vunpack.c.l.b16 %v2836
        %v3031 = vunpack.c.l.b16 %v2837
        %v3032 = vunpack.c.h.b16 %v2837
        %v3033 = vunpack.c.l.b16 %v2838
        %v3034 = vunpack.c.l.b16 %v2839
        %v3035 = vunpack.c.h.b16 %v2839
        %v3036 = vunpack.c.l.b16 %v2840
        %v3037 = vunpack.c.l.b16 %v2841
        %v3038 = vunpack.c.h.b16 %v2841
        %v3039 = vunpack.c.l.b16 %v2842
        %v3040 = vunpack.c.l.b16 %v2843
        %v3041 = vunpack.c.h.b16 %v2843
        %v3042 = vunpack.c.l.b16 %v2844
        %v3043 = vunpack.c.l.b16 %v2845
        %v3044 = vunpack.c.h.b16 %v2845
        %v3045 = vunpack.c.l.b16 %v2846
        %v3046 = vunpack.c.l.b16 %v2847
        %v3047 = vunpack.c.h.b16 %v2847
        %v3048 = vunpack.c.l.b16 %v2848
        %v3049 = vunpack.c.l.b16 %v2849
        %v3050 = vunpack.c.h.b16 %v2849
        %v3051 = vunpack.c.l.b16 %v2850
        %v3052 = vunpack.c.l.b16 %v2851
        %v3053 = vunpack.c.h.b16 %v2851
        %v3054 = vunpack.c.l.b16 %v2852
        %v3055 = vunpack.c.l.b16 %v2853
        %v3056 = vunpack.c.h.b16 %v2853
        %v3057 = vunpack.c.l.b16 %v2854
        %v3058 = vpack.c.b16 %v2965, %v2962
        %v3059 = vpack.c.b16 %v2966, %v2963
        %v3060 = vpack.c.b16 %v2967, %v2964
        %v3061 = vpack.c.b16 %v2971, %v2968
        %v3062 = vpack.c.b16 %v2972, %v2969
        %v3063 = vpack.c.b16 %v2973, %v2970
        %v3064 = vpack.c.b16 %v2977, %v2974
        %v3065 = vpack.c.b16 %v2978, %v2975
        %v3066 = vpack.c.b16 %v2979, %v2976
        %v3067 = vpack.c.b16 %v2983, %v2980
        %v3068 = vpack.c.b16 %v2984, %v2981
        %v3069 = vpack.c.b16 %v2985, %v2982
        %v3070 = vpack.c.b16 %v2989, %v2986
        %v3071 = vpack.c.b16 %v2990, %v2987
        %v3072 = vpack.c.b16 %v2991, %v2988
        %v3073 = vpack.c.b16 %v2995, %v2992
        %v3074 = vpack.c.b16 %v2996, %v2993
        %v3075 = vpack.c.b16 %v2997, %v2994
        %v3076 = vpack.c.b16 %v3001, %v2998
        %v3077 = vpack.c.b16 %v3002, %v2999
        %v3078 = vpack.c.b16 %v3003, %v3000
        %v3079 = vpack.c.b16 %v3007, %v3004
        %v3080 = vpack.c.b16 %v3008, %v3005
        %v3081 = vpack.c.b16 %v3009, %v3006
        %v3082 = vpack.c.b16 %v3013, %v3010
        %v3083 = vpack.c.b16 %v3014, %v3011
        %v3084 = vpack.c.b16 %v3015, %v3012
        %v3085 = vpack.c.b16 %v3019, %v3016
        %v3086 = vpack.c.b16 %v3020, %v3017
        %v3087 = vpack.c.b16 %v3021, %v3018
        %v3088 = vpack.c.b16 %v3025, %v3022
        %v3089 = vpack.c.b16 %v3026, %v3023
        %v3090 = vpack.c.b16 %v3027, %v3024
        %v3091 = vpack.c.b16 %v3031, %v3028
        %v3092 = vpack.c.b16 %v3032, %v3029
        %v3093 = vpack.c.b16 %v3033, %v3030
        %v3094 = vpack.c.b16 %v3037, %v3034
        %v3095 = vpack.c.b16 %v3038, %v3035
        %v3096 = vpack.c.b16 %v3039, %v3036
        %v3097 = vpack.c.b16 %v3043, %v3040
        %v3098 = vpack.c.b16 %v3044, %v3041
        %v3099 = vpack.c.b16 %v3045, %v3042
        %v3100 = vpack.c.b16 %v3049, %v3046
        %v3101 = vpack.c.b16 %v3050, %v3047
        %v3102 = vpack.c.b16 %v3051, %v3048
        %v3103 = vpack.c.b16 %v3055, %v3052
        %v3104 = vpack.c.b16 %v3056, %v3053
        %v3105 = vpack.c.b16 %v3057, %v3054
        %v3174 = vunpack.c.l.b16 %v2855
        %v3175 = vunpack.c.l.b16 %v2856
        %v3176 = vunpack.c.l.b16 %v2857
        %v3177 = vunpack.c.l.b16 %v2858
        %v3178 = vunpack.c.l.b16 %v2859
        %v3179 = vunpack.c.l.b16 %v2860
        %v3180 = vunpack.c.l.b16 %v2861
        %v3181 = vunpack.c.l.b16 %v2862
        %v3182 = vunpack.c.l.b16 %v2863
        %v3183 = vunpack.c.l.b16 %v2864
        %v3184 = vunpack.c.l.b16 %v2865
        %v3185 = vunpack.c.l.b16 %v2866
        %v3186 = vunpack.c.l.b16 %v2867
        %v3187 = vunpack.c.l.b16 %v2868
        %v3188 = vunpack.c.l.b16 %v2869
        %v3189 = vunpack.c.l.b16 %v2870
        %v3190 = vunpack.c.l.b16 %v2871
        %v3191 = vunpack.c.l.b16 %v2872
        %v3192 = vunpack.c.l.b16 %v2873
        %v3193 = vunpack.c.l.b16 %v2874
        %v3194 = vunpack.c.l.b16 %v2875
        %v3195 = vunpack.c.l.b16 %v2876
        %v3196 = vunpack.c.l.b16 %v2877
        %v3197 = vunpack.c.l.b16 %v2878
        %v3198 = vunpack.c.l.b16 %v2879
        %v3199 = vunpack.c.l.b16 %v2880
        %v3200 = vunpack.c.l.b16 %v2881
        %v3201 = vunpack.c.l.b16 %v2882
        %v3202 = vunpack.c.l.b16 %v2883
        %v3203 = vunpack.c.l.b16 %v2884
        %v3204 = vunpack.c.l.b16 %v2885
        %v3205 = vunpack.c.l.b16 %v2886
        %v3206 = vunpack.c.l.b16 %v2887
        %v3207 = vunpack.c.l.b16 %v2888
        %v3208 = vunpack.c.l.b16 %v2889
        %v3209 = vunpack.c.l.b16 %v2890
        %v3210 = vpack.c.b16 %v3175, %v3174
        %v3211 = vpack.c.b16 %v3177, %v3176
        %v3212 = vpack.c.b16 %v3179, %v3178
        %v3213 = vpack.c.b16 %v3181, %v3180
        %v3214 = vpack.c.b16 %v3183, %v3182
        %v3215 = vpack.c.b16 %v3185, %v3184
        %v3216 = vpack.c.b16 %v3187, %v3186
        %v3217 = vpack.c.b16 %v3189, %v3188
        %v3218 = vpack.c.b16 %v3191, %v3190
        %v3219 = vpack.c.b16 %v3193, %v3192
        %v3220 = vpack.c.b16 %v3195, %v3194
        %v3221 = vpack.c.b16 %v3197, %v3196
        %v3222 = vpack.c.b16 %v3199, %v3198
        %v3223 = vpack.c.b16 %v3201, %v3200
        %v3224 = vpack.c.b16 %v3203, %v3202
        %v3225 = vpack.c.b16 %v3205, %v3204
        %v3226 = vpack.c.b16 %v3207, %v3206
        %v3227 = vpack.c.b16 %v3209, %v3208
        %v3247 = vsel %vm386, %v3060, 0
        %v3250 = vsel %vm386, %v3063, 0
        %v3253 = vsel %vm386, %v3066, 0
        %v3256 = vsel %vm386, %v3069, 0
        %v3259 = vsel %vm386, %v3072, 0
        %v3262 = vsel %vm386, %v3075, 0
        %v3265 = vsel %vm386, %v3078, 0
        %v3268 = vsel %vm386, %v3081, 0
        %v3271 = vsel %vm386, %v3084, 0
        %v3274 = vsel %vm386, %v3087, 0
        %v3277 = vsel %vm386, %v3090, 0
        %v3280 = vsel %vm386, %v3093, 0
        %v3283 = vsel %vm386, %v3096, 0
        %v3286 = vsel %vm386, %v3099, 0
        %v3289 = vsel %vm386, %v3102, 0
        %v3292 = vsel %vm386, %v3105, 0
        %3294 = vmatprep.subr.bf16.mxu0 0
        %3295 = vmatpush1.bf16.msra.mxu0 %v3217
        %3296 = vmatprep.subr.bf16.mxu0 0
        %3297 = vmatpush1.bf16.msra.mxu0 %v3216
        %3298 = vmatprep.subr.bf16.mxu0 0
        %3299 = vmatpush1.bf16.msra.mxu0 %v3215
        %3300 = vmatprep.subr.bf16.mxu0 0
        %3301 = vmatpush1.bf16.msra.mxu0 %v3214
        %3302 = vmatprep.subr.bf16.mxu0 0
        %3303 = vmatpush1.bf16.msra.mxu0 %v3213
        %3304 = vmatprep.subr.bf16.mxu0 0
        %3305 = vmatpush1.bf16.msra.mxu0 %v3212
        %3306 = vmatprep.subr.bf16.mxu0 0
        %3307 = vmatpush1.bf16.msra.mxu0 %v3211
        %3308 = vmatprep.subr.bf16.mxu0 0
        %3309 = vmatpush1.bf16.msra.mxu0 %v3210
        %3310 = vmatprep.subr.bf16.mxu0 0
        %3311 = vmatpush2.bf16.msra.mxu0 %v3225
        %3312 = vmatprep.subr.bf16.mxu0 0
        %3313 = vmatpush2.bf16.msra.mxu0 %v3224
        %3314 = vmatprep.subr.bf16.mxu0 0
        %3315 = vmatpush2.bf16.msra.mxu0 %v3223
        %3316 = vmatprep.subr.bf16.mxu0 0
        %3317 = vmatpush2.bf16.msra.mxu0 %v3222
        %3318 = vmatprep.subr.bf16.mxu0 0
        %3319 = vmatpush2.bf16.msra.mxu0 %v3221
        %3320 = vmatprep.subr.bf16.mxu0 0
        %3321 = vmatpush2.bf16.msra.mxu0 %v3220
        %3322 = vmatprep.subr.bf16.mxu0 0
        %3323 = vmatpush2.bf16.msra.mxu0 %v3219
        %3324 = vmatprep.subr.bf16.mxu0 0
        %3325 = vmatpush2.bf16.msra.mxu0 %v3218
        %3326 = vmatprep.mubr.bf16.mxu0 %v3059
        %3327 = vmatmul.mubr.bf16.gmra.mxu0 %v3058
        %v3328 = vpop.f32.mrf.mxu0
        %v3329 = vadd.f32 %v2896, %v3328
        %v3330 = vpop.f32.mrf.mxu0
        %v3331 = vpop.f32.mrf.mxu0
        %v3332 = vadd.f32 %v2896, %v3331
        %v3333 = vpop.f32.mrf.mxu0
        %3334 = vmatprep.mubr.bf16.mxu0 %v3062
        %3335 = vmatmul.mubr.bf16.gmra.mxu0 %v3061
        %v3336 = vpop.f32.mrf.mxu0
        %v3337 = vadd.f32 %v2896, %v3336
        %v3338 = vpop.f32.mrf.mxu0
        %v3339 = vpop.f32.mrf.mxu0
        %v3340 = vadd.f32 %v2896, %v3339
        %v3341 = vpop.f32.mrf.mxu0
        %3342 = vmatprep.mubr.bf16.mxu0 %v3065
        %3343 = vmatmul.mubr.bf16.gmra.mxu0 %v3064
        %v3344 = vpop.f32.mrf.mxu0
        %v3345 = vadd.f32 %v2896, %v3344
        %v3346 = vpop.f32.mrf.mxu0
        %v3347 = vpop.f32.mrf.mxu0
        %v3348 = vadd.f32 %v2896, %v3347
        %v3349 = vpop.f32.mrf.mxu0
        %3350 = vmatprep.mubr.bf16.mxu0 %v3068
        %3351 = vmatmul.mubr.bf16.gmra.mxu0 %v3067
        %v3352 = vpop.f32.mrf.mxu0
        %v3353 = vadd.f32 %v2896, %v3352
        %v3354 = vpop.f32.mrf.mxu0
        %v3355 = vpop.f32.mrf.mxu0
        %v3356 = vadd.f32 %v2896, %v3355
        %v3357 = vpop.f32.mrf.mxu0
        %3358 = vmatprep.mubr.bf16.mxu0 %v3071
        %3359 = vmatmul.mubr.bf16.gmra.mxu0 %v3070
        %v3360 = vpop.f32.mrf.mxu0
        %v3361 = vadd.f32 %v2896, %v3360
        %v3362 = vpop.f32.mrf.mxu0
        %v3363 = vpop.f32.mrf.mxu0
        %v3364 = vadd.f32 %v2896, %v3363
        %v3365 = vpop.f32.mrf.mxu0
        %3366 = vmatprep.mubr.bf16.mxu0 %v3074
        %3367 = vmatmul.mubr.bf16.gmra.mxu0 %v3073
        %v3368 = vpop.f32.mrf.mxu0
        %v3369 = vadd.f32 %v2896, %v3368
        %v3370 = vpop.f32.mrf.mxu0
        %v3371 = vpop.f32.mrf.mxu0
        %v3372 = vadd.f32 %v2896, %v3371
        %v3373 = vpop.f32.mrf.mxu0
        %3374 = vmatprep.mubr.bf16.mxu0 %v3077
        %3375 = vmatmul.mubr.bf16.gmra.mxu0 %v3076
        %v3376 = vpop.f32.mrf.mxu0
        %v3377 = vadd.f32 %v2896, %v3376
        %v3378 = vpop.f32.mrf.mxu0
        %v3379 = vpop.f32.mrf.mxu0
        %v3380 = vadd.f32 %v2896, %v3379
        %v3381 = vpop.f32.mrf.mxu0
        %3382 = vmatprep.mubr.bf16.mxu0 %v3080
        %3383 = vmatmul.mubr.bf16.gmra.mxu0 %v3079
        %v3384 = vpop.f32.mrf.mxu0
        %v3385 = vadd.f32 %v2896, %v3384
        %v3386 = vpop.f32.mrf.mxu0
        %v3387 = vpop.f32.mrf.mxu0
        %v3388 = vadd.f32 %v2896, %v3387
        %v3389 = vpop.f32.mrf.mxu0
        %3390 = vmatprep.mubr.bf16.mxu0 %v3083
        %3391 = vmatmul.mubr.bf16.gmra.mxu0 %v3082
        %v3392 = vpop.f32.mrf.mxu0
        %v3393 = vadd.f32 %v2896, %v3392
        %v3394 = vpop.f32.mrf.mxu0
        %v3395 = vpop.f32.mrf.mxu0
        %v3396 = vadd.f32 %v2896, %v3395
        %v3397 = vpop.f32.mrf.mxu0
        %3398 = vmatprep.mubr.bf16.mxu0 %v3086
        %3399 = vmatmul.mubr.bf16.gmra.mxu0 %v3085
        %v3400 = vpop.f32.mrf.mxu0
        %v3401 = vadd.f32 %v2896, %v3400
        %v3402 = vpop.f32.mrf.mxu0
        %v3403 = vpop.f32.mrf.mxu0
        %v3404 = vadd.f32 %v2896, %v3403
        %v3405 = vpop.f32.mrf.mxu0
        %3406 = vmatprep.mubr.bf16.mxu0 %v3089
        %3407 = vmatmul.mubr.bf16.gmra.mxu0 %v3088
        %v3408 = vpop.f32.mrf.mxu0
        %v3409 = vadd.f32 %v2896, %v3408
        %v3410 = vpop.f32.mrf.mxu0
        %v3411 = vpop.f32.mrf.mxu0
        %v3412 = vadd.f32 %v2896, %v3411
        %v3413 = vpop.f32.mrf.mxu0
        %3414 = vmatprep.mubr.bf16.mxu0 %v3092
        %3415 = vmatmul.mubr.bf16.gmra.mxu0 %v3091
        %v3416 = vpop.f32.mrf.mxu0
        %v3417 = vadd.f32 %v2896, %v3416
        %v3418 = vpop.f32.mrf.mxu0
        %v3419 = vpop.f32.mrf.mxu0
        %v3420 = vadd.f32 %v2896, %v3419
        %v3421 = vpop.f32.mrf.mxu0
        %3422 = vmatprep.mubr.bf16.mxu0 %v3095
        %3423 = vmatmul.mubr.bf16.gmra.mxu0 %v3094
        %v3424 = vpop.f32.mrf.mxu0
        %v3425 = vadd.f32 %v2896, %v3424
        %v3426 = vpop.f32.mrf.mxu0
        %v3427 = vpop.f32.mrf.mxu0
        %v3428 = vadd.f32 %v2896, %v3427
        %v3429 = vpop.f32.mrf.mxu0
        %3430 = vmatprep.mubr.bf16.mxu0 %v3098
        %3431 = vmatmul.mubr.bf16.gmra.mxu0 %v3097
        %v3432 = vpop.f32.mrf.mxu0
        %v3433 = vadd.f32 %v2896, %v3432
        %v3434 = vpop.f32.mrf.mxu0
        %v3435 = vpop.f32.mrf.mxu0
        %v3436 = vadd.f32 %v2896, %v3435
        %v3437 = vpop.f32.mrf.mxu0
        %3438 = vmatprep.mubr.bf16.mxu0 %v3101
        %3439 = vmatmul.mubr.bf16.gmra.mxu0 %v3100
        %v3440 = vpop.f32.mrf.mxu0
        %v3441 = vadd.f32 %v2896, %v3440
        %v3442 = vpop.f32.mrf.mxu0
        %v3443 = vpop.f32.mrf.mxu0
        %v3444 = vadd.f32 %v2896, %v3443
        %v3445 = vpop.f32.mrf.mxu0
        %3446 = vmatprep.mubr.bf16.mxu0 %v3104
        %3447 = vmatmul.mubr.bf16.gmra.mxu0 %v3103
        %v3448 = vpop.f32.mrf.mxu0
        %v3449 = vadd.f32 %v2896, %v3448
        %v3450 = vpop.f32.mrf.mxu0
        %v3451 = vpop.f32.mrf.mxu0
        %v3452 = vadd.f32 %v2896, %v3451
        %v3453 = vpop.f32.mrf.mxu0
        %3454 = vdwg.mxu0
        %3455 = vmatprep.subr.bf16.mxu0 0
        %3456 = vmatpush1.bf16.msra.mxu0 0
        %3457 = vmatprep.subr.bf16.mxu0 0
        %3458 = vmatpush1.bf16.msra.mxu0 0
        %3459 = vmatprep.subr.bf16.mxu0 0
        %3460 = vmatpush1.bf16.msra.mxu0 0
        %3461 = vmatprep.subr.bf16.mxu0 0
        %3462 = vmatpush1.bf16.msra.mxu0 0
        %3463 = vmatprep.subr.bf16.mxu0 0
        %3464 = vmatpush1.bf16.msra.mxu0 0
        %3465 = vmatprep.subr.bf16.mxu0 0
        %3466 = vmatpush1.bf16.msra.mxu0 0
        %3467 = vmatprep.subr.bf16.mxu0 0
        %3468 = vmatpush1.bf16.msra.mxu0 %v3227
        %3469 = vmatprep.subr.bf16.mxu0 0
        %3470 = vmatpush1.bf16.msra.mxu0 %v3226
        %3471 = vmatprep.subr.bf16.mxu0 0
        %3472 = vmatpush2.bf16.msra.mxu0 0
        %3473 = vmatprep.subr.bf16.mxu0 0
        %3474 = vmatpush2.bf16.msra.mxu0 0
        %3475 = vmatprep.subr.bf16.mxu0 0
        %3476 = vmatpush2.bf16.msra.mxu0 0
        %3477 = vmatprep.subr.bf16.mxu0 0
        %3478 = vmatpush2.bf16.msra.mxu0 0
        %3479 = vmatprep.subr.bf16.mxu0 0
        %3480 = vmatpush2.bf16.msra.mxu0 0
        %3481 = vmatprep.subr.bf16.mxu0 0
        %3482 = vmatpush2.bf16.msra.mxu0 0
        %3483 = vmatprep.subr.bf16.mxu0 0
        %3484 = vmatpush2.bf16.msra.mxu0 0
        %3485 = vmatprep.subr.bf16.mxu0 0
        %3486 = vmatpush2.bf16.msra.mxu0 0
        %3487 = vmatprep.mubr.bf16.mxu0 0
        %3488 = vmatmul.mubr.bf16.gmra.mxu0 %v3247
        %v3489 = vpop.f32.mrf.mxu0
        %v3490 = vadd.f32 %v3329, %v3489
        %v3491 = vpop.f32.mrf.mxu0
        %v3492 = vpop.f32.mrf.mxu0
        %v3493 = vadd.f32 %v3332, %v3492
        %v3494 = vpop.f32.mrf.mxu0
        %3495 = vmatprep.mubr.bf16.mxu0 0
        %3496 = vmatmul.mubr.bf16.gmra.mxu0 %v3250
        %v3497 = vpop.f32.mrf.mxu0
        %v3498 = vadd.f32 %v3337, %v3497
        %v3499 = vpop.f32.mrf.mxu0
        %v3500 = vpop.f32.mrf.mxu0
        %v3501 = vadd.f32 %v3340, %v3500
        %v3502 = vpop.f32.mrf.mxu0
        %3503 = vmatprep.mubr.bf16.mxu0 0
        %3504 = vmatmul.mubr.bf16.gmra.mxu0 %v3253
        %v3505 = vpop.f32.mrf.mxu0
        %v3506 = vadd.f32 %v3345, %v3505
        %v3507 = vpop.f32.mrf.mxu0
        %v3508 = vpop.f32.mrf.mxu0
        %v3509 = vadd.f32 %v3348, %v3508
        %v3510 = vpop.f32.mrf.mxu0
        %3511 = vmatprep.mubr.bf16.mxu0 0
        %3512 = vmatmul.mubr.bf16.gmra.mxu0 %v3256
        %v3513 = vpop.f32.mrf.mxu0
        %v3514 = vadd.f32 %v3353, %v3513
        %v3515 = vpop.f32.mrf.mxu0
        %v3516 = vpop.f32.mrf.mxu0
        %v3517 = vadd.f32 %v3356, %v3516
        %v3518 = vpop.f32.mrf.mxu0
        %3519 = vmatprep.mubr.bf16.mxu0 0
        %3520 = vmatmul.mubr.bf16.gmra.mxu0 %v3259
        %v3521 = vpop.f32.mrf.mxu0
        %v3522 = vadd.f32 %v3361, %v3521
        %v3523 = vpop.f32.mrf.mxu0
        %v3524 = vpop.f32.mrf.mxu0
        %v3525 = vadd.f32 %v3364, %v3524
        %v3526 = vpop.f32.mrf.mxu0
        %3527 = vmatprep.mubr.bf16.mxu0 0
        %3528 = vmatmul.mubr.bf16.gmra.mxu0 %v3262
        %v3529 = vpop.f32.mrf.mxu0
        %v3530 = vadd.f32 %v3369, %v3529
        %v3531 = vpop.f32.mrf.mxu0
        %v3532 = vpop.f32.mrf.mxu0
        %v3533 = vadd.f32 %v3372, %v3532
        %v3534 = vpop.f32.mrf.mxu0
        %3535 = vmatprep.mubr.bf16.mxu0 0
        %3536 = vmatmul.mubr.bf16.gmra.mxu0 %v3265
        %v3537 = vpop.f32.mrf.mxu0
        %v3538 = vadd.f32 %v3377, %v3537
        %v3539 = vpop.f32.mrf.mxu0
        %v3540 = vpop.f32.mrf.mxu0
        %v3541 = vadd.f32 %v3380, %v3540
        %v3542 = vpop.f32.mrf.mxu0
        %3543 = vmatprep.mubr.bf16.mxu0 0
        %3544 = vmatmul.mubr.bf16.gmra.mxu0 %v3268
        %v3545 = vpop.f32.mrf.mxu0
        %v3546 = vadd.f32 %v3385, %v3545
        %v3547 = vpop.f32.mrf.mxu0
        %v3548 = vpop.f32.mrf.mxu0
        %v3549 = vadd.f32 %v3388, %v3548
        %v3550 = vpop.f32.mrf.mxu0
        %3551 = vmatprep.mubr.bf16.mxu0 0
        %3552 = vmatmul.mubr.bf16.gmra.mxu0 %v3271
        %v3553 = vpop.f32.mrf.mxu0
        %v3554 = vadd.f32 %v3393, %v3553
        %v3555 = vpop.f32.mrf.mxu0
        %v3556 = vpop.f32.mrf.mxu0
        %v3557 = vadd.f32 %v3396, %v3556
        %v3558 = vpop.f32.mrf.mxu0
        %3559 = vmatprep.mubr.bf16.mxu0 0
        %3560 = vmatmul.mubr.bf16.gmra.mxu0 %v3274
        %v3561 = vpop.f32.mrf.mxu0
        %v3562 = vadd.f32 %v3401, %v3561
        %v3563 = vpop.f32.mrf.mxu0
        %v3564 = vpop.f32.mrf.mxu0
        %v3565 = vadd.f32 %v3404, %v3564
        %v3566 = vpop.f32.mrf.mxu0
        %3567 = vmatprep.mubr.bf16.mxu0 0
        %3568 = vmatmul.mubr.bf16.gmra.mxu0 %v3277
        %v3569 = vpop.f32.mrf.mxu0
        %v3570 = vadd.f32 %v3409, %v3569
        %v3571 = vpop.f32.mrf.mxu0
        %v3572 = vpop.f32.mrf.mxu0
        %v3573 = vadd.f32 %v3412, %v3572
        %v3574 = vpop.f32.mrf.mxu0
        %3575 = vmatprep.mubr.bf16.mxu0 0
        %3576 = vmatmul.mubr.bf16.gmra.mxu0 %v3280
        %v3577 = vpop.f32.mrf.mxu0
        %v3578 = vadd.f32 %v3417, %v3577
        %v3579 = vpop.f32.mrf.mxu0
        %v3580 = vpop.f32.mrf.mxu0
        %v3581 = vadd.f32 %v3420, %v3580
        %v3582 = vpop.f32.mrf.mxu0
        %3583 = vmatprep.mubr.bf16.mxu0 0
        %3584 = vmatmul.mubr.bf16.gmra.mxu0 %v3283
        %v3585 = vpop.f32.mrf.mxu0
        %v3586 = vadd.f32 %v3425, %v3585
        %v3587 = vpop.f32.mrf.mxu0
        %v3588 = vpop.f32.mrf.mxu0
        %v3589 = vadd.f32 %v3428, %v3588
        %v3590 = vpop.f32.mrf.mxu0
        %3591 = vmatprep.mubr.bf16.mxu0 0
        %3592 = vmatmul.mubr.bf16.gmra.mxu0 %v3286
        %v3593 = vpop.f32.mrf.mxu0
        %v3594 = vadd.f32 %v3433, %v3593
        %v3595 = vpop.f32.mrf.mxu0
        %v3596 = vpop.f32.mrf.mxu0
        %v3597 = vadd.f32 %v3436, %v3596
        %v3598 = vpop.f32.mrf.mxu0
        %3599 = vmatprep.mubr.bf16.mxu0 0
        %3600 = vmatmul.mubr.bf16.gmra.mxu0 %v3289
        %v3601 = vpop.f32.mrf.mxu0
        %v3602 = vadd.f32 %v3441, %v3601
        %v3603 = vpop.f32.mrf.mxu0
        %v3604 = vpop.f32.mrf.mxu0
        %v3605 = vadd.f32 %v3444, %v3604
        %v3606 = vpop.f32.mrf.mxu0
        %3607 = vmatprep.mubr.bf16.mxu0 0
        %3608 = vmatmul.mubr.bf16.gmra.mxu0 %v3292
        %v3609 = vpop.f32.mrf.mxu0
        %v3610 = vadd.f32 %v3449, %v3609
        %v3611 = vpop.f32.mrf.mxu0
        %v3612 = vpop.f32.mrf.mxu0
        %v3613 = vadd.f32 %v3452, %v3612
        %v3614 = vpop.f32.mrf.mxu0
        %3615 = vdwg.mxu0
        %v3616 = vmax.f32 %v3490, 0.0
        %v3617 = vmax.f32 %v3493, 0.0
        %v3618 = vmax.f32 %v3498, 0.0
        %v3619 = vmax.f32 %v3501, 0.0
        %v3620 = vmax.f32 %v3506, 0.0
        %v3621 = vmax.f32 %v3509, 0.0
        %v3622 = vmax.f32 %v3514, 0.0
        %v3623 = vmax.f32 %v3517, 0.0
        %v3624 = vmax.f32 %v3522, 0.0
        %v3625 = vmax.f32 %v3525, 0.0
        %v3626 = vmax.f32 %v3530, 0.0
        %v3627 = vmax.f32 %v3533, 0.0
        %v3628 = vmax.f32 %v3538, 0.0
        %v3629 = vmax.f32 %v3541, 0.0
        %v3630 = vmax.f32 %v3546, 0.0
        %v3631 = vmax.f32 %v3549, 0.0
        %v3632 = vmax.f32 %v3554, 0.0
        %v3633 = vmax.f32 %v3557, 0.0
        %v3634 = vmax.f32 %v3562, 0.0
        %v3635 = vmax.f32 %v3565, 0.0
        %v3636 = vmax.f32 %v3570, 0.0
        %v3637 = vmax.f32 %v3573, 0.0
        %v3638 = vmax.f32 %v3578, 0.0
        %v3639 = vmax.f32 %v3581, 0.0
        %v3640 = vmax.f32 %v3586, 0.0
        %v3641 = vmax.f32 %v3589, 0.0
        %v3642 = vmax.f32 %v3594, 0.0
        %v3643 = vmax.f32 %v3597, 0.0
        %v3644 = vmax.f32 %v3602, 0.0
        %v3645 = vmax.f32 %v3605, 0.0
        %v3646 = vmax.f32 %v3610, 0.0
        %v3647 = vmax.f32 %v3613, 0.0
        %3648 = vst.msk [vmem:[#allocation3] sm:$0xff] %vm386, 0.0
        %3649 = vst.msk [vmem:[#allocation3 + $0x8] sm:$0xff] %vm386, 0.0
        %3650 = vst.msk [vmem:[#allocation3 + $0x10] sm:$0x3] %vm598, 0.0
        %s3651 = scalar_lea.vmem [#allocation3], 408
        %3652 = vst.msk [vmem:[%s3651] sm:$0xff] %vm386, 0.0
        %3653 = vst.msk [vmem:[%s3651 + $0x8] sm:$0xff] %vm386, 0.0
        %3654 = vst.msk [vmem:[%s3651 + $0x10] sm:$0x3] %vm598, 0.0
        %3655 = vst.msk [vmem:[#allocation3] sm:$0x1] %vm604, 0.0
        %3656 = vst.msk [vmem:[#allocation3 + $0x18] sm:$0x1] %vm604, 0.0
        %3657 = vst.msk [vmem:[#allocation3 + $0x30] sm:$0x1] %vm604, 0.0
        %3658 = vst.msk [vmem:[#allocation3 + $0x48] sm:$0x1] %vm604, 0.0
        %3659 = vst.msk [vmem:[#allocation3 + $0x60] sm:$0x1] %vm604, 0.0
        %3660 = vst.msk [vmem:[#allocation3 + $0x78] sm:$0x1] %vm604, 0.0
        %3661 = vst.msk [vmem:[#allocation3 + $0x90] sm:$0x1] %vm604, 0.0
        %3662 = vst.msk [vmem:[#allocation3 + $0xa8] sm:$0x1] %vm604, 0.0
        %3663 = vst.msk [vmem:[#allocation3 + $0xc0] sm:$0x1] %vm604, 0.0
        %3664 = vst.msk [vmem:[#allocation3 + $0xd8] sm:$0x1] %vm604, 0.0
        %3665 = vst.msk [vmem:[#allocation3 + $0xf0] sm:$0x1] %vm604, 0.0
        %3666 = vst.msk [vmem:[#allocation3 + $0x108] sm:$0x1] %vm604, 0.0
        %3667 = vst.msk [vmem:[#allocation3 + $0x120] sm:$0x1] %vm604, 0.0
        %3668 = vst.msk [vmem:[#allocation3 + $0x138] sm:$0x1] %vm604, 0.0
        %3669 = vst.msk [vmem:[#allocation3 + $0x150] sm:$0x1] %vm604, 0.0
        %3670 = vst.msk [vmem:[#allocation3 + $0x168] sm:$0x1] %vm604, 0.0
        %3671 = vst.msk [vmem:[#allocation3 + $0x180] sm:$0x1] %vm604, 0.0
        %3672 = vst.msk [vmem:[#allocation3 + $0x198] sm:$0x1] %vm604, 0.0
        %3673 = vst.msk [vmem:[#allocation3 + $0x11] sm:$0x1] %vm604, 0.0
        %3674 = vst.msk [vmem:[#allocation3 + $0x29] sm:$0x1] %vm604, 0.0
        %3675 = vst.msk [vmem:[#allocation3 + $0x41] sm:$0x1] %vm604, 0.0
        %3676 = vst.msk [vmem:[#allocation3 + $0x59] sm:$0x1] %vm604, 0.0
        %3677 = vst.msk [vmem:[#allocation3 + $0x71] sm:$0x1] %vm604, 0.0
        %3678 = vst.msk [vmem:[#allocation3 + $0x89] sm:$0x1] %vm604, 0.0
        %3679 = vst.msk [vmem:[#allocation3 + $0xa1] sm:$0x1] %vm604, 0.0
        %3680 = vst.msk [vmem:[#allocation3 + $0xb9] sm:$0x1] %vm604, 0.0
        %3681 = vst.msk [vmem:[#allocation3 + $0xd1] sm:$0x1] %vm604, 0.0
        %3682 = vst.msk [vmem:[#allocation3 + $0xe9] sm:$0x1] %vm604, 0.0
        %3683 = vst.msk [vmem:[#allocation3 + $0x101] sm:$0x1] %vm604, 0.0
        %3684 = vst.msk [vmem:[#allocation3 + $0x119] sm:$0x1] %vm604, 0.0
        %3685 = vst.msk [vmem:[#allocation3 + $0x131] sm:$0x1] %vm604, 0.0
        %3686 = vst.msk [vmem:[#allocation3 + $0x149] sm:$0x1] %vm604, 0.0
        %3687 = vst.msk [vmem:[#allocation3 + $0x161] sm:$0x1] %vm604, 0.0
        %3688 = vst.msk [vmem:[#allocation3 + $0x179] sm:$0x1] %vm604, 0.0
        %3689 = vst.msk [vmem:[#allocation3 + $0x191] sm:$0x1] %vm604, 0.0
        %3690 = vst.msk [vmem:[#allocation3 + $0x1a9] sm:$0x1] %vm604, 0.0
        %s3691 = scalar_lea.vmem [#allocation3], 24
        %3692 = vst.msk [vmem:[%s3691 + $0x1] sm:$0xff] %vm386, %v3616
        %3693 = vst.msk [vmem:[%s3691 + $0x9] sm:$0xff] %vm386, %v3617
        %3694 = vst.msk [vmem:[%s3691 + $0x19] sm:$0xff] %vm386, %v3618
        %3695 = vst.msk [vmem:[%s3691 + $0x21] sm:$0xff] %vm386, %v3619
        %3696 = vst.msk [vmem:[%s3691 + $0x31] sm:$0xff] %vm386, %v3620
        %3697 = vst.msk [vmem:[%s3691 + $0x39] sm:$0xff] %vm386, %v3621
        %3698 = vst.msk [vmem:[%s3691 + $0x49] sm:$0xff] %vm386, %v3622
        %3699 = vst.msk [vmem:[%s3691 + $0x51] sm:$0xff] %vm386, %v3623
        %3700 = vst.msk [vmem:[%s3691 + $0x61] sm:$0xff] %vm386, %v3624
        %3701 = vst.msk [vmem:[%s3691 + $0x69] sm:$0xff] %vm386, %v3625
        %3702 = vst.msk [vmem:[%s3691 + $0x79] sm:$0xff] %vm386, %v3626
        %3703 = vst.msk [vmem:[%s3691 + $0x81] sm:$0xff] %vm386, %v3627
        %3704 = vst.msk [vmem:[%s3691 + $0x91] sm:$0xff] %vm386, %v3628
        %3705 = vst.msk [vmem:[%s3691 + $0x99] sm:$0xff] %vm386, %v3629
        %3706 = vst.msk [vmem:[%s3691 + $0xa9] sm:$0xff] %vm386, %v3630
        %3707 = vst.msk [vmem:[%s3691 + $0xb1] sm:$0xff] %vm386, %v3631
        %3708 = vst.msk [vmem:[%s3691 + $0xc1] sm:$0xff] %vm386, %v3632
        %3709 = vst.msk [vmem:[%s3691 + $0xc9] sm:$0xff] %vm386, %v3633
        %3710 = vst.msk [vmem:[%s3691 + $0xd9] sm:$0xff] %vm386, %v3634
        %3711 = vst.msk [vmem:[%s3691 + $0xe1] sm:$0xff] %vm386, %v3635
        %3712 = vst.msk [vmem:[%s3691 + $0xf1] sm:$0xff] %vm386, %v3636
        %3713 = vst.msk [vmem:[%s3691 + $0xf9] sm:$0xff] %vm386, %v3637
        %3714 = vst.msk [vmem:[%s3691 + $0x109] sm:$0xff] %vm386, %v3638
        %3715 = vst.msk [vmem:[%s3691 + $0x111] sm:$0xff] %vm386, %v3639
        %3716 = vst.msk [vmem:[%s3691 + $0x121] sm:$0xff] %vm386, %v3640
        %3717 = vst.msk [vmem:[%s3691 + $0x129] sm:$0xff] %vm386, %v3641
        %3718 = vst.msk [vmem:[%s3691 + $0x139] sm:$0xff] %vm386, %v3642
        %3719 = vst.msk [vmem:[%s3691 + $0x141] sm:$0xff] %vm386, %v3643
        %3720 = vst.msk [vmem:[%s3691 + $0x151] sm:$0xff] %vm386, %v3644
        %3721 = vst.msk [vmem:[%s3691 + $0x159] sm:$0xff] %vm386, %v3645
        %3722 = vst.msk [vmem:[%s3691 + $0x169] sm:$0xff] %vm386, %v3646
        %3723 = vst.msk [vmem:[%s3691 + $0x171] sm:$0xff] %vm386, %v3647
        %v3724 = vld [vmem:[#allocation3] sm:$0xff]
        %v3725 = vld [vmem:[#allocation3 + $0x8] sm:$0xff]
        %v3726 = vld [vmem:[#allocation3 + $0x18] sm:$0xff]
        %v3727 = vld [vmem:[#allocation3 + $0x20] sm:$0xff]
        %v3728 = vld [vmem:[#allocation3 + $0x30] sm:$0xff]
        %v3729 = vld [vmem:[#allocation3 + $0x38] sm:$0xff]
        %v3730 = vld [vmem:[#allocation3 + $0x48] sm:$0xff]
        %v3731 = vld [vmem:[#allocation3 + $0x50] sm:$0xff]
        %v3732 = vld [vmem:[#allocation3 + $0x60] sm:$0xff]
        %v3733 = vld [vmem:[#allocation3 + $0x68] sm:$0xff]
        %v3734 = vld [vmem:[#allocation3 + $0x78] sm:$0xff]
        %v3735 = vld [vmem:[#allocation3 + $0x80] sm:$0xff]
        %v3736 = vld [vmem:[#allocation3 + $0x90] sm:$0xff]
        %v3737 = vld [vmem:[#allocation3 + $0x98] sm:$0xff]
        %v3738 = vld [vmem:[#allocation3 + $0xa8] sm:$0xff]
        %v3739 = vld [vmem:[#allocation3 + $0xb0] sm:$0xff]
        %v3740 = vld [vmem:[#allocation3 + $0xc0] sm:$0xff]
        %v3741 = vld [vmem:[#allocation3 + $0xc8] sm:$0xff]
        %v3742 = vld [vmem:[#allocation3 + $0xd8] sm:$0xff]
        %v3743 = vld [vmem:[#allocation3 + $0xe0] sm:$0xff]
        %v3744 = vld [vmem:[#allocation3 + $0xf0] sm:$0xff]
        %v3745 = vld [vmem:[#allocation3 + $0xf8] sm:$0xff]
        %v3746 = vld [vmem:[#allocation3 + $0x108] sm:$0xff]
        %v3747 = vld [vmem:[#allocation3 + $0x110] sm:$0xff]
        %v3748 = vld [vmem:[#allocation3 + $0x120] sm:$0xff]
        %v3749 = vld [vmem:[#allocation3 + $0x128] sm:$0xff]
        %v3750 = vld [vmem:[#allocation3 + $0x138] sm:$0xff]
        %v3751 = vld [vmem:[#allocation3 + $0x140] sm:$0xff]
        %v3752 = vld [vmem:[#allocation3 + $0x150] sm:$0xff]
        %v3753 = vld [vmem:[#allocation3 + $0x158] sm:$0xff]
        %v3754 = vld [vmem:[#allocation3 + $0x168] sm:$0xff]
        %v3755 = vld [vmem:[#allocation3 + $0x170] sm:$0xff]
        %v3756 = vpack.c.bf16 %v3725, %v3724
        %v3757 = vpack.c.bf16 %v3727, %v3726
        %v3758 = vpack.c.bf16 %v3729, %v3728
        %v3759 = vpack.c.bf16 %v3731, %v3730
        %v3760 = vpack.c.bf16 %v3733, %v3732
        %v3761 = vpack.c.bf16 %v3735, %v3734
        %v3762 = vpack.c.bf16 %v3737, %v3736
        %v3763 = vpack.c.bf16 %v3739, %v3738
        %v3764 = vpack.c.bf16 %v3741, %v3740
        %v3765 = vpack.c.bf16 %v3743, %v3742
        %v3766 = vpack.c.bf16 %v3745, %v3744
        %v3767 = vpack.c.bf16 %v3747, %v3746
        %v3768 = vpack.c.bf16 %v3749, %v3748
        %v3769 = vpack.c.bf16 %v3751, %v3750
        %v3770 = vpack.c.bf16 %v3753, %v3752
        %v3771 = vpack.c.bf16 %v3755, %v3754
        %v3788 = vunpack.c.l.b16 %v3756
        %v3789 = vunpack.c.h.b16 %v3756
        %v3790 = vunpack.c.l.b16 %v3757
        %v3791 = vunpack.c.h.b16 %v3757
        %v3792 = vunpack.c.l.b16 %v3758
        %v3793 = vunpack.c.h.b16 %v3758
        %v3794 = vunpack.c.l.b16 %v3759
        %v3795 = vunpack.c.h.b16 %v3759
        %v3796 = vunpack.c.l.b16 %v3760
        %v3797 = vunpack.c.h.b16 %v3760
        %v3798 = vunpack.c.l.b16 %v3761
        %v3799 = vunpack.c.h.b16 %v3761
        %v3800 = vunpack.c.l.b16 %v3762
        %v3801 = vunpack.c.h.b16 %v3762
        %v3802 = vunpack.c.l.b16 %v3763
        %v3803 = vunpack.c.h.b16 %v3763
        %v3804 = vunpack.c.l.b16 %v3764
        %v3805 = vunpack.c.h.b16 %v3764
        %v3806 = vunpack.c.l.b16 %v3765
        %v3807 = vunpack.c.h.b16 %v3765
        %v3808 = vunpack.c.l.b16 %v3766
        %v3809 = vunpack.c.h.b16 %v3766
        %v3810 = vunpack.c.l.b16 %v3767
        %v3811 = vunpack.c.h.b16 %v3767
        %v3812 = vunpack.c.l.b16 %v3768
        %v3813 = vunpack.c.h.b16 %v3768
        %v3814 = vunpack.c.l.b16 %v3769
        %v3815 = vunpack.c.h.b16 %v3769
        %v3816 = vunpack.c.l.b16 %v3770
        %v3817 = vunpack.c.h.b16 %v3770
        %v3818 = vunpack.c.l.b16 %v3771
        %v3819 = vunpack.c.h.b16 %v3771
        %v3820 = vpack.c.b16 %v3788, %v3788
        %v3821 = vpack.c.b16 %v3789, %v3789
        %v3822 = vpack.c.b16 %v3790, %v3790
        %v3823 = vpack.c.b16 %v3791, %v3791
        %v3824 = vpack.c.b16 %v3792, %v3792
        %v3825 = vpack.c.b16 %v3793, %v3793
        %v3826 = vpack.c.b16 %v3794, %v3794
        %v3827 = vpack.c.b16 %v3795, %v3795
        %v3828 = vpack.c.b16 %v3796, %v3796
        %v3829 = vpack.c.b16 %v3797, %v3797
        %v3830 = vpack.c.b16 %v3798, %v3798
        %v3831 = vpack.c.b16 %v3799, %v3799
        %v3832 = vpack.c.b16 %v3800, %v3800
        %v3833 = vpack.c.b16 %v3801, %v3801
        %v3834 = vpack.c.b16 %v3802, %v3802
        %v3835 = vpack.c.b16 %v3803, %v3803
        %v3836 = vpack.c.b16 %v3804, %v3804
        %v3837 = vpack.c.b16 %v3805, %v3805
        %v3838 = vpack.c.b16 %v3806, %v3806
        %v3839 = vpack.c.b16 %v3807, %v3807
        %v3840 = vpack.c.b16 %v3808, %v3808
        %v3841 = vpack.c.b16 %v3809, %v3809
        %v3842 = vpack.c.b16 %v3810, %v3810
        %v3843 = vpack.c.b16 %v3811, %v3811
        %v3844 = vpack.c.b16 %v3812, %v3812
        %v3845 = vpack.c.b16 %v3813, %v3813
        %v3846 = vpack.c.b16 %v3814, %v3814
        %v3847 = vpack.c.b16 %v3815, %v3815
        %v3848 = vpack.c.b16 %v3816, %v3816
        %v3849 = vpack.c.b16 %v3817, %v3817
        %v3850 = vpack.c.b16 %v3818, %v3818
        %v3851 = vpack.c.b16 %v3819, %v3819
        %3884 = vst.msk [vmem:[#allocation4] sm:$0xf] %vm834, %v3820
        %3885 = vst.msk [vmem:[#allocation4 + $0xc] sm:$0xf] %vm834, %v3821
        %3886 = vst.msk [vmem:[#allocation4 + $0x18] sm:$0xf] %vm834, %v3822
        %3887 = vst.msk [vmem:[#allocation4 + $0x24] sm:$0xf] %vm834, %v3823
        %3888 = vst.msk [vmem:[#allocation4 + $0x30] sm:$0xf] %vm834, %v3824
        %3889 = vst.msk [vmem:[#allocation4 + $0x3c] sm:$0xf] %vm834, %v3825
        %3890 = vst.msk [vmem:[#allocation4 + $0x48] sm:$0xf] %vm834, %v3826
        %3891 = vst.msk [vmem:[#allocation4 + $0x54] sm:$0xf] %vm834, %v3827
        %3892 = vst.msk [vmem:[#allocation4 + $0x60] sm:$0xf] %vm834, %v3828
        %3893 = vst.msk [vmem:[#allocation4 + $0x6c] sm:$0xf] %vm834, %v3829
        %3894 = vst.msk [vmem:[#allocation4 + $0x78] sm:$0xf] %vm834, %v3830
        %3895 = vst.msk [vmem:[#allocation4 + $0x84] sm:$0xf] %vm834, %v3831
        %3896 = vst.msk [vmem:[#allocation4 + $0x90] sm:$0xf] %vm834, %v3832
        %3897 = vst.msk [vmem:[#allocation4 + $0x9c] sm:$0xf] %vm834, %v3833
        %3898 = vst.msk [vmem:[#allocation4 + $0xa8] sm:$0xf] %vm834, %v3834
        %3899 = vst.msk [vmem:[#allocation4 + $0xb4] sm:$0xf] %vm834, %v3835
        %3900 = vst.msk [vmem:[#allocation4 + $0xc0] sm:$0xf] %vm834, %v3836
        %3901 = vst.msk [vmem:[#allocation4 + $0xcc] sm:$0xf] %vm834, %v3837
        %3902 = vst.msk [vmem:[#allocation4 + $0xd8] sm:$0xf] %vm834, %v3838
        %3903 = vst.msk [vmem:[#allocation4 + $0xe4] sm:$0xf] %vm834, %v3839
        %3904 = vst.msk [vmem:[#allocation4 + $0xf0] sm:$0xf] %vm834, %v3840
        %3905 = vst.msk [vmem:[#allocation4 + $0xfc] sm:$0xf] %vm834, %v3841
        %3906 = vst.msk [vmem:[#allocation4 + $0x108] sm:$0xf] %vm834, %v3842
        %3907 = vst.msk [vmem:[#allocation4 + $0x114] sm:$0xf] %vm834, %v3843
        %3908 = vst.msk [vmem:[#allocation4 + $0x120] sm:$0xf] %vm834, %v3844
        %3909 = vst.msk [vmem:[#allocation4 + $0x12c] sm:$0xf] %vm834, %v3845
        %3910 = vst.msk [vmem:[#allocation4 + $0x138] sm:$0xf] %vm834, %v3846
        %3911 = vst.msk [vmem:[#allocation4 + $0x144] sm:$0xf] %vm834, %v3847
        %3912 = vst.msk [vmem:[#allocation4 + $0x150] sm:$0xf] %vm834, %v3848
        %3913 = vst.msk [vmem:[#allocation4 + $0x15c] sm:$0xf] %vm834, %v3849
        %3914 = vst.msk [vmem:[#allocation4 + $0x168] sm:$0xf] %vm834, %v3850
        %3915 = vst.msk [vmem:[#allocation4 + $0x174] sm:$0xf] %vm834, %v3851
        %v3916 = vld [vmem:[#allocation3 + $0x1] sm:$0xff]
        %v3917 = vld [vmem:[#allocation3 + $0x9] sm:$0xff]
        %v3918 = vld [vmem:[#allocation3 + $0x19] sm:$0xff]
        %v3919 = vld [vmem:[#allocation3 + $0x21] sm:$0xff]
        %v3920 = vld [vmem:[#allocation3 + $0x31] sm:$0xff]
        %v3921 = vld [vmem:[#allocation3 + $0x39] sm:$0xff]
        %v3922 = vld [vmem:[#allocation3 + $0x49] sm:$0xff]
        %v3923 = vld [vmem:[#allocation3 + $0x51] sm:$0xff]
        %v3924 = vld [vmem:[#allocation3 + $0x61] sm:$0xff]
        %v3925 = vld [vmem:[#allocation3 + $0x69] sm:$0xff]
        %v3926 = vld [vmem:[#allocation3 + $0x79] sm:$0xff]
        %v3927 = vld [vmem:[#allocation3 + $0x81] sm:$0xff]
        %v3928 = vld [vmem:[#allocation3 + $0x91] sm:$0xff]
        %v3929 = vld [vmem:[#allocation3 + $0x99] sm:$0xff]
        %v3930 = vld [vmem:[#allocation3 + $0xa9] sm:$0xff]
        %v3931 = vld [vmem:[#allocation3 + $0xb1] sm:$0xff]
        %v3932 = vld [vmem:[#allocation3 + $0xc1] sm:$0xff]
        %v3933 = vld [vmem:[#allocation3 + $0xc9] sm:$0xff]
        %v3934 = vld [vmem:[#allocation3 + $0xd9] sm:$0xff]
        %v3935 = vld [vmem:[#allocation3 + $0xe1] sm:$0xff]
        %v3936 = vld [vmem:[#allocation3 + $0xf1] sm:$0xff]
        %v3937 = vld [vmem:[#allocation3 + $0xf9] sm:$0xff]
        %v3938 = vld [vmem:[#allocation3 + $0x109] sm:$0xff]
        %v3939 = vld [vmem:[#allocation3 + $0x111] sm:$0xff]
        %v3940 = vld [vmem:[#allocation3 + $0x121] sm:$0xff]
        %v3941 = vld [vmem:[#allocation3 + $0x129] sm:$0xff]
        %v3942 = vld [vmem:[#allocation3 + $0x139] sm:$0xff]
        %v3943 = vld [vmem:[#allocation3 + $0x141] sm:$0xff]
        %v3944 = vld [vmem:[#allocation3 + $0x151] sm:$0xff]
        %v3945 = vld [vmem:[#allocation3 + $0x159] sm:$0xff]
        %v3946 = vld [vmem:[#allocation3 + $0x169] sm:$0xff]
        %v3947 = vld [vmem:[#allocation3 + $0x171] sm:$0xff]
        %v3948 = vpack.c.bf16 %v3917, %v3916
        %v3949 = vpack.c.bf16 %v3919, %v3918
        %v3950 = vpack.c.bf16 %v3921, %v3920
        %v3951 = vpack.c.bf16 %v3923, %v3922
        %v3952 = vpack.c.bf16 %v3925, %v3924
        %v3953 = vpack.c.bf16 %v3927, %v3926
        %v3954 = vpack.c.bf16 %v3929, %v3928
        %v3955 = vpack.c.bf16 %v3931, %v3930
        %v3956 = vpack.c.bf16 %v3933, %v3932
        %v3957 = vpack.c.bf16 %v3935, %v3934
        %v3958 = vpack.c.bf16 %v3937, %v3936
        %v3959 = vpack.c.bf16 %v3939, %v3938
        %v3960 = vpack.c.bf16 %v3941, %v3940
        %v3961 = vpack.c.bf16 %v3943, %v3942
        %v3962 = vpack.c.bf16 %v3945, %v3944
        %v3963 = vpack.c.bf16 %v3947, %v3946
        %v3980 = vunpack.c.l.b16 %v3948
        %v3981 = vunpack.c.h.b16 %v3948
        %v3982 = vunpack.c.l.b16 %v3949
        %v3983 = vunpack.c.h.b16 %v3949
        %v3984 = vunpack.c.l.b16 %v3950
        %v3985 = vunpack.c.h.b16 %v3950
        %v3986 = vunpack.c.l.b16 %v3951
        %v3987 = vunpack.c.h.b16 %v3951
        %v3988 = vunpack.c.l.b16 %v3952
        %v3989 = vunpack.c.h.b16 %v3952
        %v3990 = vunpack.c.l.b16 %v3953
        %v3991 = vunpack.c.h.b16 %v3953
        %v3992 = vunpack.c.l.b16 %v3954
        %v3993 = vunpack.c.h.b16 %v3954
        %v3994 = vunpack.c.l.b16 %v3955
        %v3995 = vunpack.c.h.b16 %v3955
        %v3996 = vunpack.c.l.b16 %v3956
        %v3997 = vunpack.c.h.b16 %v3956
        %v3998 = vunpack.c.l.b16 %v3957
        %v3999 = vunpack.c.h.b16 %v3957
        %v4000 = vunpack.c.l.b16 %v3958
        %v4001 = vunpack.c.h.b16 %v3958
        %v4002 = vunpack.c.l.b16 %v3959
        %v4003 = vunpack.c.h.b16 %v3959
        %v4004 = vunpack.c.l.b16 %v3960
        %v4005 = vunpack.c.h.b16 %v3960
        %v4006 = vunpack.c.l.b16 %v3961
        %v4007 = vunpack.c.h.b16 %v3961
        %v4008 = vunpack.c.l.b16 %v3962
        %v4009 = vunpack.c.h.b16 %v3962
        %v4010 = vunpack.c.l.b16 %v3963
        %v4011 = vunpack.c.h.b16 %v3963
        %v4012 = vpack.c.b16 %v3980, %v3980
        %v4013 = vpack.c.b16 %v3981, %v3981
        %v4014 = vpack.c.b16 %v3982, %v3982
        %v4015 = vpack.c.b16 %v3983, %v3983
        %v4016 = vpack.c.b16 %v3984, %v3984
        %v4017 = vpack.c.b16 %v3985, %v3985
        %v4018 = vpack.c.b16 %v3986, %v3986
        %v4019 = vpack.c.b16 %v3987, %v3987
        %v4020 = vpack.c.b16 %v3988, %v3988
        %v4021 = vpack.c.b16 %v3989, %v3989
        %v4022 = vpack.c.b16 %v3990, %v3990
        %v4023 = vpack.c.b16 %v3991, %v3991
        %v4024 = vpack.c.b16 %v3992, %v3992
        %v4025 = vpack.c.b16 %v3993, %v3993
        %v4026 = vpack.c.b16 %v3994, %v3994
        %v4027 = vpack.c.b16 %v3995, %v3995
        %v4028 = vpack.c.b16 %v3996, %v3996
        %v4029 = vpack.c.b16 %v3997, %v3997
        %v4030 = vpack.c.b16 %v3998, %v3998
        %v4031 = vpack.c.b16 %v3999, %v3999
        %v4032 = vpack.c.b16 %v4000, %v4000
        %v4033 = vpack.c.b16 %v4001, %v4001
        %v4034 = vpack.c.b16 %v4002, %v4002
        %v4035 = vpack.c.b16 %v4003, %v4003
        %v4036 = vpack.c.b16 %v4004, %v4004
        %v4037 = vpack.c.b16 %v4005, %v4005
        %v4038 = vpack.c.b16 %v4006, %v4006
        %v4039 = vpack.c.b16 %v4007, %v4007
        %v4040 = vpack.c.b16 %v4008, %v4008
        %v4041 = vpack.c.b16 %v4009, %v4009
        %v4042 = vpack.c.b16 %v4010, %v4010
        %v4043 = vpack.c.b16 %v4011, %v4011
        %4044 = vrot.lane.b32.xlu0 %v4012, 32
        %v4045 = vpop.permute.xlu0 %4044
        %4046 = vrot.lane.b32.xlu0 %v4013, 32
        %v4047 = vpop.permute.xlu0 %4046
        %4048 = vrot.lane.b32.xlu0 %v4014, 32
        %v4049 = vpop.permute.xlu0 %4048
        %4050 = vrot.lane.b32.xlu0 %v4015, 32
        %v4051 = vpop.permute.xlu0 %4050
        %4052 = vrot.lane.b32.xlu0 %v4016, 32
        %v4053 = vpop.permute.xlu0 %4052
        %4054 = vrot.lane.b32.xlu0 %v4017, 32
        %v4055 = vpop.permute.xlu0 %4054
        %4056 = vrot.lane.b32.xlu0 %v4018, 32
        %v4057 = vpop.permute.xlu0 %4056
        %4058 = vrot.lane.b32.xlu0 %v4019, 32
        %v4059 = vpop.permute.xlu0 %4058
        %4060 = vrot.lane.b32.xlu0 %v4020, 32
        %v4061 = vpop.permute.xlu0 %4060
        %4062 = vrot.lane.b32.xlu0 %v4021, 32
        %v4063 = vpop.permute.xlu0 %4062
        %4064 = vrot.lane.b32.xlu0 %v4022, 32
        %v4065 = vpop.permute.xlu0 %4064
        %4066 = vrot.lane.b32.xlu0 %v4023, 32
        %v4067 = vpop.permute.xlu0 %4066
        %4068 = vrot.lane.b32.xlu0 %v4024, 32
        %v4069 = vpop.permute.xlu0 %4068
        %4070 = vrot.lane.b32.xlu0 %v4025, 32
        %v4071 = vpop.permute.xlu0 %4070
        %4072 = vrot.lane.b32.xlu0 %v4026, 32
        %v4073 = vpop.permute.xlu0 %4072
        %4074 = vrot.lane.b32.xlu0 %v4027, 32
        %v4075 = vpop.permute.xlu0 %4074
        %4076 = vrot.lane.b32.xlu0 %v4028, 32
        %v4077 = vpop.permute.xlu0 %4076
        %4078 = vrot.lane.b32.xlu0 %v4029, 32
        %v4079 = vpop.permute.xlu0 %4078
        %4080 = vrot.lane.b32.xlu0 %v4030, 32
        %v4081 = vpop.permute.xlu0 %4080
        %4082 = vrot.lane.b32.xlu0 %v4031, 32
        %v4083 = vpop.permute.xlu0 %4082
        %4084 = vrot.lane.b32.xlu0 %v4032, 32
        %v4085 = vpop.permute.xlu0 %4084
        %4086 = vrot.lane.b32.xlu0 %v4033, 32
        %v4087 = vpop.permute.xlu0 %4086
        %4088 = vrot.lane.b32.xlu0 %v4034, 32
        %v4089 = vpop.permute.xlu0 %4088
        %4090 = vrot.lane.b32.xlu0 %v4035, 32
        %v4091 = vpop.permute.xlu0 %4090
        %4092 = vrot.lane.b32.xlu0 %v4036, 32
        %v4093 = vpop.permute.xlu0 %4092
        %4094 = vrot.lane.b32.xlu0 %v4037, 32
        %v4095 = vpop.permute.xlu0 %4094
        %4096 = vrot.lane.b32.xlu0 %v4038, 32
        %v4097 = vpop.permute.xlu0 %4096
        %4098 = vrot.lane.b32.xlu0 %v4039, 32
        %v4099 = vpop.permute.xlu0 %4098
        %4100 = vrot.lane.b32.xlu0 %v4040, 32
        %v4101 = vpop.permute.xlu0 %4100
        %4102 = vrot.lane.b32.xlu0 %v4041, 32
        %v4103 = vpop.permute.xlu0 %4102
        %4104 = vrot.lane.b32.xlu0 %v4042, 32
        %v4105 = vpop.permute.xlu0 %4104
        %4106 = vrot.lane.b32.xlu0 %v4043, 32
        %v4107 = vpop.permute.xlu0 %4106
        %4140 = vst.msk [vmem:[#allocation4] sm:$0xf] %vm1091, %v4045
        %4141 = vst.msk [vmem:[#allocation4 + $0xc] sm:$0xf] %vm1091, %v4047
        %4142 = vst.msk [vmem:[#allocation4 + $0x18] sm:$0xf] %vm1091, %v4049
        %4143 = vst.msk [vmem:[#allocation4 + $0x24] sm:$0xf] %vm1091, %v4051
        %4144 = vst.msk [vmem:[#allocation4 + $0x30] sm:$0xf] %vm1091, %v4053
        %4145 = vst.msk [vmem:[#allocation4 + $0x3c] sm:$0xf] %vm1091, %v4055
        %4146 = vst.msk [vmem:[#allocation4 + $0x48] sm:$0xf] %vm1091, %v4057
        %4147 = vst.msk [vmem:[#allocation4 + $0x54] sm:$0xf] %vm1091, %v4059
        %4148 = vst.msk [vmem:[#allocation4 + $0x60] sm:$0xf] %vm1091, %v4061
        %4149 = vst.msk [vmem:[#allocation4 + $0x6c] sm:$0xf] %vm1091, %v4063
        %4150 = vst.msk [vmem:[#allocation4 + $0x78] sm:$0xf] %vm1091, %v4065
        %4151 = vst.msk [vmem:[#allocation4 + $0x84] sm:$0xf] %vm1091, %v4067
        %4152 = vst.msk [vmem:[#allocation4 + $0x90] sm:$0xf] %vm1091, %v4069
        %4153 = vst.msk [vmem:[#allocation4 + $0x9c] sm:$0xf] %vm1091, %v4071
        %4154 = vst.msk [vmem:[#allocation4 + $0xa8] sm:$0xf] %vm1091, %v4073
        %4155 = vst.msk [vmem:[#allocation4 + $0xb4] sm:$0xf] %vm1091, %v4075
        %4156 = vst.msk [vmem:[#allocation4 + $0xc0] sm:$0xf] %vm1091, %v4077
        %4157 = vst.msk [vmem:[#allocation4 + $0xcc] sm:$0xf] %vm1091, %v4079
        %4158 = vst.msk [vmem:[#allocation4 + $0xd8] sm:$0xf] %vm1091, %v4081
        %4159 = vst.msk [vmem:[#allocation4 + $0xe4] sm:$0xf] %vm1091, %v4083
        %4160 = vst.msk [vmem:[#allocation4 + $0xf0] sm:$0xf] %vm1091, %v4085
        %4161 = vst.msk [vmem:[#allocation4 + $0xfc] sm:$0xf] %vm1091, %v4087
        %4162 = vst.msk [vmem:[#allocation4 + $0x108] sm:$0xf] %vm1091, %v4089
        %4163 = vst.msk [vmem:[#allocation4 + $0x114] sm:$0xf] %vm1091, %v4091
        %4164 = vst.msk [vmem:[#allocation4 + $0x120] sm:$0xf] %vm1091, %v4093
        %4165 = vst.msk [vmem:[#allocation4 + $0x12c] sm:$0xf] %vm1091, %v4095
        %4166 = vst.msk [vmem:[#allocation4 + $0x138] sm:$0xf] %vm1091, %v4097
        %4167 = vst.msk [vmem:[#allocation4 + $0x144] sm:$0xf] %vm1091, %v4099
        %4168 = vst.msk [vmem:[#allocation4 + $0x150] sm:$0xf] %vm1091, %v4101
        %4169 = vst.msk [vmem:[#allocation4 + $0x15c] sm:$0xf] %vm1091, %v4103
        %4170 = vst.msk [vmem:[#allocation4 + $0x168] sm:$0xf] %vm1091, %v4105
        %4171 = vst.msk [vmem:[#allocation4 + $0x174] sm:$0xf] %vm1091, %v4107
        %v4172 = vld [vmem:[#allocation3 + $0x2] sm:$0xff]
        %v4173 = vld [vmem:[#allocation3 + $0xa] sm:$0xff]
        %v4174 = vld [vmem:[#allocation3 + $0x1a] sm:$0xff]
        %v4175 = vld [vmem:[#allocation3 + $0x22] sm:$0xff]
        %v4176 = vld [vmem:[#allocation3 + $0x32] sm:$0xff]
        %v4177 = vld [vmem:[#allocation3 + $0x3a] sm:$0xff]
        %v4178 = vld [vmem:[#allocation3 + $0x4a] sm:$0xff]
        %v4179 = vld [vmem:[#allocation3 + $0x52] sm:$0xff]
        %v4180 = vld [vmem:[#allocation3 + $0x62] sm:$0xff]
        %v4181 = vld [vmem:[#allocation3 + $0x6a] sm:$0xff]
        %v4182 = vld [vmem:[#allocation3 + $0x7a] sm:$0xff]
        %v4183 = vld [vmem:[#allocation3 + $0x82] sm:$0xff]
        %v4184 = vld [vmem:[#allocation3 + $0x92] sm:$0xff]
        %v4185 = vld [vmem:[#allocation3 + $0x9a] sm:$0xff]
        %v4186 = vld [vmem:[#allocation3 + $0xaa] sm:$0xff]
        %v4187 = vld [vmem:[#allocation3 + $0xb2] sm:$0xff]
        %v4188 = vld [vmem:[#allocation3 + $0xc2] sm:$0xff]
        %v4189 = vld [vmem:[#allocation3 + $0xca] sm:$0xff]
        %v4190 = vld [vmem:[#allocation3 + $0xda] sm:$0xff]
        %v4191 = vld [vmem:[#allocation3 + $0xe2] sm:$0xff]
        %v4192 = vld [vmem:[#allocation3 + $0xf2] sm:$0xff]
        %v4193 = vld [vmem:[#allocation3 + $0xfa] sm:$0xff]
        %v4194 = vld [vmem:[#allocation3 + $0x10a] sm:$0xff]
        %v4195 = vld [vmem:[#allocation3 + $0x112] sm:$0xff]
        %v4196 = vld [vmem:[#allocation3 + $0x122] sm:$0xff]
        %v4197 = vld [vmem:[#allocation3 + $0x12a] sm:$0xff]
        %v4198 = vld [vmem:[#allocation3 + $0x13a] sm:$0xff]
        %v4199 = vld [vmem:[#allocation3 + $0x142] sm:$0xff]
        %v4200 = vld [vmem:[#allocation3 + $0x152] sm:$0xff]
        %v4201 = vld [vmem:[#allocation3 + $0x15a] sm:$0xff]
        %v4202 = vld [vmem:[#allocation3 + $0x16a] sm:$0xff]
        %v4203 = vld [vmem:[#allocation3 + $0x172] sm:$0xff]
        %v4204 = vpack.c.bf16 %v4173, %v4172
        %v4205 = vpack.c.bf16 %v4175, %v4174
        %v4206 = vpack.c.bf16 %v4177, %v4176
        %v4207 = vpack.c.bf16 %v4179, %v4178
        %v4208 = vpack.c.bf16 %v4181, %v4180
        %v4209 = vpack.c.bf16 %v4183, %v4182
        %v4210 = vpack.c.bf16 %v4185, %v4184
        %v4211 = vpack.c.bf16 %v4187, %v4186
        %v4212 = vpack.c.bf16 %v4189, %v4188
        %v4213 = vpack.c.bf16 %v4191, %v4190
        %v4214 = vpack.c.bf16 %v4193, %v4192
        %v4215 = vpack.c.bf16 %v4195, %v4194
        %v4216 = vpack.c.bf16 %v4197, %v4196
        %v4217 = vpack.c.bf16 %v4199, %v4198
        %v4218 = vpack.c.bf16 %v4201, %v4200
        %v4219 = vpack.c.bf16 %v4203, %v4202
        %v4236 = vunpack.c.l.b16 %v4204
        %v4237 = vunpack.c.h.b16 %v4204
        %v4238 = vunpack.c.l.b16 %v4205
        %v4239 = vunpack.c.h.b16 %v4205
        %v4240 = vunpack.c.l.b16 %v4206
        %v4241 = vunpack.c.h.b16 %v4206
        %v4242 = vunpack.c.l.b16 %v4207
        %v4243 = vunpack.c.h.b16 %v4207
        %v4244 = vunpack.c.l.b16 %v4208
        %v4245 = vunpack.c.h.b16 %v4208
        %v4246 = vunpack.c.l.b16 %v4209
        %v4247 = vunpack.c.h.b16 %v4209
        %v4248 = vunpack.c.l.b16 %v4210
        %v4249 = vunpack.c.h.b16 %v4210
        %v4250 = vunpack.c.l.b16 %v4211
        %v4251 = vunpack.c.h.b16 %v4211
        %v4252 = vunpack.c.l.b16 %v4212
        %v4253 = vunpack.c.h.b16 %v4212
        %v4254 = vunpack.c.l.b16 %v4213
        %v4255 = vunpack.c.h.b16 %v4213
        %v4256 = vunpack.c.l.b16 %v4214
        %v4257 = vunpack.c.h.b16 %v4214
        %v4258 = vunpack.c.l.b16 %v4215
        %v4259 = vunpack.c.h.b16 %v4215
        %v4260 = vunpack.c.l.b16 %v4216
        %v4261 = vunpack.c.h.b16 %v4216
        %v4262 = vunpack.c.l.b16 %v4217
        %v4263 = vunpack.c.h.b16 %v4217
        %v4264 = vunpack.c.l.b16 %v4218
        %v4265 = vunpack.c.h.b16 %v4218
        %v4266 = vunpack.c.l.b16 %v4219
        %v4267 = vunpack.c.h.b16 %v4219
        %v4268 = vpack.c.b16 %v4236, %v4236
        %v4269 = vpack.c.b16 %v4237, %v4237
        %v4270 = vpack.c.b16 %v4238, %v4238
        %v4271 = vpack.c.b16 %v4239, %v4239
        %v4272 = vpack.c.b16 %v4240, %v4240
        %v4273 = vpack.c.b16 %v4241, %v4241
        %v4274 = vpack.c.b16 %v4242, %v4242
        %v4275 = vpack.c.b16 %v4243, %v4243
        %v4276 = vpack.c.b16 %v4244, %v4244
        %v4277 = vpack.c.b16 %v4245, %v4245
        %v4278 = vpack.c.b16 %v4246, %v4246
        %v4279 = vpack.c.b16 %v4247, %v4247
        %v4280 = vpack.c.b16 %v4248, %v4248
        %v4281 = vpack.c.b16 %v4249, %v4249
        %v4282 = vpack.c.b16 %v4250, %v4250
        %v4283 = vpack.c.b16 %v4251, %v4251
        %v4284 = vpack.c.b16 %v4252, %v4252
        %v4285 = vpack.c.b16 %v4253, %v4253
        %v4286 = vpack.c.b16 %v4254, %v4254
        %v4287 = vpack.c.b16 %v4255, %v4255
        %v4288 = vpack.c.b16 %v4256, %v4256
        %v4289 = vpack.c.b16 %v4257, %v4257
        %v4290 = vpack.c.b16 %v4258, %v4258
        %v4291 = vpack.c.b16 %v4259, %v4259
        %v4292 = vpack.c.b16 %v4260, %v4260
        %v4293 = vpack.c.b16 %v4261, %v4261
        %v4294 = vpack.c.b16 %v4262, %v4262
        %v4295 = vpack.c.b16 %v4263, %v4263
        %v4296 = vpack.c.b16 %v4264, %v4264
        %v4297 = vpack.c.b16 %v4265, %v4265
        %v4298 = vpack.c.b16 %v4266, %v4266
        %v4299 = vpack.c.b16 %v4267, %v4267
        %4300 = vrot.lane.b32.xlu0 %v4268, 64
        %v4301 = vpop.permute.xlu0 %4300
        %4302 = vrot.lane.b32.xlu0 %v4269, 64
        %v4303 = vpop.permute.xlu0 %4302
        %4304 = vrot.lane.b32.xlu0 %v4270, 64
        %v4305 = vpop.permute.xlu0 %4304
        %4306 = vrot.lane.b32.xlu0 %v4271, 64
        %v4307 = vpop.permute.xlu0 %4306
        %4308 = vrot.lane.b32.xlu0 %v4272, 64
        %v4309 = vpop.permute.xlu0 %4308
        %4310 = vrot.lane.b32.xlu0 %v4273, 64
        %v4311 = vpop.permute.xlu0 %4310
        %4312 = vrot.lane.b32.xlu0 %v4274, 64
        %v4313 = vpop.permute.xlu0 %4312
        %4314 = vrot.lane.b32.xlu0 %v4275, 64
        %v4315 = vpop.permute.xlu0 %4314
        %4316 = vrot.lane.b32.xlu0 %v4276, 64
        %v4317 = vpop.permute.xlu0 %4316
        %4318 = vrot.lane.b32.xlu0 %v4277, 64
        %v4319 = vpop.permute.xlu0 %4318
        %4320 = vrot.lane.b32.xlu0 %v4278, 64
        %v4321 = vpop.permute.xlu0 %4320
        %4322 = vrot.lane.b32.xlu0 %v4279, 64
        %v4323 = vpop.permute.xlu0 %4322
        %4324 = vrot.lane.b32.xlu0 %v4280, 64
        %v4325 = vpop.permute.xlu0 %4324
        %4326 = vrot.lane.b32.xlu0 %v4281, 64
        %v4327 = vpop.permute.xlu0 %4326
        %4328 = vrot.lane.b32.xlu0 %v4282, 64
        %v4329 = vpop.permute.xlu0 %4328
        %4330 = vrot.lane.b32.xlu0 %v4283, 64
        %v4331 = vpop.permute.xlu0 %4330
        %4332 = vrot.lane.b32.xlu0 %v4284, 64
        %v4333 = vpop.permute.xlu0 %4332
        %4334 = vrot.lane.b32.xlu0 %v4285, 64
        %v4335 = vpop.permute.xlu0 %4334
        %4336 = vrot.lane.b32.xlu0 %v4286, 64
        %v4337 = vpop.permute.xlu0 %4336
        %4338 = vrot.lane.b32.xlu0 %v4287, 64
        %v4339 = vpop.permute.xlu0 %4338
        %4340 = vrot.lane.b32.xlu0 %v4288, 64
        %v4341 = vpop.permute.xlu0 %4340
        %4342 = vrot.lane.b32.xlu0 %v4289, 64
        %v4343 = vpop.permute.xlu0 %4342
        %4344 = vrot.lane.b32.xlu0 %v4290, 64
        %v4345 = vpop.permute.xlu0 %4344
        %4346 = vrot.lane.b32.xlu0 %v4291, 64
        %v4347 = vpop.permute.xlu0 %4346
        %4348 = vrot.lane.b32.xlu0 %v4292, 64
        %v4349 = vpop.permute.xlu0 %4348
        %4350 = vrot.lane.b32.xlu0 %v4293, 64
        %v4351 = vpop.permute.xlu0 %4350
        %4352 = vrot.lane.b32.xlu0 %v4294, 64
        %v4353 = vpop.permute.xlu0 %4352
        %4354 = vrot.lane.b32.xlu0 %v4295, 64
        %v4355 = vpop.permute.xlu0 %4354
        %4356 = vrot.lane.b32.xlu0 %v4296, 64
        %v4357 = vpop.permute.xlu0 %4356
        %4358 = vrot.lane.b32.xlu0 %v4297, 64
        %v4359 = vpop.permute.xlu0 %4358
        %4360 = vrot.lane.b32.xlu0 %v4298, 64
        %v4361 = vpop.permute.xlu0 %4360
        %4362 = vrot.lane.b32.xlu0 %v4299, 64
        %v4363 = vpop.permute.xlu0 %4362
        %4396 = vst.msk [vmem:[#allocation4] sm:$0xf] %vm1348, %v4301
        %4397 = vst.msk [vmem:[#allocation4 + $0xc] sm:$0xf] %vm1348, %v4303
        %4398 = vst.msk [vmem:[#allocation4 + $0x18] sm:$0xf] %vm1348, %v4305
        %4399 = vst.msk [vmem:[#allocation4 + $0x24] sm:$0xf] %vm1348, %v4307
        %4400 = vst.msk [vmem:[#allocation4 + $0x30] sm:$0xf] %vm1348, %v4309
        %4401 = vst.msk [vmem:[#allocation4 + $0x3c] sm:$0xf] %vm1348, %v4311
        %4402 = vst.msk [vmem:[#allocation4 + $0x48] sm:$0xf] %vm1348, %v4313
        %4403 = vst.msk [vmem:[#allocation4 + $0x54] sm:$0xf] %vm1348, %v4315
        %4404 = vst.msk [vmem:[#allocation4 + $0x60] sm:$0xf] %vm1348, %v4317
        %4405 = vst.msk [vmem:[#allocation4 + $0x6c] sm:$0xf] %vm1348, %v4319
        %4406 = vst.msk [vmem:[#allocation4 + $0x78] sm:$0xf] %vm1348, %v4321
        %4407 = vst.msk [vmem:[#allocation4 + $0x84] sm:$0xf] %vm1348, %v4323
        %4408 = vst.msk [vmem:[#allocation4 + $0x90] sm:$0xf] %vm1348, %v4325
        %4409 = vst.msk [vmem:[#allocation4 + $0x9c] sm:$0xf] %vm1348, %v4327
        %4410 = vst.msk [vmem:[#allocation4 + $0xa8] sm:$0xf] %vm1348, %v4329
        %4411 = vst.msk [vmem:[#allocation4 + $0xb4] sm:$0xf] %vm1348, %v4331
        %4412 = vst.msk [vmem:[#allocation4 + $0xc0] sm:$0xf] %vm1348, %v4333
        %4413 = vst.msk [vmem:[#allocation4 + $0xcc] sm:$0xf] %vm1348, %v4335
        %4414 = vst.msk [vmem:[#allocation4 + $0xd8] sm:$0xf] %vm1348, %v4337
        %4415 = vst.msk [vmem:[#allocation4 + $0xe4] sm:$0xf] %vm1348, %v4339
        %4416 = vst.msk [vmem:[#allocation4 + $0xf0] sm:$0xf] %vm1348, %v4341
        %4417 = vst.msk [vmem:[#allocation4 + $0xfc] sm:$0xf] %vm1348, %v4343
        %4418 = vst.msk [vmem:[#allocation4 + $0x108] sm:$0xf] %vm1348, %v4345
        %4419 = vst.msk [vmem:[#allocation4 + $0x114] sm:$0xf] %vm1348, %v4347
        %4420 = vst.msk [vmem:[#allocation4 + $0x120] sm:$0xf] %vm1348, %v4349
        %4421 = vst.msk [vmem:[#allocation4 + $0x12c] sm:$0xf] %vm1348, %v4351
        %4422 = vst.msk [vmem:[#allocation4 + $0x138] sm:$0xf] %vm1348, %v4353
        %4423 = vst.msk [vmem:[#allocation4 + $0x144] sm:$0xf] %vm1348, %v4355
        %4424 = vst.msk [vmem:[#allocation4 + $0x150] sm:$0xf] %vm1348, %v4357
        %4425 = vst.msk [vmem:[#allocation4 + $0x15c] sm:$0xf] %vm1348, %v4359
        %4426 = vst.msk [vmem:[#allocation4 + $0x168] sm:$0xf] %vm1348, %v4361
        %4427 = vst.msk [vmem:[#allocation4 + $0x174] sm:$0xf] %vm1348, %v4363
        %v4428 = vld [vmem:[%s3691] sm:$0xff]
        %v4429 = vld [vmem:[%s3691 + $0x8] sm:$0xff]
        %v4430 = vld [vmem:[%s3691 + $0x18] sm:$0xff]
        %v4431 = vld [vmem:[%s3691 + $0x20] sm:$0xff]
        %v4432 = vld [vmem:[%s3691 + $0x30] sm:$0xff]
        %v4433 = vld [vmem:[%s3691 + $0x38] sm:$0xff]
        %v4434 = vld [vmem:[%s3691 + $0x48] sm:$0xff]
        %v4435 = vld [vmem:[%s3691 + $0x50] sm:$0xff]
        %v4436 = vld [vmem:[%s3691 + $0x60] sm:$0xff]
        %v4437 = vld [vmem:[%s3691 + $0x68] sm:$0xff]
        %v4438 = vld [vmem:[%s3691 + $0x78] sm:$0xff]
        %v4439 = vld [vmem:[%s3691 + $0x80] sm:$0xff]
        %v4440 = vld [vmem:[%s3691 + $0x90] sm:$0xff]
        %v4441 = vld [vmem:[%s3691 + $0x98] sm:$0xff]
        %v4442 = vld [vmem:[%s3691 + $0xa8] sm:$0xff]
        %v4443 = vld [vmem:[%s3691 + $0xb0] sm:$0xff]
        %v4444 = vld [vmem:[%s3691 + $0xc0] sm:$0xff]
        %v4445 = vld [vmem:[%s3691 + $0xc8] sm:$0xff]
        %v4446 = vld [vmem:[%s3691 + $0xd8] sm:$0xff]
        %v4447 = vld [vmem:[%s3691 + $0xe0] sm:$0xff]
        %v4448 = vld [vmem:[%s3691 + $0xf0] sm:$0xff]
        %v4449 = vld [vmem:[%s3691 + $0xf8] sm:$0xff]
        %v4450 = vld [vmem:[%s3691 + $0x108] sm:$0xff]
        %v4451 = vld [vmem:[%s3691 + $0x110] sm:$0xff]
        %v4452 = vld [vmem:[%s3691 + $0x120] sm:$0xff]
        %v4453 = vld [vmem:[%s3691 + $0x128] sm:$0xff]
        %v4454 = vld [vmem:[%s3691 + $0x138] sm:$0xff]
        %v4455 = vld [vmem:[%s3691 + $0x140] sm:$0xff]
        %v4456 = vld [vmem:[%s3691 + $0x150] sm:$0xff]
        %v4457 = vld [vmem:[%s3691 + $0x158] sm:$0xff]
        %v4458 = vld [vmem:[%s3691 + $0x168] sm:$0xff]
        %v4459 = vld [vmem:[%s3691 + $0x170] sm:$0xff]
        %v4460 = vpack.c.bf16 %v4429, %v4428
        %v4461 = vpack.c.bf16 %v4431, %v4430
        %v4462 = vpack.c.bf16 %v4433, %v4432
        %v4463 = vpack.c.bf16 %v4435, %v4434
        %v4464 = vpack.c.bf16 %v4437, %v4436
        %v4465 = vpack.c.bf16 %v4439, %v4438
        %v4466 = vpack.c.bf16 %v4441, %v4440
        %v4467 = vpack.c.bf16 %v4443, %v4442
        %v4468 = vpack.c.bf16 %v4445, %v4444
        %v4469 = vpack.c.bf16 %v4447, %v4446
        %v4470 = vpack.c.bf16 %v4449, %v4448
        %v4471 = vpack.c.bf16 %v4451, %v4450
        %v4472 = vpack.c.bf16 %v4453, %v4452
        %v4473 = vpack.c.bf16 %v4455, %v4454
        %v4474 = vpack.c.bf16 %v4457, %v4456
        %v4475 = vpack.c.bf16 %v4459, %v4458
        %v4492 = vunpack.c.l.b16 %v4460
        %v4493 = vunpack.c.h.b16 %v4460
        %v4494 = vunpack.c.l.b16 %v4461
        %v4495 = vunpack.c.h.b16 %v4461
        %v4496 = vunpack.c.l.b16 %v4462
        %v4497 = vunpack.c.h.b16 %v4462
        %v4498 = vunpack.c.l.b16 %v4463
        %v4499 = vunpack.c.h.b16 %v4463
        %v4500 = vunpack.c.l.b16 %v4464
        %v4501 = vunpack.c.h.b16 %v4464
        %v4502 = vunpack.c.l.b16 %v4465
        %v4503 = vunpack.c.h.b16 %v4465
        %v4504 = vunpack.c.l.b16 %v4466
        %v4505 = vunpack.c.h.b16 %v4466
        %v4506 = vunpack.c.l.b16 %v4467
        %v4507 = vunpack.c.h.b16 %v4467
        %v4508 = vunpack.c.l.b16 %v4468
        %v4509 = vunpack.c.h.b16 %v4468
        %v4510 = vunpack.c.l.b16 %v4469
        %v4511 = vunpack.c.h.b16 %v4469
        %v4512 = vunpack.c.l.b16 %v4470
        %v4513 = vunpack.c.h.b16 %v4470
        %v4514 = vunpack.c.l.b16 %v4471
        %v4515 = vunpack.c.h.b16 %v4471
        %v4516 = vunpack.c.l.b16 %v4472
        %v4517 = vunpack.c.h.b16 %v4472
        %v4518 = vunpack.c.l.b16 %v4473
        %v4519 = vunpack.c.h.b16 %v4473
        %v4520 = vunpack.c.l.b16 %v4474
        %v4521 = vunpack.c.h.b16 %v4474
        %v4522 = vunpack.c.l.b16 %v4475
        %v4523 = vunpack.c.h.b16 %v4475
        %v4524 = vpack.c.b16 %v4492, %v4492
        %v4525 = vpack.c.b16 %v4493, %v4493
        %v4526 = vpack.c.b16 %v4494, %v4494
        %v4527 = vpack.c.b16 %v4495, %v4495
        %v4528 = vpack.c.b16 %v4496, %v4496
        %v4529 = vpack.c.b16 %v4497, %v4497
        %v4530 = vpack.c.b16 %v4498, %v4498
        %v4531 = vpack.c.b16 %v4499, %v4499
        %v4532 = vpack.c.b16 %v4500, %v4500
        %v4533 = vpack.c.b16 %v4501, %v4501
        %v4534 = vpack.c.b16 %v4502, %v4502
        %v4535 = vpack.c.b16 %v4503, %v4503
        %v4536 = vpack.c.b16 %v4504, %v4504
        %v4537 = vpack.c.b16 %v4505, %v4505
        %v4538 = vpack.c.b16 %v4506, %v4506
        %v4539 = vpack.c.b16 %v4507, %v4507
        %v4540 = vpack.c.b16 %v4508, %v4508
        %v4541 = vpack.c.b16 %v4509, %v4509
        %v4542 = vpack.c.b16 %v4510, %v4510
        %v4543 = vpack.c.b16 %v4511, %v4511
        %v4544 = vpack.c.b16 %v4512, %v4512
        %v4545 = vpack.c.b16 %v4513, %v4513
        %v4546 = vpack.c.b16 %v4514, %v4514
        %v4547 = vpack.c.b16 %v4515, %v4515
        %v4548 = vpack.c.b16 %v4516, %v4516
        %v4549 = vpack.c.b16 %v4517, %v4517
        %v4550 = vpack.c.b16 %v4518, %v4518
        %v4551 = vpack.c.b16 %v4519, %v4519
        %v4552 = vpack.c.b16 %v4520, %v4520
        %v4553 = vpack.c.b16 %v4521, %v4521
        %v4554 = vpack.c.b16 %v4522, %v4522
        %v4555 = vpack.c.b16 %v4523, %v4523
        %4556 = vrot.lane.b32.xlu0 %v4524, 96
        %v4557 = vpop.permute.xlu0 %4556
        %4558 = vrot.lane.b32.xlu0 %v4525, 96
        %v4559 = vpop.permute.xlu0 %4558
        %4560 = vrot.lane.b32.xlu0 %v4526, 96
        %v4561 = vpop.permute.xlu0 %4560
        %4562 = vrot.lane.b32.xlu0 %v4527, 96
        %v4563 = vpop.permute.xlu0 %4562
        %4564 = vrot.lane.b32.xlu0 %v4528, 96
        %v4565 = vpop.permute.xlu0 %4564
        %4566 = vrot.lane.b32.xlu0 %v4529, 96
        %v4567 = vpop.permute.xlu0 %4566
        %4568 = vrot.lane.b32.xlu0 %v4530, 96
        %v4569 = vpop.permute.xlu0 %4568
        %4570 = vrot.lane.b32.xlu0 %v4531, 96
        %v4571 = vpop.permute.xlu0 %4570
        %4572 = vrot.lane.b32.xlu0 %v4532, 96
        %v4573 = vpop.permute.xlu0 %4572
        %4574 = vrot.lane.b32.xlu0 %v4533, 96
        %v4575 = vpop.permute.xlu0 %4574
        %4576 = vrot.lane.b32.xlu0 %v4534, 96
        %v4577 = vpop.permute.xlu0 %4576
        %4578 = vrot.lane.b32.xlu0 %v4535, 96
        %v4579 = vpop.permute.xlu0 %4578
        %4580 = vrot.lane.b32.xlu0 %v4536, 96
        %v4581 = vpop.permute.xlu0 %4580
        %4582 = vrot.lane.b32.xlu0 %v4537, 96
        %v4583 = vpop.permute.xlu0 %4582
        %4584 = vrot.lane.b32.xlu0 %v4538, 96
        %v4585 = vpop.permute.xlu0 %4584
        %4586 = vrot.lane.b32.xlu0 %v4539, 96
        %v4587 = vpop.permute.xlu0 %4586
        %4588 = vrot.lane.b32.xlu0 %v4540, 96
        %v4589 = vpop.permute.xlu0 %4588
        %4590 = vrot.lane.b32.xlu0 %v4541, 96
        %v4591 = vpop.permute.xlu0 %4590
        %4592 = vrot.lane.b32.xlu0 %v4542, 96
        %v4593 = vpop.permute.xlu0 %4592
        %4594 = vrot.lane.b32.xlu0 %v4543, 96
        %v4595 = vpop.permute.xlu0 %4594
        %4596 = vrot.lane.b32.xlu0 %v4544, 96
        %v4597 = vpop.permute.xlu0 %4596
        %4598 = vrot.lane.b32.xlu0 %v4545, 96
        %v4599 = vpop.permute.xlu0 %4598
        %4600 = vrot.lane.b32.xlu0 %v4546, 96
        %v4601 = vpop.permute.xlu0 %4600
        %4602 = vrot.lane.b32.xlu0 %v4547, 96
        %v4603 = vpop.permute.xlu0 %4602
        %4604 = vrot.lane.b32.xlu0 %v4548, 96
        %v4605 = vpop.permute.xlu0 %4604
        %4606 = vrot.lane.b32.xlu0 %v4549, 96
        %v4607 = vpop.permute.xlu0 %4606
        %4608 = vrot.lane.b32.xlu0 %v4550, 96
        %v4609 = vpop.permute.xlu0 %4608
        %4610 = vrot.lane.b32.xlu0 %v4551, 96
        %v4611 = vpop.permute.xlu0 %4610
        %4612 = vrot.lane.b32.xlu0 %v4552, 96
        %v4613 = vpop.permute.xlu0 %4612
        %4614 = vrot.lane.b32.xlu0 %v4553, 96
        %v4615 = vpop.permute.xlu0 %4614
        %4616 = vrot.lane.b32.xlu0 %v4554, 96
        %v4617 = vpop.permute.xlu0 %4616
        %4618 = vrot.lane.b32.xlu0 %v4555, 96
        %v4619 = vpop.permute.xlu0 %4618
        %4652 = vst.msk [vmem:[#allocation4] sm:$0xf] %vm1605, %v4557
        %4653 = vst.msk [vmem:[#allocation4 + $0xc] sm:$0xf] %vm1605, %v4559
        %4654 = vst.msk [vmem:[#allocation4 + $0x18] sm:$0xf] %vm1605, %v4561
        %4655 = vst.msk [vmem:[#allocation4 + $0x24] sm:$0xf] %vm1605, %v4563
        %4656 = vst.msk [vmem:[#allocation4 + $0x30] sm:$0xf] %vm1605, %v4565
        %4657 = vst.msk [vmem:[#allocation4 + $0x3c] sm:$0xf] %vm1605, %v4567
        %4658 = vst.msk [vmem:[#allocation4 + $0x48] sm:$0xf] %vm1605, %v4569
        %4659 = vst.msk [vmem:[#allocation4 + $0x54] sm:$0xf] %vm1605, %v4571
        %4660 = vst.msk [vmem:[#allocation4 + $0x60] sm:$0xf] %vm1605, %v4573
        %4661 = vst.msk [vmem:[#allocation4 + $0x6c] sm:$0xf] %vm1605, %v4575
        %4662 = vst.msk [vmem:[#allocation4 + $0x78] sm:$0xf] %vm1605, %v4577
        %4663 = vst.msk [vmem:[#allocation4 + $0x84] sm:$0xf] %vm1605, %v4579
        %4664 = vst.msk [vmem:[#allocation4 + $0x90] sm:$0xf] %vm1605, %v4581
        %4665 = vst.msk [vmem:[#allocation4 + $0x9c] sm:$0xf] %vm1605, %v4583
        %4666 = vst.msk [vmem:[#allocation4 + $0xa8] sm:$0xf] %vm1605, %v4585
        %4667 = vst.msk [vmem:[#allocation4 + $0xb4] sm:$0xf] %vm1605, %v4587
        %4668 = vst.msk [vmem:[#allocation4 + $0xc0] sm:$0xf] %vm1605, %v4589
        %4669 = vst.msk [vmem:[#allocation4 + $0xcc] sm:$0xf] %vm1605, %v4591
        %4670 = vst.msk [vmem:[#allocation4 + $0xd8] sm:$0xf] %vm1605, %v4593
        %4671 = vst.msk [vmem:[#allocation4 + $0xe4] sm:$0xf] %vm1605, %v4595
        %4672 = vst.msk [vmem:[#allocation4 + $0xf0] sm:$0xf] %vm1605, %v4597
        %4673 = vst.msk [vmem:[#allocation4 + $0xfc] sm:$0xf] %vm1605, %v4599
        %4674 = vst.msk [vmem:[#allocation4 + $0x108] sm:$0xf] %vm1605, %v4601
        %4675 = vst.msk [vmem:[#allocation4 + $0x114] sm:$0xf] %vm1605, %v4603
        %4676 = vst.msk [vmem:[#allocation4 + $0x120] sm:$0xf] %vm1605, %v4605
        %4677 = vst.msk [vmem:[#allocation4 + $0x12c] sm:$0xf] %vm1605, %v4607
        %4678 = vst.msk [vmem:[#allocation4 + $0x138] sm:$0xf] %vm1605, %v4609
        %4679 = vst.msk [vmem:[#allocation4 + $0x144] sm:$0xf] %vm1605, %v4611
        %4680 = vst.msk [vmem:[#allocation4 + $0x150] sm:$0xf] %vm1605, %v4613
        %4681 = vst.msk [vmem:[#allocation4 + $0x15c] sm:$0xf] %vm1605, %v4615
        %4682 = vst.msk [vmem:[#allocation4 + $0x168] sm:$0xf] %vm1605, %v4617
        %4683 = vst.msk [vmem:[#allocation4 + $0x174] sm:$0xf] %vm1605, %v4619
        %v4684 = vld [vmem:[%s3691 + $0x1] sm:$0xff]
        %v4685 = vld [vmem:[%s3691 + $0x9] sm:$0xff]
        %v4686 = vld [vmem:[%s3691 + $0x19] sm:$0xff]
        %v4687 = vld [vmem:[%s3691 + $0x21] sm:$0xff]
        %v4688 = vld [vmem:[%s3691 + $0x31] sm:$0xff]
        %v4689 = vld [vmem:[%s3691 + $0x39] sm:$0xff]
        %v4690 = vld [vmem:[%s3691 + $0x49] sm:$0xff]
        %v4691 = vld [vmem:[%s3691 + $0x51] sm:$0xff]
        %v4692 = vld [vmem:[%s3691 + $0x61] sm:$0xff]
        %v4693 = vld [vmem:[%s3691 + $0x69] sm:$0xff]
        %v4694 = vld [vmem:[%s3691 + $0x79] sm:$0xff]
        %v4695 = vld [vmem:[%s3691 + $0x81] sm:$0xff]
        %v4696 = vld [vmem:[%s3691 + $0x91] sm:$0xff]
        %v4697 = vld [vmem:[%s3691 + $0x99] sm:$0xff]
        %v4698 = vld [vmem:[%s3691 + $0xa9] sm:$0xff]
        %v4699 = vld [vmem:[%s3691 + $0xb1] sm:$0xff]
        %v4700 = vld [vmem:[%s3691 + $0xc1] sm:$0xff]
        %v4701 = vld [vmem:[%s3691 + $0xc9] sm:$0xff]
        %v4702 = vld [vmem:[%s3691 + $0xd9] sm:$0xff]
        %v4703 = vld [vmem:[%s3691 + $0xe1] sm:$0xff]
        %v4704 = vld [vmem:[%s3691 + $0xf1] sm:$0xff]
        %v4705 = vld [vmem:[%s3691 + $0xf9] sm:$0xff]
        %v4706 = vld [vmem:[%s3691 + $0x109] sm:$0xff]
        %v4707 = vld [vmem:[%s3691 + $0x111] sm:$0xff]
        %v4708 = vld [vmem:[%s3691 + $0x121] sm:$0xff]
        %v4709 = vld [vmem:[%s3691 + $0x129] sm:$0xff]
        %v4710 = vld [vmem:[%s3691 + $0x139] sm:$0xff]
        %v4711 = vld [vmem:[%s3691 + $0x141] sm:$0xff]
        %v4712 = vld [vmem:[%s3691 + $0x151] sm:$0xff]
        %v4713 = vld [vmem:[%s3691 + $0x159] sm:$0xff]
        %v4714 = vld [vmem:[%s3691 + $0x169] sm:$0xff]
        %v4715 = vld [vmem:[%s3691 + $0x171] sm:$0xff]
        %v4716 = vpack.c.bf16 %v4685, %v4684
        %v4717 = vpack.c.bf16 %v4687, %v4686
        %v4718 = vpack.c.bf16 %v4689, %v4688
        %v4719 = vpack.c.bf16 %v4691, %v4690
        %v4720 = vpack.c.bf16 %v4693, %v4692
        %v4721 = vpack.c.bf16 %v4695, %v4694
        %v4722 = vpack.c.bf16 %v4697, %v4696
        %v4723 = vpack.c.bf16 %v4699, %v4698
        %v4724 = vpack.c.bf16 %v4701, %v4700
        %v4725 = vpack.c.bf16 %v4703, %v4702
        %v4726 = vpack.c.bf16 %v4705, %v4704
        %v4727 = vpack.c.bf16 %v4707, %v4706
        %v4728 = vpack.c.bf16 %v4709, %v4708
        %v4729 = vpack.c.bf16 %v4711, %v4710
        %v4730 = vpack.c.bf16 %v4713, %v4712
        %v4731 = vpack.c.bf16 %v4715, %v4714
        %v4748 = vunpack.c.l.b16 %v4716
        %v4749 = vunpack.c.h.b16 %v4716
        %v4750 = vunpack.c.l.b16 %v4717
        %v4751 = vunpack.c.h.b16 %v4717
        %v4752 = vunpack.c.l.b16 %v4718
        %v4753 = vunpack.c.h.b16 %v4718
        %v4754 = vunpack.c.l.b16 %v4719
        %v4755 = vunpack.c.h.b16 %v4719
        %v4756 = vunpack.c.l.b16 %v4720
        %v4757 = vunpack.c.h.b16 %v4720
        %v4758 = vunpack.c.l.b16 %v4721
        %v4759 = vunpack.c.h.b16 %v4721
        %v4760 = vunpack.c.l.b16 %v4722
        %v4761 = vunpack.c.h.b16 %v4722
        %v4762 = vunpack.c.l.b16 %v4723
        %v4763 = vunpack.c.h.b16 %v4723
        %v4764 = vunpack.c.l.b16 %v4724
        %v4765 = vunpack.c.h.b16 %v4724
        %v4766 = vunpack.c.l.b16 %v4725
        %v4767 = vunpack.c.h.b16 %v4725
        %v4768 = vunpack.c.l.b16 %v4726
        %v4769 = vunpack.c.h.b16 %v4726
        %v4770 = vunpack.c.l.b16 %v4727
        %v4771 = vunpack.c.h.b16 %v4727
        %v4772 = vunpack.c.l.b16 %v4728
        %v4773 = vunpack.c.h.b16 %v4728
        %v4774 = vunpack.c.l.b16 %v4729
        %v4775 = vunpack.c.h.b16 %v4729
        %v4776 = vunpack.c.l.b16 %v4730
        %v4777 = vunpack.c.h.b16 %v4730
        %v4778 = vunpack.c.l.b16 %v4731
        %v4779 = vunpack.c.h.b16 %v4731
        %v4780 = vpack.c.b16 %v4748, %v4748
        %v4781 = vpack.c.b16 %v4749, %v4749
        %v4782 = vpack.c.b16 %v4750, %v4750
        %v4783 = vpack.c.b16 %v4751, %v4751
        %v4784 = vpack.c.b16 %v4752, %v4752
        %v4785 = vpack.c.b16 %v4753, %v4753
        %v4786 = vpack.c.b16 %v4754, %v4754
        %v4787 = vpack.c.b16 %v4755, %v4755
        %v4788 = vpack.c.b16 %v4756, %v4756
        %v4789 = vpack.c.b16 %v4757, %v4757
        %v4790 = vpack.c.b16 %v4758, %v4758
        %v4791 = vpack.c.b16 %v4759, %v4759
        %v4792 = vpack.c.b16 %v4760, %v4760
        %v4793 = vpack.c.b16 %v4761, %v4761
        %v4794 = vpack.c.b16 %v4762, %v4762
        %v4795 = vpack.c.b16 %v4763, %v4763
        %v4796 = vpack.c.b16 %v4764, %v4764
        %v4797 = vpack.c.b16 %v4765, %v4765
        %v4798 = vpack.c.b16 %v4766, %v4766
        %v4799 = vpack.c.b16 %v4767, %v4767
        %v4800 = vpack.c.b16 %v4768, %v4768
        %v4801 = vpack.c.b16 %v4769, %v4769
        %v4802 = vpack.c.b16 %v4770, %v4770
        %v4803 = vpack.c.b16 %v4771, %v4771
        %v4804 = vpack.c.b16 %v4772, %v4772
        %v4805 = vpack.c.b16 %v4773, %v4773
        %v4806 = vpack.c.b16 %v4774, %v4774
        %v4807 = vpack.c.b16 %v4775, %v4775
        %v4808 = vpack.c.b16 %v4776, %v4776
        %v4809 = vpack.c.b16 %v4777, %v4777
        %v4810 = vpack.c.b16 %v4778, %v4778
        %v4811 = vpack.c.b16 %v4779, %v4779
        %4844 = vst.msk [vmem:[#allocation4 + $0x4] sm:$0xf] %vm834, %v4780
        %4845 = vst.msk [vmem:[#allocation4 + $0x10] sm:$0xf] %vm834, %v4781
        %4846 = vst.msk [vmem:[#allocation4 + $0x1c] sm:$0xf] %vm834, %v4782
        %4847 = vst.msk [vmem:[#allocation4 + $0x28] sm:$0xf] %vm834, %v4783
        %4848 = vst.msk [vmem:[#allocation4 + $0x34] sm:$0xf] %vm834, %v4784
        %4849 = vst.msk [vmem:[#allocation4 + $0x40] sm:$0xf] %vm834, %v4785
        %4850 = vst.msk [vmem:[#allocation4 + $0x4c] sm:$0xf] %vm834, %v4786
        %4851 = vst.msk [vmem:[#allocation4 + $0x58] sm:$0xf] %vm834, %v4787
        %4852 = vst.msk [vmem:[#allocation4 + $0x64] sm:$0xf] %vm834, %v4788
        %4853 = vst.msk [vmem:[#allocation4 + $0x70] sm:$0xf] %vm834, %v4789
        %4854 = vst.msk [vmem:[#allocation4 + $0x7c] sm:$0xf] %vm834, %v4790
        %4855 = vst.msk [vmem:[#allocation4 + $0x88] sm:$0xf] %vm834, %v4791
        %4856 = vst.msk [vmem:[#allocation4 + $0x94] sm:$0xf] %vm834, %v4792
        %4857 = vst.msk [vmem:[#allocation4 + $0xa0] sm:$0xf] %vm834, %v4793
        %4858 = vst.msk [vmem:[#allocation4 + $0xac] sm:$0xf] %vm834, %v4794
        %4859 = vst.msk [vmem:[#allocation4 + $0xb8] sm:$0xf] %vm834, %v4795
        %4860 = vst.msk [vmem:[#allocation4 + $0xc4] sm:$0xf] %vm834, %v4796
        %4861 = vst.msk [vmem:[#allocation4 + $0xd0] sm:$0xf] %vm834, %v4797
        %4862 = vst.msk [vmem:[#allocation4 + $0xdc] sm:$0xf] %vm834, %v4798
        %4863 = vst.msk [vmem:[#allocation4 + $0xe8] sm:$0xf] %vm834, %v4799
        %4864 = vst.msk [vmem:[#allocation4 + $0xf4] sm:$0xf] %vm834, %v4800
        %4865 = vst.msk [vmem:[#allocation4 + $0x100] sm:$0xf] %vm834, %v4801
        %4866 = vst.msk [vmem:[#allocation4 + $0x10c] sm:$0xf] %vm834, %v4802
        %4867 = vst.msk [vmem:[#allocation4 + $0x118] sm:$0xf] %vm834, %v4803
        %4868 = vst.msk [vmem:[#allocation4 + $0x124] sm:$0xf] %vm834, %v4804
        %4869 = vst.msk [vmem:[#allocation4 + $0x130] sm:$0xf] %vm834, %v4805
        %4870 = vst.msk [vmem:[#allocation4 + $0x13c] sm:$0xf] %vm834, %v4806
        %4871 = vst.msk [vmem:[#allocation4 + $0x148] sm:$0xf] %vm834, %v4807
        %4872 = vst.msk [vmem:[#allocation4 + $0x154] sm:$0xf] %vm834, %v4808
        %4873 = vst.msk [vmem:[#allocation4 + $0x160] sm:$0xf] %vm834, %v4809
        %4874 = vst.msk [vmem:[#allocation4 + $0x16c] sm:$0xf] %vm834, %v4810
        %4875 = vst.msk [vmem:[#allocation4 + $0x178] sm:$0xf] %vm834, %v4811
        %v4876 = vld [vmem:[%s3691 + $0x2] sm:$0xff]
        %v4877 = vld [vmem:[%s3691 + $0xa] sm:$0xff]
        %v4878 = vld [vmem:[%s3691 + $0x1a] sm:$0xff]
        %v4879 = vld [vmem:[%s3691 + $0x22] sm:$0xff]
        %v4880 = vld [vmem:[%s3691 + $0x32] sm:$0xff]
        %v4881 = vld [vmem:[%s3691 + $0x3a] sm:$0xff]
        %v4882 = vld [vmem:[%s3691 + $0x4a] sm:$0xff]
        %v4883 = vld [vmem:[%s3691 + $0x52] sm:$0xff]
        %v4884 = vld [vmem:[%s3691 + $0x62] sm:$0xff]
        %v4885 = vld [vmem:[%s3691 + $0x6a] sm:$0xff]
        %v4886 = vld [vmem:[%s3691 + $0x7a] sm:$0xff]
        %v4887 = vld [vmem:[%s3691 + $0x82] sm:$0xff]
        %v4888 = vld [vmem:[%s3691 + $0x92] sm:$0xff]
        %v4889 = vld [vmem:[%s3691 + $0x9a] sm:$0xff]
        %v4890 = vld [vmem:[%s3691 + $0xaa] sm:$0xff]
        %v4891 = vld [vmem:[%s3691 + $0xb2] sm:$0xff]
        %v4892 = vld [vmem:[%s3691 + $0xc2] sm:$0xff]
        %v4893 = vld [vmem:[%s3691 + $0xca] sm:$0xff]
        %v4894 = vld [vmem:[%s3691 + $0xda] sm:$0xff]
        %v4895 = vld [vmem:[%s3691 + $0xe2] sm:$0xff]
        %v4896 = vld [vmem:[%s3691 + $0xf2] sm:$0xff]
        %v4897 = vld [vmem:[%s3691 + $0xfa] sm:$0xff]
        %v4898 = vld [vmem:[%s3691 + $0x10a] sm:$0xff]
        %v4899 = vld [vmem:[%s3691 + $0x112] sm:$0xff]
        %v4900 = vld [vmem:[%s3691 + $0x122] sm:$0xff]
        %v4901 = vld [vmem:[%s3691 + $0x12a] sm:$0xff]
        %v4902 = vld [vmem:[%s3691 + $0x13a] sm:$0xff]
        %v4903 = vld [vmem:[%s3691 + $0x142] sm:$0xff]
        %v4904 = vld [vmem:[%s3691 + $0x152] sm:$0xff]
        %v4905 = vld [vmem:[%s3691 + $0x15a] sm:$0xff]
        %v4906 = vld [vmem:[%s3691 + $0x16a] sm:$0xff]
        %v4907 = vld [vmem:[%s3691 + $0x172] sm:$0xff]
        %v4908 = vpack.c.bf16 %v4877, %v4876
        %v4909 = vpack.c.bf16 %v4879, %v4878
        %v4910 = vpack.c.bf16 %v4881, %v4880
        %v4911 = vpack.c.bf16 %v4883, %v4882
        %v4912 = vpack.c.bf16 %v4885, %v4884
        %v4913 = vpack.c.bf16 %v4887, %v4886
        %v4914 = vpack.c.bf16 %v4889, %v4888
        %v4915 = vpack.c.bf16 %v4891, %v4890
        %v4916 = vpack.c.bf16 %v4893, %v4892
        %v4917 = vpack.c.bf16 %v4895, %v4894
        %v4918 = vpack.c.bf16 %v4897, %v4896
        %v4919 = vpack.c.bf16 %v4899, %v4898
        %v4920 = vpack.c.bf16 %v4901, %v4900
        %v4921 = vpack.c.bf16 %v4903, %v4902
        %v4922 = vpack.c.bf16 %v4905, %v4904
        %v4923 = vpack.c.bf16 %v4907, %v4906
        %v4940 = vunpack.c.l.b16 %v4908
        %v4941 = vunpack.c.h.b16 %v4908
        %v4942 = vunpack.c.l.b16 %v4909
        %v4943 = vunpack.c.h.b16 %v4909
        %v4944 = vunpack.c.l.b16 %v4910
        %v4945 = vunpack.c.h.b16 %v4910
        %v4946 = vunpack.c.l.b16 %v4911
        %v4947 = vunpack.c.h.b16 %v4911
        %v4948 = vunpack.c.l.b16 %v4912
        %v4949 = vunpack.c.h.b16 %v4912
        %v4950 = vunpack.c.l.b16 %v4913
        %v4951 = vunpack.c.h.b16 %v4913
        %v4952 = vunpack.c.l.b16 %v4914
        %v4953 = vunpack.c.h.b16 %v4914
        %v4954 = vunpack.c.l.b16 %v4915
        %v4955 = vunpack.c.h.b16 %v4915
        %v4956 = vunpack.c.l.b16 %v4916
        %v4957 = vunpack.c.h.b16 %v4916
        %v4958 = vunpack.c.l.b16 %v4917
        %v4959 = vunpack.c.h.b16 %v4917
        %v4960 = vunpack.c.l.b16 %v4918
        %v4961 = vunpack.c.h.b16 %v4918
        %v4962 = vunpack.c.l.b16 %v4919
        %v4963 = vunpack.c.h.b16 %v4919
        %v4964 = vunpack.c.l.b16 %v4920
        %v4965 = vunpack.c.h.b16 %v4920
        %v4966 = vunpack.c.l.b16 %v4921
        %v4967 = vunpack.c.h.b16 %v4921
        %v4968 = vunpack.c.l.b16 %v4922
        %v4969 = vunpack.c.h.b16 %v4922
        %v4970 = vunpack.c.l.b16 %v4923
        %v4971 = vunpack.c.h.b16 %v4923
        %v4972 = vpack.c.b16 %v4940, %v4940
        %v4973 = vpack.c.b16 %v4941, %v4941
        %v4974 = vpack.c.b16 %v4942, %v4942
        %v4975 = vpack.c.b16 %v4943, %v4943
        %v4976 = vpack.c.b16 %v4944, %v4944
        %v4977 = vpack.c.b16 %v4945, %v4945
        %v4978 = vpack.c.b16 %v4946, %v4946
        %v4979 = vpack.c.b16 %v4947, %v4947
        %v4980 = vpack.c.b16 %v4948, %v4948
        %v4981 = vpack.c.b16 %v4949, %v4949
        %v4982 = vpack.c.b16 %v4950, %v4950
        %v4983 = vpack.c.b16 %v4951, %v4951
        %v4984 = vpack.c.b16 %v4952, %v4952
        %v4985 = vpack.c.b16 %v4953, %v4953
        %v4986 = vpack.c.b16 %v4954, %v4954
        %v4987 = vpack.c.b16 %v4955, %v4955
        %v4988 = vpack.c.b16 %v4956, %v4956
        %v4989 = vpack.c.b16 %v4957, %v4957
        %v4990 = vpack.c.b16 %v4958, %v4958
        %v4991 = vpack.c.b16 %v4959, %v4959
        %v4992 = vpack.c.b16 %v4960, %v4960
        %v4993 = vpack.c.b16 %v4961, %v4961
        %v4994 = vpack.c.b16 %v4962, %v4962
        %v4995 = vpack.c.b16 %v4963, %v4963
        %v4996 = vpack.c.b16 %v4964, %v4964
        %v4997 = vpack.c.b16 %v4965, %v4965
        %v4998 = vpack.c.b16 %v4966, %v4966
        %v4999 = vpack.c.b16 %v4967, %v4967
        %v5000 = vpack.c.b16 %v4968, %v4968
        %v5001 = vpack.c.b16 %v4969, %v4969
        %v5002 = vpack.c.b16 %v4970, %v4970
        %v5003 = vpack.c.b16 %v4971, %v4971
        %5004 = vrot.lane.b32.xlu0 %v4972, 32
        %v5005 = vpop.permute.xlu0 %5004
        %5006 = vrot.lane.b32.xlu0 %v4973, 32
        %v5007 = vpop.permute.xlu0 %5006
        %5008 = vrot.lane.b32.xlu0 %v4974, 32
        %v5009 = vpop.permute.xlu0 %5008
        %5010 = vrot.lane.b32.xlu0 %v4975, 32
        %v5011 = vpop.permute.xlu0 %5010
        %5012 = vrot.lane.b32.xlu0 %v4976, 32
        %v5013 = vpop.permute.xlu0 %5012
        %5014 = vrot.lane.b32.xlu0 %v4977, 32
        %v5015 = vpop.permute.xlu0 %5014
        %5016 = vrot.lane.b32.xlu0 %v4978, 32
        %v5017 = vpop.permute.xlu0 %5016
        %5018 = vrot.lane.b32.xlu0 %v4979, 32
        %v5019 = vpop.permute.xlu0 %5018
        %5020 = vrot.lane.b32.xlu0 %v4980, 32
        %v5021 = vpop.permute.xlu0 %5020
        %5022 = vrot.lane.b32.xlu0 %v4981, 32
        %v5023 = vpop.permute.xlu0 %5022
        %5024 = vrot.lane.b32.xlu0 %v4982, 32
        %v5025 = vpop.permute.xlu0 %5024
        %5026 = vrot.lane.b32.xlu0 %v4983, 32
        %v5027 = vpop.permute.xlu0 %5026
        %5028 = vrot.lane.b32.xlu0 %v4984, 32
        %v5029 = vpop.permute.xlu0 %5028
        %5030 = vrot.lane.b32.xlu0 %v4985, 32
        %v5031 = vpop.permute.xlu0 %5030
        %5032 = vrot.lane.b32.xlu0 %v4986, 32
        %v5033 = vpop.permute.xlu0 %5032
        %5034 = vrot.lane.b32.xlu0 %v4987, 32
        %v5035 = vpop.permute.xlu0 %5034
        %5036 = vrot.lane.b32.xlu0 %v4988, 32
        %v5037 = vpop.permute.xlu0 %5036
        %5038 = vrot.lane.b32.xlu0 %v4989, 32
        %v5039 = vpop.permute.xlu0 %5038
        %5040 = vrot.lane.b32.xlu0 %v4990, 32
        %v5041 = vpop.permute.xlu0 %5040
        %5042 = vrot.lane.b32.xlu0 %v4991, 32
        %v5043 = vpop.permute.xlu0 %5042
        %5044 = vrot.lane.b32.xlu0 %v4992, 32
        %v5045 = vpop.permute.xlu0 %5044
        %5046 = vrot.lane.b32.xlu0 %v4993, 32
        %v5047 = vpop.permute.xlu0 %5046
        %5048 = vrot.lane.b32.xlu0 %v4994, 32
        %v5049 = vpop.permute.xlu0 %5048
        %5050 = vrot.lane.b32.xlu0 %v4995, 32
        %v5051 = vpop.permute.xlu0 %5050
        %5052 = vrot.lane.b32.xlu0 %v4996, 32
        %v5053 = vpop.permute.xlu0 %5052
        %5054 = vrot.lane.b32.xlu0 %v4997, 32
        %v5055 = vpop.permute.xlu0 %5054
        %5056 = vrot.lane.b32.xlu0 %v4998, 32
        %v5057 = vpop.permute.xlu0 %5056
        %5058 = vrot.lane.b32.xlu0 %v4999, 32
        %v5059 = vpop.permute.xlu0 %5058
        %5060 = vrot.lane.b32.xlu0 %v5000, 32
        %v5061 = vpop.permute.xlu0 %5060
        %5062 = vrot.lane.b32.xlu0 %v5001, 32
        %v5063 = vpop.permute.xlu0 %5062
        %5064 = vrot.lane.b32.xlu0 %v5002, 32
        %v5065 = vpop.permute.xlu0 %5064
        %5066 = vrot.lane.b32.xlu0 %v5003, 32
        %v5067 = vpop.permute.xlu0 %5066
        %5100 = vst.msk [vmem:[#allocation4 + $0x4] sm:$0xf] %vm1091, %v5005
        %5101 = vst.msk [vmem:[#allocation4 + $0x10] sm:$0xf] %vm1091, %v5007
        %5102 = vst.msk [vmem:[#allocation4 + $0x1c] sm:$0xf] %vm1091, %v5009
        %5103 = vst.msk [vmem:[#allocation4 + $0x28] sm:$0xf] %vm1091, %v5011
        %5104 = vst.msk [vmem:[#allocation4 + $0x34] sm:$0xf] %vm1091, %v5013
        %5105 = vst.msk [vmem:[#allocation4 + $0x40] sm:$0xf] %vm1091, %v5015
        %5106 = vst.msk [vmem:[#allocation4 + $0x4c] sm:$0xf] %vm1091, %v5017
        %5107 = vst.msk [vmem:[#allocation4 + $0x58] sm:$0xf] %vm1091, %v5019
        %5108 = vst.msk [vmem:[#allocation4 + $0x64] sm:$0xf] %vm1091, %v5021
        %5109 = vst.msk [vmem:[#allocation4 + $0x70] sm:$0xf] %vm1091, %v5023
        %5110 = vst.msk [vmem:[#allocation4 + $0x7c] sm:$0xf] %vm1091, %v5025
        %5111 = vst.msk [vmem:[#allocation4 + $0x88] sm:$0xf] %vm1091, %v5027
        %5112 = vst.msk [vmem:[#allocation4 + $0x94] sm:$0xf] %vm1091, %v5029
        %5113 = vst.msk [vmem:[#allocation4 + $0xa0] sm:$0xf] %vm1091, %v5031
        %5114 = vst.msk [vmem:[#allocation4 + $0xac] sm:$0xf] %vm1091, %v5033
        %5115 = vst.msk [vmem:[#allocation4 + $0xb8] sm:$0xf] %vm1091, %v5035
        %5116 = vst.msk [vmem:[#allocation4 + $0xc4] sm:$0xf] %vm1091, %v5037
        %5117 = vst.msk [vmem:[#allocation4 + $0xd0] sm:$0xf] %vm1091, %v5039
        %5118 = vst.msk [vmem:[#allocation4 + $0xdc] sm:$0xf] %vm1091, %v5041
        %5119 = vst.msk [vmem:[#allocation4 + $0xe8] sm:$0xf] %vm1091, %v5043
        %5120 = vst.msk [vmem:[#allocation4 + $0xf4] sm:$0xf] %vm1091, %v5045
        %5121 = vst.msk [vmem:[#allocation4 + $0x100] sm:$0xf] %vm1091, %v5047
        %5122 = vst.msk [vmem:[#allocation4 + $0x10c] sm:$0xf] %vm1091, %v5049
        %5123 = vst.msk [vmem:[#allocation4 + $0x118] sm:$0xf] %vm1091, %v5051
        %5124 = vst.msk [vmem:[#allocation4 + $0x124] sm:$0xf] %vm1091, %v5053
        %5125 = vst.msk [vmem:[#allocation4 + $0x130] sm:$0xf] %vm1091, %v5055
        %5126 = vst.msk [vmem:[#allocation4 + $0x13c] sm:$0xf] %vm1091, %v5057
        %5127 = vst.msk [vmem:[#allocation4 + $0x148] sm:$0xf] %vm1091, %v5059
        %5128 = vst.msk [vmem:[#allocation4 + $0x154] sm:$0xf] %vm1091, %v5061
        %5129 = vst.msk [vmem:[#allocation4 + $0x160] sm:$0xf] %vm1091, %v5063
        %5130 = vst.msk [vmem:[#allocation4 + $0x16c] sm:$0xf] %vm1091, %v5065
        %5131 = vst.msk [vmem:[#allocation4 + $0x178] sm:$0xf] %vm1091, %v5067
        %s5132 = scalar_lea.vmem [#allocation3], 48
        %v5133 = vld [vmem:[%s5132] sm:$0xff]
        %v5134 = vld [vmem:[%s5132 + $0x8] sm:$0xff]
        %v5135 = vld [vmem:[%s5132 + $0x18] sm:$0xff]
        %v5136 = vld [vmem:[%s5132 + $0x20] sm:$0xff]
        %v5137 = vld [vmem:[%s5132 + $0x30] sm:$0xff]
        %v5138 = vld [vmem:[%s5132 + $0x38] sm:$0xff]
        %v5139 = vld [vmem:[%s5132 + $0x48] sm:$0xff]
        %v5140 = vld [vmem:[%s5132 + $0x50] sm:$0xff]
        %v5141 = vld [vmem:[%s5132 + $0x60] sm:$0xff]
        %v5142 = vld [vmem:[%s5132 + $0x68] sm:$0xff]
        %v5143 = vld [vmem:[%s5132 + $0x78] sm:$0xff]
        %v5144 = vld [vmem:[%s5132 + $0x80] sm:$0xff]
        %v5145 = vld [vmem:[%s5132 + $0x90] sm:$0xff]
        %v5146 = vld [vmem:[%s5132 + $0x98] sm:$0xff]
        %v5147 = vld [vmem:[%s5132 + $0xa8] sm:$0xff]
        %v5148 = vld [vmem:[%s5132 + $0xb0] sm:$0xff]
        %v5149 = vld [vmem:[%s5132 + $0xc0] sm:$0xff]
        %v5150 = vld [vmem:[%s5132 + $0xc8] sm:$0xff]
        %v5151 = vld [vmem:[%s5132 + $0xd8] sm:$0xff]
        %v5152 = vld [vmem:[%s5132 + $0xe0] sm:$0xff]
        %v5153 = vld [vmem:[%s5132 + $0xf0] sm:$0xff]
        %v5154 = vld [vmem:[%s5132 + $0xf8] sm:$0xff]
        %v5155 = vld [vmem:[%s5132 + $0x108] sm:$0xff]
        %v5156 = vld [vmem:[%s5132 + $0x110] sm:$0xff]
        %v5157 = vld [vmem:[%s5132 + $0x120] sm:$0xff]
        %v5158 = vld [vmem:[%s5132 + $0x128] sm:$0xff]
        %v5159 = vld [vmem:[%s5132 + $0x138] sm:$0xff]
        %v5160 = vld [vmem:[%s5132 + $0x140] sm:$0xff]
        %v5161 = vld [vmem:[%s5132 + $0x150] sm:$0xff]
        %v5162 = vld [vmem:[%s5132 + $0x158] sm:$0xff]
        %v5163 = vld [vmem:[%s5132 + $0x168] sm:$0xff]
        %v5164 = vld [vmem:[%s5132 + $0x170] sm:$0xff]
        %v5165 = vpack.c.bf16 %v5134, %v5133
        %v5166 = vpack.c.bf16 %v5136, %v5135
        %v5167 = vpack.c.bf16 %v5138, %v5137
        %v5168 = vpack.c.bf16 %v5140, %v5139
        %v5169 = vpack.c.bf16 %v5142, %v5141
        %v5170 = vpack.c.bf16 %v5144, %v5143
        %v5171 = vpack.c.bf16 %v5146, %v5145
        %v5172 = vpack.c.bf16 %v5148, %v5147
        %v5173 = vpack.c.bf16 %v5150, %v5149
        %v5174 = vpack.c.bf16 %v5152, %v5151
        %v5175 = vpack.c.bf16 %v5154, %v5153
        %v5176 = vpack.c.bf16 %v5156, %v5155
        %v5177 = vpack.c.bf16 %v5158, %v5157
        %v5178 = vpack.c.bf16 %v5160, %v5159
        %v5179 = vpack.c.bf16 %v5162, %v5161
        %v5180 = vpack.c.bf16 %v5164, %v5163
        %v5197 = vunpack.c.l.b16 %v5165
        %v5198 = vunpack.c.h.b16 %v5165
        %v5199 = vunpack.c.l.b16 %v5166
        %v5200 = vunpack.c.h.b16 %v5166
        %v5201 = vunpack.c.l.b16 %v5167
        %v5202 = vunpack.c.h.b16 %v5167
        %v5203 = vunpack.c.l.b16 %v5168
        %v5204 = vunpack.c.h.b16 %v5168
        %v5205 = vunpack.c.l.b16 %v5169
        %v5206 = vunpack.c.h.b16 %v5169
        %v5207 = vunpack.c.l.b16 %v5170
        %v5208 = vunpack.c.h.b16 %v5170
        %v5209 = vunpack.c.l.b16 %v5171
        %v5210 = vunpack.c.h.b16 %v5171
        %v5211 = vunpack.c.l.b16 %v5172
        %v5212 = vunpack.c.h.b16 %v5172
        %v5213 = vunpack.c.l.b16 %v5173
        %v5214 = vunpack.c.h.b16 %v5173
        %v5215 = vunpack.c.l.b16 %v5174
        %v5216 = vunpack.c.h.b16 %v5174
        %v5217 = vunpack.c.l.b16 %v5175
        %v5218 = vunpack.c.h.b16 %v5175
        %v5219 = vunpack.c.l.b16 %v5176
        %v5220 = vunpack.c.h.b16 %v5176
        %v5221 = vunpack.c.l.b16 %v5177
        %v5222 = vunpack.c.h.b16 %v5177
        %v5223 = vunpack.c.l.b16 %v5178
        %v5224 = vunpack.c.h.b16 %v5178
        %v5225 = vunpack.c.l.b16 %v5179
        %v5226 = vunpack.c.h.b16 %v5179
        %v5227 = vunpack.c.l.b16 %v5180
        %v5228 = vunpack.c.h.b16 %v5180
        %v5229 = vpack.c.b16 %v5197, %v5197
        %v5230 = vpack.c.b16 %v5198, %v5198
        %v5231 = vpack.c.b16 %v5199, %v5199
        %v5232 = vpack.c.b16 %v5200, %v5200
        %v5233 = vpack.c.b16 %v5201, %v5201
        %v5234 = vpack.c.b16 %v5202, %v5202
        %v5235 = vpack.c.b16 %v5203, %v5203
        %v5236 = vpack.c.b16 %v5204, %v5204
        %v5237 = vpack.c.b16 %v5205, %v5205
        %v5238 = vpack.c.b16 %v5206, %v5206
        %v5239 = vpack.c.b16 %v5207, %v5207
        %v5240 = vpack.c.b16 %v5208, %v5208
        %v5241 = vpack.c.b16 %v5209, %v5209
        %v5242 = vpack.c.b16 %v5210, %v5210
        %v5243 = vpack.c.b16 %v5211, %v5211
        %v5244 = vpack.c.b16 %v5212, %v5212
        %v5245 = vpack.c.b16 %v5213, %v5213
        %v5246 = vpack.c.b16 %v5214, %v5214
        %v5247 = vpack.c.b16 %v5215, %v5215
        %v5248 = vpack.c.b16 %v5216, %v5216
        %v5249 = vpack.c.b16 %v5217, %v5217
        %v5250 = vpack.c.b16 %v5218, %v5218
        %v5251 = vpack.c.b16 %v5219, %v5219
        %v5252 = vpack.c.b16 %v5220, %v5220
        %v5253 = vpack.c.b16 %v5221, %v5221
        %v5254 = vpack.c.b16 %v5222, %v5222
        %v5255 = vpack.c.b16 %v5223, %v5223
        %v5256 = vpack.c.b16 %v5224, %v5224
        %v5257 = vpack.c.b16 %v5225, %v5225
        %v5258 = vpack.c.b16 %v5226, %v5226
        %v5259 = vpack.c.b16 %v5227, %v5227
        %v5260 = vpack.c.b16 %v5228, %v5228
        %5261 = vrot.lane.b32.xlu0 %v5229, 64
        %v5262 = vpop.permute.xlu0 %5261
        %5263 = vrot.lane.b32.xlu0 %v5230, 64
        %v5264 = vpop.permute.xlu0 %5263
        %5265 = vrot.lane.b32.xlu0 %v5231, 64
        %v5266 = vpop.permute.xlu0 %5265
        %5267 = vrot.lane.b32.xlu0 %v5232, 64
        %v5268 = vpop.permute.xlu0 %5267
        %5269 = vrot.lane.b32.xlu0 %v5233, 64
        %v5270 = vpop.permute.xlu0 %5269
        %5271 = vrot.lane.b32.xlu0 %v5234, 64
        %v5272 = vpop.permute.xlu0 %5271
        %5273 = vrot.lane.b32.xlu0 %v5235, 64
        %v5274 = vpop.permute.xlu0 %5273
        %5275 = vrot.lane.b32.xlu0 %v5236, 64
        %v5276 = vpop.permute.xlu0 %5275
        %5277 = vrot.lane.b32.xlu0 %v5237, 64
        %v5278 = vpop.permute.xlu0 %5277
        %5279 = vrot.lane.b32.xlu0 %v5238, 64
        %v5280 = vpop.permute.xlu0 %5279
        %5281 = vrot.lane.b32.xlu0 %v5239, 64
        %v5282 = vpop.permute.xlu0 %5281
        %5283 = vrot.lane.b32.xlu0 %v5240, 64
        %v5284 = vpop.permute.xlu0 %5283
        %5285 = vrot.lane.b32.xlu0 %v5241, 64
        %v5286 = vpop.permute.xlu0 %5285
        %5287 = vrot.lane.b32.xlu0 %v5242, 64
        %v5288 = vpop.permute.xlu0 %5287
        %5289 = vrot.lane.b32.xlu0 %v5243, 64
        %v5290 = vpop.permute.xlu0 %5289
        %5291 = vrot.lane.b32.xlu0 %v5244, 64
        %v5292 = vpop.permute.xlu0 %5291
        %5293 = vrot.lane.b32.xlu0 %v5245, 64
        %v5294 = vpop.permute.xlu0 %5293
        %5295 = vrot.lane.b32.xlu0 %v5246, 64
        %v5296 = vpop.permute.xlu0 %5295
        %5297 = vrot.lane.b32.xlu0 %v5247, 64
        %v5298 = vpop.permute.xlu0 %5297
        %5299 = vrot.lane.b32.xlu0 %v5248, 64
        %v5300 = vpop.permute.xlu0 %5299
        %5301 = vrot.lane.b32.xlu0 %v5249, 64
        %v5302 = vpop.permute.xlu0 %5301
        %5303 = vrot.lane.b32.xlu0 %v5250, 64
        %v5304 = vpop.permute.xlu0 %5303
        %5305 = vrot.lane.b32.xlu0 %v5251, 64
        %v5306 = vpop.permute.xlu0 %5305
        %5307 = vrot.lane.b32.xlu0 %v5252, 64
        %v5308 = vpop.permute.xlu0 %5307
        %5309 = vrot.lane.b32.xlu0 %v5253, 64
        %v5310 = vpop.permute.xlu0 %5309
        %5311 = vrot.lane.b32.xlu0 %v5254, 64
        %v5312 = vpop.permute.xlu0 %5311
        %5313 = vrot.lane.b32.xlu0 %v5255, 64
        %v5314 = vpop.permute.xlu0 %5313
        %5315 = vrot.lane.b32.xlu0 %v5256, 64
        %v5316 = vpop.permute.xlu0 %5315
        %5317 = vrot.lane.b32.xlu0 %v5257, 64
        %v5318 = vpop.permute.xlu0 %5317
        %5319 = vrot.lane.b32.xlu0 %v5258, 64
        %v5320 = vpop.permute.xlu0 %5319
        %5321 = vrot.lane.b32.xlu0 %v5259, 64
        %v5322 = vpop.permute.xlu0 %5321
        %5323 = vrot.lane.b32.xlu0 %v5260, 64
        %v5324 = vpop.permute.xlu0 %5323
        %5357 = vst.msk [vmem:[#allocation4 + $0x4] sm:$0xf] %vm1348, %v5262
        %5358 = vst.msk [vmem:[#allocation4 + $0x10] sm:$0xf] %vm1348, %v5264
        %5359 = vst.msk [vmem:[#allocation4 + $0x1c] sm:$0xf] %vm1348, %v5266
        %5360 = vst.msk [vmem:[#allocation4 + $0x28] sm:$0xf] %vm1348, %v5268
        %5361 = vst.msk [vmem:[#allocation4 + $0x34] sm:$0xf] %vm1348, %v5270
        %5362 = vst.msk [vmem:[#allocation4 + $0x40] sm:$0xf] %vm1348, %v5272
        %5363 = vst.msk [vmem:[#allocation4 + $0x4c] sm:$0xf] %vm1348, %v5274
        %5364 = vst.msk [vmem:[#allocation4 + $0x58] sm:$0xf] %vm1348, %v5276
        %5365 = vst.msk [vmem:[#allocation4 + $0x64] sm:$0xf] %vm1348, %v5278
        %5366 = vst.msk [vmem:[#allocation4 + $0x70] sm:$0xf] %vm1348, %v5280
        %5367 = vst.msk [vmem:[#allocation4 + $0x7c] sm:$0xf] %vm1348, %v5282
        %5368 = vst.msk [vmem:[#allocation4 + $0x88] sm:$0xf] %vm1348, %v5284
        %5369 = vst.msk [vmem:[#allocation4 + $0x94] sm:$0xf] %vm1348, %v5286
        %5370 = vst.msk [vmem:[#allocation4 + $0xa0] sm:$0xf] %vm1348, %v5288
        %5371 = vst.msk [vmem:[#allocation4 + $0xac] sm:$0xf] %vm1348, %v5290
        %5372 = vst.msk [vmem:[#allocation4 + $0xb8] sm:$0xf] %vm1348, %v5292
        %5373 = vst.msk [vmem:[#allocation4 + $0xc4] sm:$0xf] %vm1348, %v5294
        %5374 = vst.msk [vmem:[#allocation4 + $0xd0] sm:$0xf] %vm1348, %v5296
        %5375 = vst.msk [vmem:[#allocation4 + $0xdc] sm:$0xf] %vm1348, %v5298
        %5376 = vst.msk [vmem:[#allocation4 + $0xe8] sm:$0xf] %vm1348, %v5300
        %5377 = vst.msk [vmem:[#allocation4 + $0xf4] sm:$0xf] %vm1348, %v5302
        %5378 = vst.msk [vmem:[#allocation4 + $0x100] sm:$0xf] %vm1348, %v5304
        %5379 = vst.msk [vmem:[#allocation4 + $0x10c] sm:$0xf] %vm1348, %v5306
        %5380 = vst.msk [vmem:[#allocation4 + $0x118] sm:$0xf] %vm1348, %v5308
        %5381 = vst.msk [vmem:[#allocation4 + $0x124] sm:$0xf] %vm1348, %v5310
        %5382 = vst.msk [vmem:[#allocation4 + $0x130] sm:$0xf] %vm1348, %v5312
        %5383 = vst.msk [vmem:[#allocation4 + $0x13c] sm:$0xf] %vm1348, %v5314
        %5384 = vst.msk [vmem:[#allocation4 + $0x148] sm:$0xf] %vm1348, %v5316
        %5385 = vst.msk [vmem:[#allocation4 + $0x154] sm:$0xf] %vm1348, %v5318
        %5386 = vst.msk [vmem:[#allocation4 + $0x160] sm:$0xf] %vm1348, %v5320
        %5387 = vst.msk [vmem:[#allocation4 + $0x16c] sm:$0xf] %vm1348, %v5322
        %5388 = vst.msk [vmem:[#allocation4 + $0x178] sm:$0xf] %vm1348, %v5324
        %v5389 = vld [vmem:[%s5132 + $0x1] sm:$0xff]
        %v5390 = vld [vmem:[%s5132 + $0x9] sm:$0xff]
        %v5391 = vld [vmem:[%s5132 + $0x19] sm:$0xff]
        %v5392 = vld [vmem:[%s5132 + $0x21] sm:$0xff]
        %v5393 = vld [vmem:[%s5132 + $0x31] sm:$0xff]
        %v5394 = vld [vmem:[%s5132 + $0x39] sm:$0xff]
        %v5395 = vld [vmem:[%s5132 + $0x49] sm:$0xff]
        %v5396 = vld [vmem:[%s5132 + $0x51] sm:$0xff]
        %v5397 = vld [vmem:[%s5132 + $0x61] sm:$0xff]
        %v5398 = vld [vmem:[%s5132 + $0x69] sm:$0xff]
        %v5399 = vld [vmem:[%s5132 + $0x79] sm:$0xff]
        %v5400 = vld [vmem:[%s5132 + $0x81] sm:$0xff]
        %v5401 = vld [vmem:[%s5132 + $0x91] sm:$0xff]
        %v5402 = vld [vmem:[%s5132 + $0x99] sm:$0xff]
        %v5403 = vld [vmem:[%s5132 + $0xa9] sm:$0xff]
        %v5404 = vld [vmem:[%s5132 + $0xb1] sm:$0xff]
        %v5405 = vld [vmem:[%s5132 + $0xc1] sm:$0xff]
        %v5406 = vld [vmem:[%s5132 + $0xc9] sm:$0xff]
        %v5407 = vld [vmem:[%s5132 + $0xd9] sm:$0xff]
        %v5408 = vld [vmem:[%s5132 + $0xe1] sm:$0xff]
        %v5409 = vld [vmem:[%s5132 + $0xf1] sm:$0xff]
        %v5410 = vld [vmem:[%s5132 + $0xf9] sm:$0xff]
        %v5411 = vld [vmem:[%s5132 + $0x109] sm:$0xff]
        %v5412 = vld [vmem:[%s5132 + $0x111] sm:$0xff]
        %v5413 = vld [vmem:[%s5132 + $0x121] sm:$0xff]
        %v5414 = vld [vmem:[%s5132 + $0x129] sm:$0xff]
        %v5415 = vld [vmem:[%s5132 + $0x139] sm:$0xff]
        %v5416 = vld [vmem:[%s5132 + $0x141] sm:$0xff]
        %v5417 = vld [vmem:[%s5132 + $0x151] sm:$0xff]
        %v5418 = vld [vmem:[%s5132 + $0x159] sm:$0xff]
        %v5419 = vld [vmem:[%s5132 + $0x169] sm:$0xff]
        %v5420 = vld [vmem:[%s5132 + $0x171] sm:$0xff]
        %v5421 = vpack.c.bf16 %v5390, %v5389
        %v5422 = vpack.c.bf16 %v5392, %v5391
        %v5423 = vpack.c.bf16 %v5394, %v5393
        %v5424 = vpack.c.bf16 %v5396, %v5395
        %v5425 = vpack.c.bf16 %v5398, %v5397
        %v5426 = vpack.c.bf16 %v5400, %v5399
        %v5427 = vpack.c.bf16 %v5402, %v5401
        %v5428 = vpack.c.bf16 %v5404, %v5403
        %v5429 = vpack.c.bf16 %v5406, %v5405
        %v5430 = vpack.c.bf16 %v5408, %v5407
        %v5431 = vpack.c.bf16 %v5410, %v5409
        %v5432 = vpack.c.bf16 %v5412, %v5411
        %v5433 = vpack.c.bf16 %v5414, %v5413
        %v5434 = vpack.c.bf16 %v5416, %v5415
        %v5435 = vpack.c.bf16 %v5418, %v5417
        %v5436 = vpack.c.bf16 %v5420, %v5419
        %v5453 = vunpack.c.l.b16 %v5421
        %v5454 = vunpack.c.h.b16 %v5421
        %v5455 = vunpack.c.l.b16 %v5422
        %v5456 = vunpack.c.h.b16 %v5422
        %v5457 = vunpack.c.l.b16 %v5423
        %v5458 = vunpack.c.h.b16 %v5423
        %v5459 = vunpack.c.l.b16 %v5424
        %v5460 = vunpack.c.h.b16 %v5424
        %v5461 = vunpack.c.l.b16 %v5425
        %v5462 = vunpack.c.h.b16 %v5425
        %v5463 = vunpack.c.l.b16 %v5426
        %v5464 = vunpack.c.h.b16 %v5426
        %v5465 = vunpack.c.l.b16 %v5427
        %v5466 = vunpack.c.h.b16 %v5427
        %v5467 = vunpack.c.l.b16 %v5428
        %v5468 = vunpack.c.h.b16 %v5428
        %v5469 = vunpack.c.l.b16 %v5429
        %v5470 = vunpack.c.h.b16 %v5429
        %v5471 = vunpack.c.l.b16 %v5430
        %v5472 = vunpack.c.h.b16 %v5430
        %v5473 = vunpack.c.l.b16 %v5431
        %v5474 = vunpack.c.h.b16 %v5431
        %v5475 = vunpack.c.l.b16 %v5432
        %v5476 = vunpack.c.h.b16 %v5432
        %v5477 = vunpack.c.l.b16 %v5433
        %v5478 = vunpack.c.h.b16 %v5433
        %v5479 = vunpack.c.l.b16 %v5434
        %v5480 = vunpack.c.h.b16 %v5434
        %v5481 = vunpack.c.l.b16 %v5435
        %v5482 = vunpack.c.h.b16 %v5435
        %v5483 = vunpack.c.l.b16 %v5436
        %v5484 = vunpack.c.h.b16 %v5436
        %v5485 = vpack.c.b16 %v5453, %v5453
        %v5486 = vpack.c.b16 %v5454, %v5454
        %v5487 = vpack.c.b16 %v5455, %v5455
        %v5488 = vpack.c.b16 %v5456, %v5456
        %v5489 = vpack.c.b16 %v5457, %v5457
        %v5490 = vpack.c.b16 %v5458, %v5458
        %v5491 = vpack.c.b16 %v5459, %v5459
        %v5492 = vpack.c.b16 %v5460, %v5460
        %v5493 = vpack.c.b16 %v5461, %v5461
        %v5494 = vpack.c.b16 %v5462, %v5462
        %v5495 = vpack.c.b16 %v5463, %v5463
        %v5496 = vpack.c.b16 %v5464, %v5464
        %v5497 = vpack.c.b16 %v5465, %v5465
        %v5498 = vpack.c.b16 %v5466, %v5466
        %v5499 = vpack.c.b16 %v5467, %v5467
        %v5500 = vpack.c.b16 %v5468, %v5468
        %v5501 = vpack.c.b16 %v5469, %v5469
        %v5502 = vpack.c.b16 %v5470, %v5470
        %v5503 = vpack.c.b16 %v5471, %v5471
        %v5504 = vpack.c.b16 %v5472, %v5472
        %v5505 = vpack.c.b16 %v5473, %v5473
        %v5506 = vpack.c.b16 %v5474, %v5474
        %v5507 = vpack.c.b16 %v5475, %v5475
        %v5508 = vpack.c.b16 %v5476, %v5476
        %v5509 = vpack.c.b16 %v5477, %v5477
        %v5510 = vpack.c.b16 %v5478, %v5478
        %v5511 = vpack.c.b16 %v5479, %v5479
        %v5512 = vpack.c.b16 %v5480, %v5480
        %v5513 = vpack.c.b16 %v5481, %v5481
        %v5514 = vpack.c.b16 %v5482, %v5482
        %v5515 = vpack.c.b16 %v5483, %v5483
        %v5516 = vpack.c.b16 %v5484, %v5484
        %5517 = vrot.lane.b32.xlu0 %v5485, 96
        %v5518 = vpop.permute.xlu0 %5517
        %5519 = vrot.lane.b32.xlu0 %v5486, 96
        %v5520 = vpop.permute.xlu0 %5519
        %5521 = vrot.lane.b32.xlu0 %v5487, 96
        %v5522 = vpop.permute.xlu0 %5521
        %5523 = vrot.lane.b32.xlu0 %v5488, 96
        %v5524 = vpop.permute.xlu0 %5523
        %5525 = vrot.lane.b32.xlu0 %v5489, 96
        %v5526 = vpop.permute.xlu0 %5525
        %5527 = vrot.lane.b32.xlu0 %v5490, 96
        %v5528 = vpop.permute.xlu0 %5527
        %5529 = vrot.lane.b32.xlu0 %v5491, 96
        %v5530 = vpop.permute.xlu0 %5529
        %5531 = vrot.lane.b32.xlu0 %v5492, 96
        %v5532 = vpop.permute.xlu0 %5531
        %5533 = vrot.lane.b32.xlu0 %v5493, 96
        %v5534 = vpop.permute.xlu0 %5533
        %5535 = vrot.lane.b32.xlu0 %v5494, 96
        %v5536 = vpop.permute.xlu0 %5535
        %5537 = vrot.lane.b32.xlu0 %v5495, 96
        %v5538 = vpop.permute.xlu0 %5537
        %5539 = vrot.lane.b32.xlu0 %v5496, 96
        %v5540 = vpop.permute.xlu0 %5539
        %5541 = vrot.lane.b32.xlu0 %v5497, 96
        %v5542 = vpop.permute.xlu0 %5541
        %5543 = vrot.lane.b32.xlu0 %v5498, 96
        %v5544 = vpop.permute.xlu0 %5543
        %5545 = vrot.lane.b32.xlu0 %v5499, 96
        %v5546 = vpop.permute.xlu0 %5545
        %5547 = vrot.lane.b32.xlu0 %v5500, 96
        %v5548 = vpop.permute.xlu0 %5547
        %5549 = vrot.lane.b32.xlu0 %v5501, 96
        %v5550 = vpop.permute.xlu0 %5549
        %5551 = vrot.lane.b32.xlu0 %v5502, 96
        %v5552 = vpop.permute.xlu0 %5551
        %5553 = vrot.lane.b32.xlu0 %v5503, 96
        %v5554 = vpop.permute.xlu0 %5553
        %5555 = vrot.lane.b32.xlu0 %v5504, 96
        %v5556 = vpop.permute.xlu0 %5555
        %5557 = vrot.lane.b32.xlu0 %v5505, 96
        %v5558 = vpop.permute.xlu0 %5557
        %5559 = vrot.lane.b32.xlu0 %v5506, 96
        %v5560 = vpop.permute.xlu0 %5559
        %5561 = vrot.lane.b32.xlu0 %v5507, 96
        %v5562 = vpop.permute.xlu0 %5561
        %5563 = vrot.lane.b32.xlu0 %v5508, 96
        %v5564 = vpop.permute.xlu0 %5563
        %5565 = vrot.lane.b32.xlu0 %v5509, 96
        %v5566 = vpop.permute.xlu0 %5565
        %5567 = vrot.lane.b32.xlu0 %v5510, 96
        %v5568 = vpop.permute.xlu0 %5567
        %5569 = vrot.lane.b32.xlu0 %v5511, 96
        %v5570 = vpop.permute.xlu0 %5569
        %5571 = vrot.lane.b32.xlu0 %v5512, 96
        %v5572 = vpop.permute.xlu0 %5571
        %5573 = vrot.lane.b32.xlu0 %v5513, 96
        %v5574 = vpop.permute.xlu0 %5573
        %5575 = vrot.lane.b32.xlu0 %v5514, 96
        %v5576 = vpop.permute.xlu0 %5575
        %5577 = vrot.lane.b32.xlu0 %v5515, 96
        %v5578 = vpop.permute.xlu0 %5577
        %5579 = vrot.lane.b32.xlu0 %v5516, 96
        %v5580 = vpop.permute.xlu0 %5579
        %5613 = vst.msk [vmem:[#allocation4 + $0x4] sm:$0xf] %vm1605, %v5518
        %5614 = vst.msk [vmem:[#allocation4 + $0x10] sm:$0xf] %vm1605, %v5520
        %5615 = vst.msk [vmem:[#allocation4 + $0x1c] sm:$0xf] %vm1605, %v5522
        %5616 = vst.msk [vmem:[#allocation4 + $0x28] sm:$0xf] %vm1605, %v5524
        %5617 = vst.msk [vmem:[#allocation4 + $0x34] sm:$0xf] %vm1605, %v5526
        %5618 = vst.msk [vmem:[#allocation4 + $0x40] sm:$0xf] %vm1605, %v5528
        %5619 = vst.msk [vmem:[#allocation4 + $0x4c] sm:$0xf] %vm1605, %v5530
        %5620 = vst.msk [vmem:[#allocation4 + $0x58] sm:$0xf] %vm1605, %v5532
        %5621 = vst.msk [vmem:[#allocation4 + $0x64] sm:$0xf] %vm1605, %v5534
        %5622 = vst.msk [vmem:[#allocation4 + $0x70] sm:$0xf] %vm1605, %v5536
        %5623 = vst.msk [vmem:[#allocation4 + $0x7c] sm:$0xf] %vm1605, %v5538
        %5624 = vst.msk [vmem:[#allocation4 + $0x88] sm:$0xf] %vm1605, %v5540
        %5625 = vst.msk [vmem:[#allocation4 + $0x94] sm:$0xf] %vm1605, %v5542
        %5626 = vst.msk [vmem:[#allocation4 + $0xa0] sm:$0xf] %vm1605, %v5544
        %5627 = vst.msk [vmem:[#allocation4 + $0xac] sm:$0xf] %vm1605, %v5546
        %5628 = vst.msk [vmem:[#allocation4 + $0xb8] sm:$0xf] %vm1605, %v5548
        %5629 = vst.msk [vmem:[#allocation4 + $0xc4] sm:$0xf] %vm1605, %v5550
        %5630 = vst.msk [vmem:[#allocation4 + $0xd0] sm:$0xf] %vm1605, %v5552
        %5631 = vst.msk [vmem:[#allocation4 + $0xdc] sm:$0xf] %vm1605, %v5554
        %5632 = vst.msk [vmem:[#allocation4 + $0xe8] sm:$0xf] %vm1605, %v5556
        %5633 = vst.msk [vmem:[#allocation4 + $0xf4] sm:$0xf] %vm1605, %v5558
        %5634 = vst.msk [vmem:[#allocation4 + $0x100] sm:$0xf] %vm1605, %v5560
        %5635 = vst.msk [vmem:[#allocation4 + $0x10c] sm:$0xf] %vm1605, %v5562
        %5636 = vst.msk [vmem:[#allocation4 + $0x118] sm:$0xf] %vm1605, %v5564
        %5637 = vst.msk [vmem:[#allocation4 + $0x124] sm:$0xf] %vm1605, %v5566
        %5638 = vst.msk [vmem:[#allocation4 + $0x130] sm:$0xf] %vm1605, %v5568
        %5639 = vst.msk [vmem:[#allocation4 + $0x13c] sm:$0xf] %vm1605, %v5570
        %5640 = vst.msk [vmem:[#allocation4 + $0x148] sm:$0xf] %vm1605, %v5572
        %5641 = vst.msk [vmem:[#allocation4 + $0x154] sm:$0xf] %vm1605, %v5574
        %5642 = vst.msk [vmem:[#allocation4 + $0x160] sm:$0xf] %vm1605, %v5576
        %5643 = vst.msk [vmem:[#allocation4 + $0x16c] sm:$0xf] %vm1605, %v5578
        %5644 = vst.msk [vmem:[#allocation4 + $0x178] sm:$0xf] %vm1605, %v5580
        %v5645 = vld [vmem:[%s5132 + $0x2] sm:$0xff]
        %v5646 = vld [vmem:[%s5132 + $0xa] sm:$0xff]
        %v5647 = vld [vmem:[%s5132 + $0x1a] sm:$0xff]
        %v5648 = vld [vmem:[%s5132 + $0x22] sm:$0xff]
        %v5649 = vld [vmem:[%s5132 + $0x32] sm:$0xff]
        %v5650 = vld [vmem:[%s5132 + $0x3a] sm:$0xff]
        %v5651 = vld [vmem:[%s5132 + $0x4a] sm:$0xff]
        %v5652 = vld [vmem:[%s5132 + $0x52] sm:$0xff]
        %v5653 = vld [vmem:[%s5132 + $0x62] sm:$0xff]
        %v5654 = vld [vmem:[%s5132 + $0x6a] sm:$0xff]
        %v5655 = vld [vmem:[%s5132 + $0x7a] sm:$0xff]
        %v5656 = vld [vmem:[%s5132 + $0x82] sm:$0xff]
        %v5657 = vld [vmem:[%s5132 + $0x92] sm:$0xff]
        %v5658 = vld [vmem:[%s5132 + $0x9a] sm:$0xff]
        %v5659 = vld [vmem:[%s5132 + $0xaa] sm:$0xff]
        %v5660 = vld [vmem:[%s5132 + $0xb2] sm:$0xff]
        %v5661 = vld [vmem:[%s5132 + $0xc2] sm:$0xff]
        %v5662 = vld [vmem:[%s5132 + $0xca] sm:$0xff]
        %v5663 = vld [vmem:[%s5132 + $0xda] sm:$0xff]
        %v5664 = vld [vmem:[%s5132 + $0xe2] sm:$0xff]
        %v5665 = vld [vmem:[%s5132 + $0xf2] sm:$0xff]
        %v5666 = vld [vmem:[%s5132 + $0xfa] sm:$0xff]
        %v5667 = vld [vmem:[%s5132 + $0x10a] sm:$0xff]
        %v5668 = vld [vmem:[%s5132 + $0x112] sm:$0xff]
        %v5669 = vld [vmem:[%s5132 + $0x122] sm:$0xff]
        %v5670 = vld [vmem:[%s5132 + $0x12a] sm:$0xff]
        %v5671 = vld [vmem:[%s5132 + $0x13a] sm:$0xff]
        %v5672 = vld [vmem:[%s5132 + $0x142] sm:$0xff]
        %v5673 = vld [vmem:[%s5132 + $0x152] sm:$0xff]
        %v5674 = vld [vmem:[%s5132 + $0x15a] sm:$0xff]
        %v5675 = vld [vmem:[%s5132 + $0x16a] sm:$0xff]
        %v5676 = vld [vmem:[%s5132 + $0x172] sm:$0xff]
        %v5677 = vpack.c.bf16 %v5646, %v5645
        %v5678 = vpack.c.bf16 %v5648, %v5647
        %v5679 = vpack.c.bf16 %v5650, %v5649
        %v5680 = vpack.c.bf16 %v5652, %v5651
        %v5681 = vpack.c.bf16 %v5654, %v5653
        %v5682 = vpack.c.bf16 %v5656, %v5655
        %v5683 = vpack.c.bf16 %v5658, %v5657
        %v5684 = vpack.c.bf16 %v5660, %v5659
        %v5685 = vpack.c.bf16 %v5662, %v5661
        %v5686 = vpack.c.bf16 %v5664, %v5663
        %v5687 = vpack.c.bf16 %v5666, %v5665
        %v5688 = vpack.c.bf16 %v5668, %v5667
        %v5689 = vpack.c.bf16 %v5670, %v5669
        %v5690 = vpack.c.bf16 %v5672, %v5671
        %v5691 = vpack.c.bf16 %v5674, %v5673
        %v5692 = vpack.c.bf16 %v5676, %v5675
        %v5709 = vunpack.c.l.b16 %v5677
        %v5710 = vunpack.c.h.b16 %v5677
        %v5711 = vunpack.c.l.b16 %v5678
        %v5712 = vunpack.c.h.b16 %v5678
        %v5713 = vunpack.c.l.b16 %v5679
        %v5714 = vunpack.c.h.b16 %v5679
        %v5715 = vunpack.c.l.b16 %v5680
        %v5716 = vunpack.c.h.b16 %v5680
        %v5717 = vunpack.c.l.b16 %v5681
        %v5718 = vunpack.c.h.b16 %v5681
        %v5719 = vunpack.c.l.b16 %v5682
        %v5720 = vunpack.c.h.b16 %v5682
        %v5721 = vunpack.c.l.b16 %v5683
        %v5722 = vunpack.c.h.b16 %v5683
        %v5723 = vunpack.c.l.b16 %v5684
        %v5724 = vunpack.c.h.b16 %v5684
        %v5725 = vunpack.c.l.b16 %v5685
        %v5726 = vunpack.c.h.b16 %v5685
        %v5727 = vunpack.c.l.b16 %v5686
        %v5728 = vunpack.c.h.b16 %v5686
        %v5729 = vunpack.c.l.b16 %v5687
        %v5730 = vunpack.c.h.b16 %v5687
        %v5731 = vunpack.c.l.b16 %v5688
        %v5732 = vunpack.c.h.b16 %v5688
        %v5733 = vunpack.c.l.b16 %v5689
        %v5734 = vunpack.c.h.b16 %v5689
        %v5735 = vunpack.c.l.b16 %v5690
        %v5736 = vunpack.c.h.b16 %v5690
        %v5737 = vunpack.c.l.b16 %v5691
        %v5738 = vunpack.c.h.b16 %v5691
        %v5739 = vunpack.c.l.b16 %v5692
        %v5740 = vunpack.c.h.b16 %v5692
        %v5741 = vpack.c.b16 %v5709, %v5709
        %v5742 = vpack.c.b16 %v5710, %v5710
        %v5743 = vpack.c.b16 %v5711, %v5711
        %v5744 = vpack.c.b16 %v5712, %v5712
        %v5745 = vpack.c.b16 %v5713, %v5713
        %v5746 = vpack.c.b16 %v5714, %v5714
        %v5747 = vpack.c.b16 %v5715, %v5715
        %v5748 = vpack.c.b16 %v5716, %v5716
        %v5749 = vpack.c.b16 %v5717, %v5717
        %v5750 = vpack.c.b16 %v5718, %v5718
        %v5751 = vpack.c.b16 %v5719, %v5719
        %v5752 = vpack.c.b16 %v5720, %v5720
        %v5753 = vpack.c.b16 %v5721, %v5721
        %v5754 = vpack.c.b16 %v5722, %v5722
        %v5755 = vpack.c.b16 %v5723, %v5723
        %v5756 = vpack.c.b16 %v5724, %v5724
        %v5757 = vpack.c.b16 %v5725, %v5725
        %v5758 = vpack.c.b16 %v5726, %v5726
        %v5759 = vpack.c.b16 %v5727, %v5727
        %v5760 = vpack.c.b16 %v5728, %v5728
        %v5761 = vpack.c.b16 %v5729, %v5729
        %v5762 = vpack.c.b16 %v5730, %v5730
        %v5763 = vpack.c.b16 %v5731, %v5731
        %v5764 = vpack.c.b16 %v5732, %v5732
        %v5765 = vpack.c.b16 %v5733, %v5733
        %v5766 = vpack.c.b16 %v5734, %v5734
        %v5767 = vpack.c.b16 %v5735, %v5735
        %v5768 = vpack.c.b16 %v5736, %v5736
        %v5769 = vpack.c.b16 %v5737, %v5737
        %v5770 = vpack.c.b16 %v5738, %v5738
        %v5771 = vpack.c.b16 %v5739, %v5739
        %v5772 = vpack.c.b16 %v5740, %v5740
        %5805 = vst.msk [vmem:[#allocation4 + $0x8] sm:$0xf] %vm834, %v5741
        %5806 = vst.msk [vmem:[#allocation4 + $0x14] sm:$0xf] %vm834, %v5742
        %5807 = vst.msk [vmem:[#allocation4 + $0x20] sm:$0xf] %vm834, %v5743
        %5808 = vst.msk [vmem:[#allocation4 + $0x2c] sm:$0xf] %vm834, %v5744
        %5809 = vst.msk [vmem:[#allocation4 + $0x38] sm:$0xf] %vm834, %v5745
        %5810 = vst.msk [vmem:[#allocation4 + $0x44] sm:$0xf] %vm834, %v5746
        %5811 = vst.msk [vmem:[#allocation4 + $0x50] sm:$0xf] %vm834, %v5747
        %5812 = vst.msk [vmem:[#allocation4 + $0x5c] sm:$0xf] %vm834, %v5748
        %5813 = vst.msk [vmem:[#allocation4 + $0x68] sm:$0xf] %vm834, %v5749
        %5814 = vst.msk [vmem:[#allocation4 + $0x74] sm:$0xf] %vm834, %v5750
        %5815 = vst.msk [vmem:[#allocation4 + $0x80] sm:$0xf] %vm834, %v5751
        %5816 = vst.msk [vmem:[#allocation4 + $0x8c] sm:$0xf] %vm834, %v5752
        %5817 = vst.msk [vmem:[#allocation4 + $0x98] sm:$0xf] %vm834, %v5753
        %5818 = vst.msk [vmem:[#allocation4 + $0xa4] sm:$0xf] %vm834, %v5754
        %5819 = vst.msk [vmem:[#allocation4 + $0xb0] sm:$0xf] %vm834, %v5755
        %5820 = vst.msk [vmem:[#allocation4 + $0xbc] sm:$0xf] %vm834, %v5756
        %5821 = vst.msk [vmem:[#allocation4 + $0xc8] sm:$0xf] %vm834, %v5757
        %5822 = vst.msk [vmem:[#allocation4 + $0xd4] sm:$0xf] %vm834, %v5758
        %5823 = vst.msk [vmem:[#allocation4 + $0xe0] sm:$0xf] %vm834, %v5759
        %5824 = vst.msk [vmem:[#allocation4 + $0xec] sm:$0xf] %vm834, %v5760
        %5825 = vst.msk [vmem:[#allocation4 + $0xf8] sm:$0xf] %vm834, %v5761
        %5826 = vst.msk [vmem:[#allocation4 + $0x104] sm:$0xf] %vm834, %v5762
        %5827 = vst.msk [vmem:[#allocation4 + $0x110] sm:$0xf] %vm834, %v5763
        %5828 = vst.msk [vmem:[#allocation4 + $0x11c] sm:$0xf] %vm834, %v5764
        %5829 = vst.msk [vmem:[#allocation4 + $0x128] sm:$0xf] %vm834, %v5765
        %5830 = vst.msk [vmem:[#allocation4 + $0x134] sm:$0xf] %vm834, %v5766
        %5831 = vst.msk [vmem:[#allocation4 + $0x140] sm:$0xf] %vm834, %v5767
        %5832 = vst.msk [vmem:[#allocation4 + $0x14c] sm:$0xf] %vm834, %v5768
        %5833 = vst.msk [vmem:[#allocation4 + $0x158] sm:$0xf] %vm834, %v5769
        %5834 = vst.msk [vmem:[#allocation4 + $0x164] sm:$0xf] %vm834, %v5770
        %5835 = vst.msk [vmem:[#allocation4 + $0x170] sm:$0xf] %vm834, %v5771
        %5836 = vst.msk [vmem:[#allocation4 + $0x17c] sm:$0xf] %vm834, %v5772
        %v5837 = vld [vmem:[#allocation4] sm:$0xff]
        %v5838 = vld [vmem:[#allocation4 + $0x8] sm:$0xf]
        %v5839 = vld [vmem:[#allocation4 + $0xc] sm:$0xff]
        %v5840 = vld [vmem:[#allocation4 + $0x14] sm:$0xf]
        %v5841 = vld [vmem:[#allocation4 + $0x18] sm:$0xff]
        %v5842 = vld [vmem:[#allocation4 + $0x20] sm:$0xf]
        %v5843 = vld [vmem:[#allocation4 + $0x24] sm:$0xff]
        %v5844 = vld [vmem:[#allocation4 + $0x2c] sm:$0xf]
        %v5845 = vld [vmem:[#allocation4 + $0x30] sm:$0xff]
        %v5846 = vld [vmem:[#allocation4 + $0x38] sm:$0xf]
        %v5847 = vld [vmem:[#allocation4 + $0x3c] sm:$0xff]
        %v5848 = vld [vmem:[#allocation4 + $0x44] sm:$0xf]
        %v5849 = vld [vmem:[#allocation4 + $0x48] sm:$0xff]
        %v5850 = vld [vmem:[#allocation4 + $0x50] sm:$0xf]
        %v5851 = vld [vmem:[#allocation4 + $0x54] sm:$0xff]
        %v5852 = vld [vmem:[#allocation4 + $0x5c] sm:$0xf]
        %v5853 = vld [vmem:[#allocation4 + $0x60] sm:$0xff]
        %v5854 = vld [vmem:[#allocation4 + $0x68] sm:$0xf]
        %v5855 = vld [vmem:[#allocation4 + $0x6c] sm:$0xff]
        %v5856 = vld [vmem:[#allocation4 + $0x74] sm:$0xf]
        %v5857 = vld [vmem:[#allocation4 + $0x78] sm:$0xff]
        %v5858 = vld [vmem:[#allocation4 + $0x80] sm:$0xf]
        %v5859 = vld [vmem:[#allocation4 + $0x84] sm:$0xff]
        %v5860 = vld [vmem:[#allocation4 + $0x8c] sm:$0xf]
        %v5861 = vld [vmem:[#allocation4 + $0x90] sm:$0xff]
        %v5862 = vld [vmem:[#allocation4 + $0x98] sm:$0xf]
        %v5863 = vld [vmem:[#allocation4 + $0x9c] sm:$0xff]
        %v5864 = vld [vmem:[#allocation4 + $0xa4] sm:$0xf]
        %v5865 = vld [vmem:[#allocation4 + $0xa8] sm:$0xff]
        %v5866 = vld [vmem:[#allocation4 + $0xb0] sm:$0xf]
        %v5867 = vld [vmem:[#allocation4 + $0xb4] sm:$0xff]
        %v5868 = vld [vmem:[#allocation4 + $0xbc] sm:$0xf]
        %v5869 = vld [vmem:[#allocation4 + $0xc0] sm:$0xff]
        %v5870 = vld [vmem:[#allocation4 + $0xc8] sm:$0xf]
        %v5871 = vld [vmem:[#allocation4 + $0xcc] sm:$0xff]
        %v5872 = vld [vmem:[#allocation4 + $0xd4] sm:$0xf]
        %v5873 = vld [vmem:[#allocation4 + $0xd8] sm:$0xff]
        %v5874 = vld [vmem:[#allocation4 + $0xe0] sm:$0xf]
        %v5875 = vld [vmem:[#allocation4 + $0xe4] sm:$0xff]
        %v5876 = vld [vmem:[#allocation4 + $0xec] sm:$0xf]
        %v5877 = vld [vmem:[#allocation4 + $0xf0] sm:$0xff]
        %v5878 = vld [vmem:[#allocation4 + $0xf8] sm:$0xf]
        %v5879 = vld [vmem:[#allocation4 + $0xfc] sm:$0xff]
        %v5880 = vld [vmem:[#allocation4 + $0x104] sm:$0xf]
        %v5881 = vld [vmem:[#allocation4 + $0x108] sm:$0xff]
        %v5882 = vld [vmem:[#allocation4 + $0x110] sm:$0xf]
        %v5883 = vld [vmem:[#allocation4 + $0x114] sm:$0xff]
        %v5884 = vld [vmem:[#allocation4 + $0x11c] sm:$0xf]
        %v5885 = vld [vmem:[#allocation4 + $0x120] sm:$0xff]
        %v5886 = vld [vmem:[#allocation4 + $0x128] sm:$0xf]
        %v5887 = vld [vmem:[#allocation4 + $0x12c] sm:$0xff]
        %v5888 = vld [vmem:[#allocation4 + $0x134] sm:$0xf]
        %v5889 = vld [vmem:[#allocation4 + $0x138] sm:$0xff]
        %v5890 = vld [vmem:[#allocation4 + $0x140] sm:$0xf]
        %v5891 = vld [vmem:[#allocation4 + $0x144] sm:$0xff]
        %v5892 = vld [vmem:[#allocation4 + $0x14c] sm:$0xf]
        %v5893 = vld [vmem:[#allocation4 + $0x150] sm:$0xff]
        %v5894 = vld [vmem:[#allocation4 + $0x158] sm:$0xf]
        %v5895 = vld [vmem:[#allocation4 + $0x15c] sm:$0xff]
        %v5896 = vld [vmem:[#allocation4 + $0x164] sm:$0xf]
        %v5897 = vld [vmem:[#allocation4 + $0x168] sm:$0xff]
        %v5898 = vld [vmem:[#allocation4 + $0x170] sm:$0xf]
        %v5899 = vld [vmem:[#allocation4 + $0x174] sm:$0xff]
        %v5900 = vld [vmem:[#allocation4 + $0x17c] sm:$0xf]
        %v5901 = vld [vmem:[%s5] sm:$0xf]
        %v5902 = vld [vmem:[%s5 + $0x4] sm:$0xf]
        %v5903 = vld [vmem:[%s5 + $0x8] sm:$0xf]
        %v5904 = vld [vmem:[%s5 + $0xc] sm:$0xf]
        %v5905 = vld [vmem:[%s5 + $0x10] sm:$0xf]
        %v5906 = vld [vmem:[%s5 + $0x14] sm:$0xf]
        %v5907 = vld [vmem:[%s5 + $0x18] sm:$0xf]
        %v5908 = vld [vmem:[%s5 + $0x1c] sm:$0xf]
        %v5909 = vld [vmem:[%s5 + $0x20] sm:$0xf]
        %v5910 = vld [vmem:[%s5 + $0x24] sm:$0xf]
        %v5911 = vld [vmem:[%s5 + $0x28] sm:$0xf]
        %v5912 = vld [vmem:[%s5 + $0x2c] sm:$0xf]
        %v5913 = vld [vmem:[%s5 + $0x30] sm:$0xf]
        %v5914 = vld [vmem:[%s5 + $0x34] sm:$0xf]
        %v5915 = vld [vmem:[%s5 + $0x38] sm:$0xf]
        %v5916 = vld [vmem:[%s5 + $0x3c] sm:$0xf]
        %v5917 = vld [vmem:[%s5 + $0x40] sm:$0xf]
        %v5918 = vld [vmem:[%s5 + $0x44] sm:$0xf]
        %v5919 = vld [vmem:[%s5 + $0x48] sm:$0xf]
        %v5920 = vld [vmem:[%s5 + $0x4c] sm:$0xf]
        %v5921 = vld [vmem:[%s5 + $0x50] sm:$0xf]
        %v5922 = vld [vmem:[%s5 + $0x54] sm:$0xf]
        %v5923 = vld [vmem:[%s5 + $0x58] sm:$0xf]
        %v5924 = vld [vmem:[%s5 + $0x5c] sm:$0xf]
        %v5925 = vld [vmem:[%s5 + $0x60] sm:$0xf]
        %v5926 = vld [vmem:[%s5 + $0x64] sm:$0xf]
        %v5927 = vld [vmem:[%s5 + $0x68] sm:$0xf]
        %v5928 = vld [vmem:[%s5 + $0x6c] sm:$0xf]
        %v5929 = vld [vmem:[%s5 + $0x70] sm:$0xf]
        %v5930 = vld [vmem:[%s5 + $0x74] sm:$0xf]
        %v5931 = vld [vmem:[%s5 + $0x78] sm:$0xf]
        %v5932 = vld [vmem:[%s5 + $0x7c] sm:$0xf]
        %v5933 = vld [vmem:[%s5 + $0x80] sm:$0xf]
        %v5934 = vld [vmem:[%s5 + $0x84] sm:$0xf]
        %v5935 = vld [vmem:[%s5 + $0x88] sm:$0xf]
        %v5936 = vld [vmem:[%s5 + $0x8c] sm:$0xf]
        %v6001 = vunpack.c.l.b16 %v5837
        %v6002 = vunpack.c.h.b16 %v5837
        %v6003 = vunpack.c.l.b16 %v5838
        %v6004 = vunpack.c.l.b16 %v5839
        %v6005 = vunpack.c.h.b16 %v5839
        %v6006 = vunpack.c.l.b16 %v5840
        %v6007 = vunpack.c.l.b16 %v5841
        %v6008 = vunpack.c.h.b16 %v5841
        %v6009 = vunpack.c.l.b16 %v5842
        %v6010 = vunpack.c.l.b16 %v5843
        %v6011 = vunpack.c.h.b16 %v5843
        %v6012 = vunpack.c.l.b16 %v5844
        %v6013 = vunpack.c.l.b16 %v5845
        %v6014 = vunpack.c.h.b16 %v5845
        %v6015 = vunpack.c.l.b16 %v5846
        %v6016 = vunpack.c.l.b16 %v5847
        %v6017 = vunpack.c.h.b16 %v5847
        %v6018 = vunpack.c.l.b16 %v5848
        %v6019 = vunpack.c.l.b16 %v5849
        %v6020 = vunpack.c.h.b16 %v5849
        %v6021 = vunpack.c.l.b16 %v5850
        %v6022 = vunpack.c.l.b16 %v5851
        %v6023 = vunpack.c.h.b16 %v5851
        %v6024 = vunpack.c.l.b16 %v5852
        %v6025 = vunpack.c.l.b16 %v5853
        %v6026 = vunpack.c.h.b16 %v5853
        %v6027 = vunpack.c.l.b16 %v5854
        %v6028 = vunpack.c.l.b16 %v5855
        %v6029 = vunpack.c.h.b16 %v5855
        %v6030 = vunpack.c.l.b16 %v5856
        %v6031 = vunpack.c.l.b16 %v5857
        %v6032 = vunpack.c.h.b16 %v5857
        %v6033 = vunpack.c.l.b16 %v5858
        %v6034 = vunpack.c.l.b16 %v5859
        %v6035 = vunpack.c.h.b16 %v5859
        %v6036 = vunpack.c.l.b16 %v5860
        %v6037 = vunpack.c.l.b16 %v5861
        %v6038 = vunpack.c.h.b16 %v5861
        %v6039 = vunpack.c.l.b16 %v5862
        %v6040 = vunpack.c.l.b16 %v5863
        %v6041 = vunpack.c.h.b16 %v5863
        %v6042 = vunpack.c.l.b16 %v5864
        %v6043 = vunpack.c.l.b16 %v5865
        %v6044 = vunpack.c.h.b16 %v5865
        %v6045 = vunpack.c.l.b16 %v5866
        %v6046 = vunpack.c.l.b16 %v5867
        %v6047 = vunpack.c.h.b16 %v5867
        %v6048 = vunpack.c.l.b16 %v5868
        %v6049 = vunpack.c.l.b16 %v5869
        %v6050 = vunpack.c.h.b16 %v5869
        %v6051 = vunpack.c.l.b16 %v5870
        %v6052 = vunpack.c.l.b16 %v5871
        %v6053 = vunpack.c.h.b16 %v5871
        %v6054 = vunpack.c.l.b16 %v5872
        %v6055 = vunpack.c.l.b16 %v5873
        %v6056 = vunpack.c.h.b16 %v5873
        %v6057 = vunpack.c.l.b16 %v5874
        %v6058 = vunpack.c.l.b16 %v5875
        %v6059 = vunpack.c.h.b16 %v5875
        %v6060 = vunpack.c.l.b16 %v5876
        %v6061 = vunpack.c.l.b16 %v5877
        %v6062 = vunpack.c.h.b16 %v5877
        %v6063 = vunpack.c.l.b16 %v5878
        %v6064 = vunpack.c.l.b16 %v5879
        %v6065 = vunpack.c.h.b16 %v5879
        %v6066 = vunpack.c.l.b16 %v5880
        %v6067 = vunpack.c.l.b16 %v5881
        %v6068 = vunpack.c.h.b16 %v5881
        %v6069 = vunpack.c.l.b16 %v5882
        %v6070 = vunpack.c.l.b16 %v5883
        %v6071 = vunpack.c.h.b16 %v5883
        %v6072 = vunpack.c.l.b16 %v5884
        %v6073 = vunpack.c.l.b16 %v5885
        %v6074 = vunpack.c.h.b16 %v5885
        %v6075 = vunpack.c.l.b16 %v5886
        %v6076 = vunpack.c.l.b16 %v5887
        %v6077 = vunpack.c.h.b16 %v5887
        %v6078 = vunpack.c.l.b16 %v5888
        %v6079 = vunpack.c.l.b16 %v5889
        %v6080 = vunpack.c.h.b16 %v5889
        %v6081 = vunpack.c.l.b16 %v5890
        %v6082 = vunpack.c.l.b16 %v5891
        %v6083 = vunpack.c.h.b16 %v5891
        %v6084 = vunpack.c.l.b16 %v5892
        %v6085 = vunpack.c.l.b16 %v5893
        %v6086 = vunpack.c.h.b16 %v5893
        %v6087 = vunpack.c.l.b16 %v5894
        %v6088 = vunpack.c.l.b16 %v5895
        %v6089 = vunpack.c.h.b16 %v5895
        %v6090 = vunpack.c.l.b16 %v5896
        %v6091 = vunpack.c.l.b16 %v5897
        %v6092 = vunpack.c.h.b16 %v5897
        %v6093 = vunpack.c.l.b16 %v5898
        %v6094 = vunpack.c.l.b16 %v5899
        %v6095 = vunpack.c.h.b16 %v5899
        %v6096 = vunpack.c.l.b16 %v5900
        %v6097 = vpack.c.b16 %v6004, %v6001
        %v6098 = vpack.c.b16 %v6005, %v6002
        %v6099 = vpack.c.b16 %v6006, %v6003
        %v6100 = vpack.c.b16 %v6010, %v6007
        %v6101 = vpack.c.b16 %v6011, %v6008
        %v6102 = vpack.c.b16 %v6012, %v6009
        %v6103 = vpack.c.b16 %v6016, %v6013
        %v6104 = vpack.c.b16 %v6017, %v6014
        %v6105 = vpack.c.b16 %v6018, %v6015
        %v6106 = vpack.c.b16 %v6022, %v6019
        %v6107 = vpack.c.b16 %v6023, %v6020
        %v6108 = vpack.c.b16 %v6024, %v6021
        %v6109 = vpack.c.b16 %v6028, %v6025
        %v6110 = vpack.c.b16 %v6029, %v6026
        %v6111 = vpack.c.b16 %v6030, %v6027
        %v6112 = vpack.c.b16 %v6034, %v6031
        %v6113 = vpack.c.b16 %v6035, %v6032
        %v6114 = vpack.c.b16 %v6036, %v6033
        %v6115 = vpack.c.b16 %v6040, %v6037
        %v6116 = vpack.c.b16 %v6041, %v6038
        %v6117 = vpack.c.b16 %v6042, %v6039
        %v6118 = vpack.c.b16 %v6046, %v6043
        %v6119 = vpack.c.b16 %v6047, %v6044
        %v6120 = vpack.c.b16 %v6048, %v6045
        %v6121 = vpack.c.b16 %v6052, %v6049
        %v6122 = vpack.c.b16 %v6053, %v6050
        %v6123 = vpack.c.b16 %v6054, %v6051
        %v6124 = vpack.c.b16 %v6058, %v6055
        %v6125 = vpack.c.b16 %v6059, %v6056
        %v6126 = vpack.c.b16 %v6060, %v6057
        %v6127 = vpack.c.b16 %v6064, %v6061
        %v6128 = vpack.c.b16 %v6065, %v6062
        %v6129 = vpack.c.b16 %v6066, %v6063
        %v6130 = vpack.c.b16 %v6070, %v6067
        %v6131 = vpack.c.b16 %v6071, %v6068
        %v6132 = vpack.c.b16 %v6072, %v6069
        %v6133 = vpack.c.b16 %v6076, %v6073
        %v6134 = vpack.c.b16 %v6077, %v6074
        %v6135 = vpack.c.b16 %v6078, %v6075
        %v6136 = vpack.c.b16 %v6082, %v6079
        %v6137 = vpack.c.b16 %v6083, %v6080
        %v6138 = vpack.c.b16 %v6084, %v6081
        %v6139 = vpack.c.b16 %v6088, %v6085
        %v6140 = vpack.c.b16 %v6089, %v6086
        %v6141 = vpack.c.b16 %v6090, %v6087
        %v6142 = vpack.c.b16 %v6094, %v6091
        %v6143 = vpack.c.b16 %v6095, %v6092
        %v6144 = vpack.c.b16 %v6096, %v6093
        %v6213 = vunpack.c.l.b16 %v5901
        %v6214 = vunpack.c.l.b16 %v5902
        %v6215 = vunpack.c.l.b16 %v5903
        %v6216 = vunpack.c.l.b16 %v5904
        %v6217 = vunpack.c.l.b16 %v5905
        %v6218 = vunpack.c.l.b16 %v5906
        %v6219 = vunpack.c.l.b16 %v5907
        %v6220 = vunpack.c.l.b16 %v5908
        %v6221 = vunpack.c.l.b16 %v5909
        %v6222 = vunpack.c.l.b16 %v5910
        %v6223 = vunpack.c.l.b16 %v5911
        %v6224 = vunpack.c.l.b16 %v5912
        %v6225 = vunpack.c.l.b16 %v5913
        %v6226 = vunpack.c.l.b16 %v5914
        %v6227 = vunpack.c.l.b16 %v5915
        %v6228 = vunpack.c.l.b16 %v5916
        %v6229 = vunpack.c.l.b16 %v5917
        %v6230 = vunpack.c.l.b16 %v5918
        %v6231 = vunpack.c.l.b16 %v5919
        %v6232 = vunpack.c.l.b16 %v5920
        %v6233 = vunpack.c.l.b16 %v5921
        %v6234 = vunpack.c.l.b16 %v5922
        %v6235 = vunpack.c.l.b16 %v5923
        %v6236 = vunpack.c.l.b16 %v5924
        %v6237 = vunpack.c.l.b16 %v5925
        %v6238 = vunpack.c.l.b16 %v5926
        %v6239 = vunpack.c.l.b16 %v5927
        %v6240 = vunpack.c.l.b16 %v5928
        %v6241 = vunpack.c.l.b16 %v5929
        %v6242 = vunpack.c.l.b16 %v5930
        %v6243 = vunpack.c.l.b16 %v5931
        %v6244 = vunpack.c.l.b16 %v5932
        %v6245 = vunpack.c.l.b16 %v5933
        %v6246 = vunpack.c.l.b16 %v5934
        %v6247 = vunpack.c.l.b16 %v5935
        %v6248 = vunpack.c.l.b16 %v5936
        %v6249 = vpack.c.b16 %v6214, %v6213
        %v6250 = vpack.c.b16 %v6216, %v6215
        %v6251 = vpack.c.b16 %v6218, %v6217
        %v6252 = vpack.c.b16 %v6220, %v6219
        %v6253 = vpack.c.b16 %v6222, %v6221
        %v6254 = vpack.c.b16 %v6224, %v6223
        %v6255 = vpack.c.b16 %v6226, %v6225
        %v6256 = vpack.c.b16 %v6228, %v6227
        %v6257 = vpack.c.b16 %v6230, %v6229
        %v6258 = vpack.c.b16 %v6232, %v6231
        %v6259 = vpack.c.b16 %v6234, %v6233
        %v6260 = vpack.c.b16 %v6236, %v6235
        %v6261 = vpack.c.b16 %v6238, %v6237
        %v6262 = vpack.c.b16 %v6240, %v6239
        %v6263 = vpack.c.b16 %v6242, %v6241
        %v6264 = vpack.c.b16 %v6244, %v6243
        %v6265 = vpack.c.b16 %v6246, %v6245
        %v6266 = vpack.c.b16 %v6248, %v6247
        %v6286 = vsel %vm386, %v6099, 0
        %v6289 = vsel %vm386, %v6102, 0
        %v6292 = vsel %vm386, %v6105, 0
        %v6295 = vsel %vm386, %v6108, 0
        %v6298 = vsel %vm386, %v6111, 0
        %v6301 = vsel %vm386, %v6114, 0
        %v6304 = vsel %vm386, %v6117, 0
        %v6307 = vsel %vm386, %v6120, 0
        %v6310 = vsel %vm386, %v6123, 0
        %v6313 = vsel %vm386, %v6126, 0
        %v6316 = vsel %vm386, %v6129, 0
        %v6319 = vsel %vm386, %v6132, 0
        %v6322 = vsel %vm386, %v6135, 0
        %v6325 = vsel %vm386, %v6138, 0
        %v6328 = vsel %vm386, %v6141, 0
        %v6331 = vsel %vm386, %v6144, 0
        %6333 = vmatprep.subr.bf16.mxu0 0
        %6334 = vmatpush1.bf16.msra.mxu0 %v6256
        %6335 = vmatprep.subr.bf16.mxu0 0
        %6336 = vmatpush1.bf16.msra.mxu0 %v6255
        %6337 = vmatprep.subr.bf16.mxu0 0
        %6338 = vmatpush1.bf16.msra.mxu0 %v6254
        %6339 = vmatprep.subr.bf16.mxu0 0
        %6340 = vmatpush1.bf16.msra.mxu0 %v6253
        %6341 = vmatprep.subr.bf16.mxu0 0
        %6342 = vmatpush1.bf16.msra.mxu0 %v6252
        %6343 = vmatprep.subr.bf16.mxu0 0
        %6344 = vmatpush1.bf16.msra.mxu0 %v6251
        %6345 = vmatprep.subr.bf16.mxu0 0
        %6346 = vmatpush1.bf16.msra.mxu0 %v6250
        %6347 = vmatprep.subr.bf16.mxu0 0
        %6348 = vmatpush1.bf16.msra.mxu0 %v6249
        %6349 = vmatprep.subr.bf16.mxu0 0
        %6350 = vmatpush2.bf16.msra.mxu0 %v6264
        %6351 = vmatprep.subr.bf16.mxu0 0
        %6352 = vmatpush2.bf16.msra.mxu0 %v6263
        %6353 = vmatprep.subr.bf16.mxu0 0
        %6354 = vmatpush2.bf16.msra.mxu0 %v6262
        %6355 = vmatprep.subr.bf16.mxu0 0
        %6356 = vmatpush2.bf16.msra.mxu0 %v6261
        %6357 = vmatprep.subr.bf16.mxu0 0
        %6358 = vmatpush2.bf16.msra.mxu0 %v6260
        %6359 = vmatprep.subr.bf16.mxu0 0
        %6360 = vmatpush2.bf16.msra.mxu0 %v6259
        %6361 = vmatprep.subr.bf16.mxu0 0
        %6362 = vmatpush2.bf16.msra.mxu0 %v6258
        %6363 = vmatprep.subr.bf16.mxu0 0
        %6364 = vmatpush2.bf16.msra.mxu0 %v6257
        %6365 = vmatprep.mubr.bf16.mxu0 %v6098
        %6366 = vmatmul.mubr.bf16.gmra.mxu0 %v6097
        %v6367 = vpop.f32.mrf.mxu0
        %v6368 = vadd.f32 0.0, %v6367
        %v6369 = vpop.f32.mrf.mxu0
        %v6370 = vpop.f32.mrf.mxu0
        %v6371 = vadd.f32 0.0, %v6370
        %v6372 = vpop.f32.mrf.mxu0
        %6373 = vmatprep.mubr.bf16.mxu0 %v6101
        %6374 = vmatmul.mubr.bf16.gmra.mxu0 %v6100
        %v6375 = vpop.f32.mrf.mxu0
        %v6376 = vadd.f32 0.0, %v6375
        %v6377 = vpop.f32.mrf.mxu0
        %v6378 = vpop.f32.mrf.mxu0
        %v6379 = vadd.f32 0.0, %v6378
        %v6380 = vpop.f32.mrf.mxu0
        %6381 = vmatprep.mubr.bf16.mxu0 %v6104
        %6382 = vmatmul.mubr.bf16.gmra.mxu0 %v6103
        %v6383 = vpop.f32.mrf.mxu0
        %v6384 = vadd.f32 0.0, %v6383
        %v6385 = vpop.f32.mrf.mxu0
        %v6386 = vpop.f32.mrf.mxu0
        %v6387 = vadd.f32 0.0, %v6386
        %v6388 = vpop.f32.mrf.mxu0
        %6389 = vmatprep.mubr.bf16.mxu0 %v6107
        %6390 = vmatmul.mubr.bf16.gmra.mxu0 %v6106
        %v6391 = vpop.f32.mrf.mxu0
        %v6392 = vadd.f32 0.0, %v6391
        %v6393 = vpop.f32.mrf.mxu0
        %v6394 = vpop.f32.mrf.mxu0
        %v6395 = vadd.f32 0.0, %v6394
        %v6396 = vpop.f32.mrf.mxu0
        %6397 = vmatprep.mubr.bf16.mxu0 %v6110
        %6398 = vmatmul.mubr.bf16.gmra.mxu0 %v6109
        %v6399 = vpop.f32.mrf.mxu0
        %v6400 = vadd.f32 0.0, %v6399
        %v6401 = vpop.f32.mrf.mxu0
        %v6402 = vpop.f32.mrf.mxu0
        %v6403 = vadd.f32 0.0, %v6402
        %v6404 = vpop.f32.mrf.mxu0
        %6405 = vmatprep.mubr.bf16.mxu0 %v6113
        %6406 = vmatmul.mubr.bf16.gmra.mxu0 %v6112
        %v6407 = vpop.f32.mrf.mxu0
        %v6408 = vadd.f32 0.0, %v6407
        %v6409 = vpop.f32.mrf.mxu0
        %v6410 = vpop.f32.mrf.mxu0
        %v6411 = vadd.f32 0.0, %v6410
        %v6412 = vpop.f32.mrf.mxu0
        %6413 = vmatprep.mubr.bf16.mxu0 %v6116
        %6414 = vmatmul.mubr.bf16.gmra.mxu0 %v6115
        %v6415 = vpop.f32.mrf.mxu0
        %v6416 = vadd.f32 0.0, %v6415
        %v6417 = vpop.f32.mrf.mxu0
        %v6418 = vpop.f32.mrf.mxu0
        %v6419 = vadd.f32 0.0, %v6418
        %v6420 = vpop.f32.mrf.mxu0
        %6421 = vmatprep.mubr.bf16.mxu0 %v6119
        %6422 = vmatmul.mubr.bf16.gmra.mxu0 %v6118
        %v6423 = vpop.f32.mrf.mxu0
        %v6424 = vadd.f32 0.0, %v6423
        %v6425 = vpop.f32.mrf.mxu0
        %v6426 = vpop.f32.mrf.mxu0
        %v6427 = vadd.f32 0.0, %v6426
        %v6428 = vpop.f32.mrf.mxu0
        %6429 = vmatprep.mubr.bf16.mxu0 %v6122
        %6430 = vmatmul.mubr.bf16.gmra.mxu0 %v6121
        %v6431 = vpop.f32.mrf.mxu0
        %v6432 = vadd.f32 0.0, %v6431
        %v6433 = vpop.f32.mrf.mxu0
        %v6434 = vpop.f32.mrf.mxu0
        %v6435 = vadd.f32 0.0, %v6434
        %v6436 = vpop.f32.mrf.mxu0
        %6437 = vmatprep.mubr.bf16.mxu0 %v6125
        %6438 = vmatmul.mubr.bf16.gmra.mxu0 %v6124
        %v6439 = vpop.f32.mrf.mxu0
        %v6440 = vadd.f32 0.0, %v6439
        %v6441 = vpop.f32.mrf.mxu0
        %v6442 = vpop.f32.mrf.mxu0
        %v6443 = vadd.f32 0.0, %v6442
        %v6444 = vpop.f32.mrf.mxu0
        %6445 = vmatprep.mubr.bf16.mxu0 %v6128
        %6446 = vmatmul.mubr.bf16.gmra.mxu0 %v6127
        %v6447 = vpop.f32.mrf.mxu0
        %v6448 = vadd.f32 0.0, %v6447
        %v6449 = vpop.f32.mrf.mxu0
        %v6450 = vpop.f32.mrf.mxu0
        %v6451 = vadd.f32 0.0, %v6450
        %v6452 = vpop.f32.mrf.mxu0
        %6453 = vmatprep.mubr.bf16.mxu0 %v6131
        %6454 = vmatmul.mubr.bf16.gmra.mxu0 %v6130
        %v6455 = vpop.f32.mrf.mxu0
        %v6456 = vadd.f32 0.0, %v6455
        %v6457 = vpop.f32.mrf.mxu0
        %v6458 = vpop.f32.mrf.mxu0
        %v6459 = vadd.f32 0.0, %v6458
        %v6460 = vpop.f32.mrf.mxu0
        %6461 = vmatprep.mubr.bf16.mxu0 %v6134
        %6462 = vmatmul.mubr.bf16.gmra.mxu0 %v6133
        %v6463 = vpop.f32.mrf.mxu0
        %v6464 = vadd.f32 0.0, %v6463
        %v6465 = vpop.f32.mrf.mxu0
        %v6466 = vpop.f32.mrf.mxu0
        %v6467 = vadd.f32 0.0, %v6466
        %v6468 = vpop.f32.mrf.mxu0
        %6469 = vmatprep.mubr.bf16.mxu0 %v6137
        %6470 = vmatmul.mubr.bf16.gmra.mxu0 %v6136
        %v6471 = vpop.f32.mrf.mxu0
        %v6472 = vadd.f32 0.0, %v6471
        %v6473 = vpop.f32.mrf.mxu0
        %v6474 = vpop.f32.mrf.mxu0
        %v6475 = vadd.f32 0.0, %v6474
        %v6476 = vpop.f32.mrf.mxu0
        %6477 = vmatprep.mubr.bf16.mxu0 %v6140
        %6478 = vmatmul.mubr.bf16.gmra.mxu0 %v6139
        %v6479 = vpop.f32.mrf.mxu0
        %v6480 = vadd.f32 0.0, %v6479
        %v6481 = vpop.f32.mrf.mxu0
        %v6482 = vpop.f32.mrf.mxu0
        %v6483 = vadd.f32 0.0, %v6482
        %v6484 = vpop.f32.mrf.mxu0
        %6485 = vmatprep.mubr.bf16.mxu0 %v6143
        %6486 = vmatmul.mubr.bf16.gmra.mxu0 %v6142
        %v6487 = vpop.f32.mrf.mxu0
        %v6488 = vadd.f32 0.0, %v6487
        %v6489 = vpop.f32.mrf.mxu0
        %v6490 = vpop.f32.mrf.mxu0
        %v6491 = vadd.f32 0.0, %v6490
        %v6492 = vpop.f32.mrf.mxu0
        %6493 = vdwg.mxu0
        %6494 = vmatprep.subr.bf16.mxu0 0
        %6495 = vmatpush1.bf16.msra.mxu0 0
        %6496 = vmatprep.subr.bf16.mxu0 0
        %6497 = vmatpush1.bf16.msra.mxu0 0
        %6498 = vmatprep.subr.bf16.mxu0 0
        %6499 = vmatpush1.bf16.msra.mxu0 0
        %6500 = vmatprep.subr.bf16.mxu0 0
        %6501 = vmatpush1.bf16.msra.mxu0 0
        %6502 = vmatprep.subr.bf16.mxu0 0
        %6503 = vmatpush1.bf16.msra.mxu0 0
        %6504 = vmatprep.subr.bf16.mxu0 0
        %6505 = vmatpush1.bf16.msra.mxu0 0
        %6506 = vmatprep.subr.bf16.mxu0 0
        %6507 = vmatpush1.bf16.msra.mxu0 %v6266
        %6508 = vmatprep.subr.bf16.mxu0 0
        %6509 = vmatpush1.bf16.msra.mxu0 %v6265
        %6510 = vmatprep.subr.bf16.mxu0 0
        %6511 = vmatpush2.bf16.msra.mxu0 0
        %6512 = vmatprep.subr.bf16.mxu0 0
        %6513 = vmatpush2.bf16.msra.mxu0 0
        %6514 = vmatprep.subr.bf16.mxu0 0
        %6515 = vmatpush2.bf16.msra.mxu0 0
        %6516 = vmatprep.subr.bf16.mxu0 0
        %6517 = vmatpush2.bf16.msra.mxu0 0
        %6518 = vmatprep.subr.bf16.mxu0 0
        %6519 = vmatpush2.bf16.msra.mxu0 0
        %6520 = vmatprep.subr.bf16.mxu0 0
        %6521 = vmatpush2.bf16.msra.mxu0 0
        %6522 = vmatprep.subr.bf16.mxu0 0
        %6523 = vmatpush2.bf16.msra.mxu0 0
        %6524 = vmatprep.subr.bf16.mxu0 0
        %6525 = vmatpush2.bf16.msra.mxu0 0
        %6526 = vmatprep.mubr.bf16.mxu0 0
        %6527 = vmatmul.mubr.bf16.gmra.mxu0 %v6286
        %v6528 = vpop.f32.mrf.mxu0
        %v6529 = vadd.f32 %v6368, %v6528
        %v6530 = vpop.f32.mrf.mxu0
        %v6531 = vpop.f32.mrf.mxu0
        %v6532 = vadd.f32 %v6371, %v6531
        %v6533 = vpop.f32.mrf.mxu0
        %6534 = vmatprep.mubr.bf16.mxu0 0
        %6535 = vmatmul.mubr.bf16.gmra.mxu0 %v6289
        %v6536 = vpop.f32.mrf.mxu0
        %v6537 = vadd.f32 %v6376, %v6536
        %v6538 = vpop.f32.mrf.mxu0
        %v6539 = vpop.f32.mrf.mxu0
        %v6540 = vadd.f32 %v6379, %v6539
        %v6541 = vpop.f32.mrf.mxu0
        %6542 = vmatprep.mubr.bf16.mxu0 0
        %6543 = vmatmul.mubr.bf16.gmra.mxu0 %v6292
        %v6544 = vpop.f32.mrf.mxu0
        %v6545 = vadd.f32 %v6384, %v6544
        %v6546 = vpop.f32.mrf.mxu0
        %v6547 = vpop.f32.mrf.mxu0
        %v6548 = vadd.f32 %v6387, %v6547
        %v6549 = vpop.f32.mrf.mxu0
        %6550 = vmatprep.mubr.bf16.mxu0 0
        %6551 = vmatmul.mubr.bf16.gmra.mxu0 %v6295
        %v6552 = vpop.f32.mrf.mxu0
        %v6553 = vadd.f32 %v6392, %v6552
        %v6554 = vpop.f32.mrf.mxu0
        %v6555 = vpop.f32.mrf.mxu0
        %v6556 = vadd.f32 %v6395, %v6555
        %v6557 = vpop.f32.mrf.mxu0
        %6558 = vmatprep.mubr.bf16.mxu0 0
        %6559 = vmatmul.mubr.bf16.gmra.mxu0 %v6298
        %v6560 = vpop.f32.mrf.mxu0
        %v6561 = vadd.f32 %v6400, %v6560
        %v6562 = vpop.f32.mrf.mxu0
        %v6563 = vpop.f32.mrf.mxu0
        %v6564 = vadd.f32 %v6403, %v6563
        %v6565 = vpop.f32.mrf.mxu0
        %6566 = vmatprep.mubr.bf16.mxu0 0
        %6567 = vmatmul.mubr.bf16.gmra.mxu0 %v6301
        %v6568 = vpop.f32.mrf.mxu0
        %v6569 = vadd.f32 %v6408, %v6568
        %v6570 = vpop.f32.mrf.mxu0
        %v6571 = vpop.f32.mrf.mxu0
        %v6572 = vadd.f32 %v6411, %v6571
        %v6573 = vpop.f32.mrf.mxu0
        %6574 = vmatprep.mubr.bf16.mxu0 0
        %6575 = vmatmul.mubr.bf16.gmra.mxu0 %v6304
        %v6576 = vpop.f32.mrf.mxu0
        %v6577 = vadd.f32 %v6416, %v6576
        %v6578 = vpop.f32.mrf.mxu0
        %v6579 = vpop.f32.mrf.mxu0
        %v6580 = vadd.f32 %v6419, %v6579
        %v6581 = vpop.f32.mrf.mxu0
        %6582 = vmatprep.mubr.bf16.mxu0 0
        %6583 = vmatmul.mubr.bf16.gmra.mxu0 %v6307
        %v6584 = vpop.f32.mrf.mxu0
        %v6585 = vadd.f32 %v6424, %v6584
        %v6586 = vpop.f32.mrf.mxu0
        %v6587 = vpop.f32.mrf.mxu0
        %v6588 = vadd.f32 %v6427, %v6587
        %v6589 = vpop.f32.mrf.mxu0
        %6590 = vmatprep.mubr.bf16.mxu0 0
        %6591 = vmatmul.mubr.bf16.gmra.mxu0 %v6310
        %v6592 = vpop.f32.mrf.mxu0
        %v6593 = vadd.f32 %v6432, %v6592
        %v6594 = vpop.f32.mrf.mxu0
        %v6595 = vpop.f32.mrf.mxu0
        %v6596 = vadd.f32 %v6435, %v6595
        %v6597 = vpop.f32.mrf.mxu0
        %6598 = vmatprep.mubr.bf16.mxu0 0
        %6599 = vmatmul.mubr.bf16.gmra.mxu0 %v6313
        %v6600 = vpop.f32.mrf.mxu0
        %v6601 = vadd.f32 %v6440, %v6600
        %v6602 = vpop.f32.mrf.mxu0
        %v6603 = vpop.f32.mrf.mxu0
        %v6604 = vadd.f32 %v6443, %v6603
        %v6605 = vpop.f32.mrf.mxu0
        %6606 = vmatprep.mubr.bf16.mxu0 0
        %6607 = vmatmul.mubr.bf16.gmra.mxu0 %v6316
        %v6608 = vpop.f32.mrf.mxu0
        %v6609 = vadd.f32 %v6448, %v6608
        %v6610 = vpop.f32.mrf.mxu0
        %v6611 = vpop.f32.mrf.mxu0
        %v6612 = vadd.f32 %v6451, %v6611
        %v6613 = vpop.f32.mrf.mxu0
        %6614 = vmatprep.mubr.bf16.mxu0 0
        %6615 = vmatmul.mubr.bf16.gmra.mxu0 %v6319
        %v6616 = vpop.f32.mrf.mxu0
        %v6617 = vadd.f32 %v6456, %v6616
        %v6618 = vpop.f32.mrf.mxu0
        %v6619 = vpop.f32.mrf.mxu0
        %v6620 = vadd.f32 %v6459, %v6619
        %v6621 = vpop.f32.mrf.mxu0
        %6622 = vmatprep.mubr.bf16.mxu0 0
        %6623 = vmatmul.mubr.bf16.gmra.mxu0 %v6322
        %v6624 = vpop.f32.mrf.mxu0
        %v6625 = vadd.f32 %v6464, %v6624
        %v6626 = vpop.f32.mrf.mxu0
        %v6627 = vpop.f32.mrf.mxu0
        %v6628 = vadd.f32 %v6467, %v6627
        %v6629 = vpop.f32.mrf.mxu0
        %6630 = vmatprep.mubr.bf16.mxu0 0
        %6631 = vmatmul.mubr.bf16.gmra.mxu0 %v6325
        %v6632 = vpop.f32.mrf.mxu0
        %v6633 = vadd.f32 %v6472, %v6632
        %v6634 = vpop.f32.mrf.mxu0
        %v6635 = vpop.f32.mrf.mxu0
        %v6636 = vadd.f32 %v6475, %v6635
        %v6637 = vpop.f32.mrf.mxu0
        %6638 = vmatprep.mubr.bf16.mxu0 0
        %6639 = vmatmul.mubr.bf16.gmra.mxu0 %v6328
        %v6640 = vpop.f32.mrf.mxu0
        %v6641 = vadd.f32 %v6480, %v6640
        %v6642 = vpop.f32.mrf.mxu0
        %v6643 = vpop.f32.mrf.mxu0
        %v6644 = vadd.f32 %v6483, %v6643
        %v6645 = vpop.f32.mrf.mxu0
        %6646 = vmatprep.mubr.bf16.mxu0 0
        %6647 = vmatmul.mubr.bf16.gmra.mxu0 %v6331
        %v6648 = vpop.f32.mrf.mxu0
        %v6649 = vadd.f32 %v6488, %v6648
        %v6650 = vpop.f32.mrf.mxu0
        %v6651 = vpop.f32.mrf.mxu0
        %v6652 = vadd.f32 %v6491, %v6651
        %v6653 = vpop.f32.mrf.mxu0
        %6654 = vdwg.mxu0
        %v6655 = vld [vmem:[%s641 + $0x1] sm:$0xff]
        %v6656 = vld [vmem:[%s641 + $0x9] sm:$0xff]
        %v6657 = vld [vmem:[%s641 + $0x19] sm:$0xff]
        %v6658 = vld [vmem:[%s641 + $0x21] sm:$0xff]
        %v6659 = vld [vmem:[%s641 + $0x31] sm:$0xff]
        %v6660 = vld [vmem:[%s641 + $0x39] sm:$0xff]
        %v6661 = vld [vmem:[%s641 + $0x49] sm:$0xff]
        %v6662 = vld [vmem:[%s641 + $0x51] sm:$0xff]
        %v6663 = vld [vmem:[%s641 + $0x61] sm:$0xff]
        %v6664 = vld [vmem:[%s641 + $0x69] sm:$0xff]
        %v6665 = vld [vmem:[%s641 + $0x79] sm:$0xff]
        %v6666 = vld [vmem:[%s641 + $0x81] sm:$0xff]
        %v6667 = vld [vmem:[%s641 + $0x91] sm:$0xff]
        %v6668 = vld [vmem:[%s641 + $0x99] sm:$0xff]
        %v6669 = vld [vmem:[%s641 + $0xa9] sm:$0xff]
        %v6670 = vld [vmem:[%s641 + $0xb1] sm:$0xff]
        %v6671 = vld [vmem:[%s641 + $0xc1] sm:$0xff]
        %v6672 = vld [vmem:[%s641 + $0xc9] sm:$0xff]
        %v6673 = vld [vmem:[%s641 + $0xd9] sm:$0xff]
        %v6674 = vld [vmem:[%s641 + $0xe1] sm:$0xff]
        %v6675 = vld [vmem:[%s641 + $0xf1] sm:$0xff]
        %v6676 = vld [vmem:[%s641 + $0xf9] sm:$0xff]
        %v6677 = vld [vmem:[%s641 + $0x109] sm:$0xff]
        %v6678 = vld [vmem:[%s641 + $0x111] sm:$0xff]
        %v6679 = vld [vmem:[%s641 + $0x121] sm:$0xff]
        %v6680 = vld [vmem:[%s641 + $0x129] sm:$0xff]
        %v6681 = vld [vmem:[%s641 + $0x139] sm:$0xff]
        %v6682 = vld [vmem:[%s641 + $0x141] sm:$0xff]
        %v6683 = vld [vmem:[%s641 + $0x151] sm:$0xff]
        %v6684 = vld [vmem:[%s641 + $0x159] sm:$0xff]
        %v6685 = vld [vmem:[%s641 + $0x169] sm:$0xff]
        %v6686 = vld [vmem:[%s641 + $0x171] sm:$0xff]
        %v6687 = vadd.f32 %v6655, %v6529
        %v6688 = vadd.f32 %v6656, %v6532
        %v6689 = vadd.f32 %v6657, %v6537
        %v6690 = vadd.f32 %v6658, %v6540
        %v6691 = vadd.f32 %v6659, %v6545
        %v6692 = vadd.f32 %v6660, %v6548
        %v6693 = vadd.f32 %v6661, %v6553
        %v6694 = vadd.f32 %v6662, %v6556
        %v6695 = vadd.f32 %v6663, %v6561
        %v6696 = vadd.f32 %v6664, %v6564
        %v6697 = vadd.f32 %v6665, %v6569
        %v6698 = vadd.f32 %v6666, %v6572
        %v6699 = vadd.f32 %v6667, %v6577
        %v6700 = vadd.f32 %v6668, %v6580
        %v6701 = vadd.f32 %v6669, %v6585
        %v6702 = vadd.f32 %v6670, %v6588
        %v6703 = vadd.f32 %v6671, %v6593
        %v6704 = vadd.f32 %v6672, %v6596
        %v6705 = vadd.f32 %v6673, %v6601
        %v6706 = vadd.f32 %v6674, %v6604
        %v6707 = vadd.f32 %v6675, %v6609
        %v6708 = vadd.f32 %v6676, %v6612
        %v6709 = vadd.f32 %v6677, %v6617
        %v6710 = vadd.f32 %v6678, %v6620
        %v6711 = vadd.f32 %v6679, %v6625
        %v6712 = vadd.f32 %v6680, %v6628
        %v6713 = vadd.f32 %v6681, %v6633
        %v6714 = vadd.f32 %v6682, %v6636
        %v6715 = vadd.f32 %v6683, %v6641
        %v6716 = vadd.f32 %v6684, %v6644
        %v6717 = vadd.f32 %v6685, %v6649
        %v6718 = vadd.f32 %v6686, %v6652
        %v6719 = vmax.f32 %v6687, 0.0
        %v6720 = vmax.f32 %v6688, 0.0
        %v6721 = vmax.f32 %v6689, 0.0
        %v6722 = vmax.f32 %v6690, 0.0
        %v6723 = vmax.f32 %v6691, 0.0
        %v6724 = vmax.f32 %v6692, 0.0
        %v6725 = vmax.f32 %v6693, 0.0
        %v6726 = vmax.f32 %v6694, 0.0
        %v6727 = vmax.f32 %v6695, 0.0
        %v6728 = vmax.f32 %v6696, 0.0
        %v6729 = vmax.f32 %v6697, 0.0
        %v6730 = vmax.f32 %v6698, 0.0
        %v6731 = vmax.f32 %v6699, 0.0
        %v6732 = vmax.f32 %v6700, 0.0
        %v6733 = vmax.f32 %v6701, 0.0
        %v6734 = vmax.f32 %v6702, 0.0
        %v6735 = vmax.f32 %v6703, 0.0
        %v6736 = vmax.f32 %v6704, 0.0
        %v6737 = vmax.f32 %v6705, 0.0
        %v6738 = vmax.f32 %v6706, 0.0
        %v6739 = vmax.f32 %v6707, 0.0
        %v6740 = vmax.f32 %v6708, 0.0
        %v6741 = vmax.f32 %v6709, 0.0
        %v6742 = vmax.f32 %v6710, 0.0
        %v6743 = vmax.f32 %v6711, 0.0
        %v6744 = vmax.f32 %v6712, 0.0
        %v6745 = vmax.f32 %v6713, 0.0
        %v6746 = vmax.f32 %v6714, 0.0
        %v6747 = vmax.f32 %v6715, 0.0
        %v6748 = vmax.f32 %v6716, 0.0
        %v6749 = vmax.f32 %v6717, 0.0
        %v6750 = vmax.f32 %v6718, 0.0
        %6751 = vst.msk [vmem:[%s244] sm:$0xff] %vm386, %v6719
        %6752 = vst.msk [vmem:[%s244 + $0x8] sm:$0xff] %vm386, %v6720
        %6753 = vst.msk [vmem:[%s244 + $0x10] sm:$0xff] %vm386, %v6721
        %6754 = vst.msk [vmem:[%s244 + $0x18] sm:$0xff] %vm386, %v6722
        %6755 = vst.msk [vmem:[%s244 + $0x20] sm:$0xff] %vm386, %v6723
        %6756 = vst.msk [vmem:[%s244 + $0x28] sm:$0xff] %vm386, %v6724
        %6757 = vst.msk [vmem:[%s244 + $0x30] sm:$0xff] %vm386, %v6725
        %6758 = vst.msk [vmem:[%s244 + $0x38] sm:$0xff] %vm386, %v6726
        %6759 = vst.msk [vmem:[%s244 + $0x40] sm:$0xff] %vm386, %v6727
        %6760 = vst.msk [vmem:[%s244 + $0x48] sm:$0xff] %vm386, %v6728
        %6761 = vst.msk [vmem:[%s244 + $0x50] sm:$0xff] %vm386, %v6729
        %6762 = vst.msk [vmem:[%s244 + $0x58] sm:$0xff] %vm386, %v6730
        %6763 = vst.msk [vmem:[%s244 + $0x60] sm:$0xff] %vm386, %v6731
        %6764 = vst.msk [vmem:[%s244 + $0x68] sm:$0xff] %vm386, %v6732
        %6765 = vst.msk [vmem:[%s244 + $0x70] sm:$0xff] %vm386, %v6733
        %6766 = vst.msk [vmem:[%s244 + $0x78] sm:$0xff] %vm386, %v6734
        %6767 = vst.msk [vmem:[%s244 + $0x80] sm:$0xff] %vm386, %v6735
        %6768 = vst.msk [vmem:[%s244 + $0x88] sm:$0xff] %vm386, %v6736
        %6769 = vst.msk [vmem:[%s244 + $0x90] sm:$0xff] %vm386, %v6737
        %6770 = vst.msk [vmem:[%s244 + $0x98] sm:$0xff] %vm386, %v6738
        %6771 = vst.msk [vmem:[%s244 + $0xa0] sm:$0xff] %vm386, %v6739
        %6772 = vst.msk [vmem:[%s244 + $0xa8] sm:$0xff] %vm386, %v6740
        %6773 = vst.msk [vmem:[%s244 + $0xb0] sm:$0xff] %vm386, %v6741
        %6774 = vst.msk [vmem:[%s244 + $0xb8] sm:$0xff] %vm386, %v6742
        %6775 = vst.msk [vmem:[%s244 + $0xc0] sm:$0xff] %vm386, %v6743
        %6776 = vst.msk [vmem:[%s244 + $0xc8] sm:$0xff] %vm386, %v6744
        %6777 = vst.msk [vmem:[%s244 + $0xd0] sm:$0xff] %vm386, %v6745
        %6778 = vst.msk [vmem:[%s244 + $0xd8] sm:$0xff] %vm386, %v6746
        %6779 = vst.msk [vmem:[%s244 + $0xe0] sm:$0xff] %vm386, %v6747
        %6780 = vst.msk [vmem:[%s244 + $0xe8] sm:$0xff] %vm386, %v6748
        %6781 = vst.msk [vmem:[%s244 + $0xf0] sm:$0xff] %vm386, %v6749
        %6782 = vst.msk [vmem:[%s244 + $0xf8] sm:$0xff] %vm386, %v6750
        %s6783 = sand.u32 %s159, 1
        %s6784 = scalar_lea.sflag [#allocation6], %s6783
        %s6785 = sand.u32 %s159, 1
        %s6786 = smul.addr %s6785, 256
        %s6787 = scalar_lea.vmem [#allocation5], %s6786
        // Predicated region
        $region45: #{tpu_custom_call.1} parent=43 // pred_check
          %p6788 = pneg %p169
        $region46: #{tpu_custom_call.1} parent=43 // pred_check_branch
          %6790 = sbr.rel (%p6788) target = $region48
        $region47: #{tpu_custom_call.1} parent=43 // pred_region
          %s6792 = ssub.s32 4096, 4096
          %6793 = vsyncadd %s6784, %s6792
          %s6794 = smul.addr %s20, 32
          %s6795 = smul.addr %s6794, 128
          %s6796 = scalar_lea.hbm %s6, %s6795
          %s6797 = sshll.u32 %s6787, 4
          %s6798 = int_to_ptr.vmem [resolvable:$true] %s6797
          %6803 = dma.vmem_to_hbm [thread:$0]  %s6798, 4096, %s6796, %s6784, 128, 128, 8
        $region48: #{tpu_custom_call.1} parent=43 // pred_fallthru
          _
      $region44: #{tpu_custom_call.1} parent=5 // pred_fallthru
        _
      %p6804 = scmp.le.s32.totalorder 2, %s15
      // Predicated region
      $region49: #{tpu_custom_call.1} parent=5 // pred_check
        %p6805 = pneg %p6804
      $region50: #{tpu_custom_call.1} parent=5 // pred_check_branch
        %6807 = sbr.rel (%p6805) target = $region52
      $region51: #{tpu_custom_call.1} parent=5 // pred_region
        %s6808 = ssub.s32 %s15, 2
        // Predicated region
        $region53: #{tpu_custom_call.1} parent=51 // pred_check
          %p6809 = pneg %p175
        $region54: #{tpu_custom_call.1} parent=51 // pred_check_branch
          %6811 = sbr.rel (%p6809) target = $region56
        $region55: #{tpu_custom_call.1} parent=51 // pred_region
          %s6812 = sand.u32 %s160, 1
          %s6813 = scalar_lea.sflag [#allocation6], %s6812
          %s6814 = sand.u32 %s160, 1
          %s6815 = smul.addr %s6814, 256
          %s6816 = scalar_lea.vmem [#allocation5], %s6815
          %6817 = dma.done %s6813, 4096
        $region56: #{tpu_custom_call.1} parent=51 // pred_fallthru
          _
      $region52: #{tpu_custom_call.1} parent=5 // pred_fallthru
        _
    $region6: #{tpu_custom_call.1} parent=1 // loop_footer
      %s19 = sadd.s32 1, %s15
    $region7: #{tpu_custom_call.1} parent=1 // loop_footer_branch
      %14 = sbr.rel target = $region3
    $region8: #{tpu_custom_call.1} parent=1 // loop_exit
      _
    %6818 = vsyncpa [#allocation6], 1
    %s6819 = scalar_lea.sflag [#allocation6], 1
    %6820 = vsyncpa %s6819, 1

</llo_original>
